<compile_context>
chip_gen: v7x
topology: tpu7x:2x2x1
jax: 0.10.0
libtpu: 0.0.40
codegen_flags: <defaults>
</compile_context>

<pallas_src>
import functools

import jax
import jax.numpy as jnp
import numpy as np
from jax.experimental import pallas as pl
from jax.experimental.pallas import tpu as pltpu


# ---------------------------------------------------------------------------
# Fused multi-layer ConvLSTM kernel
# ---------------------------------------------------------------------------
def _make_fused_kernel(num_layers, T, B, L, Hs, Cins, Ks, mxu_dtype):
    """Ref layout (all whole-array VMEM blocks):
         inputs : x_col_all, wx0, then per layer: w_fused, bias, h0, c0, masks
         outputs: allh_last, then per layer: hT, cT
         scratch: xproj (4H0, T*B*L) f32
    """
    BL = B * L
    n_in = 2 + 5 * num_layers
    n_out = 1 + 2 * num_layers

    def kernel(*refs):
        in_refs = refs[:n_in]
        out_refs = refs[n_in:n_in + n_out]
        xproj_ref = refs[n_in + n_out]            # VMEM scratch (4H0, T*BL) f32

        x_col_ref, wx0_ref = in_refs[0], in_refs[1]
        allh_ref = out_refs[0]

        def rolled_taps(v, K, p, masks):
            # v: (C, BL) f32.  Tap k is v shifted by (k - p) inside every
            # length-L lane segment, zeroed where the conv window leaves
            # [0, L) ("same" zero padding of Conv1d).  The lane rotation goes
            # to the XLU (free slot); the mask kills positions that wrapped
            # across batch boundaries / sequence edges.  The K taps are
            # concatenated along sublanes so ONE wide matmul consumes them.
            taps = []
            for k in range(K):
                s = k - p
                if s == 0:
                    taps.append(v)
                else:
                    taps.append(pltpu.roll(v, shift=(-s) % BL, axis=1) * masks[k])
            return taps[0] if K == 1 else jnp.concatenate(taps, axis=0)

        # ---- hoisted per-layer loads: weights, bias broadcast, state, masks ----
        layers = []
        for l in range(num_layers):
            base = 2 + 5 * l
            st = {
                "w": in_refs[base][...],          # bf16 fused weight matrix
                "h": in_refs[base + 2][...],      # f32 (H, BL)
                "c": in_refs[base + 3][...],      # f32 (H, BL)
                "m": in_refs[base + 4][...],      # f32 (K, 1, BL)
            }
            if l == 0:
                st["b"] = in_refs[base + 1][...]  # folded into xproj below
            else:
                st["b_bl"] = jnp.broadcast_to(in_refs[base + 1][...],
                                              (4 * Hs[l], BL))
            layers.append(st)

        # ---- layer-0 input projection for ALL time steps: one MXU matmul ----
        # Non-recurrent, so it is off the serial h->h critical path; the bias
        # is folded in here; the result lives in VMEM scratch and is sliced
        # lane-aligned per step.
        xproj_ref[...] = (
            jnp.dot(wx0_ref[...], x_col_ref[...],
                    preferred_element_type=jnp.float32)
            + jnp.broadcast_to(layers[0]["b"], (4 * Hs[0], T * BL)))

        # T is small in the demo -> fully unrolled recurrence.
        # TODO(synk): for long sequences, switch to lax.fori_loop(unroll=2)
        # with h/c in VMEM scratch and move T to a chunked "arbitrary" grid
        # axis (blocked x_col/allh BlockSpecs) to restore double-buffering.
        for t in range(T):
            x_in = None                # previous layer's hidden at time t (f32)
            for l in range(num_layers):
                st = layers[l]
                H, K = Hs[l], Ks[l]
                p = (K - 1) // 2

                h_taps = rolled_taps(st["h"], K, p, st["m"])    # (K*H, BL) f32
                if l == 0:
                    # Recurrent conv only; input projection was hoisted.
                    acc = (xproj_ref[:, t * BL:(t + 1) * BL]
                           + jnp.dot(st["w"], h_taps.astype(mxu_dtype),
                                     preferred_element_type=jnp.float32))
                else:
                    # One fused matmul over [input taps ; recurrent taps].
                    x_taps = rolled_taps(x_in, K, p, st["m"])   # (K*Cin, BL)
                    operand = jnp.concatenate([x_taps, h_taps],
                                              axis=0).astype(mxu_dtype)
                    acc = (jnp.dot(st["w"], operand,
                                   preferred_element_type=jnp.float32)
                           + st["b_bl"])

                # Gate math in f32 (v5e has no bf16 VPU/EUP).  i/f/o sigmoids
                # via the tanh identity on the contiguous 3H slab: one EUP pass.
                ifo = 0.5 * (1.0 + jnp.tanh(0.5 * acc[0:3 * H]))
                i_g = ifo[0:H]
                f_g = ifo[H:2 * H]
                o_g = ifo[2 * H:3 * H]
                g_g = jnp.tanh(acc[3 * H:4 * H])

                c_new = f_g * st["c"] + i_g * g_g
                h_new = o_g * jnp.tanh(c_new)
                st["h"], st["c"] = h_new, c_new
                x_in = h_new

            # Only the last layer's hidden state goes to HBM each step
            # (full-width, unmasked lane-dense store).
            allh_ref[t] = x_in

        for l in range(num_layers):
            out_refs[1 + 2 * l][...] = layers[l]["h"]
            out_refs[2 + 2 * l][...] = layers[l]["c"]

    return kernel


# ---------------------------------------------------------------------------
# MultiConvLSTM forward (layout plumbing in plain JAX; hot path in the kernel)
# ---------------------------------------------------------------------------
def multi_conv_lstm_forward(x, hidden_state, params, filter_sizes):
    """x: (B, T, C0, L); hidden_state: list of (h, c) each (B, H_l, L);
       params: list of (w, b), w: (4H_l, Cin_l + H_l, K_l) PyTorch Conv1d O,I,K.
       Returns (next_hidden, out_seq) with out_seq: (T, B, H_last, L)."""
    B, T, C0, L = x.shape
    num_layers = len(params)
    Hs = [int(params[l][0].shape[0]) // 4 for l in range(num_layers)]
    Cins = [C0] + Hs[:-1]
    Ks = [int(k) for k in filter_sizes]
    for l in range(num_layers):
        assert Ks[l] % 2 == 1, "filter_size must be odd ('same' Conv1d padding)"
        assert Hs[l] % 8 == 0, "num_features must be a multiple of 8 (aligned gate split)"
    BL = B * L
    mxu_dtype = jnp.bfloat16   # MXU operands; accumulation & gates stay f32

    # ---- layer-0 input: im2col, batch folded into lanes, all T flattened ----
    K0, p0 = Ks[0], (Ks[0] - 1) // 2
    x_tm = jnp.transpose(x, (1, 2, 0, 3)).astype(jnp.float32)          # (T,C0,B,L)
    x_pad = jnp.pad(x_tm, ((0, 0), (0, 0), (0, 0), (p0, p0)))
    x_col = jnp.stack([x_pad[..., k:k + L] for k in range(K0)], axis=1)  # (T,K,C0,B,L)
    x_col = x_col.reshape(T, K0 * C0, BL)                              # (T,K*C0,B*L)
    KC = K0 * C0
    KCp = ((KC + 7) // 8) * 8        # pad contraction dim to a sublane multiple
    # Flatten time into the lane axis so the whole projection is ONE matmul
    # with N = T*B*L, done once before the recurrence.
    x_col_all = jnp.transpose(x_col, (1, 0, 2)).reshape(KC, T * BL)
    if KCp != KC:
        x_col_all = jnp.pad(x_col_all, ((0, KCp - KC), (0, 0)))
    x_col_all = x_col_all.astype(mxu_dtype)

    in_arrays = [x_col_all, None]    # slot 1 = layer-0 input weights (filled below)
    for l in range(num_layers):
        w, b = params[l]
        H, K, Cin = Hs[l], Ks[l], Cins[l]
        p = (K - 1) // 2
        wx, wh = w[:, :Cin, :], w[:, Cin:, :]
        # Concatenate taps host-side -> single wide-contraction weight matrix.
        # Contraction-row order is (tap k, channel), matching the kernel's
        # concatenated rolled views.
        wx_cat = jnp.transpose(wx, (0, 2, 1)).reshape(4 * H, K * Cin)
        wh_cat = jnp.transpose(wh, (0, 2, 1)).reshape(4 * H, K * H)
        if l == 0:
            wx0 = wx_cat
            if KCp != KC:
                wx0 = jnp.pad(wx0, ((0, 0), (0, KCp - KC)))
            in_arrays[1] = wx0.astype(mxu_dtype)
            w_fused = wh_cat                               # recurrent conv only
        else:
            w_fused = jnp.concatenate([wx_cat, wh_cat], axis=1)  # (4H, K*(Cin+H))
        h0, c0 = hidden_state[l]
        h0_a = jnp.transpose(h0, (1, 0, 2)).reshape(H, BL).astype(jnp.float32)
        c0_a = jnp.transpose(c0, (1, 0, 2)).reshape(H, BL).astype(jnp.float32)
        # Validity masks for the rolled hidden views:
        #   masks[k, 0, b*L + j] = 1  iff  0 <= j + (k - p) < L
        j = np.arange(L)
        m = np.stack([((j + (k - p) >= 0) & (j + (k - p) < L)).astype(np.float32)
                      for k in range(K)], axis=0)                       # (K, L)
        mask_a = jnp.asarray(np.tile(m, (1, B)).reshape(K, 1, BL))
        in_arrays += [w_fused.astype(mxu_dtype),
                      b.reshape(4 * H, 1).astype(jnp.float32),
                      h0_a, c0_a, mask_a]

    out_shape = [jax.ShapeDtypeStruct((T, Hs[-1], BL), jnp.float32)]
    for l in range(num_layers):
        out_shape += [jax.ShapeDtypeStruct((Hs[l], BL), jnp.float32),
                      jax.ShapeDtypeStruct((Hs[l], BL), jnp.float32)]

    def _whole(shape):
        nd = len(shape)
        return pl.BlockSpec(shape, lambda i, _nd=nd: (0,) * _nd)

    kernel = _make_fused_kernel(num_layers, T, B, L, Hs, Cins, Ks, mxu_dtype)
    outs = pl.pallas_call(
        kernel,
        out_shape=tuple(out_shape),
        grid_spec=pltpu.PrefetchScalarGridSpec(
            num_scalar_prefetch=0,
            grid=(1,),                   # whole recurrence in one invocation
            in_specs=[_whole(a.shape) for a in in_arrays],
            out_specs=[_whole(s.shape) for s in out_shape],
            scratch_shapes=[pltpu.VMEM((4 * Hs[0], T * BL), jnp.float32)],
        ),
        # For production sizes: add a leading batch-chunk grid axis marked
        # "parallel" (feeds both v7x TensorCores), chunk T as an "arbitrary"
        # axis, and set vmem_limit_bytes per generation (16/32/32 MiB defaults).
        compiler_params=pltpu.CompilerParams(
            dimension_semantics=("arbitrary",)),
    )(*in_arrays)

    allh = outs[0]                                                   # (T,H,B*L)
    out_seq = jnp.transpose(allh.reshape(T, Hs[-1], B, L), (0, 2, 1, 3))
    next_hidden = []
    for l in range(num_layers):
        hT = jnp.transpose(outs[1 + 2 * l].reshape(Hs[l], B, L), (1, 0, 2))
        cT = jnp.transpose(outs[2 + 2 * l].reshape(Hs[l], B, L), (1, 0, 2))
        next_hidden.append((hT, cT))
    return next_hidden, out_seq


# ---------------------------------------------------------------------------
# Pure-JAX reference (mirrors the PyTorch module) for a correctness check
# ---------------------------------------------------------------------------
def _ref_cell(x, h, c, w, b, K):
    p = (K - 1) // 2
    H = h.shape[1]
    combined = jnp.concatenate([x, h], axis=1)        # (B, Cin+H, L)
    A = jax.lax.conv_general_dilated(
        combined, w, window_strides=(1,), padding=[(p, p)],
        dimension_numbers=("NCH", "OIH", "NCH")) + b[None, :, None]
    ai, af, ao, ag = A[:, :H], A[:, H:2 * H], A[:, 2 * H:3 * H], A[:, 3 * H:]
    i = jax.nn.sigmoid(ai)
    f = jax.nn.sigmoid(af)
    o = jax.nn.sigmoid(ao)
    g = jnp.tanh(ag)
    c2 = f * c + i * g
    h2 = o * jnp.tanh(c2)
    return h2, c2


def _ref_forward(x, hidden_state, params, filter_sizes):
    current = jnp.transpose(x, (1, 0, 2, 3))
    T = current.shape[0]
    next_hidden = []
    for l, (w, b) in enumerate(params):
        h, c = hidden_state[l]
        outs = []
        for t in range(T):
            h, c = _ref_cell(current[t], h, c, w, b, filter_sizes[l])
            outs.append(h)
        next_hidden.append((h, c))
        current = jnp.stack(outs, axis=0)
    return next_hidden, current


# ---------------------------------------------------------------------------
if __name__ == "__main__":
    # Small, module-consistent shapes; B*L = 128 makes the kernel lane-dense.
    B, T, C0, L = 2, 8, 4, 64          # batch, seq_len, input channels, shape
    num_layers = 2
    num_features = [32, 32]            # hidden channels per layer
    filter_sizes = [3, 3]              # odd -> "same" padding like the module

    key = jax.random.PRNGKey(0)
    keys = jax.random.split(key, 1 + 2 * num_layers)

    # Deterministic parameters (Conv1d weight: (4H, Cin+H, K), bias: (4H,))
    params = []
    in_ch = C0
    for l in range(num_layers):
        H = num_features[l]
        K = filter_sizes[l]
        w = 0.1 * jax.random.normal(keys[1 + 2 * l], (4 * H, in_ch + H, K),
                                    dtype=jnp.float32)
        b = 0.1 * jax.random.normal(keys[2 + 2 * l], (4 * H,), dtype=jnp.float32)
        params.append((w, b))
        in_ch = H

    x = jax.random.normal(keys[0], (B, T, C0, L), dtype=jnp.float32)

    # init_hidden: zeros, like the PyTorch module
    hidden_state = [
        (jnp.zeros((B, num_features[l], L), jnp.float32),
         jnp.zeros((B, num_features[l], L), jnp.float32))
        for l in range(num_layers)
    ]

    fwd = jax.jit(functools.partial(multi_conv_lstm_forward,
                                    filter_sizes=filter_sizes))
    next_hidden, out_seq = fwd(x, hidden_state, params)
    out_seq = jax.block_until_ready(out_seq)
    for h, c in next_hidden:
        jax.block_until_ready(h)
        jax.block_until_ready(c)

    # Sanity check vs. pure-f32 JAX reference of the PyTorch forward.
    # (bf16 MXU operands with f32 accumulation -> slightly relaxed tolerance.)
    ref_hidden, ref_seq = _ref_forward(x, hidden_state, params, filter_sizes)
    np.testing.assert_allclose(np.asarray(out_seq), np.asarray(ref_seq),
                               rtol=3e-2, atol=3e-2)
    for (h, c), (rh, rc) in zip(next_hidden, ref_hidden):
        np.testing.assert_allclose(np.asarray(h), np.asarray(rh),
                                   rtol=3e-2, atol=3e-2)
        np.testing.assert_allclose(np.asarray(c), np.asarray(rc),
                                   rtol=3e-2, atol=3e-2)

    print("KERNEL_OK")
</pallas_src>

<mosaic_0001>
module attributes {stable_mosaic.version = 11 : i64} {
  func.func @kernel(%arg0: i32, %arg1: memref<16x1024xbf16, #tpu.memory_space<vmem>>, %arg2: memref<128x16xbf16, #tpu.memory_space<vmem>>, %arg3: memref<128x96xbf16, #tpu.memory_space<vmem>>, %arg4: memref<128x1xf32, #tpu.memory_space<vmem>>, %arg5: memref<32x128xf32, #tpu.memory_space<vmem>>, %arg6: memref<32x128xf32, #tpu.memory_space<vmem>>, %arg7: memref<3x1x128xf32, #tpu.memory_space<vmem>>, %arg8: memref<128x192xbf16, #tpu.memory_space<vmem>>, %arg9: memref<128x1xf32, #tpu.memory_space<vmem>>, %arg10: memref<32x128xf32, #tpu.memory_space<vmem>>, %arg11: memref<32x128xf32, #tpu.memory_space<vmem>>, %arg12: memref<3x1x128xf32, #tpu.memory_space<vmem>>, %arg13: memref<8x32x128xf32, #tpu.memory_space<vmem>>, %arg14: memref<32x128xf32, #tpu.memory_space<vmem>>, %arg15: memref<32x128xf32, #tpu.memory_space<vmem>>, %arg16: memref<32x128xf32, #tpu.memory_space<vmem>>, %arg17: memref<32x128xf32, #tpu.memory_space<vmem>>, %arg18: memref<128x1024xf32, #tpu.memory_space<vmem>>) attributes {dimension_semantics = [#tpu.dimension_semantics<arbitrary>], iteration_bounds = array<i64: 1>, scalar_prefetch = 0 : i64, scratch_operands = 1 : i64, tpu.core_type = #tpu.core_type<tc>, window_params = [{pipeline_mode = #tpu.pipeline_mode<synchronous>, transform_indices = @transform_0, window_bounds = array<i64: 16, 1024>}, {pipeline_mode = #tpu.pipeline_mode<synchronous>, transform_indices = @transform_1, window_bounds = array<i64: 128, 16>}, {pipeline_mode = #tpu.pipeline_mode<synchronous>, transform_indices = @transform_2, window_bounds = array<i64: 128, 96>}, {pipeline_mode = #tpu.pipeline_mode<synchronous>, transform_indices = @transform_3, window_bounds = array<i64: 128, 1>}, {pipeline_mode = #tpu.pipeline_mode<synchronous>, transform_indices = @transform_4, window_bounds = array<i64: 32, 128>}, {pipeline_mode = #tpu.pipeline_mode<synchronous>, transform_indices = @transform_5, window_bounds = array<i64: 32, 128>}, {pipeline_mode = #tpu.pipeline_mode<synchronous>, transform_indices = @transform_6, window_bounds = array<i64: 3, 1, 128>}, {pipeline_mode = #tpu.pipeline_mode<synchronous>, transform_indices = @transform_7, window_bounds = array<i64: 128, 192>}, {pipeline_mode = #tpu.pipeline_mode<synchronous>, transform_indices = @transform_8, window_bounds = array<i64: 128, 1>}, {pipeline_mode = #tpu.pipeline_mode<synchronous>, transform_indices = @transform_9, window_bounds = array<i64: 32, 128>}, {pipeline_mode = #tpu.pipeline_mode<synchronous>, transform_indices = @transform_10, window_bounds = array<i64: 32, 128>}, {pipeline_mode = #tpu.pipeline_mode<synchronous>, transform_indices = @transform_11, window_bounds = array<i64: 3, 1, 128>}, {pipeline_mode = #tpu.pipeline_mode<synchronous>, transform_indices = @transform_12, window_bounds = array<i64: 8, 32, 128>}, {pipeline_mode = #tpu.pipeline_mode<synchronous>, transform_indices = @transform_13, window_bounds = array<i64: 32, 128>}, {pipeline_mode = #tpu.pipeline_mode<synchronous>, transform_indices = @transform_14, window_bounds = array<i64: 32, 128>}, {pipeline_mode = #tpu.pipeline_mode<synchronous>, transform_indices = @transform_15, window_bounds = array<i64: 32, 128>}, {pipeline_mode = #tpu.pipeline_mode<synchronous>, transform_indices = @transform_16, window_bounds = array<i64: 32, 128>}]} {
    %c0 = arith.constant 0 : index
    %c0_0 = arith.constant 0 : index
    %0 = vector.load %arg3[%c0, %c0_0] : memref<128x96xbf16, #tpu.memory_space<vmem>>, vector<128x96xbf16>
    %c0_1 = arith.constant 0 : index
    %c0_2 = arith.constant 0 : index
    %1 = vector.load %arg5[%c0_1, %c0_2] : memref<32x128xf32, #tpu.memory_space<vmem>>, vector<32x128xf32>
    %c0_3 = arith.constant 0 : index
    %c0_4 = arith.constant 0 : index
    %2 = vector.load %arg6[%c0_3, %c0_4] : memref<32x128xf32, #tpu.memory_space<vmem>>, vector<32x128xf32>
    %c0_5 = arith.constant 0 : index
    %c0_6 = arith.constant 0 : index
    %c0_7 = arith.constant 0 : index
    %3 = vector.load %arg7[%c0_5, %c0_6, %c0_7] : memref<3x1x128xf32, #tpu.memory_space<vmem>>, vector<3x1x128xf32>
    %c0_8 = arith.constant 0 : index
    %c0_9 = arith.constant 0 : index
    %4 = vector.load %arg4[%c0_8, %c0_9] : memref<128x1xf32, #tpu.memory_space<vmem>>, vector<128x1xf32>
    %c0_10 = arith.constant 0 : index
    %c0_11 = arith.constant 0 : index
    %5 = vector.load %arg8[%c0_10, %c0_11] : memref<128x192xbf16, #tpu.memory_space<vmem>>, vector<128x192xbf16>
    %c0_12 = arith.constant 0 : index
    %c0_13 = arith.constant 0 : index
    %6 = vector.load %arg10[%c0_12, %c0_13] : memref<32x128xf32, #tpu.memory_space<vmem>>, vector<32x128xf32>
    %c0_14 = arith.constant 0 : index
    %c0_15 = arith.constant 0 : index
    %7 = vector.load %arg11[%c0_14, %c0_15] : memref<32x128xf32, #tpu.memory_space<vmem>>, vector<32x128xf32>
    %c0_16 = arith.constant 0 : index
    %c0_17 = arith.constant 0 : index
    %c0_18 = arith.constant 0 : index
    %8 = vector.load %arg12[%c0_16, %c0_17, %c0_18] : memref<3x1x128xf32, #tpu.memory_space<vmem>>, vector<3x1x128xf32>
    %c0_19 = arith.constant 0 : index
    %c0_20 = arith.constant 0 : index
    %9 = vector.load %arg9[%c0_19, %c0_20] : memref<128x1xf32, #tpu.memory_space<vmem>>, vector<128x1xf32>
    %10 = vector.shape_cast %9 : vector<128x1xf32> to vector<128x1xf32>
    %11 = vector.broadcast %10 : vector<128x1xf32> to vector<128x128xf32>
    %c0_21 = arith.constant 0 : index
    %c0_22 = arith.constant 0 : index
    %12 = vector.load %arg2[%c0_21, %c0_22] : memref<128x16xbf16, #tpu.memory_space<vmem>>, vector<128x16xbf16>
    %c0_23 = arith.constant 0 : index
    %c0_24 = arith.constant 0 : index
    %13 = vector.load %arg1[%c0_23, %c0_24] : memref<16x1024xbf16, #tpu.memory_space<vmem>>, vector<16x1024xbf16>
    %cst = arith.constant dense<0.000000e+00> : vector<128x1024xf32>
    %14 = tpu.matmul %12, %13, %cst {dimension_numbers = #tpu.dot_dimension_numbers<[1], [0], [0], [1], [0, 0, 1, 1], [], []>} : vector<128x16xbf16>, vector<16x1024xbf16>, vector<128x1024xf32> -> vector<128x1024xf32>
    %15 = vector.shape_cast %4 : vector<128x1xf32> to vector<128x1xf32>
    %16 = vector.broadcast %15 : vector<128x1xf32> to vector<128x1024xf32>
    %17 = arith.addf %14, %16 : vector<128x1024xf32>
    %c0_25 = arith.constant 0 : index
    %c0_26 = arith.constant 0 : index
    %18 = vector.load %arg18[%c0_25, %c0_26] : memref<128x1024xf32, #tpu.memory_space<vmem>>, vector<128x1024xf32>
    tpu.vector_store %arg18[%c0_25, %c0_26], %17 {strides = array<i32>} : memref<128x1024xf32, #tpu.memory_space<vmem>>, vector<128x1024xf32>,
    %c1_i32 = arith.constant 1 : i32
    %19 = tpu.dynamic_rotate %1 by %c1_i32 dim 1 : vector<32x128xf32>, i32 -> vector<32x128xf32>
    %20 = vector.extract_strided_slice %3 {offsets = [0, 0, 0], sizes = [1, 1, 128], strides = [1, 1, 1]} : vector<3x1x128xf32> to vector<1x1x128xf32>
    %21 = vector.shape_cast %20 : vector<1x1x128xf32> to vector<1x128xf32>
    %22 = vector.broadcast %21 : vector<1x128xf32> to vector<32x128xf32>
    %23 = arith.mulf %19, %22 : vector<32x128xf32>
    %c127_i32 = arith.constant 127 : i32
    %24 = tpu.dynamic_rotate %1 by %c127_i32 dim 1 : vector<32x128xf32>, i32 -> vector<32x128xf32>
    %25 = vector.extract_strided_slice %3 {offsets = [2, 0, 0], sizes = [1, 1, 128], strides = [1, 1, 1]} : vector<3x1x128xf32> to vector<1x1x128xf32>
    %26 = vector.shape_cast %25 : vector<1x1x128xf32> to vector<1x128xf32>
    %27 = vector.broadcast %26 : vector<1x128xf32> to vector<32x128xf32>
    %28 = arith.mulf %24, %27 : vector<32x128xf32>
    %29 = tpu.concatenate %23, %1, %28 in 0 : vector<32x128xf32>, vector<32x128xf32>, vector<32x128xf32> -> vector<96x128xf32>
    %c0_27 = arith.constant 0 : index
    %c0_28 = arith.constant 0 : index
    %30 = vector.load %arg18[%c0_27, %c0_28] : memref<128x1024xf32, #tpu.memory_space<vmem>>, vector<128x128xf32>
    %31 = arith.truncf %29 : vector<96x128xf32> to vector<96x128xbf16>
    %cst_29 = arith.constant dense<0.000000e+00> : vector<128x128xf32>
    %32 = tpu.matmul %0, %31, %cst_29 {dimension_numbers = #tpu.dot_dimension_numbers<[1], [0], [0], [1], [0, 0, 1, 1], [], []>} : vector<128x96xbf16>, vector<96x128xbf16>, vector<128x128xf32> -> vector<128x128xf32>
    %33 = arith.addf %30, %32 : vector<128x128xf32>
    %34 = vector.extract_strided_slice %33 {offsets = [0, 0], sizes = [96, 128], strides = [1, 1]} : vector<128x128xf32> to vector<96x128xf32>
    %cst_30 = arith.constant 5.000000e-01 : f32
    %35 = vector.broadcast %cst_30 : f32 to vector<96x128xf32>
    %36 = arith.mulf %35, %34 : vector<96x128xf32>
    %37 = math.tanh %36 : vector<96x128xf32>
    %cst_31 = arith.constant 1.000000e+00 : f32
    %38 = vector.broadcast %cst_31 : f32 to vector<96x128xf32>
    %39 = arith.addf %38, %37 : vector<96x128xf32>
    %cst_32 = arith.constant 5.000000e-01 : f32
    %40 = vector.broadcast %cst_32 : f32 to vector<96x128xf32>
    %41 = arith.mulf %40, %39 : vector<96x128xf32>
    %42 = vector.extract_strided_slice %41 {offsets = [0, 0], sizes = [32, 128], strides = [1, 1]} : vector<96x128xf32> to vector<32x128xf32>
    %43 = vector.extract_strided_slice %41 {offsets = [32, 0], sizes = [32, 128], strides = [1, 1]} : vector<96x128xf32> to vector<32x128xf32>
    %44 = vector.extract_strided_slice %41 {offsets = [64, 0], sizes = [32, 128], strides = [1, 1]} : vector<96x128xf32> to vector<32x128xf32>
    %45 = vector.extract_strided_slice %33 {offsets = [96, 0], sizes = [32, 128], strides = [1, 1]} : vector<128x128xf32> to vector<32x128xf32>
    %46 = math.tanh %45 : vector<32x128xf32>
    %47 = arith.mulf %43, %2 : vector<32x128xf32>
    %48 = arith.mulf %42, %46 : vector<32x128xf32>
    %49 = arith.addf %47, %48 : vector<32x128xf32>
    %50 = math.tanh %49 : vector<32x128xf32>
    %51 = arith.mulf %44, %50 : vector<32x128xf32>
    %c1_i32_33 = arith.constant 1 : i32
    %52 = tpu.dynamic_rotate %6 by %c1_i32_33 dim 1 : vector<32x128xf32>, i32 -> vector<32x128xf32>
    %53 = vector.extract_strided_slice %8 {offsets = [0, 0, 0], sizes = [1, 1, 128], strides = [1, 1, 1]} : vector<3x1x128xf32> to vector<1x1x128xf32>
    %54 = vector.shape_cast %53 : vector<1x1x128xf32> to vector<1x128xf32>
    %55 = vector.broadcast %54 : vector<1x128xf32> to vector<32x128xf32>
    %56 = arith.mulf %52, %55 : vector<32x128xf32>
    %c127_i32_34 = arith.constant 127 : i32
    %57 = tpu.dynamic_rotate %6 by %c127_i32_34 dim 1 : vector<32x128xf32>, i32 -> vector<32x128xf32>
    %58 = vector.extract_strided_slice %8 {offsets = [2, 0, 0], sizes = [1, 1, 128], strides = [1, 1, 1]} : vector<3x1x128xf32> to vector<1x1x128xf32>
    %59 = vector.shape_cast %58 : vector<1x1x128xf32> to vector<1x128xf32>
    %60 = vector.broadcast %59 : vector<1x128xf32> to vector<32x128xf32>
    %61 = arith.mulf %57, %60 : vector<32x128xf32>
    %62 = tpu.concatenate %56, %6, %61 in 0 : vector<32x128xf32>, vector<32x128xf32>, vector<32x128xf32> -> vector<96x128xf32>
    %c1_i32_35 = arith.constant 1 : i32
    %63 = tpu.dynamic_rotate %51 by %c1_i32_35 dim 1 : vector<32x128xf32>, i32 -> vector<32x128xf32>
    %64 = vector.extract_strided_slice %8 {offsets = [0, 0, 0], sizes = [1, 1, 128], strides = [1, 1, 1]} : vector<3x1x128xf32> to vector<1x1x128xf32>
    %65 = vector.shape_cast %64 : vector<1x1x128xf32> to vector<1x128xf32>
    %66 = vector.broadcast %65 : vector<1x128xf32> to vector<32x128xf32>
    %67 = arith.mulf %63, %66 : vector<32x128xf32>
    %c127_i32_36 = arith.constant 127 : i32
    %68 = tpu.dynamic_rotate %51 by %c127_i32_36 dim 1 : vector<32x128xf32>, i32 -> vector<32x128xf32>
    %69 = vector.extract_strided_slice %8 {offsets = [2, 0, 0], sizes = [1, 1, 128], strides = [1, 1, 1]} : vector<3x1x128xf32> to vector<1x1x128xf32>
    %70 = vector.shape_cast %69 : vector<1x1x128xf32> to vector<1x128xf32>
    %71 = vector.broadcast %70 : vector<1x128xf32> to vector<32x128xf32>
    %72 = arith.mulf %68, %71 : vector<32x128xf32>
    %73 = tpu.concatenate %67, %51, %72 in 0 : vector<32x128xf32>, vector<32x128xf32>, vector<32x128xf32> -> vector<96x128xf32>
    %74 = tpu.concatenate %73, %62 in 0 : vector<96x128xf32>, vector<96x128xf32> -> vector<192x128xf32>
    %75 = arith.truncf %74 : vector<192x128xf32> to vector<192x128xbf16>
    %cst_37 = arith.constant dense<0.000000e+00> : vector<128x128xf32>
    %76 = tpu.matmul %5, %75, %cst_37 {dimension_numbers = #tpu.dot_dimension_numbers<[1], [0], [0], [1], [0, 0, 1, 1], [], []>} : vector<128x192xbf16>, vector<192x128xbf16>, vector<128x128xf32> -> vector<128x128xf32>
    %77 = arith.addf %76, %11 : vector<128x128xf32>
    %78 = vector.extract_strided_slice %77 {offsets = [0, 0], sizes = [96, 128], strides = [1, 1]} : vector<128x128xf32> to vector<96x128xf32>
    %cst_38 = arith.constant 5.000000e-01 : f32
    %79 = vector.broadcast %cst_38 : f32 to vector<96x128xf32>
    %80 = arith.mulf %79, %78 : vector<96x128xf32>
    %81 = math.tanh %80 : vector<96x128xf32>
    %cst_39 = arith.constant 1.000000e+00 : f32
    %82 = vector.broadcast %cst_39 : f32 to vector<96x128xf32>
    %83 = arith.addf %82, %81 : vector<96x128xf32>
    %cst_40 = arith.constant 5.000000e-01 : f32
    %84 = vector.broadcast %cst_40 : f32 to vector<96x128xf32>
    %85 = arith.mulf %84, %83 : vector<96x128xf32>
    %86 = vector.extract_strided_slice %85 {offsets = [0, 0], sizes = [32, 128], strides = [1, 1]} : vector<96x128xf32> to vector<32x128xf32>
    %87 = vector.extract_strided_slice %85 {offsets = [32, 0], sizes = [32, 128], strides = [1, 1]} : vector<96x128xf32> to vector<32x128xf32>
    %88 = vector.extract_strided_slice %85 {offsets = [64, 0], sizes = [32, 128], strides = [1, 1]} : vector<96x128xf32> to vector<32x128xf32>
    %89 = vector.extract_strided_slice %77 {offsets = [96, 0], sizes = [32, 128], strides = [1, 1]} : vector<128x128xf32> to vector<32x128xf32>
    %90 = math.tanh %89 : vector<32x128xf32>
    %91 = arith.mulf %87, %7 : vector<32x128xf32>
    %92 = arith.mulf %86, %90 : vector<32x128xf32>
    %93 = arith.addf %91, %92 : vector<32x128xf32>
    %94 = math.tanh %93 : vector<32x128xf32>
    %95 = arith.mulf %88, %94 : vector<32x128xf32>
    %c0_41 = arith.constant 0 : index
    %c0_42 = arith.constant 0 : index
    %c0_43 = arith.constant 0 : index
    %96 = vector.load %arg13[%c0_41, %c0_42, %c0_43] : memref<8x32x128xf32, #tpu.memory_space<vmem>>, vector<1x32x128xf32>
    %97 = vector.shape_cast %96 : vector<1x32x128xf32> to vector<32x128xf32>
    %98 = vector.shape_cast %95 : vector<32x128xf32> to vector<1x32x128xf32>
    tpu.vector_store %arg13[%c0_41, %c0_42, %c0_43], %98 {strides = array<i32>} : memref<8x32x128xf32, #tpu.memory_space<vmem>>, vector<1x32x128xf32>,
    %c1_i32_44 = arith.constant 1 : i32
    %99 = tpu.dynamic_rotate %51 by %c1_i32_44 dim 1 : vector<32x128xf32>, i32 -> vector<32x128xf32>
    %100 = vector.extract_strided_slice %3 {offsets = [0, 0, 0], sizes = [1, 1, 128], strides = [1, 1, 1]} : vector<3x1x128xf32> to vector<1x1x128xf32>
    %101 = vector.shape_cast %100 : vector<1x1x128xf32> to vector<1x128xf32>
    %102 = vector.broadcast %101 : vector<1x128xf32> to vector<32x128xf32>
    %103 = arith.mulf %99, %102 : vector<32x128xf32>
    %c127_i32_45 = arith.constant 127 : i32
    %104 = tpu.dynamic_rotate %51 by %c127_i32_45 dim 1 : vector<32x128xf32>, i32 -> vector<32x128xf32>
    %105 = vector.extract_strided_slice %3 {offsets = [2, 0, 0], sizes = [1, 1, 128], strides = [1, 1, 1]} : vector<3x1x128xf32> to vector<1x1x128xf32>
    %106 = vector.shape_cast %105 : vector<1x1x128xf32> to vector<1x128xf32>
    %107 = vector.broadcast %106 : vector<1x128xf32> to vector<32x128xf32>
    %108 = arith.mulf %104, %107 : vector<32x128xf32>
    %109 = tpu.concatenate %103, %51, %108 in 0 : vector<32x128xf32>, vector<32x128xf32>, vector<32x128xf32> -> vector<96x128xf32>
    %c0_46 = arith.constant 0 : index
    %c128 = arith.constant 128 : index
    %110 = vector.load %arg18[%c0_46, %c128] : memref<128x1024xf32, #tpu.memory_space<vmem>>, vector<128x128xf32>
    %111 = arith.truncf %109 : vector<96x128xf32> to vector<96x128xbf16>
    %cst_47 = arith.constant dense<0.000000e+00> : vector<128x128xf32>
    %112 = tpu.matmul %0, %111, %cst_47 {dimension_numbers = #tpu.dot_dimension_numbers<[1], [0], [0], [1], [0, 0, 1, 1], [], []>} : vector<128x96xbf16>, vector<96x128xbf16>, vector<128x128xf32> -> vector<128x128xf32>
    %113 = arith.addf %110, %112 : vector<128x128xf32>
    %114 = vector.extract_strided_slice %113 {offsets = [0, 0], sizes = [96, 128], strides = [1, 1]} : vector<128x128xf32> to vector<96x128xf32>
    %cst_48 = arith.constant 5.000000e-01 : f32
    %115 = vector.broadcast %cst_48 : f32 to vector<96x128xf32>
    %116 = arith.mulf %115, %114 : vector<96x128xf32>
    %117 = math.tanh %116 : vector<96x128xf32>
    %cst_49 = arith.constant 1.000000e+00 : f32
    %118 = vector.broadcast %cst_49 : f32 to vector<96x128xf32>
    %119 = arith.addf %118, %117 : vector<96x128xf32>
    %cst_50 = arith.constant 5.000000e-01 : f32
    %120 = vector.broadcast %cst_50 : f32 to vector<96x128xf32>
    %121 = arith.mulf %120, %119 : vector<96x128xf32>
    %122 = vector.extract_strided_slice %121 {offsets = [0, 0], sizes = [32, 128], strides = [1, 1]} : vector<96x128xf32> to vector<32x128xf32>
    %123 = vector.extract_strided_slice %121 {offsets = [32, 0], sizes = [32, 128], strides = [1, 1]} : vector<96x128xf32> to vector<32x128xf32>
    %124 = vector.extract_strided_slice %121 {offsets = [64, 0], sizes = [32, 128], strides = [1, 1]} : vector<96x128xf32> to vector<32x128xf32>
    %125 = vector.extract_strided_slice %113 {offsets = [96, 0], sizes = [32, 128], strides = [1, 1]} : vector<128x128xf32> to vector<32x128xf32>
    %126 = math.tanh %125 : vector<32x128xf32>
    %127 = arith.mulf %123, %49 : vector<32x128xf32>
    %128 = arith.mulf %122, %126 : vector<32x128xf32>
    %129 = arith.addf %127, %128 : vector<32x128xf32>
    %130 = math.tanh %129 : vector<32x128xf32>
    %131 = arith.mulf %124, %130 : vector<32x128xf32>
    %c1_i32_51 = arith.constant 1 : i32
    %132 = tpu.dynamic_rotate %95 by %c1_i32_51 dim 1 : vector<32x128xf32>, i32 -> vector<32x128xf32>
    %133 = vector.extract_strided_slice %8 {offsets = [0, 0, 0], sizes = [1, 1, 128], strides = [1, 1, 1]} : vector<3x1x128xf32> to vector<1x1x128xf32>
    %134 = vector.shape_cast %133 : vector<1x1x128xf32> to vector<1x128xf32>
    %135 = vector.broadcast %134 : vector<1x128xf32> to vector<32x128xf32>
    %136 = arith.mulf %132, %135 : vector<32x128xf32>
    %c127_i32_52 = arith.constant 127 : i32
    %137 = tpu.dynamic_rotate %95 by %c127_i32_52 dim 1 : vector<32x128xf32>, i32 -> vector<32x128xf32>
    %138 = vector.extract_strided_slice %8 {offsets = [2, 0, 0], sizes = [1, 1, 128], strides = [1, 1, 1]} : vector<3x1x128xf32> to vector<1x1x128xf32>
    %139 = vector.shape_cast %138 : vector<1x1x128xf32> to vector<1x128xf32>
    %140 = vector.broadcast %139 : vector<1x128xf32> to vector<32x128xf32>
    %141 = arith.mulf %137, %140 : vector<32x128xf32>
    %142 = tpu.concatenate %136, %95, %141 in 0 : vector<32x128xf32>, vector<32x128xf32>, vector<32x128xf32> -> vector<96x128xf32>
    %c1_i32_53 = arith.constant 1 : i32
    %143 = tpu.dynamic_rotate %131 by %c1_i32_53 dim 1 : vector<32x128xf32>, i32 -> vector<32x128xf32>
    %144 = vector.extract_strided_slice %8 {offsets = [0, 0, 0], sizes = [1, 1, 128], strides = [1, 1, 1]} : vector<3x1x128xf32> to vector<1x1x128xf32>
    %145 = vector.shape_cast %144 : vector<1x1x128xf32> to vector<1x128xf32>
    %146 = vector.broadcast %145 : vector<1x128xf32> to vector<32x128xf32>
    %147 = arith.mulf %143, %146 : vector<32x128xf32>
    %c127_i32_54 = arith.constant 127 : i32
    %148 = tpu.dynamic_rotate %131 by %c127_i32_54 dim 1 : vector<32x128xf32>, i32 -> vector<32x128xf32>
    %149 = vector.extract_strided_slice %8 {offsets = [2, 0, 0], sizes = [1, 1, 128], strides = [1, 1, 1]} : vector<3x1x128xf32> to vector<1x1x128xf32>
    %150 = vector.shape_cast %149 : vector<1x1x128xf32> to vector<1x128xf32>
    %151 = vector.broadcast %150 : vector<1x128xf32> to vector<32x128xf32>
    %152 = arith.mulf %148, %151 : vector<32x128xf32>
    %153 = tpu.concatenate %147, %131, %152 in 0 : vector<32x128xf32>, vector<32x128xf32>, vector<32x128xf32> -> vector<96x128xf32>
    %154 = tpu.concatenate %153, %142 in 0 : vector<96x128xf32>, vector<96x128xf32> -> vector<192x128xf32>
    %155 = arith.truncf %154 : vector<192x128xf32> to vector<192x128xbf16>
    %cst_55 = arith.constant dense<0.000000e+00> : vector<128x128xf32>
    %156 = tpu.matmul %5, %155, %cst_55 {dimension_numbers = #tpu.dot_dimension_numbers<[1], [0], [0], [1], [0, 0, 1, 1], [], []>} : vector<128x192xbf16>, vector<192x128xbf16>, vector<128x128xf32> -> vector<128x128xf32>
    %157 = arith.addf %156, %11 : vector<128x128xf32>
    %158 = vector.extract_strided_slice %157 {offsets = [0, 0], sizes = [96, 128], strides = [1, 1]} : vector<128x128xf32> to vector<96x128xf32>
    %cst_56 = arith.constant 5.000000e-01 : f32
    %159 = vector.broadcast %cst_56 : f32 to vector<96x128xf32>
    %160 = arith.mulf %159, %158 : vector<96x128xf32>
    %161 = math.tanh %160 : vector<96x128xf32>
    %cst_57 = arith.constant 1.000000e+00 : f32
    %162 = vector.broadcast %cst_57 : f32 to vector<96x128xf32>
    %163 = arith.addf %162, %161 : vector<96x128xf32>
    %cst_58 = arith.constant 5.000000e-01 : f32
    %164 = vector.broadcast %cst_58 : f32 to vector<96x128xf32>
    %165 = arith.mulf %164, %163 : vector<96x128xf32>
    %166 = vector.extract_strided_slice %165 {offsets = [0, 0], sizes = [32, 128], strides = [1, 1]} : vector<96x128xf32> to vector<32x128xf32>
    %167 = vector.extract_strided_slice %165 {offsets = [32, 0], sizes = [32, 128], strides = [1, 1]} : vector<96x128xf32> to vector<32x128xf32>
    %168 = vector.extract_strided_slice %165 {offsets = [64, 0], sizes = [32, 128], strides = [1, 1]} : vector<96x128xf32> to vector<32x128xf32>
    %169 = vector.extract_strided_slice %157 {offsets = [96, 0], sizes = [32, 128], strides = [1, 1]} : vector<128x128xf32> to vector<32x128xf32>
    %170 = math.tanh %169 : vector<32x128xf32>
    %171 = arith.mulf %167, %93 : vector<32x128xf32>
    %172 = arith.mulf %166, %170 : vector<32x128xf32>
    %173 = arith.addf %171, %172 : vector<32x128xf32>
    %174 = math.tanh %173 : vector<32x128xf32>
    %175 = arith.mulf %168, %174 : vector<32x128xf32>
    %c1 = arith.constant 1 : index
    %c0_59 = arith.constant 0 : index
    %c0_60 = arith.constant 0 : index
    %176 = vector.load %arg13[%c1, %c0_59, %c0_60] : memref<8x32x128xf32, #tpu.memory_space<vmem>>, vector<1x32x128xf32>
    %177 = vector.shape_cast %176 : vector<1x32x128xf32> to vector<32x128xf32>
    %178 = vector.shape_cast %175 : vector<32x128xf32> to vector<1x32x128xf32>
    tpu.vector_store %arg13[%c1, %c0_59, %c0_60], %178 {strides = array<i32>} : memref<8x32x128xf32, #tpu.memory_space<vmem>>, vector<1x32x128xf32>,
    %c1_i32_61 = arith.constant 1 : i32
    %179 = tpu.dynamic_rotate %131 by %c1_i32_61 dim 1 : vector<32x128xf32>, i32 -> vector<32x128xf32>
    %180 = vector.extract_strided_slice %3 {offsets = [0, 0, 0], sizes = [1, 1, 128], strides = [1, 1, 1]} : vector<3x1x128xf32> to vector<1x1x128xf32>
    %181 = vector.shape_cast %180 : vector<1x1x128xf32> to vector<1x128xf32>
    %182 = vector.broadcast %181 : vector<1x128xf32> to vector<32x128xf32>
    %183 = arith.mulf %179, %182 : vector<32x128xf32>
    %c127_i32_62 = arith.constant 127 : i32
    %184 = tpu.dynamic_rotate %131 by %c127_i32_62 dim 1 : vector<32x128xf32>, i32 -> vector<32x128xf32>
    %185 = vector.extract_strided_slice %3 {offsets = [2, 0, 0], sizes = [1, 1, 128], strides = [1, 1, 1]} : vector<3x1x128xf32> to vector<1x1x128xf32>
    %186 = vector.shape_cast %185 : vector<1x1x128xf32> to vector<1x128xf32>
    %187 = vector.broadcast %186 : vector<1x128xf32> to vector<32x128xf32>
    %188 = arith.mulf %184, %187 : vector<32x128xf32>
    %189 = tpu.concatenate %183, %131, %188 in 0 : vector<32x128xf32>, vector<32x128xf32>, vector<32x128xf32> -> vector<96x128xf32>
    %c0_63 = arith.constant 0 : index
    %c256 = arith.constant 256 : index
    %190 = vector.load %arg18[%c0_63, %c256] : memref<128x1024xf32, #tpu.memory_space<vmem>>, vector<128x128xf32>
    %191 = arith.truncf %189 : vector<96x128xf32> to vector<96x128xbf16>
    %cst_64 = arith.constant dense<0.000000e+00> : vector<128x128xf32>
    %192 = tpu.matmul %0, %191, %cst_64 {dimension_numbers = #tpu.dot_dimension_numbers<[1], [0], [0], [1], [0, 0, 1, 1], [], []>} : vector<128x96xbf16>, vector<96x128xbf16>, vector<128x128xf32> -> vector<128x128xf32>
    %193 = arith.addf %190, %192 : vector<128x128xf32>
    %194 = vector.extract_strided_slice %193 {offsets = [0, 0], sizes = [96, 128], strides = [1, 1]} : vector<128x128xf32> to vector<96x128xf32>
    %cst_65 = arith.constant 5.000000e-01 : f32
    %195 = vector.broadcast %cst_65 : f32 to vector<96x128xf32>
    %196 = arith.mulf %195, %194 : vector<96x128xf32>
    %197 = math.tanh %196 : vector<96x128xf32>
    %cst_66 = arith.constant 1.000000e+00 : f32
    %198 = vector.broadcast %cst_66 : f32 to vector<96x128xf32>
    %199 = arith.addf %198, %197 : vector<96x128xf32>
    %cst_67 = arith.constant 5.000000e-01 : f32
    %200 = vector.broadcast %cst_67 : f32 to vector<96x128xf32>
    %201 = arith.mulf %200, %199 : vector<96x128xf32>
    %202 = vector.extract_strided_slice %201 {offsets = [0, 0], sizes = [32, 128], strides = [1, 1]} : vector<96x128xf32> to vector<32x128xf32>
    %203 = vector.extract_strided_slice %201 {offsets = [32, 0], sizes = [32, 128], strides = [1, 1]} : vector<96x128xf32> to vector<32x128xf32>
    %204 = vector.extract_strided_slice %201 {offsets = [64, 0], sizes = [32, 128], strides = [1, 1]} : vector<96x128xf32> to vector<32x128xf32>
    %205 = vector.extract_strided_slice %193 {offsets = [96, 0], sizes = [32, 128], strides = [1, 1]} : vector<128x128xf32> to vector<32x128xf32>
    %206 = math.tanh %205 : vector<32x128xf32>
    %207 = arith.mulf %203, %129 : vector<32x128xf32>
    %208 = arith.mulf %202, %206 : vector<32x128xf32>
    %209 = arith.addf %207, %208 : vector<32x128xf32>
    %210 = math.tanh %209 : vector<32x128xf32>
    %211 = arith.mulf %204, %210 : vector<32x128xf32>
    %c1_i32_68 = arith.constant 1 : i32
    %212 = tpu.dynamic_rotate %175 by %c1_i32_68 dim 1 : vector<32x128xf32>, i32 -> vector<32x128xf32>
    %213 = vector.extract_strided_slice %8 {offsets = [0, 0, 0], sizes = [1, 1, 128], strides = [1, 1, 1]} : vector<3x1x128xf32> to vector<1x1x128xf32>
    %214 = vector.shape_cast %213 : vector<1x1x128xf32> to vector<1x128xf32>
    %215 = vector.broadcast %214 : vector<1x128xf32> to vector<32x128xf32>
    %216 = arith.mulf %212, %215 : vector<32x128xf32>
    %c127_i32_69 = arith.constant 127 : i32
    %217 = tpu.dynamic_rotate %175 by %c127_i32_69 dim 1 : vector<32x128xf32>, i32 -> vector<32x128xf32>
    %218 = vector.extract_strided_slice %8 {offsets = [2, 0, 0], sizes = [1, 1, 128], strides = [1, 1, 1]} : vector<3x1x128xf32> to vector<1x1x128xf32>
    %219 = vector.shape_cast %218 : vector<1x1x128xf32> to vector<1x128xf32>
    %220 = vector.broadcast %219 : vector<1x128xf32> to vector<32x128xf32>
    %221 = arith.mulf %217, %220 : vector<32x128xf32>
    %222 = tpu.concatenate %216, %175, %221 in 0 : vector<32x128xf32>, vector<32x128xf32>, vector<32x128xf32> -> vector<96x128xf32>
    %c1_i32_70 = arith.constant 1 : i32
    %223 = tpu.dynamic_rotate %211 by %c1_i32_70 dim 1 : vector<32x128xf32>, i32 -> vector<32x128xf32>
    %224 = vector.extract_strided_slice %8 {offsets = [0, 0, 0], sizes = [1, 1, 128], strides = [1, 1, 1]} : vector<3x1x128xf32> to vector<1x1x128xf32>
    %225 = vector.shape_cast %224 : vector<1x1x128xf32> to vector<1x128xf32>
    %226 = vector.broadcast %225 : vector<1x128xf32> to vector<32x128xf32>
    %227 = arith.mulf %223, %226 : vector<32x128xf32>
    %c127_i32_71 = arith.constant 127 : i32
    %228 = tpu.dynamic_rotate %211 by %c127_i32_71 dim 1 : vector<32x128xf32>, i32 -> vector<32x128xf32>
    %229 = vector.extract_strided_slice %8 {offsets = [2, 0, 0], sizes = [1, 1, 128], strides = [1, 1, 1]} : vector<3x1x128xf32> to vector<1x1x128xf32>
    %230 = vector.shape_cast %229 : vector<1x1x128xf32> to vector<1x128xf32>
    %231 = vector.broadcast %230 : vector<1x128xf32> to vector<32x128xf32>
    %232 = arith.mulf %228, %231 : vector<32x128xf32>
    %233 = tpu.concatenate %227, %211, %232 in 0 : vector<32x128xf32>, vector<32x128xf32>, vector<32x128xf32> -> vector<96x128xf32>
    %234 = tpu.concatenate %233, %222 in 0 : vector<96x128xf32>, vector<96x128xf32> -> vector<192x128xf32>
    %235 = arith.truncf %234 : vector<192x128xf32> to vector<192x128xbf16>
    %cst_72 = arith.constant dense<0.000000e+00> : vector<128x128xf32>
    %236 = tpu.matmul %5, %235, %cst_72 {dimension_numbers = #tpu.dot_dimension_numbers<[1], [0], [0], [1], [0, 0, 1, 1], [], []>} : vector<128x192xbf16>, vector<192x128xbf16>, vector<128x128xf32> -> vector<128x128xf32>
    %237 = arith.addf %236, %11 : vector<128x128xf32>
    %238 = vector.extract_strided_slice %237 {offsets = [0, 0], sizes = [96, 128], strides = [1, 1]} : vector<128x128xf32> to vector<96x128xf32>
    %cst_73 = arith.constant 5.000000e-01 : f32
    %239 = vector.broadcast %cst_73 : f32 to vector<96x128xf32>
    %240 = arith.mulf %239, %238 : vector<96x128xf32>
    %241 = math.tanh %240 : vector<96x128xf32>
    %cst_74 = arith.constant 1.000000e+00 : f32
    %242 = vector.broadcast %cst_74 : f32 to vector<96x128xf32>
    %243 = arith.addf %242, %241 : vector<96x128xf32>
    %cst_75 = arith.constant 5.000000e-01 : f32
    %244 = vector.broadcast %cst_75 : f32 to vector<96x128xf32>
    %245 = arith.mulf %244, %243 : vector<96x128xf32>
    %246 = vector.extract_strided_slice %245 {offsets = [0, 0], sizes = [32, 128], strides = [1, 1]} : vector<96x128xf32> to vector<32x128xf32>
    %247 = vector.extract_strided_slice %245 {offsets = [32, 0], sizes = [32, 128], strides = [1, 1]} : vector<96x128xf32> to vector<32x128xf32>
    %248 = vector.extract_strided_slice %245 {offsets = [64, 0], sizes = [32, 128], strides = [1, 1]} : vector<96x128xf32> to vector<32x128xf32>
    %249 = vector.extract_strided_slice %237 {offsets = [96, 0], sizes = [32, 128], strides = [1, 1]} : vector<128x128xf32> to vector<32x128xf32>
    %250 = math.tanh %249 : vector<32x128xf32>
    %251 = arith.mulf %247, %173 : vector<32x128xf32>
    %252 = arith.mulf %246, %250 : vector<32x128xf32>
    %253 = arith.addf %251, %252 : vector<32x128xf32>
    %254 = math.tanh %253 : vector<32x128xf32>
    %255 = arith.mulf %248, %254 : vector<32x128xf32>
    %c2 = arith.constant 2 : index
    %c0_76 = arith.constant 0 : index
    %c0_77 = arith.constant 0 : index
    %256 = vector.load %arg13[%c2, %c0_76, %c0_77] : memref<8x32x128xf32, #tpu.memory_space<vmem>>, vector<1x32x128xf32>
    %257 = vector.shape_cast %256 : vector<1x32x128xf32> to vector<32x128xf32>
    %258 = vector.shape_cast %255 : vector<32x128xf32> to vector<1x32x128xf32>
    tpu.vector_store %arg13[%c2, %c0_76, %c0_77], %258 {strides = array<i32>} : memref<8x32x128xf32, #tpu.memory_space<vmem>>, vector<1x32x128xf32>,
    %c1_i32_78 = arith.constant 1 : i32
    %259 = tpu.dynamic_rotate %211 by %c1_i32_78 dim 1 : vector<32x128xf32>, i32 -> vector<32x128xf32>
    %260 = vector.extract_strided_slice %3 {offsets = [0, 0, 0], sizes = [1, 1, 128], strides = [1, 1, 1]} : vector<3x1x128xf32> to vector<1x1x128xf32>
    %261 = vector.shape_cast %260 : vector<1x1x128xf32> to vector<1x128xf32>
    %262 = vector.broadcast %261 : vector<1x128xf32> to vector<32x128xf32>
    %263 = arith.mulf %259, %262 : vector<32x128xf32>
    %c127_i32_79 = arith.constant 127 : i32
    %264 = tpu.dynamic_rotate %211 by %c127_i32_79 dim 1 : vector<32x128xf32>, i32 -> vector<32x128xf32>
    %265 = vector.extract_strided_slice %3 {offsets = [2, 0, 0], sizes = [1, 1, 128], strides = [1, 1, 1]} : vector<3x1x128xf32> to vector<1x1x128xf32>
    %266 = vector.shape_cast %265 : vector<1x1x128xf32> to vector<1x128xf32>
    %267 = vector.broadcast %266 : vector<1x128xf32> to vector<32x128xf32>
    %268 = arith.mulf %264, %267 : vector<32x128xf32>
    %269 = tpu.concatenate %263, %211, %268 in 0 : vector<32x128xf32>, vector<32x128xf32>, vector<32x128xf32> -> vector<96x128xf32>
    %c0_80 = arith.constant 0 : index
    %c384 = arith.constant 384 : index
    %270 = vector.load %arg18[%c0_80, %c384] : memref<128x1024xf32, #tpu.memory_space<vmem>>, vector<128x128xf32>
    %271 = arith.truncf %269 : vector<96x128xf32> to vector<96x128xbf16>
    %cst_81 = arith.constant dense<0.000000e+00> : vector<128x128xf32>
    %272 = tpu.matmul %0, %271, %cst_81 {dimension_numbers = #tpu.dot_dimension_numbers<[1], [0], [0], [1], [0, 0, 1, 1], [], []>} : vector<128x96xbf16>, vector<96x128xbf16>, vector<128x128xf32> -> vector<128x128xf32>
    %273 = arith.addf %270, %272 : vector<128x128xf32>
    %274 = vector.extract_strided_slice %273 {offsets = [0, 0], sizes = [96, 128], strides = [1, 1]} : vector<128x128xf32> to vector<96x128xf32>
    %cst_82 = arith.constant 5.000000e-01 : f32
    %275 = vector.broadcast %cst_82 : f32 to vector<96x128xf32>
    %276 = arith.mulf %275, %274 : vector<96x128xf32>
    %277 = math.tanh %276 : vector<96x128xf32>
    %cst_83 = arith.constant 1.000000e+00 : f32
    %278 = vector.broadcast %cst_83 : f32 to vector<96x128xf32>
    %279 = arith.addf %278, %277 : vector<96x128xf32>
    %cst_84 = arith.constant 5.000000e-01 : f32
    %280 = vector.broadcast %cst_84 : f32 to vector<96x128xf32>
    %281 = arith.mulf %280, %279 : vector<96x128xf32>
    %282 = vector.extract_strided_slice %281 {offsets = [0, 0], sizes = [32, 128], strides = [1, 1]} : vector<96x128xf32> to vector<32x128xf32>
    %283 = vector.extract_strided_slice %281 {offsets = [32, 0], sizes = [32, 128], strides = [1, 1]} : vector<96x128xf32> to vector<32x128xf32>
    %284 = vector.extract_strided_slice %281 {offsets = [64, 0], sizes = [32, 128], strides = [1, 1]} : vector<96x128xf32> to vector<32x128xf32>
    %285 = vector.extract_strided_slice %273 {offsets = [96, 0], sizes = [32, 128], strides = [1, 1]} : vector<128x128xf32> to vector<32x128xf32>
    %286 = math.tanh %285 : vector<32x128xf32>
    %287 = arith.mulf %283, %209 : vector<32x128xf32>
    %288 = arith.mulf %282, %286 : vector<32x128xf32>
    %289 = arith.addf %287, %288 : vector<32x128xf32>
    %290 = math.tanh %289 : vector<32x128xf32>
    %291 = arith.mulf %284, %290 : vector<32x128xf32>
    %c1_i32_85 = arith.constant 1 : i32
    %292 = tpu.dynamic_rotate %255 by %c1_i32_85 dim 1 : vector<32x128xf32>, i32 -> vector<32x128xf32>
    %293 = vector.extract_strided_slice %8 {offsets = [0, 0, 0], sizes = [1, 1, 128], strides = [1, 1, 1]} : vector<3x1x128xf32> to vector<1x1x128xf32>
    %294 = vector.shape_cast %293 : vector<1x1x128xf32> to vector<1x128xf32>
    %295 = vector.broadcast %294 : vector<1x128xf32> to vector<32x128xf32>
    %296 = arith.mulf %292, %295 : vector<32x128xf32>
    %c127_i32_86 = arith.constant 127 : i32
    %297 = tpu.dynamic_rotate %255 by %c127_i32_86 dim 1 : vector<32x128xf32>, i32 -> vector<32x128xf32>
    %298 = vector.extract_strided_slice %8 {offsets = [2, 0, 0], sizes = [1, 1, 128], strides = [1, 1, 1]} : vector<3x1x128xf32> to vector<1x1x128xf32>
    %299 = vector.shape_cast %298 : vector<1x1x128xf32> to vector<1x128xf32>
    %300 = vector.broadcast %299 : vector<1x128xf32> to vector<32x128xf32>
    %301 = arith.mulf %297, %300 : vector<32x128xf32>
    %302 = tpu.concatenate %296, %255, %301 in 0 : vector<32x128xf32>, vector<32x128xf32>, vector<32x128xf32> -> vector<96x128xf32>
    %c1_i32_87 = arith.constant 1 : i32
    %303 = tpu.dynamic_rotate %291 by %c1_i32_87 dim 1 : vector<32x128xf32>, i32 -> vector<32x128xf32>
    %304 = vector.extract_strided_slice %8 {offsets = [0, 0, 0], sizes = [1, 1, 128], strides = [1, 1, 1]} : vector<3x1x128xf32> to vector<1x1x128xf32>
    %305 = vector.shape_cast %304 : vector<1x1x128xf32> to vector<1x128xf32>
    %306 = vector.broadcast %305 : vector<1x128xf32> to vector<32x128xf32>
    %307 = arith.mulf %303, %306 : vector<32x128xf32>
    %c127_i32_88 = arith.constant 127 : i32
    %308 = tpu.dynamic_rotate %291 by %c127_i32_88 dim 1 : vector<32x128xf32>, i32 -> vector<32x128xf32>
    %309 = vector.extract_strided_slice %8 {offsets = [2, 0, 0], sizes = [1, 1, 128], strides = [1, 1, 1]} : vector<3x1x128xf32> to vector<1x1x128xf32>
    %310 = vector.shape_cast %309 : vector<1x1x128xf32> to vector<1x128xf32>
    %311 = vector.broadcast %310 : vector<1x128xf32> to vector<32x128xf32>
    %312 = arith.mulf %308, %311 : vector<32x128xf32>
    %313 = tpu.concatenate %307, %291, %312 in 0 : vector<32x128xf32>, vector<32x128xf32>, vector<32x128xf32> -> vector<96x128xf32>
    %314 = tpu.concatenate %313, %302 in 0 : vector<96x128xf32>, vector<96x128xf32> -> vector<192x128xf32>
    %315 = arith.truncf %314 : vector<192x128xf32> to vector<192x128xbf16>
    %cst_89 = arith.constant dense<0.000000e+00> : vector<128x128xf32>
    %316 = tpu.matmul %5, %315, %cst_89 {dimension_numbers = #tpu.dot_dimension_numbers<[1], [0], [0], [1], [0, 0, 1, 1], [], []>} : vector<128x192xbf16>, vector<192x128xbf16>, vector<128x128xf32> -> vector<128x128xf32>
    %317 = arith.addf %316, %11 : vector<128x128xf32>
    %318 = vector.extract_strided_slice %317 {offsets = [0, 0], sizes = [96, 128], strides = [1, 1]} : vector<128x128xf32> to vector<96x128xf32>
    %cst_90 = arith.constant 5.000000e-01 : f32
    %319 = vector.broadcast %cst_90 : f32 to vector<96x128xf32>
    %320 = arith.mulf %319, %318 : vector<96x128xf32>
    %321 = math.tanh %320 : vector<96x128xf32>
    %cst_91 = arith.constant 1.000000e+00 : f32
    %322 = vector.broadcast %cst_91 : f32 to vector<96x128xf32>
    %323 = arith.addf %322, %321 : vector<96x128xf32>
    %cst_92 = arith.constant 5.000000e-01 : f32
    %324 = vector.broadcast %cst_92 : f32 to vector<96x128xf32>
    %325 = arith.mulf %324, %323 : vector<96x128xf32>
    %326 = vector.extract_strided_slice %325 {offsets = [0, 0], sizes = [32, 128], strides = [1, 1]} : vector<96x128xf32> to vector<32x128xf32>
    %327 = vector.extract_strided_slice %325 {offsets = [32, 0], sizes = [32, 128], strides = [1, 1]} : vector<96x128xf32> to vector<32x128xf32>
    %328 = vector.extract_strided_slice %325 {offsets = [64, 0], sizes = [32, 128], strides = [1, 1]} : vector<96x128xf32> to vector<32x128xf32>
    %329 = vector.extract_strided_slice %317 {offsets = [96, 0], sizes = [32, 128], strides = [1, 1]} : vector<128x128xf32> to vector<32x128xf32>
    %330 = math.tanh %329 : vector<32x128xf32>
    %331 = arith.mulf %327, %253 : vector<32x128xf32>
    %332 = arith.mulf %326, %330 : vector<32x128xf32>
    %333 = arith.addf %331, %332 : vector<32x128xf32>
    %334 = math.tanh %333 : vector<32x128xf32>
    %335 = arith.mulf %328, %334 : vector<32x128xf32>
    %c3 = arith.constant 3 : index
    %c0_93 = arith.constant 0 : index
    %c0_94 = arith.constant 0 : index
    %336 = vector.load %arg13[%c3, %c0_93, %c0_94] : memref<8x32x128xf32, #tpu.memory_space<vmem>>, vector<1x32x128xf32>
    %337 = vector.shape_cast %336 : vector<1x32x128xf32> to vector<32x128xf32>
    %338 = vector.shape_cast %335 : vector<32x128xf32> to vector<1x32x128xf32>
    tpu.vector_store %arg13[%c3, %c0_93, %c0_94], %338 {strides = array<i32>} : memref<8x32x128xf32, #tpu.memory_space<vmem>>, vector<1x32x128xf32>,
    %c1_i32_95 = arith.constant 1 : i32
    %339 = tpu.dynamic_rotate %291 by %c1_i32_95 dim 1 : vector<32x128xf32>, i32 -> vector<32x128xf32>
    %340 = vector.extract_strided_slice %3 {offsets = [0, 0, 0], sizes = [1, 1, 128], strides = [1, 1, 1]} : vector<3x1x128xf32> to vector<1x1x128xf32>
    %341 = vector.shape_cast %340 : vector<1x1x128xf32> to vector<1x128xf32>
    %342 = vector.broadcast %341 : vector<1x128xf32> to vector<32x128xf32>
    %343 = arith.mulf %339, %342 : vector<32x128xf32>
    %c127_i32_96 = arith.constant 127 : i32
    %344 = tpu.dynamic_rotate %291 by %c127_i32_96 dim 1 : vector<32x128xf32>, i32 -> vector<32x128xf32>
    %345 = vector.extract_strided_slice %3 {offsets = [2, 0, 0], sizes = [1, 1, 128], strides = [1, 1, 1]} : vector<3x1x128xf32> to vector<1x1x128xf32>
    %346 = vector.shape_cast %345 : vector<1x1x128xf32> to vector<1x128xf32>
    %347 = vector.broadcast %346 : vector<1x128xf32> to vector<32x128xf32>
    %348 = arith.mulf %344, %347 : vector<32x128xf32>
    %349 = tpu.concatenate %343, %291, %348 in 0 : vector<32x128xf32>, vector<32x128xf32>, vector<32x128xf32> -> vector<96x128xf32>
    %c0_97 = arith.constant 0 : index
    %c512 = arith.constant 512 : index
    %350 = vector.load %arg18[%c0_97, %c512] : memref<128x1024xf32, #tpu.memory_space<vmem>>, vector<128x128xf32>
    %351 = arith.truncf %349 : vector<96x128xf32> to vector<96x128xbf16>
    %cst_98 = arith.constant dense<0.000000e+00> : vector<128x128xf32>
    %352 = tpu.matmul %0, %351, %cst_98 {dimension_numbers = #tpu.dot_dimension_numbers<[1], [0], [0], [1], [0, 0, 1, 1], [], []>} : vector<128x96xbf16>, vector<96x128xbf16>, vector<128x128xf32> -> vector<128x128xf32>
    %353 = arith.addf %350, %352 : vector<128x128xf32>
    %354 = vector.extract_strided_slice %353 {offsets = [0, 0], sizes = [96, 128], strides = [1, 1]} : vector<128x128xf32> to vector<96x128xf32>
    %cst_99 = arith.constant 5.000000e-01 : f32
    %355 = vector.broadcast %cst_99 : f32 to vector<96x128xf32>
    %356 = arith.mulf %355, %354 : vector<96x128xf32>
    %357 = math.tanh %356 : vector<96x128xf32>
    %cst_100 = arith.constant 1.000000e+00 : f32
    %358 = vector.broadcast %cst_100 : f32 to vector<96x128xf32>
    %359 = arith.addf %358, %357 : vector<96x128xf32>
    %cst_101 = arith.constant 5.000000e-01 : f32
    %360 = vector.broadcast %cst_101 : f32 to vector<96x128xf32>
    %361 = arith.mulf %360, %359 : vector<96x128xf32>
    %362 = vector.extract_strided_slice %361 {offsets = [0, 0], sizes = [32, 128], strides = [1, 1]} : vector<96x128xf32> to vector<32x128xf32>
    %363 = vector.extract_strided_slice %361 {offsets = [32, 0], sizes = [32, 128], strides = [1, 1]} : vector<96x128xf32> to vector<32x128xf32>
    %364 = vector.extract_strided_slice %361 {offsets = [64, 0], sizes = [32, 128], strides = [1, 1]} : vector<96x128xf32> to vector<32x128xf32>
    %365 = vector.extract_strided_slice %353 {offsets = [96, 0], sizes = [32, 128], strides = [1, 1]} : vector<128x128xf32> to vector<32x128xf32>
    %366 = math.tanh %365 : vector<32x128xf32>
    %367 = arith.mulf %363, %289 : vector<32x128xf32>
    %368 = arith.mulf %362, %366 : vector<32x128xf32>
    %369 = arith.addf %367, %368 : vector<32x128xf32>
    %370 = math.tanh %369 : vector<32x128xf32>
    %371 = arith.mulf %364, %370 : vector<32x128xf32>
    %c1_i32_102 = arith.constant 1 : i32
    %372 = tpu.dynamic_rotate %335 by %c1_i32_102 dim 1 : vector<32x128xf32>, i32 -> vector<32x128xf32>
    %373 = vector.extract_strided_slice %8 {offsets = [0, 0, 0], sizes = [1, 1, 128], strides = [1, 1, 1]} : vector<3x1x128xf32> to vector<1x1x128xf32>
    %374 = vector.shape_cast %373 : vector<1x1x128xf32> to vector<1x128xf32>
    %375 = vector.broadcast %374 : vector<1x128xf32> to vector<32x128xf32>
    %376 = arith.mulf %372, %375 : vector<32x128xf32>
    %c127_i32_103 = arith.constant 127 : i32
    %377 = tpu.dynamic_rotate %335 by %c127_i32_103 dim 1 : vector<32x128xf32>, i32 -> vector<32x128xf32>
    %378 = vector.extract_strided_slice %8 {offsets = [2, 0, 0], sizes = [1, 1, 128], strides = [1, 1, 1]} : vector<3x1x128xf32> to vector<1x1x128xf32>
    %379 = vector.shape_cast %378 : vector<1x1x128xf32> to vector<1x128xf32>
    %380 = vector.broadcast %379 : vector<1x128xf32> to vector<32x128xf32>
    %381 = arith.mulf %377, %380 : vector<32x128xf32>
    %382 = tpu.concatenate %376, %335, %381 in 0 : vector<32x128xf32>, vector<32x128xf32>, vector<32x128xf32> -> vector<96x128xf32>
    %c1_i32_104 = arith.constant 1 : i32
    %383 = tpu.dynamic_rotate %371 by %c1_i32_104 dim 1 : vector<32x128xf32>, i32 -> vector<32x128xf32>
    %384 = vector.extract_strided_slice %8 {offsets = [0, 0, 0], sizes = [1, 1, 128], strides = [1, 1, 1]} : vector<3x1x128xf32> to vector<1x1x128xf32>
    %385 = vector.shape_cast %384 : vector<1x1x128xf32> to vector<1x128xf32>
    %386 = vector.broadcast %385 : vector<1x128xf32> to vector<32x128xf32>
    %387 = arith.mulf %383, %386 : vector<32x128xf32>
    %c127_i32_105 = arith.constant 127 : i32
    %388 = tpu.dynamic_rotate %371 by %c127_i32_105 dim 1 : vector<32x128xf32>, i32 -> vector<32x128xf32>
    %389 = vector.extract_strided_slice %8 {offsets = [2, 0, 0], sizes = [1, 1, 128], strides = [1, 1, 1]} : vector<3x1x128xf32> to vector<1x1x128xf32>
    %390 = vector.shape_cast %389 : vector<1x1x128xf32> to vector<1x128xf32>
    %391 = vector.broadcast %390 : vector<1x128xf32> to vector<32x128xf32>
    %392 = arith.mulf %388, %391 : vector<32x128xf32>
    %393 = tpu.concatenate %387, %371, %392 in 0 : vector<32x128xf32>, vector<32x128xf32>, vector<32x128xf32> -> vector<96x128xf32>
    %394 = tpu.concatenate %393, %382 in 0 : vector<96x128xf32>, vector<96x128xf32> -> vector<192x128xf32>
    %395 = arith.truncf %394 : vector<192x128xf32> to vector<192x128xbf16>
    %cst_106 = arith.constant dense<0.000000e+00> : vector<128x128xf32>
    %396 = tpu.matmul %5, %395, %cst_106 {dimension_numbers = #tpu.dot_dimension_numbers<[1], [0], [0], [1], [0, 0, 1, 1], [], []>} : vector<128x192xbf16>, vector<192x128xbf16>, vector<128x128xf32> -> vector<128x128xf32>
    %397 = arith.addf %396, %11 : vector<128x128xf32>
    %398 = vector.extract_strided_slice %397 {offsets = [0, 0], sizes = [96, 128], strides = [1, 1]} : vector<128x128xf32> to vector<96x128xf32>
    %cst_107 = arith.constant 5.000000e-01 : f32
    %399 = vector.broadcast %cst_107 : f32 to vector<96x128xf32>
    %400 = arith.mulf %399, %398 : vector<96x128xf32>
    %401 = math.tanh %400 : vector<96x128xf32>
    %cst_108 = arith.constant 1.000000e+00 : f32
    %402 = vector.broadcast %cst_108 : f32 to vector<96x128xf32>
    %403 = arith.addf %402, %401 : vector<96x128xf32>
    %cst_109 = arith.constant 5.000000e-01 : f32
    %404 = vector.broadcast %cst_109 : f32 to vector<96x128xf32>
    %405 = arith.mulf %404, %403 : vector<96x128xf32>
    %406 = vector.extract_strided_slice %405 {offsets = [0, 0], sizes = [32, 128], strides = [1, 1]} : vector<96x128xf32> to vector<32x128xf32>
    %407 = vector.extract_strided_slice %405 {offsets = [32, 0], sizes = [32, 128], strides = [1, 1]} : vector<96x128xf32> to vector<32x128xf32>
    %408 = vector.extract_strided_slice %405 {offsets = [64, 0], sizes = [32, 128], strides = [1, 1]} : vector<96x128xf32> to vector<32x128xf32>
    %409 = vector.extract_strided_slice %397 {offsets = [96, 0], sizes = [32, 128], strides = [1, 1]} : vector<128x128xf32> to vector<32x128xf32>
    %410 = math.tanh %409 : vector<32x128xf32>
    %411 = arith.mulf %407, %333 : vector<32x128xf32>
    %412 = arith.mulf %406, %410 : vector<32x128xf32>
    %413 = arith.addf %411, %412 : vector<32x128xf32>
    %414 = math.tanh %413 : vector<32x128xf32>
    %415 = arith.mulf %408, %414 : vector<32x128xf32>
    %c4 = arith.constant 4 : index
    %c0_110 = arith.constant 0 : index
    %c0_111 = arith.constant 0 : index
    %416 = vector.load %arg13[%c4, %c0_110, %c0_111] : memref<8x32x128xf32, #tpu.memory_space<vmem>>, vector<1x32x128xf32>
    %417 = vector.shape_cast %416 : vector<1x32x128xf32> to vector<32x128xf32>
    %418 = vector.shape_cast %415 : vector<32x128xf32> to vector<1x32x128xf32>
    tpu.vector_store %arg13[%c4, %c0_110, %c0_111], %418 {strides = array<i32>} : memref<8x32x128xf32, #tpu.memory_space<vmem>>, vector<1x32x128xf32>,
    %c1_i32_112 = arith.constant 1 : i32
    %419 = tpu.dynamic_rotate %371 by %c1_i32_112 dim 1 : vector<32x128xf32>, i32 -> vector<32x128xf32>
    %420 = vector.extract_strided_slice %3 {offsets = [0, 0, 0], sizes = [1, 1, 128], strides = [1, 1, 1]} : vector<3x1x128xf32> to vector<1x1x128xf32>
    %421 = vector.shape_cast %420 : vector<1x1x128xf32> to vector<1x128xf32>
    %422 = vector.broadcast %421 : vector<1x128xf32> to vector<32x128xf32>
    %423 = arith.mulf %419, %422 : vector<32x128xf32>
    %c127_i32_113 = arith.constant 127 : i32
    %424 = tpu.dynamic_rotate %371 by %c127_i32_113 dim 1 : vector<32x128xf32>, i32 -> vector<32x128xf32>
    %425 = vector.extract_strided_slice %3 {offsets = [2, 0, 0], sizes = [1, 1, 128], strides = [1, 1, 1]} : vector<3x1x128xf32> to vector<1x1x128xf32>
    %426 = vector.shape_cast %425 : vector<1x1x128xf32> to vector<1x128xf32>
    %427 = vector.broadcast %426 : vector<1x128xf32> to vector<32x128xf32>
    %428 = arith.mulf %424, %427 : vector<32x128xf32>
    %429 = tpu.concatenate %423, %371, %428 in 0 : vector<32x128xf32>, vector<32x128xf32>, vector<32x128xf32> -> vector<96x128xf32>
    %c0_114 = arith.constant 0 : index
    %c640 = arith.constant 640 : index
    %430 = vector.load %arg18[%c0_114, %c640] : memref<128x1024xf32, #tpu.memory_space<vmem>>, vector<128x128xf32>
    %431 = arith.truncf %429 : vector<96x128xf32> to vector<96x128xbf16>
    %cst_115 = arith.constant dense<0.000000e+00> : vector<128x128xf32>
    %432 = tpu.matmul %0, %431, %cst_115 {dimension_numbers = #tpu.dot_dimension_numbers<[1], [0], [0], [1], [0, 0, 1, 1], [], []>} : vector<128x96xbf16>, vector<96x128xbf16>, vector<128x128xf32> -> vector<128x128xf32>
    %433 = arith.addf %430, %432 : vector<128x128xf32>
    %434 = vector.extract_strided_slice %433 {offsets = [0, 0], sizes = [96, 128], strides = [1, 1]} : vector<128x128xf32> to vector<96x128xf32>
    %cst_116 = arith.constant 5.000000e-01 : f32
    %435 = vector.broadcast %cst_116 : f32 to vector<96x128xf32>
    %436 = arith.mulf %435, %434 : vector<96x128xf32>
    %437 = math.tanh %436 : vector<96x128xf32>
    %cst_117 = arith.constant 1.000000e+00 : f32
    %438 = vector.broadcast %cst_117 : f32 to vector<96x128xf32>
    %439 = arith.addf %438, %437 : vector<96x128xf32>
    %cst_118 = arith.constant 5.000000e-01 : f32
    %440 = vector.broadcast %cst_118 : f32 to vector<96x128xf32>
    %441 = arith.mulf %440, %439 : vector<96x128xf32>
    %442 = vector.extract_strided_slice %441 {offsets = [0, 0], sizes = [32, 128], strides = [1, 1]} : vector<96x128xf32> to vector<32x128xf32>
    %443 = vector.extract_strided_slice %441 {offsets = [32, 0], sizes = [32, 128], strides = [1, 1]} : vector<96x128xf32> to vector<32x128xf32>
    %444 = vector.extract_strided_slice %441 {offsets = [64, 0], sizes = [32, 128], strides = [1, 1]} : vector<96x128xf32> to vector<32x128xf32>
    %445 = vector.extract_strided_slice %433 {offsets = [96, 0], sizes = [32, 128], strides = [1, 1]} : vector<128x128xf32> to vector<32x128xf32>
    %446 = math.tanh %445 : vector<32x128xf32>
    %447 = arith.mulf %443, %369 : vector<32x128xf32>
    %448 = arith.mulf %442, %446 : vector<32x128xf32>
    %449 = arith.addf %447, %448 : vector<32x128xf32>
    %450 = math.tanh %449 : vector<32x128xf32>
    %451 = arith.mulf %444, %450 : vector<32x128xf32>
    %c1_i32_119 = arith.constant 1 : i32
    %452 = tpu.dynamic_rotate %415 by %c1_i32_119 dim 1 : vector<32x128xf32>, i32 -> vector<32x128xf32>
    %453 = vector.extract_strided_slice %8 {offsets = [0, 0, 0], sizes = [1, 1, 128], strides = [1, 1, 1]} : vector<3x1x128xf32> to vector<1x1x128xf32>
    %454 = vector.shape_cast %453 : vector<1x1x128xf32> to vector<1x128xf32>
    %455 = vector.broadcast %454 : vector<1x128xf32> to vector<32x128xf32>
    %456 = arith.mulf %452, %455 : vector<32x128xf32>
    %c127_i32_120 = arith.constant 127 : i32
    %457 = tpu.dynamic_rotate %415 by %c127_i32_120 dim 1 : vector<32x128xf32>, i32 -> vector<32x128xf32>
    %458 = vector.extract_strided_slice %8 {offsets = [2, 0, 0], sizes = [1, 1, 128], strides = [1, 1, 1]} : vector<3x1x128xf32> to vector<1x1x128xf32>
    %459 = vector.shape_cast %458 : vector<1x1x128xf32> to vector<1x128xf32>
    %460 = vector.broadcast %459 : vector<1x128xf32> to vector<32x128xf32>
    %461 = arith.mulf %457, %460 : vector<32x128xf32>
    %462 = tpu.concatenate %456, %415, %461 in 0 : vector<32x128xf32>, vector<32x128xf32>, vector<32x128xf32> -> vector<96x128xf32>
    %c1_i32_121 = arith.constant 1 : i32
    %463 = tpu.dynamic_rotate %451 by %c1_i32_121 dim 1 : vector<32x128xf32>, i32 -> vector<32x128xf32>
    %464 = vector.extract_strided_slice %8 {offsets = [0, 0, 0], sizes = [1, 1, 128], strides = [1, 1, 1]} : vector<3x1x128xf32> to vector<1x1x128xf32>
    %465 = vector.shape_cast %464 : vector<1x1x128xf32> to vector<1x128xf32>
    %466 = vector.broadcast %465 : vector<1x128xf32> to vector<32x128xf32>
    %467 = arith.mulf %463, %466 : vector<32x128xf32>
    %c127_i32_122 = arith.constant 127 : i32
    %468 = tpu.dynamic_rotate %451 by %c127_i32_122 dim 1 : vector<32x128xf32>, i32 -> vector<32x128xf32>
    %469 = vector.extract_strided_slice %8 {offsets = [2, 0, 0], sizes = [1, 1, 128], strides = [1, 1, 1]} : vector<3x1x128xf32> to vector<1x1x128xf32>
    %470 = vector.shape_cast %469 : vector<1x1x128xf32> to vector<1x128xf32>
    %471 = vector.broadcast %470 : vector<1x128xf32> to vector<32x128xf32>
    %472 = arith.mulf %468, %471 : vector<32x128xf32>
    %473 = tpu.concatenate %467, %451, %472 in 0 : vector<32x128xf32>, vector<32x128xf32>, vector<32x128xf32> -> vector<96x128xf32>
    %474 = tpu.concatenate %473, %462 in 0 : vector<96x128xf32>, vector<96x128xf32> -> vector<192x128xf32>
    %475 = arith.truncf %474 : vector<192x128xf32> to vector<192x128xbf16>
    %cst_123 = arith.constant dense<0.000000e+00> : vector<128x128xf32>
    %476 = tpu.matmul %5, %475, %cst_123 {dimension_numbers = #tpu.dot_dimension_numbers<[1], [0], [0], [1], [0, 0, 1, 1], [], []>} : vector<128x192xbf16>, vector<192x128xbf16>, vector<128x128xf32> -> vector<128x128xf32>
    %477 = arith.addf %476, %11 : vector<128x128xf32>
    %478 = vector.extract_strided_slice %477 {offsets = [0, 0], sizes = [96, 128], strides = [1, 1]} : vector<128x128xf32> to vector<96x128xf32>
    %cst_124 = arith.constant 5.000000e-01 : f32
    %479 = vector.broadcast %cst_124 : f32 to vector<96x128xf32>
    %480 = arith.mulf %479, %478 : vector<96x128xf32>
    %481 = math.tanh %480 : vector<96x128xf32>
    %cst_125 = arith.constant 1.000000e+00 : f32
    %482 = vector.broadcast %cst_125 : f32 to vector<96x128xf32>
    %483 = arith.addf %482, %481 : vector<96x128xf32>
    %cst_126 = arith.constant 5.000000e-01 : f32
    %484 = vector.broadcast %cst_126 : f32 to vector<96x128xf32>
    %485 = arith.mulf %484, %483 : vector<96x128xf32>
    %486 = vector.extract_strided_slice %485 {offsets = [0, 0], sizes = [32, 128], strides = [1, 1]} : vector<96x128xf32> to vector<32x128xf32>
    %487 = vector.extract_strided_slice %485 {offsets = [32, 0], sizes = [32, 128], strides = [1, 1]} : vector<96x128xf32> to vector<32x128xf32>
    %488 = vector.extract_strided_slice %485 {offsets = [64, 0], sizes = [32, 128], strides = [1, 1]} : vector<96x128xf32> to vector<32x128xf32>
    %489 = vector.extract_strided_slice %477 {offsets = [96, 0], sizes = [32, 128], strides = [1, 1]} : vector<128x128xf32> to vector<32x128xf32>
    %490 = math.tanh %489 : vector<32x128xf32>
    %491 = arith.mulf %487, %413 : vector<32x128xf32>
    %492 = arith.mulf %486, %490 : vector<32x128xf32>
    %493 = arith.addf %491, %492 : vector<32x128xf32>
    %494 = math.tanh %493 : vector<32x128xf32>
    %495 = arith.mulf %488, %494 : vector<32x128xf32>
    %c5 = arith.constant 5 : index
    %c0_127 = arith.constant 0 : index
    %c0_128 = arith.constant 0 : index
    %496 = vector.load %arg13[%c5, %c0_127, %c0_128] : memref<8x32x128xf32, #tpu.memory_space<vmem>>, vector<1x32x128xf32>
    %497 = vector.shape_cast %496 : vector<1x32x128xf32> to vector<32x128xf32>
    %498 = vector.shape_cast %495 : vector<32x128xf32> to vector<1x32x128xf32>
    tpu.vector_store %arg13[%c5, %c0_127, %c0_128], %498 {strides = array<i32>} : memref<8x32x128xf32, #tpu.memory_space<vmem>>, vector<1x32x128xf32>,
    %c1_i32_129 = arith.constant 1 : i32
    %499 = tpu.dynamic_rotate %451 by %c1_i32_129 dim 1 : vector<32x128xf32>, i32 -> vector<32x128xf32>
    %500 = vector.extract_strided_slice %3 {offsets = [0, 0, 0], sizes = [1, 1, 128], strides = [1, 1, 1]} : vector<3x1x128xf32> to vector<1x1x128xf32>
    %501 = vector.shape_cast %500 : vector<1x1x128xf32> to vector<1x128xf32>
    %502 = vector.broadcast %501 : vector<1x128xf32> to vector<32x128xf32>
    %503 = arith.mulf %499, %502 : vector<32x128xf32>
    %c127_i32_130 = arith.constant 127 : i32
    %504 = tpu.dynamic_rotate %451 by %c127_i32_130 dim 1 : vector<32x128xf32>, i32 -> vector<32x128xf32>
    %505 = vector.extract_strided_slice %3 {offsets = [2, 0, 0], sizes = [1, 1, 128], strides = [1, 1, 1]} : vector<3x1x128xf32> to vector<1x1x128xf32>
    %506 = vector.shape_cast %505 : vector<1x1x128xf32> to vector<1x128xf32>
    %507 = vector.broadcast %506 : vector<1x128xf32> to vector<32x128xf32>
    %508 = arith.mulf %504, %507 : vector<32x128xf32>
    %509 = tpu.concatenate %503, %451, %508 in 0 : vector<32x128xf32>, vector<32x128xf32>, vector<32x128xf32> -> vector<96x128xf32>
    %c0_131 = arith.constant 0 : index
    %c768 = arith.constant 768 : index
    %510 = vector.load %arg18[%c0_131, %c768] : memref<128x1024xf32, #tpu.memory_space<vmem>>, vector<128x128xf32>
    %511 = arith.truncf %509 : vector<96x128xf32> to vector<96x128xbf16>
    %cst_132 = arith.constant dense<0.000000e+00> : vector<128x128xf32>
    %512 = tpu.matmul %0, %511, %cst_132 {dimension_numbers = #tpu.dot_dimension_numbers<[1], [0], [0], [1], [0, 0, 1, 1], [], []>} : vector<128x96xbf16>, vector<96x128xbf16>, vector<128x128xf32> -> vector<128x128xf32>
    %513 = arith.addf %510, %512 : vector<128x128xf32>
    %514 = vector.extract_strided_slice %513 {offsets = [0, 0], sizes = [96, 128], strides = [1, 1]} : vector<128x128xf32> to vector<96x128xf32>
    %cst_133 = arith.constant 5.000000e-01 : f32
    %515 = vector.broadcast %cst_133 : f32 to vector<96x128xf32>
    %516 = arith.mulf %515, %514 : vector<96x128xf32>
    %517 = math.tanh %516 : vector<96x128xf32>
    %cst_134 = arith.constant 1.000000e+00 : f32
    %518 = vector.broadcast %cst_134 : f32 to vector<96x128xf32>
    %519 = arith.addf %518, %517 : vector<96x128xf32>
    %cst_135 = arith.constant 5.000000e-01 : f32
    %520 = vector.broadcast %cst_135 : f32 to vector<96x128xf32>
    %521 = arith.mulf %520, %519 : vector<96x128xf32>
    %522 = vector.extract_strided_slice %521 {offsets = [0, 0], sizes = [32, 128], strides = [1, 1]} : vector<96x128xf32> to vector<32x128xf32>
    %523 = vector.extract_strided_slice %521 {offsets = [32, 0], sizes = [32, 128], strides = [1, 1]} : vector<96x128xf32> to vector<32x128xf32>
    %524 = vector.extract_strided_slice %521 {offsets = [64, 0], sizes = [32, 128], strides = [1, 1]} : vector<96x128xf32> to vector<32x128xf32>
    %525 = vector.extract_strided_slice %513 {offsets = [96, 0], sizes = [32, 128], strides = [1, 1]} : vector<128x128xf32> to vector<32x128xf32>
    %526 = math.tanh %525 : vector<32x128xf32>
    %527 = arith.mulf %523, %449 : vector<32x128xf32>
    %528 = arith.mulf %522, %526 : vector<32x128xf32>
    %529 = arith.addf %527, %528 : vector<32x128xf32>
    %530 = math.tanh %529 : vector<32x128xf32>
    %531 = arith.mulf %524, %530 : vector<32x128xf32>
    %c1_i32_136 = arith.constant 1 : i32
    %532 = tpu.dynamic_rotate %495 by %c1_i32_136 dim 1 : vector<32x128xf32>, i32 -> vector<32x128xf32>
    %533 = vector.extract_strided_slice %8 {offsets = [0, 0, 0], sizes = [1, 1, 128], strides = [1, 1, 1]} : vector<3x1x128xf32> to vector<1x1x128xf32>
    %534 = vector.shape_cast %533 : vector<1x1x128xf32> to vector<1x128xf32>
    %535 = vector.broadcast %534 : vector<1x128xf32> to vector<32x128xf32>
    %536 = arith.mulf %532, %535 : vector<32x128xf32>
    %c127_i32_137 = arith.constant 127 : i32
    %537 = tpu.dynamic_rotate %495 by %c127_i32_137 dim 1 : vector<32x128xf32>, i32 -> vector<32x128xf32>
    %538 = vector.extract_strided_slice %8 {offsets = [2, 0, 0], sizes = [1, 1, 128], strides = [1, 1, 1]} : vector<3x1x128xf32> to vector<1x1x128xf32>
    %539 = vector.shape_cast %538 : vector<1x1x128xf32> to vector<1x128xf32>
    %540 = vector.broadcast %539 : vector<1x128xf32> to vector<32x128xf32>
    %541 = arith.mulf %537, %540 : vector<32x128xf32>
    %542 = tpu.concatenate %536, %495, %541 in 0 : vector<32x128xf32>, vector<32x128xf32>, vector<32x128xf32> -> vector<96x128xf32>
    %c1_i32_138 = arith.constant 1 : i32
    %543 = tpu.dynamic_rotate %531 by %c1_i32_138 dim 1 : vector<32x128xf32>, i32 -> vector<32x128xf32>
    %544 = vector.extract_strided_slice %8 {offsets = [0, 0, 0], sizes = [1, 1, 128], strides = [1, 1, 1]} : vector<3x1x128xf32> to vector<1x1x128xf32>
    %545 = vector.shape_cast %544 : vector<1x1x128xf32> to vector<1x128xf32>
    %546 = vector.broadcast %545 : vector<1x128xf32> to vector<32x128xf32>
    %547 = arith.mulf %543, %546 : vector<32x128xf32>
    %c127_i32_139 = arith.constant 127 : i32
    %548 = tpu.dynamic_rotate %531 by %c127_i32_139 dim 1 : vector<32x128xf32>, i32 -> vector<32x128xf32>
    %549 = vector.extract_strided_slice %8 {offsets = [2, 0, 0], sizes = [1, 1, 128], strides = [1, 1, 1]} : vector<3x1x128xf32> to vector<1x1x128xf32>
    %550 = vector.shape_cast %549 : vector<1x1x128xf32> to vector<1x128xf32>
    %551 = vector.broadcast %550 : vector<1x128xf32> to vector<32x128xf32>
    %552 = arith.mulf %548, %551 : vector<32x128xf32>
    %553 = tpu.concatenate %547, %531, %552 in 0 : vector<32x128xf32>, vector<32x128xf32>, vector<32x128xf32> -> vector<96x128xf32>
    %554 = tpu.concatenate %553, %542 in 0 : vector<96x128xf32>, vector<96x128xf32> -> vector<192x128xf32>
    %555 = arith.truncf %554 : vector<192x128xf32> to vector<192x128xbf16>
    %cst_140 = arith.constant dense<0.000000e+00> : vector<128x128xf32>
    %556 = tpu.matmul %5, %555, %cst_140 {dimension_numbers = #tpu.dot_dimension_numbers<[1], [0], [0], [1], [0, 0, 1, 1], [], []>} : vector<128x192xbf16>, vector<192x128xbf16>, vector<128x128xf32> -> vector<128x128xf32>
    %557 = arith.addf %556, %11 : vector<128x128xf32>
    %558 = vector.extract_strided_slice %557 {offsets = [0, 0], sizes = [96, 128], strides = [1, 1]} : vector<128x128xf32> to vector<96x128xf32>
    %cst_141 = arith.constant 5.000000e-01 : f32
    %559 = vector.broadcast %cst_141 : f32 to vector<96x128xf32>
    %560 = arith.mulf %559, %558 : vector<96x128xf32>
    %561 = math.tanh %560 : vector<96x128xf32>
    %cst_142 = arith.constant 1.000000e+00 : f32
    %562 = vector.broadcast %cst_142 : f32 to vector<96x128xf32>
    %563 = arith.addf %562, %561 : vector<96x128xf32>
    %cst_143 = arith.constant 5.000000e-01 : f32
    %564 = vector.broadcast %cst_143 : f32 to vector<96x128xf32>
    %565 = arith.mulf %564, %563 : vector<96x128xf32>
    %566 = vector.extract_strided_slice %565 {offsets = [0, 0], sizes = [32, 128], strides = [1, 1]} : vector<96x128xf32> to vector<32x128xf32>
    %567 = vector.extract_strided_slice %565 {offsets = [32, 0], sizes = [32, 128], strides = [1, 1]} : vector<96x128xf32> to vector<32x128xf32>
    %568 = vector.extract_strided_slice %565 {offsets = [64, 0], sizes = [32, 128], strides = [1, 1]} : vector<96x128xf32> to vector<32x128xf32>
    %569 = vector.extract_strided_slice %557 {offsets = [96, 0], sizes = [32, 128], strides = [1, 1]} : vector<128x128xf32> to vector<32x128xf32>
    %570 = math.tanh %569 : vector<32x128xf32>
    %571 = arith.mulf %567, %493 : vector<32x128xf32>
    %572 = arith.mulf %566, %570 : vector<32x128xf32>
    %573 = arith.addf %571, %572 : vector<32x128xf32>
    %574 = math.tanh %573 : vector<32x128xf32>
    %575 = arith.mulf %568, %574 : vector<32x128xf32>
    %c6 = arith.constant 6 : index
    %c0_144 = arith.constant 0 : index
    %c0_145 = arith.constant 0 : index
    %576 = vector.load %arg13[%c6, %c0_144, %c0_145] : memref<8x32x128xf32, #tpu.memory_space<vmem>>, vector<1x32x128xf32>
    %577 = vector.shape_cast %576 : vector<1x32x128xf32> to vector<32x128xf32>
    %578 = vector.shape_cast %575 : vector<32x128xf32> to vector<1x32x128xf32>
    tpu.vector_store %arg13[%c6, %c0_144, %c0_145], %578 {strides = array<i32>} : memref<8x32x128xf32, #tpu.memory_space<vmem>>, vector<1x32x128xf32>,
    %c1_i32_146 = arith.constant 1 : i32
    %579 = tpu.dynamic_rotate %531 by %c1_i32_146 dim 1 : vector<32x128xf32>, i32 -> vector<32x128xf32>
    %580 = vector.extract_strided_slice %3 {offsets = [0, 0, 0], sizes = [1, 1, 128], strides = [1, 1, 1]} : vector<3x1x128xf32> to vector<1x1x128xf32>
    %581 = vector.shape_cast %580 : vector<1x1x128xf32> to vector<1x128xf32>
    %582 = vector.broadcast %581 : vector<1x128xf32> to vector<32x128xf32>
    %583 = arith.mulf %579, %582 : vector<32x128xf32>
    %c127_i32_147 = arith.constant 127 : i32
    %584 = tpu.dynamic_rotate %531 by %c127_i32_147 dim 1 : vector<32x128xf32>, i32 -> vector<32x128xf32>
    %585 = vector.extract_strided_slice %3 {offsets = [2, 0, 0], sizes = [1, 1, 128], strides = [1, 1, 1]} : vector<3x1x128xf32> to vector<1x1x128xf32>
    %586 = vector.shape_cast %585 : vector<1x1x128xf32> to vector<1x128xf32>
    %587 = vector.broadcast %586 : vector<1x128xf32> to vector<32x128xf32>
    %588 = arith.mulf %584, %587 : vector<32x128xf32>
    %589 = tpu.concatenate %583, %531, %588 in 0 : vector<32x128xf32>, vector<32x128xf32>, vector<32x128xf32> -> vector<96x128xf32>
    %c0_148 = arith.constant 0 : index
    %c896 = arith.constant 896 : index
    %590 = vector.load %arg18[%c0_148, %c896] : memref<128x1024xf32, #tpu.memory_space<vmem>>, vector<128x128xf32>
    %591 = arith.truncf %589 : vector<96x128xf32> to vector<96x128xbf16>
    %cst_149 = arith.constant dense<0.000000e+00> : vector<128x128xf32>
    %592 = tpu.matmul %0, %591, %cst_149 {dimension_numbers = #tpu.dot_dimension_numbers<[1], [0], [0], [1], [0, 0, 1, 1], [], []>} : vector<128x96xbf16>, vector<96x128xbf16>, vector<128x128xf32> -> vector<128x128xf32>
    %593 = arith.addf %590, %592 : vector<128x128xf32>
    %594 = vector.extract_strided_slice %593 {offsets = [0, 0], sizes = [96, 128], strides = [1, 1]} : vector<128x128xf32> to vector<96x128xf32>
    %cst_150 = arith.constant 5.000000e-01 : f32
    %595 = vector.broadcast %cst_150 : f32 to vector<96x128xf32>
    %596 = arith.mulf %595, %594 : vector<96x128xf32>
    %597 = math.tanh %596 : vector<96x128xf32>
    %cst_151 = arith.constant 1.000000e+00 : f32
    %598 = vector.broadcast %cst_151 : f32 to vector<96x128xf32>
    %599 = arith.addf %598, %597 : vector<96x128xf32>
    %cst_152 = arith.constant 5.000000e-01 : f32
    %600 = vector.broadcast %cst_152 : f32 to vector<96x128xf32>
    %601 = arith.mulf %600, %599 : vector<96x128xf32>
    %602 = vector.extract_strided_slice %601 {offsets = [0, 0], sizes = [32, 128], strides = [1, 1]} : vector<96x128xf32> to vector<32x128xf32>
    %603 = vector.extract_strided_slice %601 {offsets = [32, 0], sizes = [32, 128], strides = [1, 1]} : vector<96x128xf32> to vector<32x128xf32>
    %604 = vector.extract_strided_slice %601 {offsets = [64, 0], sizes = [32, 128], strides = [1, 1]} : vector<96x128xf32> to vector<32x128xf32>
    %605 = vector.extract_strided_slice %593 {offsets = [96, 0], sizes = [32, 128], strides = [1, 1]} : vector<128x128xf32> to vector<32x128xf32>
    %606 = math.tanh %605 : vector<32x128xf32>
    %607 = arith.mulf %603, %529 : vector<32x128xf32>
    %608 = arith.mulf %602, %606 : vector<32x128xf32>
    %609 = arith.addf %607, %608 : vector<32x128xf32>
    %610 = math.tanh %609 : vector<32x128xf32>
    %611 = arith.mulf %604, %610 : vector<32x128xf32>
    %c1_i32_153 = arith.constant 1 : i32
    %612 = tpu.dynamic_rotate %575 by %c1_i32_153 dim 1 : vector<32x128xf32>, i32 -> vector<32x128xf32>
    %613 = vector.extract_strided_slice %8 {offsets = [0, 0, 0], sizes = [1, 1, 128], strides = [1, 1, 1]} : vector<3x1x128xf32> to vector<1x1x128xf32>
    %614 = vector.shape_cast %613 : vector<1x1x128xf32> to vector<1x128xf32>
    %615 = vector.broadcast %614 : vector<1x128xf32> to vector<32x128xf32>
    %616 = arith.mulf %612, %615 : vector<32x128xf32>
    %c127_i32_154 = arith.constant 127 : i32
    %617 = tpu.dynamic_rotate %575 by %c127_i32_154 dim 1 : vector<32x128xf32>, i32 -> vector<32x128xf32>
    %618 = vector.extract_strided_slice %8 {offsets = [2, 0, 0], sizes = [1, 1, 128], strides = [1, 1, 1]} : vector<3x1x128xf32> to vector<1x1x128xf32>
    %619 = vector.shape_cast %618 : vector<1x1x128xf32> to vector<1x128xf32>
    %620 = vector.broadcast %619 : vector<1x128xf32> to vector<32x128xf32>
    %621 = arith.mulf %617, %620 : vector<32x128xf32>
    %622 = tpu.concatenate %616, %575, %621 in 0 : vector<32x128xf32>, vector<32x128xf32>, vector<32x128xf32> -> vector<96x128xf32>
    %c1_i32_155 = arith.constant 1 : i32
    %623 = tpu.dynamic_rotate %611 by %c1_i32_155 dim 1 : vector<32x128xf32>, i32 -> vector<32x128xf32>
    %624 = vector.extract_strided_slice %8 {offsets = [0, 0, 0], sizes = [1, 1, 128], strides = [1, 1, 1]} : vector<3x1x128xf32> to vector<1x1x128xf32>
    %625 = vector.shape_cast %624 : vector<1x1x128xf32> to vector<1x128xf32>
    %626 = vector.broadcast %625 : vector<1x128xf32> to vector<32x128xf32>
    %627 = arith.mulf %623, %626 : vector<32x128xf32>
    %c127_i32_156 = arith.constant 127 : i32
    %628 = tpu.dynamic_rotate %611 by %c127_i32_156 dim 1 : vector<32x128xf32>, i32 -> vector<32x128xf32>
    %629 = vector.extract_strided_slice %8 {offsets = [2, 0, 0], sizes = [1, 1, 128], strides = [1, 1, 1]} : vector<3x1x128xf32> to vector<1x1x128xf32>
    %630 = vector.shape_cast %629 : vector<1x1x128xf32> to vector<1x128xf32>
    %631 = vector.broadcast %630 : vector<1x128xf32> to vector<32x128xf32>
    %632 = arith.mulf %628, %631 : vector<32x128xf32>
    %633 = tpu.concatenate %627, %611, %632 in 0 : vector<32x128xf32>, vector<32x128xf32>, vector<32x128xf32> -> vector<96x128xf32>
    %634 = tpu.concatenate %633, %622 in 0 : vector<96x128xf32>, vector<96x128xf32> -> vector<192x128xf32>
    %635 = arith.truncf %634 : vector<192x128xf32> to vector<192x128xbf16>
    %cst_157 = arith.constant dense<0.000000e+00> : vector<128x128xf32>
    %636 = tpu.matmul %5, %635, %cst_157 {dimension_numbers = #tpu.dot_dimension_numbers<[1], [0], [0], [1], [0, 0, 1, 1], [], []>} : vector<128x192xbf16>, vector<192x128xbf16>, vector<128x128xf32> -> vector<128x128xf32>
    %637 = arith.addf %636, %11 : vector<128x128xf32>
    %638 = vector.extract_strided_slice %637 {offsets = [0, 0], sizes = [96, 128], strides = [1, 1]} : vector<128x128xf32> to vector<96x128xf32>
    %cst_158 = arith.constant 5.000000e-01 : f32
    %639 = vector.broadcast %cst_158 : f32 to vector<96x128xf32>
    %640 = arith.mulf %639, %638 : vector<96x128xf32>
    %641 = math.tanh %640 : vector<96x128xf32>
    %cst_159 = arith.constant 1.000000e+00 : f32
    %642 = vector.broadcast %cst_159 : f32 to vector<96x128xf32>
    %643 = arith.addf %642, %641 : vector<96x128xf32>
    %cst_160 = arith.constant 5.000000e-01 : f32
    %644 = vector.broadcast %cst_160 : f32 to vector<96x128xf32>
    %645 = arith.mulf %644, %643 : vector<96x128xf32>
    %646 = vector.extract_strided_slice %645 {offsets = [0, 0], sizes = [32, 128], strides = [1, 1]} : vector<96x128xf32> to vector<32x128xf32>
    %647 = vector.extract_strided_slice %645 {offsets = [32, 0], sizes = [32, 128], strides = [1, 1]} : vector<96x128xf32> to vector<32x128xf32>
    %648 = vector.extract_strided_slice %645 {offsets = [64, 0], sizes = [32, 128], strides = [1, 1]} : vector<96x128xf32> to vector<32x128xf32>
    %649 = vector.extract_strided_slice %637 {offsets = [96, 0], sizes = [32, 128], strides = [1, 1]} : vector<128x128xf32> to vector<32x128xf32>
    %650 = math.tanh %649 : vector<32x128xf32>
    %651 = arith.mulf %647, %573 : vector<32x128xf32>
    %652 = arith.mulf %646, %650 : vector<32x128xf32>
    %653 = arith.addf %651, %652 : vector<32x128xf32>
    %654 = math.tanh %653 : vector<32x128xf32>
    %655 = arith.mulf %648, %654 : vector<32x128xf32>
    %c7 = arith.constant 7 : index
    %c0_161 = arith.constant 0 : index
    %c0_162 = arith.constant 0 : index
    %656 = vector.load %arg13[%c7, %c0_161, %c0_162] : memref<8x32x128xf32, #tpu.memory_space<vmem>>, vector<1x32x128xf32>
    %657 = vector.shape_cast %656 : vector<1x32x128xf32> to vector<32x128xf32>
    %658 = vector.shape_cast %655 : vector<32x128xf32> to vector<1x32x128xf32>
    tpu.vector_store %arg13[%c7, %c0_161, %c0_162], %658 {strides = array<i32>} : memref<8x32x128xf32, #tpu.memory_space<vmem>>, vector<1x32x128xf32>,
    %c0_163 = arith.constant 0 : index
    %c0_164 = arith.constant 0 : index
    %659 = vector.load %arg14[%c0_163, %c0_164] : memref<32x128xf32, #tpu.memory_space<vmem>>, vector<32x128xf32>
    tpu.vector_store %arg14[%c0_163, %c0_164], %611 {strides = array<i32>} : memref<32x128xf32, #tpu.memory_space<vmem>>, vector<32x128xf32>,
    %c0_165 = arith.constant 0 : index
    %c0_166 = arith.constant 0 : index
    %660 = vector.load %arg15[%c0_165, %c0_166] : memref<32x128xf32, #tpu.memory_space<vmem>>, vector<32x128xf32>
    tpu.vector_store %arg15[%c0_165, %c0_166], %609 {strides = array<i32>} : memref<32x128xf32, #tpu.memory_space<vmem>>, vector<32x128xf32>,
    %c0_167 = arith.constant 0 : index
    %c0_168 = arith.constant 0 : index
    %661 = vector.load %arg16[%c0_167, %c0_168] : memref<32x128xf32, #tpu.memory_space<vmem>>, vector<32x128xf32>
    tpu.vector_store %arg16[%c0_167, %c0_168], %655 {strides = array<i32>} : memref<32x128xf32, #tpu.memory_space<vmem>>, vector<32x128xf32>,
    %c0_169 = arith.constant 0 : index
    %c0_170 = arith.constant 0 : index
    %662 = vector.load %arg17[%c0_169, %c0_170] : memref<32x128xf32, #tpu.memory_space<vmem>>, vector<32x128xf32>
    tpu.vector_store %arg17[%c0_169, %c0_170], %653 {strides = array<i32>} : memref<32x128xf32, #tpu.memory_space<vmem>>, vector<32x128xf32>,
    return
  }
  func.func @transform_0(%arg0: i32) -> (i32, i32) {
    %c0_i32 = arith.constant 0 : i32
    %c0_i32_0 = arith.constant 0 : i32
    %c0_i32_1 = arith.constant 0 : i32
    return %c0_i32, %c0_i32_0 : i32, i32
  }
  func.func @transform_1(%arg0: i32) -> (i32, i32) {
    %c0_i32 = arith.constant 0 : i32
    %c0_i32_0 = arith.constant 0 : i32
    %c0_i32_1 = arith.constant 0 : i32
    return %c0_i32, %c0_i32_0 : i32, i32
  }
  func.func @transform_2(%arg0: i32) -> (i32, i32) {
    %c0_i32 = arith.constant 0 : i32
    %c0_i32_0 = arith.constant 0 : i32
    %c0_i32_1 = arith.constant 0 : i32
    return %c0_i32, %c0_i32_0 : i32, i32
  }
  func.func @transform_3(%arg0: i32) -> (i32, i32) {
    %c0_i32 = arith.constant 0 : i32
    %c0_i32_0 = arith.constant 0 : i32
    %c0_i32_1 = arith.constant 0 : i32
    return %c0_i32, %c0_i32_0 : i32, i32
  }
  func.func @transform_4(%arg0: i32) -> (i32, i32) {
    %c0_i32 = arith.constant 0 : i32
    %c0_i32_0 = arith.constant 0 : i32
    %c0_i32_1 = arith.constant 0 : i32
    return %c0_i32, %c0_i32_0 : i32, i32
  }
  func.func @transform_5(%arg0: i32) -> (i32, i32) {
    %c0_i32 = arith.constant 0 : i32
    %c0_i32_0 = arith.constant 0 : i32
    %c0_i32_1 = arith.constant 0 : i32
    return %c0_i32, %c0_i32_0 : i32, i32
  }
  func.func @transform_6(%arg0: i32) -> (i32, i32, i32) {
    %c0_i32 = arith.constant 0 : i32
    %c0_i32_0 = arith.constant 0 : i32
    %c0_i32_1 = arith.constant 0 : i32
    %c0_i32_2 = arith.constant 0 : i32
    return %c0_i32, %c0_i32_0, %c0_i32_1 : i32, i32, i32
  }
  func.func @transform_7(%arg0: i32) -> (i32, i32) {
    %c0_i32 = arith.constant 0 : i32
    %c0_i32_0 = arith.constant 0 : i32
    %c0_i32_1 = arith.constant 0 : i32
    return %c0_i32, %c0_i32_0 : i32, i32
  }
  func.func @transform_8(%arg0: i32) -> (i32, i32) {
    %c0_i32 = arith.constant 0 : i32
    %c0_i32_0 = arith.constant 0 : i32
    %c0_i32_1 = arith.constant 0 : i32
    return %c0_i32, %c0_i32_0 : i32, i32
  }
  func.func @transform_9(%arg0: i32) -> (i32, i32) {
    %c0_i32 = arith.constant 0 : i32
    %c0_i32_0 = arith.constant 0 : i32
    %c0_i32_1 = arith.constant 0 : i32
    return %c0_i32, %c0_i32_0 : i32, i32
  }
  func.func @transform_10(%arg0: i32) -> (i32, i32) {
    %c0_i32 = arith.constant 0 : i32
    %c0_i32_0 = arith.constant 0 : i32
    %c0_i32_1 = arith.constant 0 : i32
    return %c0_i32, %c0_i32_0 : i32, i32
  }
  func.func @transform_11(%arg0: i32) -> (i32, i32, i32) {
    %c0_i32 = arith.constant 0 : i32
    %c0_i32_0 = arith.constant 0 : i32
    %c0_i32_1 = arith.constant 0 : i32
    %c0_i32_2 = arith.constant 0 : i32
    return %c0_i32, %c0_i32_0, %c0_i32_1 : i32, i32, i32
  }
  func.func @transform_12(%arg0: i32) -> (i32, i32, i32) {
    %c0_i32 = arith.constant 0 : i32
    %c0_i32_0 = arith.constant 0 : i32
    %c0_i32_1 = arith.constant 0 : i32
    %c0_i32_2 = arith.constant 0 : i32
    return %c0_i32, %c0_i32_0, %c0_i32_1 : i32, i32, i32
  }
  func.func @transform_13(%arg0: i32) -> (i32, i32) {
    %c0_i32 = arith.constant 0 : i32
    %c0_i32_0 = arith.constant 0 : i32
    %c0_i32_1 = arith.constant 0 : i32
    return %c0_i32, %c0_i32_0 : i32, i32
  }
  func.func @transform_14(%arg0: i32) -> (i32, i32) {
    %c0_i32 = arith.constant 0 : i32
    %c0_i32_0 = arith.constant 0 : i32
    %c0_i32_1 = arith.constant 0 : i32
    return %c0_i32, %c0_i32_0 : i32, i32
  }
  func.func @transform_15(%arg0: i32) -> (i32, i32) {
    %c0_i32 = arith.constant 0 : i32
    %c0_i32_0 = arith.constant 0 : i32
    %c0_i32_1 = arith.constant 0 : i32
    return %c0_i32, %c0_i32_0 : i32, i32
  }
  func.func @transform_16(%arg0: i32) -> (i32, i32) {
    %c0_i32 = arith.constant 0 : i32
    %c0_i32_0 = arith.constant 0 : i32
    %c0_i32_1 = arith.constant 0 : i32
    return %c0_i32, %c0_i32_0 : i32, i32
  }
}

</mosaic_0001>

<llo_original>
// kernel: multi_conv_lstm_forward.1
$region0: #{multi_conv_lstm_forward.1}
  #allocation0 [shape = 'u32[]', space=smem, size = 0x4, offset = 0x4, fixed_abs, tag = 'smem constant byte address 0x4 - core index']
  #allocation1 [shape = 'u32[144,128]{1,0:T(1,128)}', space=vmem, size = 0x12000, scoped, tag = 'internal scratch']
  #allocation2 [shape = 'f32[128,1024]{1,0:T(8,128)}', space=vmem, size = 0x80000, scoped, tag = 'scratch operand']
  %s0 = inlined_call_operand.vmem [shape: bf16[16,1024], index: 0, kind: input, shape index: {}]
  %s1 = inlined_call_operand.vmem [shape: bf16[128,16], index: 1, kind: input, shape index: {}]
  %s2 = inlined_call_operand.vmem [shape: bf16[128,96], index: 2, kind: input, shape index: {}]
  %s3 = inlined_call_operand.vmem [shape: f32[128,1], index: 3, kind: input, shape index: {}]
  %s4 = inlined_call_operand.vmem [shape: f32[32,128], index: 4, kind: input, shape index: {}]
  %s5 = inlined_call_operand.vmem [shape: f32[32,128], index: 5, kind: input, shape index: {}]
  %s6 = inlined_call_operand.vmem [shape: f32[3,1,128], index: 6, kind: input, shape index: {}, may-alias: {6,11}]
  %s7 = inlined_call_operand.vmem [shape: bf16[128,192], index: 7, kind: input, shape index: {}]
  %s8 = inlined_call_operand.vmem [shape: f32[128,1], index: 8, kind: input, shape index: {}]
  %s9 = inlined_call_operand.vmem [shape: f32[32,128], index: 9, kind: input, shape index: {}]
  %s10 = inlined_call_operand.vmem [shape: f32[32,128], index: 10, kind: input, shape index: {}]
  %s11 = inlined_call_operand.vmem [shape: f32[3,1,128], index: 11, kind: input, shape index: {}, may-alias: {6,11}]
  %s12 = inlined_call_operand.vmem [shape: f32[8,32,128], index: 12, kind: output, shape index: {0}]
  %s13 = inlined_call_operand.vmem [shape: f32[32,128], index: 13, kind: output, shape index: {1}]
  %s14 = inlined_call_operand.vmem [shape: f32[32,128], index: 14, kind: output, shape index: {2}]
  %s15 = inlined_call_operand.vmem [shape: f32[32,128], index: 15, kind: output, shape index: {3}]
  %s16 = inlined_call_operand.vmem [shape: f32[32,128], index: 16, kind: output, shape index: {4}]
  %17 = xla_tuple %s12, %s13, %s14, %s15, %s16
  %s18 = sld [smem:[#allocation0]]
  $region90: #{multi_conv_lstm_forward.1} parent=0
    _
  %s20 = ssub.s32 1, %s18
  %s21 = scalar_select 0, %s20, %s18
  // Predicated region
  $region2: #{multi_conv_lstm_forward.1} parent=0 // pred_check
    _
  $region3: #{multi_conv_lstm_forward.1} parent=0 // pred_check_branch
    %23 = sbr.rel (0) target = $region5
  $region4: #{multi_conv_lstm_forward.1} parent=0 // pred_region
    _
  $region5: #{multi_conv_lstm_forward.1} parent=0 // pred_fallthru
    _
  // Predicated region
  $region6: #{multi_conv_lstm_forward.1} parent=0 // pred_check
    _
  $region7: #{multi_conv_lstm_forward.1} parent=0 // pred_check_branch
    %25 = sbr.rel (0) target = $region9
  $region8: #{multi_conv_lstm_forward.1} parent=0 // pred_region
    _
  $region9: #{multi_conv_lstm_forward.1} parent=0 // pred_fallthru
    _
  // Predicated region
  $region10: #{multi_conv_lstm_forward.1} parent=0 // pred_check
    _
  $region11: #{multi_conv_lstm_forward.1} parent=0 // pred_check_branch
    %27 = sbr.rel (0) target = $region13
  $region12: #{multi_conv_lstm_forward.1} parent=0 // pred_region
    _
  $region13: #{multi_conv_lstm_forward.1} parent=0 // pred_fallthru
    _
  // Predicated region
  $region14: #{multi_conv_lstm_forward.1} parent=0 // pred_check
    _
  $region15: #{multi_conv_lstm_forward.1} parent=0 // pred_check_branch
    %29 = sbr.rel (0) target = $region17
  $region16: #{multi_conv_lstm_forward.1} parent=0 // pred_region
    _
  $region17: #{multi_conv_lstm_forward.1} parent=0 // pred_fallthru
    _
  // Predicated region
  $region18: #{multi_conv_lstm_forward.1} parent=0 // pred_check
    _
  $region19: #{multi_conv_lstm_forward.1} parent=0 // pred_check_branch
    %31 = sbr.rel (0) target = $region21
  $region20: #{multi_conv_lstm_forward.1} parent=0 // pred_region
    _
  $region21: #{multi_conv_lstm_forward.1} parent=0 // pred_fallthru
    _
  // Predicated region
  $region22: #{multi_conv_lstm_forward.1} parent=0 // pred_check
    _
  $region23: #{multi_conv_lstm_forward.1} parent=0 // pred_check_branch
    %33 = sbr.rel (0) target = $region25
  $region24: #{multi_conv_lstm_forward.1} parent=0 // pred_region
    _
  $region25: #{multi_conv_lstm_forward.1} parent=0 // pred_fallthru
    _
  // Predicated region
  $region26: #{multi_conv_lstm_forward.1} parent=0 // pred_check
    _
  $region27: #{multi_conv_lstm_forward.1} parent=0 // pred_check_branch
    %35 = sbr.rel (0) target = $region29
  $region28: #{multi_conv_lstm_forward.1} parent=0 // pred_region
    _
  $region29: #{multi_conv_lstm_forward.1} parent=0 // pred_fallthru
    _
  // Predicated region
  $region30: #{multi_conv_lstm_forward.1} parent=0 // pred_check
    _
  $region31: #{multi_conv_lstm_forward.1} parent=0 // pred_check_branch
    %37 = sbr.rel (0) target = $region33
  $region32: #{multi_conv_lstm_forward.1} parent=0 // pred_region
    _
  $region33: #{multi_conv_lstm_forward.1} parent=0 // pred_fallthru
    _
  // Predicated region
  $region34: #{multi_conv_lstm_forward.1} parent=0 // pred_check
    _
  $region35: #{multi_conv_lstm_forward.1} parent=0 // pred_check_branch
    %39 = sbr.rel (0) target = $region37
  $region36: #{multi_conv_lstm_forward.1} parent=0 // pred_region
    _
  $region37: #{multi_conv_lstm_forward.1} parent=0 // pred_fallthru
    _
  // Predicated region
  $region38: #{multi_conv_lstm_forward.1} parent=0 // pred_check
    _
  $region39: #{multi_conv_lstm_forward.1} parent=0 // pred_check_branch
    %41 = sbr.rel (0) target = $region41
  $region40: #{multi_conv_lstm_forward.1} parent=0 // pred_region
    _
  $region41: #{multi_conv_lstm_forward.1} parent=0 // pred_fallthru
    _
  // Predicated region
  $region42: #{multi_conv_lstm_forward.1} parent=0 // pred_check
    _
  $region43: #{multi_conv_lstm_forward.1} parent=0 // pred_check_branch
    %43 = sbr.rel (0) target = $region45
  $region44: #{multi_conv_lstm_forward.1} parent=0 // pred_region
    _
  $region45: #{multi_conv_lstm_forward.1} parent=0 // pred_fallthru
    _
  // Predicated region
  $region46: #{multi_conv_lstm_forward.1} parent=0 // pred_check
    _
  $region47: #{multi_conv_lstm_forward.1} parent=0 // pred_check_branch
    %45 = sbr.rel (0) target = $region49
  $region48: #{multi_conv_lstm_forward.1} parent=0 // pred_region
    _
  $region49: #{multi_conv_lstm_forward.1} parent=0 // pred_fallthru
    _
  %v47 = vld [vmem:[%s2] sm:$0xf]
  %v48 = vld [vmem:[%s2 + $0x4] sm:$0xf]
  %v49 = vld [vmem:[%s2 + $0x8] sm:$0xf]
  %v50 = vld [vmem:[%s2 + $0xc] sm:$0xf]
  %v51 = vld [vmem:[%s2 + $0x10] sm:$0xf]
  %v52 = vld [vmem:[%s2 + $0x14] sm:$0xf]
  %v53 = vld [vmem:[%s2 + $0x18] sm:$0xf]
  %v54 = vld [vmem:[%s2 + $0x1c] sm:$0xf]
  %v55 = vld [vmem:[%s2 + $0x20] sm:$0xf]
  %v56 = vld [vmem:[%s2 + $0x24] sm:$0xf]
  %v57 = vld [vmem:[%s2 + $0x28] sm:$0xf]
  %v58 = vld [vmem:[%s2 + $0x2c] sm:$0xf]
  %v59 = vld [vmem:[%s2 + $0x30] sm:$0xf]
  %v60 = vld [vmem:[%s2 + $0x34] sm:$0xf]
  %v61 = vld [vmem:[%s2 + $0x38] sm:$0xf]
  %v62 = vld [vmem:[%s2 + $0x3c] sm:$0xf]
  %v63 = vld [vmem:[%s4] sm:$0xff]
  %v64 = vld [vmem:[%s4 + $0x8] sm:$0xff]
  %v65 = vld [vmem:[%s4 + $0x10] sm:$0xff]
  %v66 = vld [vmem:[%s4 + $0x18] sm:$0xff]
  %v67 = vld [vmem:[%s5] sm:$0xff]
  %v68 = vld [vmem:[%s5 + $0x8] sm:$0xff]
  %v69 = vld [vmem:[%s5 + $0x10] sm:$0xff]
  %v70 = vld [vmem:[%s5 + $0x18] sm:$0xff]
  %v71 = vld [vmem:[%s6] sm:$0x1]
  %v72 = vld [vmem:[%s6 + $0x2] sm:$0x1]
  %v73 = vld [vmem:[%s3] sm:$0xff]
  %v74 = vld [vmem:[%s3 + $0x8] sm:$0xff]
  %v75 = vld [vmem:[%s3 + $0x10] sm:$0xff]
  %v76 = vld [vmem:[%s3 + $0x18] sm:$0xff]
  %v77 = vld [vmem:[%s3 + $0x20] sm:$0xff]
  %v78 = vld [vmem:[%s3 + $0x28] sm:$0xff]
  %v79 = vld [vmem:[%s3 + $0x30] sm:$0xff]
  %v80 = vld [vmem:[%s3 + $0x38] sm:$0xff]
  %v81 = vld [vmem:[%s3 + $0x40] sm:$0xff]
  %v82 = vld [vmem:[%s3 + $0x48] sm:$0xff]
  %v83 = vld [vmem:[%s3 + $0x50] sm:$0xff]
  %v84 = vld [vmem:[%s3 + $0x58] sm:$0xff]
  %v85 = vld [vmem:[%s3 + $0x60] sm:$0xff]
  %v86 = vld [vmem:[%s3 + $0x68] sm:$0xff]
  %v87 = vld [vmem:[%s3 + $0x70] sm:$0xff]
  %v88 = vld [vmem:[%s3 + $0x78] sm:$0xff]
  %v89 = vld [vmem:[%s7] sm:$0xff]
  %v90 = vld [vmem:[%s7 + $0x8] sm:$0xff]
  %v91 = vld [vmem:[%s7 + $0x10] sm:$0xff]
  %v92 = vld [vmem:[%s7 + $0x18] sm:$0xff]
  %v93 = vld [vmem:[%s7 + $0x20] sm:$0xff]
  %v94 = vld [vmem:[%s7 + $0x28] sm:$0xff]
  %v95 = vld [vmem:[%s7 + $0x30] sm:$0xff]
  %v96 = vld [vmem:[%s7 + $0x38] sm:$0xff]
  %v97 = vld [vmem:[%s7 + $0x40] sm:$0xff]
  %v98 = vld [vmem:[%s7 + $0x48] sm:$0xff]
  %v99 = vld [vmem:[%s7 + $0x50] sm:$0xff]
  %v100 = vld [vmem:[%s7 + $0x58] sm:$0xff]
  %v101 = vld [vmem:[%s7 + $0x60] sm:$0xff]
  %v102 = vld [vmem:[%s7 + $0x68] sm:$0xff]
  %v103 = vld [vmem:[%s7 + $0x70] sm:$0xff]
  %v104 = vld [vmem:[%s7 + $0x78] sm:$0xff]
  %v105 = vld [vmem:[%s9] sm:$0xff]
  %v106 = vld [vmem:[%s9 + $0x8] sm:$0xff]
  %v107 = vld [vmem:[%s9 + $0x10] sm:$0xff]
  %v108 = vld [vmem:[%s9 + $0x18] sm:$0xff]
  %v109 = vld [vmem:[%s10] sm:$0xff]
  %v110 = vld [vmem:[%s10 + $0x8] sm:$0xff]
  %v111 = vld [vmem:[%s10 + $0x10] sm:$0xff]
  %v112 = vld [vmem:[%s10 + $0x18] sm:$0xff]
  %v113 = vld [vmem:[%s11] sm:$0x1]
  %v114 = vld [vmem:[%s11 + $0x2] sm:$0x1]
  %v115 = vld [vmem:[%s8] sm:$0xff]
  %v116 = vld [vmem:[%s8 + $0x8] sm:$0xff]
  %v117 = vld [vmem:[%s8 + $0x10] sm:$0xff]
  %v118 = vld [vmem:[%s8 + $0x18] sm:$0xff]
  %v119 = vld [vmem:[%s8 + $0x20] sm:$0xff]
  %v120 = vld [vmem:[%s8 + $0x28] sm:$0xff]
  %v121 = vld [vmem:[%s8 + $0x30] sm:$0xff]
  %v122 = vld [vmem:[%s8 + $0x38] sm:$0xff]
  %v123 = vld [vmem:[%s8 + $0x40] sm:$0xff]
  %v124 = vld [vmem:[%s8 + $0x48] sm:$0xff]
  %v125 = vld [vmem:[%s8 + $0x50] sm:$0xff]
  %v126 = vld [vmem:[%s8 + $0x58] sm:$0xff]
  %v127 = vld [vmem:[%s8 + $0x60] sm:$0xff]
  %v128 = vld [vmem:[%s8 + $0x68] sm:$0xff]
  %v129 = vld [vmem:[%s8 + $0x70] sm:$0xff]
  %v130 = vld [vmem:[%s8 + $0x78] sm:$0xff]
  %132 = vset.pattern.permute.xlu0 0
  %133 = vperm.xlu0 %132, %v115
  %v134 = vpop.permute.xlu0 %133
  %137 = vset.pattern.permute.xlu0 0
  %138 = vperm.xlu0 %137, %v116
  %v139 = vpop.permute.xlu0 %138
  %142 = vset.pattern.permute.xlu0 0
  %143 = vperm.xlu0 %142, %v117
  %v144 = vpop.permute.xlu0 %143
  %147 = vset.pattern.permute.xlu0 0
  %148 = vperm.xlu0 %147, %v118
  %v149 = vpop.permute.xlu0 %148
  %152 = vset.pattern.permute.xlu0 0
  %153 = vperm.xlu0 %152, %v119
  %v154 = vpop.permute.xlu0 %153
  %157 = vset.pattern.permute.xlu0 0
  %158 = vperm.xlu0 %157, %v120
  %v159 = vpop.permute.xlu0 %158
  %162 = vset.pattern.permute.xlu0 0
  %163 = vperm.xlu0 %162, %v121
  %v164 = vpop.permute.xlu0 %163
  %167 = vset.pattern.permute.xlu0 0
  %168 = vperm.xlu0 %167, %v122
  %v169 = vpop.permute.xlu0 %168
  %172 = vset.pattern.permute.xlu0 0
  %173 = vperm.xlu0 %172, %v123
  %v174 = vpop.permute.xlu0 %173
  %177 = vset.pattern.permute.xlu0 0
  %178 = vperm.xlu0 %177, %v124
  %v179 = vpop.permute.xlu0 %178
  %182 = vset.pattern.permute.xlu0 0
  %183 = vperm.xlu0 %182, %v125
  %v184 = vpop.permute.xlu0 %183
  %187 = vset.pattern.permute.xlu0 0
  %188 = vperm.xlu0 %187, %v126
  %v189 = vpop.permute.xlu0 %188
  %192 = vset.pattern.permute.xlu0 0
  %193 = vperm.xlu0 %192, %v127
  %v194 = vpop.permute.xlu0 %193
  %197 = vset.pattern.permute.xlu0 0
  %198 = vperm.xlu0 %197, %v128
  %v199 = vpop.permute.xlu0 %198
  %202 = vset.pattern.permute.xlu0 0
  %203 = vperm.xlu0 %202, %v129
  %v204 = vpop.permute.xlu0 %203
  %207 = vset.pattern.permute.xlu0 0
  %208 = vperm.xlu0 %207, %v130
  %v209 = vpop.permute.xlu0 %208
  %v211 = vld [vmem:[%s1] sm:$0xf]
  %v212 = vld [vmem:[%s1 + $0x4] sm:$0xf]
  %v213 = vld [vmem:[%s1 + $0x8] sm:$0xf]
  %v214 = vld [vmem:[%s1 + $0xc] sm:$0xf]
  %v215 = vld [vmem:[%s1 + $0x10] sm:$0xf]
  %v216 = vld [vmem:[%s1 + $0x14] sm:$0xf]
  %v217 = vld [vmem:[%s1 + $0x18] sm:$0xf]
  %v218 = vld [vmem:[%s1 + $0x1c] sm:$0xf]
  %v219 = vld [vmem:[%s1 + $0x20] sm:$0xf]
  %v220 = vld [vmem:[%s1 + $0x24] sm:$0xf]
  %v221 = vld [vmem:[%s1 + $0x28] sm:$0xf]
  %v222 = vld [vmem:[%s1 + $0x2c] sm:$0xf]
  %v223 = vld [vmem:[%s1 + $0x30] sm:$0xf]
  %v224 = vld [vmem:[%s1 + $0x34] sm:$0xf]
  %v225 = vld [vmem:[%s1 + $0x38] sm:$0xf]
  %v226 = vld [vmem:[%s1 + $0x3c] sm:$0xf]
  %v227 = vld [vmem:[%s0] sm:$0xff]
  %v228 = vld [vmem:[%s0 + $0x8] sm:$0xff]
  %v229 = vld [vmem:[%s0 + $0x10] sm:$0xff]
  %v230 = vld [vmem:[%s0 + $0x18] sm:$0xff]
  %v231 = vld [vmem:[%s0 + $0x20] sm:$0xff]
  %v232 = vld [vmem:[%s0 + $0x28] sm:$0xff]
  %v233 = vld [vmem:[%s0 + $0x30] sm:$0xff]
  %v234 = vld [vmem:[%s0 + $0x38] sm:$0xff]
  %236 = vset.pattern.permute.xlu0 0
  %237 = vperm.xlu0 %236, %v73
  %v238 = vpop.permute.xlu0 %237
  %241 = vset.pattern.permute.xlu0 0
  %242 = vperm.xlu0 %241, %v74
  %v243 = vpop.permute.xlu0 %242
  %246 = vset.pattern.permute.xlu0 0
  %247 = vperm.xlu0 %246, %v75
  %v248 = vpop.permute.xlu0 %247
  %251 = vset.pattern.permute.xlu0 0
  %252 = vperm.xlu0 %251, %v76
  %v253 = vpop.permute.xlu0 %252
  %256 = vset.pattern.permute.xlu0 0
  %257 = vperm.xlu0 %256, %v77
  %v258 = vpop.permute.xlu0 %257
  %261 = vset.pattern.permute.xlu0 0
  %262 = vperm.xlu0 %261, %v78
  %v263 = vpop.permute.xlu0 %262
  %266 = vset.pattern.permute.xlu0 0
  %267 = vperm.xlu0 %266, %v79
  %v268 = vpop.permute.xlu0 %267
  %271 = vset.pattern.permute.xlu0 0
  %272 = vperm.xlu0 %271, %v80
  %v273 = vpop.permute.xlu0 %272
  %276 = vset.pattern.permute.xlu0 0
  %277 = vperm.xlu0 %276, %v81
  %v278 = vpop.permute.xlu0 %277
  %281 = vset.pattern.permute.xlu0 0
  %282 = vperm.xlu0 %281, %v82
  %v283 = vpop.permute.xlu0 %282
  %286 = vset.pattern.permute.xlu0 0
  %287 = vperm.xlu0 %286, %v83
  %v288 = vpop.permute.xlu0 %287
  %291 = vset.pattern.permute.xlu0 0
  %292 = vperm.xlu0 %291, %v84
  %v293 = vpop.permute.xlu0 %292
  %296 = vset.pattern.permute.xlu0 0
  %297 = vperm.xlu0 %296, %v85
  %v298 = vpop.permute.xlu0 %297
  %301 = vset.pattern.permute.xlu0 0
  %302 = vperm.xlu0 %301, %v86
  %v303 = vpop.permute.xlu0 %302
  %306 = vset.pattern.permute.xlu0 0
  %307 = vperm.xlu0 %306, %v87
  %v308 = vpop.permute.xlu0 %307
  %311 = vset.pattern.permute.xlu0 0
  %312 = vperm.xlu0 %311, %v88
  %v313 = vpop.permute.xlu0 %312
  %v331 = vunpack.c.l.b16 %v211
  %v332 = vunpack.c.l.b16 %v212
  %v333 = vunpack.c.l.b16 %v213
  %v334 = vunpack.c.l.b16 %v214
  %v335 = vunpack.c.l.b16 %v215
  %v336 = vunpack.c.l.b16 %v216
  %v337 = vunpack.c.l.b16 %v217
  %v338 = vunpack.c.l.b16 %v218
  %v339 = vunpack.c.l.b16 %v219
  %v340 = vunpack.c.l.b16 %v220
  %v341 = vunpack.c.l.b16 %v221
  %v342 = vunpack.c.l.b16 %v222
  %v343 = vunpack.c.l.b16 %v223
  %v344 = vunpack.c.l.b16 %v224
  %v345 = vunpack.c.l.b16 %v225
  %v346 = vunpack.c.l.b16 %v226
  %v347 = vpack.c.b16 %v332, %v331
  %v348 = vpack.c.b16 %v334, %v333
  %v349 = vpack.c.b16 %v336, %v335
  %v350 = vpack.c.b16 %v338, %v337
  %v351 = vpack.c.b16 %v340, %v339
  %v352 = vpack.c.b16 %v342, %v341
  %v353 = vpack.c.b16 %v344, %v343
  %v354 = vpack.c.b16 %v346, %v345
  %v363 = vunpack.c.l.b16 %v227
  %v364 = vunpack.c.h.b16 %v227
  %v365 = vunpack.c.l.b16 %v228
  %v366 = vunpack.c.h.b16 %v228
  %v367 = vunpack.c.l.b16 %v229
  %v368 = vunpack.c.h.b16 %v229
  %v369 = vunpack.c.l.b16 %v230
  %v370 = vunpack.c.h.b16 %v230
  %v371 = vunpack.c.l.b16 %v231
  %v372 = vunpack.c.h.b16 %v231
  %v373 = vunpack.c.l.b16 %v232
  %v374 = vunpack.c.h.b16 %v232
  %v375 = vunpack.c.l.b16 %v233
  %v376 = vunpack.c.h.b16 %v233
  %v377 = vunpack.c.l.b16 %v234
  %v378 = vunpack.c.h.b16 %v234
  %v379 = vpack.c.b16 %v371, %v363
  %v380 = vpack.c.b16 %v372, %v364
  %v381 = vpack.c.b16 %v373, %v365
  %v382 = vpack.c.b16 %v374, %v366
  %v383 = vpack.c.b16 %v375, %v367
  %v384 = vpack.c.b16 %v376, %v368
  %v385 = vpack.c.b16 %v377, %v369
  %v386 = vpack.c.b16 %v378, %v370
  %vm395 = vcmask 130048
  %v397 = vsel %vm395, %v347, 0
  %v400 = vsel %vm395, %v348, 0
  %v403 = vsel %vm395, %v349, 0
  %v406 = vsel %vm395, %v350, 0
  %v409 = vsel %vm395, %v351, 0
  %v412 = vsel %vm395, %v352, 0
  %v415 = vsel %vm395, %v353, 0
  %v418 = vsel %vm395, %v354, 0
  %420 = vmatprep.subr.bf16.mxu0 %v380
  %421 = vmatpush1.bf16.msra.mxu0 %v379
  %422 = vmatprep.subr.bf16.mxu0 0
  %423 = vmatpush1.bf16.msra.mxu0 0
  %424 = vmatprep.subr.bf16.mxu0 0
  %425 = vmatpush1.bf16.msra.mxu0 0
  %426 = vmatprep.subr.bf16.mxu0 0
  %427 = vmatpush1.bf16.msra.mxu0 0
  %428 = vmatprep.subr.bf16.mxu0 0
  %429 = vmatpush1.bf16.msra.mxu0 0
  %430 = vmatprep.subr.bf16.mxu0 0
  %431 = vmatpush1.bf16.msra.mxu0 0
  %432 = vmatprep.subr.bf16.mxu0 0
  %433 = vmatpush1.bf16.msra.mxu0 0
  %434 = vmatprep.subr.bf16.mxu0 0
  %435 = vmatpush1.bf16.msra.mxu0 0
  %436 = vmatprep.subr.bf16.mxu0 0
  %437 = vmatpush1.bf16.msra.mxu0 0
  %438 = vmatprep.subr.bf16.mxu0 0
  %439 = vmatpush1.bf16.msra.mxu0 0
  %440 = vmatprep.subr.bf16.mxu0 0
  %441 = vmatpush1.bf16.msra.mxu0 0
  %442 = vmatprep.subr.bf16.mxu0 0
  %443 = vmatpush1.bf16.msra.mxu0 0
  %444 = vmatprep.subr.bf16.mxu0 0
  %445 = vmatpush1.bf16.msra.mxu0 0
  %446 = vmatprep.subr.bf16.mxu0 0
  %447 = vmatpush1.bf16.msra.mxu0 0
  %448 = vmatprep.subr.bf16.mxu0 0
  %449 = vmatpush1.bf16.msra.mxu0 0
  %450 = vmatprep.subr.bf16.mxu0 0
  %451 = vmatpush1.bf16.msra.mxu0 0
  %452 = vmatprep.mubr.bf16.mxu0 0
  %453 = vmatmul.mubr.bf16.gmra.mrb[0].mxu0 %v397
  %v454 = vpop.f32.mrb[0].mxu0
  %v455 = vadd.f32 %v238, %v454
  %v456 = vpop.f32.mrb[0].mxu0
  %v457 = vadd.f32 %v238, %v456
  %v458 = vpop.f32.mrb[0].mxu0
  %v459 = vadd.f32 %v243, %v458
  %v460 = vpop.f32.mrb[0].mxu0
  %v461 = vadd.f32 %v243, %v460
  %462 = vmatprep.mubr.bf16.mxu0 0
  %463 = vmatmul.mubr.bf16.gmra.mrb[0].mxu0 %v400
  %v464 = vpop.f32.mrb[0].mxu0
  %v465 = vadd.f32 %v248, %v464
  %v466 = vpop.f32.mrb[0].mxu0
  %v467 = vadd.f32 %v248, %v466
  %v468 = vpop.f32.mrb[0].mxu0
  %v469 = vadd.f32 %v253, %v468
  %v470 = vpop.f32.mrb[0].mxu0
  %v471 = vadd.f32 %v253, %v470
  %472 = vmatprep.mubr.bf16.mxu0 0
  %473 = vmatmul.mubr.bf16.gmra.mrb[0].mxu0 %v403
  %v474 = vpop.f32.mrb[0].mxu0
  %v475 = vadd.f32 %v258, %v474
  %v476 = vpop.f32.mrb[0].mxu0
  %v477 = vadd.f32 %v258, %v476
  %v478 = vpop.f32.mrb[0].mxu0
  %v479 = vadd.f32 %v263, %v478
  %v480 = vpop.f32.mrb[0].mxu0
  %v481 = vadd.f32 %v263, %v480
  %482 = vmatprep.mubr.bf16.mxu0 0
  %483 = vmatmul.mubr.bf16.gmra.mrb[0].mxu0 %v406
  %v484 = vpop.f32.mrb[0].mxu0
  %v485 = vadd.f32 %v268, %v484
  %v486 = vpop.f32.mrb[0].mxu0
  %v487 = vadd.f32 %v268, %v486
  %v488 = vpop.f32.mrb[0].mxu0
  %v489 = vadd.f32 %v273, %v488
  %v490 = vpop.f32.mrb[0].mxu0
  %v491 = vadd.f32 %v273, %v490
  %492 = vmatprep.mubr.bf16.mxu0 0
  %493 = vmatmul.mubr.bf16.gmra.mrb[0].mxu0 %v409
  %v494 = vpop.f32.mrb[0].mxu0
  %v495 = vadd.f32 %v278, %v494
  %v496 = vpop.f32.mrb[0].mxu0
  %v497 = vadd.f32 %v278, %v496
  %v498 = vpop.f32.mrb[0].mxu0
  %v499 = vadd.f32 %v283, %v498
  %v500 = vpop.f32.mrb[0].mxu0
  %v501 = vadd.f32 %v283, %v500
  %502 = vmatprep.mubr.bf16.mxu0 0
  %503 = vmatmul.mubr.bf16.gmra.mrb[0].mxu0 %v412
  %v504 = vpop.f32.mrb[0].mxu0
  %v505 = vadd.f32 %v288, %v504
  %v506 = vpop.f32.mrb[0].mxu0
  %v507 = vadd.f32 %v288, %v506
  %v508 = vpop.f32.mrb[0].mxu0
  %v509 = vadd.f32 %v293, %v508
  %v510 = vpop.f32.mrb[0].mxu0
  %v511 = vadd.f32 %v293, %v510
  %512 = vmatprep.mubr.bf16.mxu0 0
  %513 = vmatmul.mubr.bf16.gmra.mrb[0].mxu0 %v415
  %v514 = vpop.f32.mrb[0].mxu0
  %v515 = vadd.f32 %v298, %v514
  %v516 = vpop.f32.mrb[0].mxu0
  %v517 = vadd.f32 %v298, %v516
  %v518 = vpop.f32.mrb[0].mxu0
  %v519 = vadd.f32 %v303, %v518
  %v520 = vpop.f32.mrb[0].mxu0
  %v521 = vadd.f32 %v303, %v520
  %522 = vmatprep.mubr.bf16.mxu0 0
  %523 = vmatmul.mubr.bf16.gmra.mrb[0].mxu0 %v418
  %v524 = vpop.f32.mrb[0].mxu0
  %v525 = vadd.f32 %v308, %v524
  %v526 = vpop.f32.mrb[0].mxu0
  %v527 = vadd.f32 %v308, %v526
  %v528 = vpop.f32.mrb[0].mxu0
  %v529 = vadd.f32 %v313, %v528
  %v530 = vpop.f32.mrb[0].mxu0
  %v531 = vadd.f32 %v313, %v530
  %532 = vdwg.mxu0
  %533 = vmatprep.subr.bf16.mxu0 %v382
  %534 = vmatpush1.bf16.msra.mxu0 %v381
  %535 = vmatprep.subr.bf16.mxu0 0
  %536 = vmatpush1.bf16.msra.mxu0 0
  %537 = vmatprep.subr.bf16.mxu0 0
  %538 = vmatpush1.bf16.msra.mxu0 0
  %539 = vmatprep.subr.bf16.mxu0 0
  %540 = vmatpush1.bf16.msra.mxu0 0
  %541 = vmatprep.subr.bf16.mxu0 0
  %542 = vmatpush1.bf16.msra.mxu0 0
  %543 = vmatprep.subr.bf16.mxu0 0
  %544 = vmatpush1.bf16.msra.mxu0 0
  %545 = vmatprep.subr.bf16.mxu0 0
  %546 = vmatpush1.bf16.msra.mxu0 0
  %547 = vmatprep.subr.bf16.mxu0 0
  %548 = vmatpush1.bf16.msra.mxu0 0
  %549 = vmatprep.subr.bf16.mxu0 0
  %550 = vmatpush1.bf16.msra.mxu0 0
  %551 = vmatprep.subr.bf16.mxu0 0
  %552 = vmatpush1.bf16.msra.mxu0 0
  %553 = vmatprep.subr.bf16.mxu0 0
  %554 = vmatpush1.bf16.msra.mxu0 0
  %555 = vmatprep.subr.bf16.mxu0 0
  %556 = vmatpush1.bf16.msra.mxu0 0
  %557 = vmatprep.subr.bf16.mxu0 0
  %558 = vmatpush1.bf16.msra.mxu0 0
  %559 = vmatprep.subr.bf16.mxu0 0
  %560 = vmatpush1.bf16.msra.mxu0 0
  %561 = vmatprep.subr.bf16.mxu0 0
  %562 = vmatpush1.bf16.msra.mxu0 0
  %563 = vmatprep.subr.bf16.mxu0 0
  %564 = vmatpush1.bf16.msra.mxu0 0
  %565 = vmatprep.mubr.bf16.mxu0 0
  %566 = vmatmul.mubr.bf16.gmra.mrb[0].mxu0 %v397
  %v567 = vpop.f32.mrb[0].mxu0
  %v568 = vadd.f32 %v238, %v567
  %v569 = vpop.f32.mrb[0].mxu0
  %v570 = vadd.f32 %v238, %v569
  %v571 = vpop.f32.mrb[0].mxu0
  %v572 = vadd.f32 %v243, %v571
  %v573 = vpop.f32.mrb[0].mxu0
  %v574 = vadd.f32 %v243, %v573
  %575 = vmatprep.mubr.bf16.mxu0 0
  %576 = vmatmul.mubr.bf16.gmra.mrb[0].mxu0 %v400
  %v577 = vpop.f32.mrb[0].mxu0
  %v578 = vadd.f32 %v248, %v577
  %v579 = vpop.f32.mrb[0].mxu0
  %v580 = vadd.f32 %v248, %v579
  %v581 = vpop.f32.mrb[0].mxu0
  %v582 = vadd.f32 %v253, %v581
  %v583 = vpop.f32.mrb[0].mxu0
  %v584 = vadd.f32 %v253, %v583
  %585 = vmatprep.mubr.bf16.mxu0 0
  %586 = vmatmul.mubr.bf16.gmra.mrb[0].mxu0 %v403
  %v587 = vpop.f32.mrb[0].mxu0
  %v588 = vadd.f32 %v258, %v587
  %v589 = vpop.f32.mrb[0].mxu0
  %v590 = vadd.f32 %v258, %v589
  %v591 = vpop.f32.mrb[0].mxu0
  %v592 = vadd.f32 %v263, %v591
  %v593 = vpop.f32.mrb[0].mxu0
  %v594 = vadd.f32 %v263, %v593
  %595 = vmatprep.mubr.bf16.mxu0 0
  %596 = vmatmul.mubr.bf16.gmra.mrb[0].mxu0 %v406
  %v597 = vpop.f32.mrb[0].mxu0
  %v598 = vadd.f32 %v268, %v597
  %v599 = vpop.f32.mrb[0].mxu0
  %v600 = vadd.f32 %v268, %v599
  %v601 = vpop.f32.mrb[0].mxu0
  %v602 = vadd.f32 %v273, %v601
  %v603 = vpop.f32.mrb[0].mxu0
  %v604 = vadd.f32 %v273, %v603
  %605 = vmatprep.mubr.bf16.mxu0 0
  %606 = vmatmul.mubr.bf16.gmra.mrb[0].mxu0 %v409
  %v607 = vpop.f32.mrb[0].mxu0
  %v608 = vadd.f32 %v278, %v607
  %v609 = vpop.f32.mrb[0].mxu0
  %v610 = vadd.f32 %v278, %v609
  %v611 = vpop.f32.mrb[0].mxu0
  %v612 = vadd.f32 %v283, %v611
  %v613 = vpop.f32.mrb[0].mxu0
  %v614 = vadd.f32 %v283, %v613
  %615 = vmatprep.mubr.bf16.mxu0 0
  %616 = vmatmul.mubr.bf16.gmra.mrb[0].mxu0 %v412
  %v617 = vpop.f32.mrb[0].mxu0
  %v618 = vadd.f32 %v288, %v617
  %v619 = vpop.f32.mrb[0].mxu0
  %v620 = vadd.f32 %v288, %v619
  %v621 = vpop.f32.mrb[0].mxu0
  %v622 = vadd.f32 %v293, %v621
  %v623 = vpop.f32.mrb[0].mxu0
  %v624 = vadd.f32 %v293, %v623
  %625 = vmatprep.mubr.bf16.mxu0 0
  %626 = vmatmul.mubr.bf16.gmra.mrb[0].mxu0 %v415
  %v627 = vpop.f32.mrb[0].mxu0
  %v628 = vadd.f32 %v298, %v627
  %v629 = vpop.f32.mrb[0].mxu0
  %v630 = vadd.f32 %v298, %v629
  %v631 = vpop.f32.mrb[0].mxu0
  %v632 = vadd.f32 %v303, %v631
  %v633 = vpop.f32.mrb[0].mxu0
  %v634 = vadd.f32 %v303, %v633
  %635 = vmatprep.mubr.bf16.mxu0 0
  %636 = vmatmul.mubr.bf16.gmra.mrb[0].mxu0 %v418
  %v637 = vpop.f32.mrb[0].mxu0
  %v638 = vadd.f32 %v308, %v637
  %v639 = vpop.f32.mrb[0].mxu0
  %v640 = vadd.f32 %v308, %v639
  %v641 = vpop.f32.mrb[0].mxu0
  %v642 = vadd.f32 %v313, %v641
  %v643 = vpop.f32.mrb[0].mxu0
  %v644 = vadd.f32 %v313, %v643
  %645 = vdwg.mxu0
  %646 = vmatprep.subr.bf16.mxu0 %v384
  %647 = vmatpush1.bf16.msra.mxu0 %v383
  %648 = vmatprep.subr.bf16.mxu0 0
  %649 = vmatpush1.bf16.msra.mxu0 0
  %650 = vmatprep.subr.bf16.mxu0 0
  %651 = vmatpush1.bf16.msra.mxu0 0
  %652 = vmatprep.subr.bf16.mxu0 0
  %653 = vmatpush1.bf16.msra.mxu0 0
  %654 = vmatprep.subr.bf16.mxu0 0
  %655 = vmatpush1.bf16.msra.mxu0 0
  %656 = vmatprep.subr.bf16.mxu0 0
  %657 = vmatpush1.bf16.msra.mxu0 0
  %658 = vmatprep.subr.bf16.mxu0 0
  %659 = vmatpush1.bf16.msra.mxu0 0
  %660 = vmatprep.subr.bf16.mxu0 0
  %661 = vmatpush1.bf16.msra.mxu0 0
  %662 = vmatprep.subr.bf16.mxu0 0
  %663 = vmatpush1.bf16.msra.mxu0 0
  %664 = vmatprep.subr.bf16.mxu0 0
  %665 = vmatpush1.bf16.msra.mxu0 0
  %666 = vmatprep.subr.bf16.mxu0 0
  %667 = vmatpush1.bf16.msra.mxu0 0
  %668 = vmatprep.subr.bf16.mxu0 0
  %669 = vmatpush1.bf16.msra.mxu0 0
  %670 = vmatprep.subr.bf16.mxu0 0
  %671 = vmatpush1.bf16.msra.mxu0 0
  %672 = vmatprep.subr.bf16.mxu0 0
  %673 = vmatpush1.bf16.msra.mxu0 0
  %674 = vmatprep.subr.bf16.mxu0 0
  %675 = vmatpush1.bf16.msra.mxu0 0
  %676 = vmatprep.subr.bf16.mxu0 0
  %677 = vmatpush1.bf16.msra.mxu0 0
  %678 = vmatprep.mubr.bf16.mxu0 0
  %679 = vmatmul.mubr.bf16.gmra.mrb[0].mxu0 %v397
  %v680 = vpop.f32.mrb[0].mxu0
  %v681 = vadd.f32 %v238, %v680
  %v682 = vpop.f32.mrb[0].mxu0
  %v683 = vadd.f32 %v238, %v682
  %v684 = vpop.f32.mrb[0].mxu0
  %v685 = vadd.f32 %v243, %v684
  %v686 = vpop.f32.mrb[0].mxu0
  %v687 = vadd.f32 %v243, %v686
  %688 = vmatprep.mubr.bf16.mxu0 0
  %689 = vmatmul.mubr.bf16.gmra.mrb[0].mxu0 %v400
  %v690 = vpop.f32.mrb[0].mxu0
  %v691 = vadd.f32 %v248, %v690
  %v692 = vpop.f32.mrb[0].mxu0
  %v693 = vadd.f32 %v248, %v692
  %v694 = vpop.f32.mrb[0].mxu0
  %v695 = vadd.f32 %v253, %v694
  %v696 = vpop.f32.mrb[0].mxu0
  %v697 = vadd.f32 %v253, %v696
  %698 = vmatprep.mubr.bf16.mxu0 0
  %699 = vmatmul.mubr.bf16.gmra.mrb[0].mxu0 %v403
  %v700 = vpop.f32.mrb[0].mxu0
  %v701 = vadd.f32 %v258, %v700
  %v702 = vpop.f32.mrb[0].mxu0
  %v703 = vadd.f32 %v258, %v702
  %v704 = vpop.f32.mrb[0].mxu0
  %v705 = vadd.f32 %v263, %v704
  %v706 = vpop.f32.mrb[0].mxu0
  %v707 = vadd.f32 %v263, %v706
  %708 = vmatprep.mubr.bf16.mxu0 0
  %709 = vmatmul.mubr.bf16.gmra.mrb[0].mxu0 %v406
  %v710 = vpop.f32.mrb[0].mxu0
  %v711 = vadd.f32 %v268, %v710
  %v712 = vpop.f32.mrb[0].mxu0
  %v713 = vadd.f32 %v268, %v712
  %v714 = vpop.f32.mrb[0].mxu0
  %v715 = vadd.f32 %v273, %v714
  %v716 = vpop.f32.mrb[0].mxu0
  %v717 = vadd.f32 %v273, %v716
  %718 = vmatprep.mubr.bf16.mxu0 0
  %719 = vmatmul.mubr.bf16.gmra.mrb[0].mxu0 %v409
  %v720 = vpop.f32.mrb[0].mxu0
  %v721 = vadd.f32 %v278, %v720
  %v722 = vpop.f32.mrb[0].mxu0
  %v723 = vadd.f32 %v278, %v722
  %v724 = vpop.f32.mrb[0].mxu0
  %v725 = vadd.f32 %v283, %v724
  %v726 = vpop.f32.mrb[0].mxu0
  %v727 = vadd.f32 %v283, %v726
  %728 = vmatprep.mubr.bf16.mxu0 0
  %729 = vmatmul.mubr.bf16.gmra.mrb[0].mxu0 %v412
  %v730 = vpop.f32.mrb[0].mxu0
  %v731 = vadd.f32 %v288, %v730
  %v732 = vpop.f32.mrb[0].mxu0
  %v733 = vadd.f32 %v288, %v732
  %v734 = vpop.f32.mrb[0].mxu0
  %v735 = vadd.f32 %v293, %v734
  %v736 = vpop.f32.mrb[0].mxu0
  %v737 = vadd.f32 %v293, %v736
  %738 = vmatprep.mubr.bf16.mxu0 0
  %739 = vmatmul.mubr.bf16.gmra.mrb[0].mxu0 %v415
  %v740 = vpop.f32.mrb[0].mxu0
  %v741 = vadd.f32 %v298, %v740
  %v742 = vpop.f32.mrb[0].mxu0
  %v743 = vadd.f32 %v298, %v742
  %v744 = vpop.f32.mrb[0].mxu0
  %v745 = vadd.f32 %v303, %v744
  %v746 = vpop.f32.mrb[0].mxu0
  %v747 = vadd.f32 %v303, %v746
  %748 = vmatprep.mubr.bf16.mxu0 0
  %749 = vmatmul.mubr.bf16.gmra.mrb[0].mxu0 %v418
  %v750 = vpop.f32.mrb[0].mxu0
  %v751 = vadd.f32 %v308, %v750
  %v752 = vpop.f32.mrb[0].mxu0
  %v753 = vadd.f32 %v308, %v752
  %v754 = vpop.f32.mrb[0].mxu0
  %v755 = vadd.f32 %v313, %v754
  %v756 = vpop.f32.mrb[0].mxu0
  %v757 = vadd.f32 %v313, %v756
  %758 = vdwg.mxu0
  %759 = vmatprep.subr.bf16.mxu0 %v386
  %760 = vmatpush1.bf16.msra.mxu0 %v385
  %761 = vmatprep.subr.bf16.mxu0 0
  %762 = vmatpush1.bf16.msra.mxu0 0
  %763 = vmatprep.subr.bf16.mxu0 0
  %764 = vmatpush1.bf16.msra.mxu0 0
  %765 = vmatprep.subr.bf16.mxu0 0
  %766 = vmatpush1.bf16.msra.mxu0 0
  %767 = vmatprep.subr.bf16.mxu0 0
  %768 = vmatpush1.bf16.msra.mxu0 0
  %769 = vmatprep.subr.bf16.mxu0 0
  %770 = vmatpush1.bf16.msra.mxu0 0
  %771 = vmatprep.subr.bf16.mxu0 0
  %772 = vmatpush1.bf16.msra.mxu0 0
  %773 = vmatprep.subr.bf16.mxu0 0
  %774 = vmatpush1.bf16.msra.mxu0 0
  %775 = vmatprep.subr.bf16.mxu0 0
  %776 = vmatpush1.bf16.msra.mxu0 0
  %777 = vmatprep.subr.bf16.mxu0 0
  %778 = vmatpush1.bf16.msra.mxu0 0
  %779 = vmatprep.subr.bf16.mxu0 0
  %780 = vmatpush1.bf16.msra.mxu0 0
  %781 = vmatprep.subr.bf16.mxu0 0
  %782 = vmatpush1.bf16.msra.mxu0 0
  %783 = vmatprep.subr.bf16.mxu0 0
  %784 = vmatpush1.bf16.msra.mxu0 0
  %785 = vmatprep.subr.bf16.mxu0 0
  %786 = vmatpush1.bf16.msra.mxu0 0
  %787 = vmatprep.subr.bf16.mxu0 0
  %788 = vmatpush1.bf16.msra.mxu0 0
  %789 = vmatprep.subr.bf16.mxu0 0
  %790 = vmatpush1.bf16.msra.mxu0 0
  %791 = vmatprep.mubr.bf16.mxu0 0
  %792 = vmatmul.mubr.bf16.gmra.mrb[0].mxu0 %v397
  %v793 = vpop.f32.mrb[0].mxu0
  %v794 = vadd.f32 %v238, %v793
  %v795 = vpop.f32.mrb[0].mxu0
  %v796 = vadd.f32 %v238, %v795
  %v797 = vpop.f32.mrb[0].mxu0
  %v798 = vadd.f32 %v243, %v797
  %v799 = vpop.f32.mrb[0].mxu0
  %v800 = vadd.f32 %v243, %v799
  %801 = vmatprep.mubr.bf16.mxu0 0
  %802 = vmatmul.mubr.bf16.gmra.mrb[0].mxu0 %v400
  %v803 = vpop.f32.mrb[0].mxu0
  %v804 = vadd.f32 %v248, %v803
  %v805 = vpop.f32.mrb[0].mxu0
  %v806 = vadd.f32 %v248, %v805
  %v807 = vpop.f32.mrb[0].mxu0
  %v808 = vadd.f32 %v253, %v807
  %v809 = vpop.f32.mrb[0].mxu0
  %v810 = vadd.f32 %v253, %v809
  %811 = vmatprep.mubr.bf16.mxu0 0
  %812 = vmatmul.mubr.bf16.gmra.mrb[0].mxu0 %v403
  %v813 = vpop.f32.mrb[0].mxu0
  %v814 = vadd.f32 %v258, %v813
  %v815 = vpop.f32.mrb[0].mxu0
  %v816 = vadd.f32 %v258, %v815
  %v817 = vpop.f32.mrb[0].mxu0
  %v818 = vadd.f32 %v263, %v817
  %v819 = vpop.f32.mrb[0].mxu0
  %v820 = vadd.f32 %v263, %v819
  %821 = vmatprep.mubr.bf16.mxu0 0
  %822 = vmatmul.mubr.bf16.gmra.mrb[0].mxu0 %v406
  %v823 = vpop.f32.mrb[0].mxu0
  %v824 = vadd.f32 %v268, %v823
  %v825 = vpop.f32.mrb[0].mxu0
  %v826 = vadd.f32 %v268, %v825
  %v827 = vpop.f32.mrb[0].mxu0
  %v828 = vadd.f32 %v273, %v827
  %v829 = vpop.f32.mrb[0].mxu0
  %v830 = vadd.f32 %v273, %v829
  %831 = vmatprep.mubr.bf16.mxu0 0
  %832 = vmatmul.mubr.bf16.gmra.mrb[0].mxu0 %v409
  %v833 = vpop.f32.mrb[0].mxu0
  %v834 = vadd.f32 %v278, %v833
  %v835 = vpop.f32.mrb[0].mxu0
  %v836 = vadd.f32 %v278, %v835
  %v837 = vpop.f32.mrb[0].mxu0
  %v838 = vadd.f32 %v283, %v837
  %v839 = vpop.f32.mrb[0].mxu0
  %v840 = vadd.f32 %v283, %v839
  %841 = vmatprep.mubr.bf16.mxu0 0
  %842 = vmatmul.mubr.bf16.gmra.mrb[0].mxu0 %v412
  %v843 = vpop.f32.mrb[0].mxu0
  %v844 = vadd.f32 %v288, %v843
  %v845 = vpop.f32.mrb[0].mxu0
  %v846 = vadd.f32 %v288, %v845
  %v847 = vpop.f32.mrb[0].mxu0
  %v848 = vadd.f32 %v293, %v847
  %v849 = vpop.f32.mrb[0].mxu0
  %v850 = vadd.f32 %v293, %v849
  %851 = vmatprep.mubr.bf16.mxu0 0
  %852 = vmatmul.mubr.bf16.gmra.mrb[0].mxu0 %v415
  %v853 = vpop.f32.mrb[0].mxu0
  %v854 = vadd.f32 %v298, %v853
  %v855 = vpop.f32.mrb[0].mxu0
  %v856 = vadd.f32 %v298, %v855
  %v857 = vpop.f32.mrb[0].mxu0
  %v858 = vadd.f32 %v303, %v857
  %v859 = vpop.f32.mrb[0].mxu0
  %v860 = vadd.f32 %v303, %v859
  %861 = vmatprep.mubr.bf16.mxu0 0
  %862 = vmatmul.mubr.bf16.gmra.mrb[0].mxu0 %v418
  %v863 = vpop.f32.mrb[0].mxu0
  %v864 = vadd.f32 %v308, %v863
  %v865 = vpop.f32.mrb[0].mxu0
  %v866 = vadd.f32 %v308, %v865
  %v867 = vpop.f32.mrb[0].mxu0
  %v868 = vadd.f32 %v313, %v867
  %v869 = vpop.f32.mrb[0].mxu0
  %v870 = vadd.f32 %v313, %v869
  %871 = vdwg.mxu0
  %872 = vst [vmem:[#allocation2] sm:$0xff] %v455
  %873 = vst [vmem:[#allocation2 + $0x8] sm:$0xff] %v457
  %874 = vst [vmem:[#allocation2 + $0x10] sm:$0xff] %v568
  %875 = vst [vmem:[#allocation2 + $0x18] sm:$0xff] %v570
  %876 = vst [vmem:[#allocation2 + $0x20] sm:$0xff] %v681
  %877 = vst [vmem:[#allocation2 + $0x28] sm:$0xff] %v683
  %878 = vst [vmem:[#allocation2 + $0x30] sm:$0xff] %v794
  %879 = vst [vmem:[#allocation2 + $0x38] sm:$0xff] %v796
  %880 = vst [vmem:[#allocation2 + $0x40] sm:$0xff] %v459
  %881 = vst [vmem:[#allocation2 + $0x48] sm:$0xff] %v461
  %882 = vst [vmem:[#allocation2 + $0x50] sm:$0xff] %v572
  %883 = vst [vmem:[#allocation2 + $0x58] sm:$0xff] %v574
  %884 = vst [vmem:[#allocation2 + $0x60] sm:$0xff] %v685
  %885 = vst [vmem:[#allocation2 + $0x68] sm:$0xff] %v687
  %886 = vst [vmem:[#allocation2 + $0x70] sm:$0xff] %v798
  %887 = vst [vmem:[#allocation2 + $0x78] sm:$0xff] %v800
  %888 = vst [vmem:[#allocation2 + $0x80] sm:$0xff] %v465
  %889 = vst [vmem:[#allocation2 + $0x88] sm:$0xff] %v467
  %890 = vst [vmem:[#allocation2 + $0x90] sm:$0xff] %v578
  %891 = vst [vmem:[#allocation2 + $0x98] sm:$0xff] %v580
  %892 = vst [vmem:[#allocation2 + $0xa0] sm:$0xff] %v691
  %893 = vst [vmem:[#allocation2 + $0xa8] sm:$0xff] %v693
  %894 = vst [vmem:[#allocation2 + $0xb0] sm:$0xff] %v804
  %895 = vst [vmem:[#allocation2 + $0xb8] sm:$0xff] %v806
  %896 = vst [vmem:[#allocation2 + $0xc0] sm:$0xff] %v469
  %897 = vst [vmem:[#allocation2 + $0xc8] sm:$0xff] %v471
  %898 = vst [vmem:[#allocation2 + $0xd0] sm:$0xff] %v582
  %899 = vst [vmem:[#allocation2 + $0xd8] sm:$0xff] %v584
  %900 = vst [vmem:[#allocation2 + $0xe0] sm:$0xff] %v695
  %901 = vst [vmem:[#allocation2 + $0xe8] sm:$0xff] %v697
  %902 = vst [vmem:[#allocation2 + $0xf0] sm:$0xff] %v808
  %903 = vst [vmem:[#allocation2 + $0xf8] sm:$0xff] %v810
  %904 = vst [vmem:[#allocation2 + $0x100] sm:$0xff] %v475
  %905 = vst [vmem:[#allocation2 + $0x108] sm:$0xff] %v477
  %906 = vst [vmem:[#allocation2 + $0x110] sm:$0xff] %v588
  %907 = vst [vmem:[#allocation2 + $0x118] sm:$0xff] %v590
  %908 = vst [vmem:[#allocation2 + $0x120] sm:$0xff] %v701
  %909 = vst [vmem:[#allocation2 + $0x128] sm:$0xff] %v703
  %910 = vst [vmem:[#allocation2 + $0x130] sm:$0xff] %v814
  %911 = vst [vmem:[#allocation2 + $0x138] sm:$0xff] %v816
  %912 = vst [vmem:[#allocation2 + $0x140] sm:$0xff] %v479
  %913 = vst [vmem:[#allocation2 + $0x148] sm:$0xff] %v481
  %914 = vst [vmem:[#allocation2 + $0x150] sm:$0xff] %v592
  %915 = vst [vmem:[#allocation2 + $0x158] sm:$0xff] %v594
  %916 = vst [vmem:[#allocation2 + $0x160] sm:$0xff] %v705
  %917 = vst [vmem:[#allocation2 + $0x168] sm:$0xff] %v707
  %918 = vst [vmem:[#allocation2 + $0x170] sm:$0xff] %v818
  %919 = vst [vmem:[#allocation2 + $0x178] sm:$0xff] %v820
  %920 = vst [vmem:[#allocation2 + $0x180] sm:$0xff] %v485
  %921 = vst [vmem:[#allocation2 + $0x188] sm:$0xff] %v487
  %922 = vst [vmem:[#allocation2 + $0x190] sm:$0xff] %v598
  %923 = vst [vmem:[#allocation2 + $0x198] sm:$0xff] %v600
  %924 = vst [vmem:[#allocation2 + $0x1a0] sm:$0xff] %v711
  %925 = vst [vmem:[#allocation2 + $0x1a8] sm:$0xff] %v713
  %926 = vst [vmem:[#allocation2 + $0x1b0] sm:$0xff] %v824
  %927 = vst [vmem:[#allocation2 + $0x1b8] sm:$0xff] %v826
  %928 = vst [vmem:[#allocation2 + $0x1c0] sm:$0xff] %v489
  %929 = vst [vmem:[#allocation2 + $0x1c8] sm:$0xff] %v491
  %930 = vst [vmem:[#allocation2 + $0x1d0] sm:$0xff] %v602
  %931 = vst [vmem:[#allocation2 + $0x1d8] sm:$0xff] %v604
  %932 = vst [vmem:[#allocation2 + $0x1e0] sm:$0xff] %v715
  %933 = vst [vmem:[#allocation2 + $0x1e8] sm:$0xff] %v717
  %934 = vst [vmem:[#allocation2 + $0x1f0] sm:$0xff] %v828
  %935 = vst [vmem:[#allocation2 + $0x1f8] sm:$0xff] %v830
  %936 = vst [vmem:[#allocation2 + $0x200] sm:$0xff] %v495
  %937 = vst [vmem:[#allocation2 + $0x208] sm:$0xff] %v497
  %938 = vst [vmem:[#allocation2 + $0x210] sm:$0xff] %v608
  %939 = vst [vmem:[#allocation2 + $0x218] sm:$0xff] %v610
  %940 = vst [vmem:[#allocation2 + $0x220] sm:$0xff] %v721
  %941 = vst [vmem:[#allocation2 + $0x228] sm:$0xff] %v723
  %942 = vst [vmem:[#allocation2 + $0x230] sm:$0xff] %v834
  %943 = vst [vmem:[#allocation2 + $0x238] sm:$0xff] %v836
  %944 = vst [vmem:[#allocation2 + $0x240] sm:$0xff] %v499
  %945 = vst [vmem:[#allocation2 + $0x248] sm:$0xff] %v501
  %946 = vst [vmem:[#allocation2 + $0x250] sm:$0xff] %v612
  %947 = vst [vmem:[#allocation2 + $0x258] sm:$0xff] %v614
  %948 = vst [vmem:[#allocation2 + $0x260] sm:$0xff] %v725
  %949 = vst [vmem:[#allocation2 + $0x268] sm:$0xff] %v727
  %950 = vst [vmem:[#allocation2 + $0x270] sm:$0xff] %v838
  %951 = vst [vmem:[#allocation2 + $0x278] sm:$0xff] %v840
  %952 = vst [vmem:[#allocation2 + $0x280] sm:$0xff] %v505
  %953 = vst [vmem:[#allocation2 + $0x288] sm:$0xff] %v507
  %954 = vst [vmem:[#allocation2 + $0x290] sm:$0xff] %v618
  %955 = vst [vmem:[#allocation2 + $0x298] sm:$0xff] %v620
  %956 = vst [vmem:[#allocation2 + $0x2a0] sm:$0xff] %v731
  %957 = vst [vmem:[#allocation2 + $0x2a8] sm:$0xff] %v733
  %958 = vst [vmem:[#allocation2 + $0x2b0] sm:$0xff] %v844
  %959 = vst [vmem:[#allocation2 + $0x2b8] sm:$0xff] %v846
  %960 = vst [vmem:[#allocation2 + $0x2c0] sm:$0xff] %v509
  %961 = vst [vmem:[#allocation2 + $0x2c8] sm:$0xff] %v511
  %962 = vst [vmem:[#allocation2 + $0x2d0] sm:$0xff] %v622
  %963 = vst [vmem:[#allocation2 + $0x2d8] sm:$0xff] %v624
  %964 = vst [vmem:[#allocation2 + $0x2e0] sm:$0xff] %v735
  %965 = vst [vmem:[#allocation2 + $0x2e8] sm:$0xff] %v737
  %966 = vst [vmem:[#allocation2 + $0x2f0] sm:$0xff] %v848
  %967 = vst [vmem:[#allocation2 + $0x2f8] sm:$0xff] %v850
  %968 = vst [vmem:[#allocation2 + $0x300] sm:$0xff] %v515
  %969 = vst [vmem:[#allocation2 + $0x308] sm:$0xff] %v517
  %970 = vst [vmem:[#allocation2 + $0x310] sm:$0xff] %v628
  %971 = vst [vmem:[#allocation2 + $0x318] sm:$0xff] %v630
  %972 = vst [vmem:[#allocation2 + $0x320] sm:$0xff] %v741
  %973 = vst [vmem:[#allocation2 + $0x328] sm:$0xff] %v743
  %974 = vst [vmem:[#allocation2 + $0x330] sm:$0xff] %v854
  %975 = vst [vmem:[#allocation2 + $0x338] sm:$0xff] %v856
  %976 = vst [vmem:[#allocation2 + $0x340] sm:$0xff] %v519
  %977 = vst [vmem:[#allocation2 + $0x348] sm:$0xff] %v521
  %978 = vst [vmem:[#allocation2 + $0x350] sm:$0xff] %v632
  %979 = vst [vmem:[#allocation2 + $0x358] sm:$0xff] %v634
  %980 = vst [vmem:[#allocation2 + $0x360] sm:$0xff] %v745
  %981 = vst [vmem:[#allocation2 + $0x368] sm:$0xff] %v747
  %982 = vst [vmem:[#allocation2 + $0x370] sm:$0xff] %v858
  %983 = vst [vmem:[#allocation2 + $0x378] sm:$0xff] %v860
  %984 = vst [vmem:[#allocation2 + $0x380] sm:$0xff] %v525
  %985 = vst [vmem:[#allocation2 + $0x388] sm:$0xff] %v527
  %986 = vst [vmem:[#allocation2 + $0x390] sm:$0xff] %v638
  %987 = vst [vmem:[#allocation2 + $0x398] sm:$0xff] %v640
  %988 = vst [vmem:[#allocation2 + $0x3a0] sm:$0xff] %v751
  %989 = vst [vmem:[#allocation2 + $0x3a8] sm:$0xff] %v753
  %990 = vst [vmem:[#allocation2 + $0x3b0] sm:$0xff] %v864
  %991 = vst [vmem:[#allocation2 + $0x3b8] sm:$0xff] %v866
  %992 = vst [vmem:[#allocation2 + $0x3c0] sm:$0xff] %v529
  %993 = vst [vmem:[#allocation2 + $0x3c8] sm:$0xff] %v531
  %994 = vst [vmem:[#allocation2 + $0x3d0] sm:$0xff] %v642
  %995 = vst [vmem:[#allocation2 + $0x3d8] sm:$0xff] %v644
  %996 = vst [vmem:[#allocation2 + $0x3e0] sm:$0xff] %v755
  %997 = vst [vmem:[#allocation2 + $0x3e8] sm:$0xff] %v757
  %998 = vst [vmem:[#allocation2 + $0x3f0] sm:$0xff] %v868
  %999 = vst [vmem:[#allocation2 + $0x3f8] sm:$0xff] %v870
  %1000 = vrot.lane.b32.xlu0 %v63, 1
  %v1001 = vpop.permute.xlu0 %1000
  %1002 = vrot.lane.b32.xlu0 %v64, 1
  %v1003 = vpop.permute.xlu0 %1002
  %1004 = vrot.lane.b32.xlu0 %v65, 1
  %v1005 = vpop.permute.xlu0 %1004
  %1006 = vrot.lane.b32.xlu0 %v66, 1
  %v1007 = vpop.permute.xlu0 %1006
  %v1009 = vlaneseq
  %v1010 = vshrl.u32 %v1009, 7
  %v1011 = vsub.s32 0, %v1010
  %v1012 = vrot.slane %v71, %v1011
  %v1014 = vmul.f32 %v1001, %v1012
  %v1015 = vmul.f32 %v1003, %v1012
  %v1016 = vmul.f32 %v1005, %v1012
  %v1017 = vmul.f32 %v1007, %v1012
  %1018 = vrot.lane.b32.xlu0 %v63, 127
  %v1019 = vpop.permute.xlu0 %1018
  %1020 = vrot.lane.b32.xlu0 %v64, 127
  %v1021 = vpop.permute.xlu0 %1020
  %1022 = vrot.lane.b32.xlu0 %v65, 127
  %v1023 = vpop.permute.xlu0 %1022
  %1024 = vrot.lane.b32.xlu0 %v66, 127
  %v1025 = vpop.permute.xlu0 %1024
  %v1027 = vlaneseq
  %v1028 = vshrl.u32 %v1027, 7
  %v1029 = vsub.s32 0, %v1028
  %v1030 = vrot.slane %v72, %v1029
  %v1032 = vmul.f32 %v1019, %v1030
  %v1033 = vmul.f32 %v1021, %v1030
  %v1034 = vmul.f32 %v1023, %v1030
  %v1035 = vmul.f32 %v1025, %v1030
  %v1036 = vld [vmem:[#allocation2] sm:$0xff]
  %v1037 = vld [vmem:[#allocation2 + $0x40] sm:$0xff]
  %v1038 = vld [vmem:[#allocation2 + $0x80] sm:$0xff]
  %v1039 = vld [vmem:[#allocation2 + $0xc0] sm:$0xff]
  %v1040 = vld [vmem:[#allocation2 + $0x100] sm:$0xff]
  %v1041 = vld [vmem:[#allocation2 + $0x140] sm:$0xff]
  %v1042 = vld [vmem:[#allocation2 + $0x180] sm:$0xff]
  %v1043 = vld [vmem:[#allocation2 + $0x1c0] sm:$0xff]
  %v1044 = vld [vmem:[#allocation2 + $0x200] sm:$0xff]
  %v1045 = vld [vmem:[#allocation2 + $0x240] sm:$0xff]
  %v1046 = vld [vmem:[#allocation2 + $0x280] sm:$0xff]
  %v1047 = vld [vmem:[#allocation2 + $0x2c0] sm:$0xff]
  %v1048 = vld [vmem:[#allocation2 + $0x300] sm:$0xff]
  %v1049 = vld [vmem:[#allocation2 + $0x340] sm:$0xff]
  %v1050 = vld [vmem:[#allocation2 + $0x380] sm:$0xff]
  %v1051 = vld [vmem:[#allocation2 + $0x3c0] sm:$0xff]
  %v1052 = vpack.c.bf16 %v1015, %v1014
  %v1053 = vpack.c.bf16 %v1017, %v1016
  %v1054 = vpack.c.bf16 %v64, %v63
  %v1055 = vpack.c.bf16 %v66, %v65
  %v1056 = vpack.c.bf16 %v1033, %v1032
  %v1057 = vpack.c.bf16 %v1035, %v1034
  %v1074 = vunpack.c.l.b16 %v47
  %v1075 = vunpack.c.l.b16 %v48
  %v1076 = vunpack.c.l.b16 %v49
  %v1077 = vunpack.c.l.b16 %v50
  %v1078 = vunpack.c.l.b16 %v51
  %v1079 = vunpack.c.l.b16 %v52
  %v1080 = vunpack.c.l.b16 %v53
  %v1081 = vunpack.c.l.b16 %v54
  %v1082 = vunpack.c.l.b16 %v55
  %v1083 = vunpack.c.l.b16 %v56
  %v1084 = vunpack.c.l.b16 %v57
  %v1085 = vunpack.c.l.b16 %v58
  %v1086 = vunpack.c.l.b16 %v59
  %v1087 = vunpack.c.l.b16 %v60
  %v1088 = vunpack.c.l.b16 %v61
  %v1089 = vunpack.c.l.b16 %v62
  %v1090 = vpack.c.b16 %v1075, %v1074
  %v1091 = vpack.c.b16 %v1077, %v1076
  %v1092 = vpack.c.b16 %v1079, %v1078
  %v1093 = vpack.c.b16 %v1081, %v1080
  %v1094 = vpack.c.b16 %v1083, %v1082
  %v1095 = vpack.c.b16 %v1085, %v1084
  %v1096 = vpack.c.b16 %v1087, %v1086
  %v1097 = vpack.c.b16 %v1089, %v1088
  %vm1098 = vcmask 785408
  %v1100 = vsel %vm1098, %v1090, 0
  %v1103 = vsel %vm1098, %v1091, 0
  %v1106 = vsel %vm1098, %v1092, 0
  %v1109 = vsel %vm1098, %v1093, 0
  %v1112 = vsel %vm1098, %v1094, 0
  %v1115 = vsel %vm1098, %v1095, 0
  %v1118 = vsel %vm1098, %v1096, 0
  %v1121 = vsel %vm1098, %v1097, 0
  %1123 = vmatprep.subr.bf16.mxu0 0
  %1124 = vmatpush1.bf16.msra.mxu0 %v1052
  %1125 = vmatprep.subr.bf16.mxu0 0
  %1126 = vmatpush1.bf16.msra.mxu0 %v1053
  %1127 = vmatprep.subr.bf16.mxu0 0
  %1128 = vmatpush1.bf16.msra.mxu0 %v1054
  %1129 = vmatprep.subr.bf16.mxu0 0
  %1130 = vmatpush1.bf16.msra.mxu0 %v1055
  %1131 = vmatprep.subr.bf16.mxu0 0
  %1132 = vmatpush1.bf16.msra.mxu0 %v1056
  %1133 = vmatprep.subr.bf16.mxu0 0
  %1134 = vmatpush1.bf16.msra.mxu0 %v1057
  %1135 = vmatprep.subr.bf16.mxu0 0
  %1136 = vmatpush1.bf16.msra.mxu0 0
  %1137 = vmatprep.subr.bf16.mxu0 0
  %1138 = vmatpush1.bf16.msra.mxu0 0
  %1139 = vmatprep.subr.bf16.mxu0 0
  %1140 = vmatpush1.bf16.msra.mxu0 0
  %1141 = vmatprep.subr.bf16.mxu0 0
  %1142 = vmatpush1.bf16.msra.mxu0 0
  %1143 = vmatprep.subr.bf16.mxu0 0
  %1144 = vmatpush1.bf16.msra.mxu0 0
  %1145 = vmatprep.subr.bf16.mxu0 0
  %1146 = vmatpush1.bf16.msra.mxu0 0
  %1147 = vmatprep.subr.bf16.mxu0 0
  %1148 = vmatpush1.bf16.msra.mxu0 0
  %1149 = vmatprep.subr.bf16.mxu0 0
  %1150 = vmatpush1.bf16.msra.mxu0 0
  %1151 = vmatprep.subr.bf16.mxu0 0
  %1152 = vmatpush1.bf16.msra.mxu0 0
  %1153 = vmatprep.subr.bf16.mxu0 0
  %1154 = vmatpush1.bf16.msra.mxu0 0
  %1155 = vmatprep.mubr.bf16.mxu0 0
  %1156 = vmatmul.mubr.bf16.gmra.mrb[0].mxu0 %v1100
  %v1157 = vpop.f32.mrb[0].mxu0
  %v1158 = vadd.f32 0.0, %v1157
  %v1159 = vpop.f32.mrb[0].mxu0
  %v1160 = vpop.f32.mrb[0].mxu0
  %v1161 = vadd.f32 0.0, %v1160
  %v1162 = vpop.f32.mrb[0].mxu0
  %1163 = vmatprep.mubr.bf16.mxu0 0
  %1164 = vmatmul.mubr.bf16.gmra.mrb[0].mxu0 %v1103
  %v1165 = vpop.f32.mrb[0].mxu0
  %v1166 = vadd.f32 0.0, %v1165
  %v1167 = vpop.f32.mrb[0].mxu0
  %v1168 = vpop.f32.mrb[0].mxu0
  %v1169 = vadd.f32 0.0, %v1168
  %v1170 = vpop.f32.mrb[0].mxu0
  %1171 = vmatprep.mubr.bf16.mxu0 0
  %1172 = vmatmul.mubr.bf16.gmra.mrb[0].mxu0 %v1106
  %v1173 = vpop.f32.mrb[0].mxu0
  %v1174 = vadd.f32 0.0, %v1173
  %v1175 = vpop.f32.mrb[0].mxu0
  %v1176 = vpop.f32.mrb[0].mxu0
  %v1177 = vadd.f32 0.0, %v1176
  %v1178 = vpop.f32.mrb[0].mxu0
  %1179 = vmatprep.mubr.bf16.mxu0 0
  %1180 = vmatmul.mubr.bf16.gmra.mrb[0].mxu0 %v1109
  %v1181 = vpop.f32.mrb[0].mxu0
  %v1182 = vadd.f32 0.0, %v1181
  %v1183 = vpop.f32.mrb[0].mxu0
  %v1184 = vpop.f32.mrb[0].mxu0
  %v1185 = vadd.f32 0.0, %v1184
  %v1186 = vpop.f32.mrb[0].mxu0
  %1187 = vmatprep.mubr.bf16.mxu0 0
  %1188 = vmatmul.mubr.bf16.gmra.mrb[0].mxu0 %v1112
  %v1189 = vpop.f32.mrb[0].mxu0
  %v1190 = vadd.f32 0.0, %v1189
  %v1191 = vpop.f32.mrb[0].mxu0
  %v1192 = vpop.f32.mrb[0].mxu0
  %v1193 = vadd.f32 0.0, %v1192
  %v1194 = vpop.f32.mrb[0].mxu0
  %1195 = vmatprep.mubr.bf16.mxu0 0
  %1196 = vmatmul.mubr.bf16.gmra.mrb[0].mxu0 %v1115
  %v1197 = vpop.f32.mrb[0].mxu0
  %v1198 = vadd.f32 0.0, %v1197
  %v1199 = vpop.f32.mrb[0].mxu0
  %v1200 = vpop.f32.mrb[0].mxu0
  %v1201 = vadd.f32 0.0, %v1200
  %v1202 = vpop.f32.mrb[0].mxu0
  %1203 = vmatprep.mubr.bf16.mxu0 0
  %1204 = vmatmul.mubr.bf16.gmra.mrb[0].mxu0 %v1118
  %v1205 = vpop.f32.mrb[0].mxu0
  %v1206 = vadd.f32 0.0, %v1205
  %v1207 = vpop.f32.mrb[0].mxu0
  %v1208 = vpop.f32.mrb[0].mxu0
  %v1209 = vadd.f32 0.0, %v1208
  %v1210 = vpop.f32.mrb[0].mxu0
  %1211 = vmatprep.mubr.bf16.mxu0 0
  %1212 = vmatmul.mubr.bf16.gmra.mrb[0].mxu0 %v1121
  %v1213 = vpop.f32.mrb[0].mxu0
  %v1214 = vadd.f32 0.0, %v1213
  %v1215 = vpop.f32.mrb[0].mxu0
  %v1216 = vpop.f32.mrb[0].mxu0
  %v1217 = vadd.f32 0.0, %v1216
  %v1218 = vpop.f32.mrb[0].mxu0
  %1219 = vdwg.mxu0
  %v1220 = vadd.f32 %v1036, %v1158
  %v1221 = vadd.f32 %v1037, %v1161
  %v1222 = vadd.f32 %v1038, %v1166
  %v1223 = vadd.f32 %v1039, %v1169
  %v1224 = vadd.f32 %v1040, %v1174
  %v1225 = vadd.f32 %v1041, %v1177
  %v1226 = vadd.f32 %v1042, %v1182
  %v1227 = vadd.f32 %v1043, %v1185
  %v1228 = vadd.f32 %v1044, %v1190
  %v1229 = vadd.f32 %v1045, %v1193
  %v1230 = vadd.f32 %v1046, %v1198
  %v1231 = vadd.f32 %v1047, %v1201
  %v1232 = vadd.f32 %v1048, %v1206
  %v1233 = vadd.f32 %v1049, %v1209
  %v1234 = vadd.f32 %v1050, %v1214
  %v1235 = vadd.f32 %v1051, %v1217
  %v1236 = vmul.f32 %v1220, 0.5
  %v1237 = vmul.f32 %v1221, 0.5
  %v1238 = vmul.f32 %v1222, 0.5
  %v1239 = vmul.f32 %v1223, 0.5
  %v1240 = vmul.f32 %v1224, 0.5
  %v1241 = vmul.f32 %v1225, 0.5
  %v1242 = vmul.f32 %v1226, 0.5
  %v1243 = vmul.f32 %v1227, 0.5
  %v1244 = vmul.f32 %v1228, 0.5
  %v1245 = vmul.f32 %v1229, 0.5
  %v1246 = vmul.f32 %v1230, 0.5
  %v1247 = vmul.f32 %v1231, 0.5
  %v1248 = vtanh.pop %v1236
  %v1249 = vtanh.pop %v1237
  %v1250 = vtanh.pop %v1238
  %v1251 = vtanh.pop %v1239
  %v1252 = vtanh.pop %v1240
  %v1253 = vtanh.pop %v1241
  %v1254 = vtanh.pop %v1242
  %v1255 = vtanh.pop %v1243
  %v1256 = vtanh.pop %v1244
  %v1257 = vtanh.pop %v1245
  %v1258 = vtanh.pop %v1246
  %v1259 = vtanh.pop %v1247
  %v1260 = vadd.f32 %v1248, 1.0
  %v1261 = vadd.f32 %v1249, 1.0
  %v1262 = vadd.f32 %v1250, 1.0
  %v1263 = vadd.f32 %v1251, 1.0
  %v1264 = vadd.f32 %v1252, 1.0
  %v1265 = vadd.f32 %v1253, 1.0
  %v1266 = vadd.f32 %v1254, 1.0
  %v1267 = vadd.f32 %v1255, 1.0
  %v1268 = vadd.f32 %v1256, 1.0
  %v1269 = vadd.f32 %v1257, 1.0
  %v1270 = vadd.f32 %v1258, 1.0
  %v1271 = vadd.f32 %v1259, 1.0
  %v1272 = vmul.f32 %v1260, 0.5
  %v1273 = vmul.f32 %v1261, 0.5
  %v1274 = vmul.f32 %v1262, 0.5
  %v1275 = vmul.f32 %v1263, 0.5
  %v1276 = vmul.f32 %v1264, 0.5
  %v1277 = vmul.f32 %v1265, 0.5
  %v1278 = vmul.f32 %v1266, 0.5
  %v1279 = vmul.f32 %v1267, 0.5
  %v1280 = vmul.f32 %v1268, 0.5
  %v1281 = vmul.f32 %v1269, 0.5
  %v1282 = vmul.f32 %v1270, 0.5
  %v1283 = vmul.f32 %v1271, 0.5
  %v1284 = vtanh.pop %v1232
  %v1285 = vtanh.pop %v1233
  %v1286 = vtanh.pop %v1234
  %v1287 = vtanh.pop %v1235
  %v1288 = vmul.f32 %v1276, %v67
  %v1289 = vmul.f32 %v1277, %v68
  %v1290 = vmul.f32 %v1278, %v69
  %v1291 = vmul.f32 %v1279, %v70
  %v1292 = vmul.f32 %v1272, %v1284
  %v1293 = vmul.f32 %v1273, %v1285
  %v1294 = vmul.f32 %v1274, %v1286
  %v1295 = vmul.f32 %v1275, %v1287
  %v1296 = vadd.f32 %v1288, %v1292
  %v1297 = vadd.f32 %v1289, %v1293
  %v1298 = vadd.f32 %v1290, %v1294
  %v1299 = vadd.f32 %v1291, %v1295
  %v1300 = vtanh.pop %v1296
  %v1301 = vtanh.pop %v1297
  %v1302 = vtanh.pop %v1298
  %v1303 = vtanh.pop %v1299
  %v1304 = vmul.f32 %v1280, %v1300
  %v1305 = vmul.f32 %v1281, %v1301
  %v1306 = vmul.f32 %v1282, %v1302
  %v1307 = vmul.f32 %v1283, %v1303
  %1308 = vrot.lane.b32.xlu0 %v105, 1
  %v1309 = vpop.permute.xlu0 %1308
  %1310 = vrot.lane.b32.xlu0 %v106, 1
  %v1311 = vpop.permute.xlu0 %1310
  %1312 = vrot.lane.b32.xlu0 %v107, 1
  %v1313 = vpop.permute.xlu0 %1312
  %1314 = vrot.lane.b32.xlu0 %v108, 1
  %v1315 = vpop.permute.xlu0 %1314
  %v1317 = vlaneseq
  %v1318 = vshrl.u32 %v1317, 7
  %v1319 = vsub.s32 0, %v1318
  %v1320 = vrot.slane %v113, %v1319
  %v1322 = vmul.f32 %v1309, %v1320
  %v1323 = vmul.f32 %v1311, %v1320
  %v1324 = vmul.f32 %v1313, %v1320
  %v1325 = vmul.f32 %v1315, %v1320
  %1326 = vrot.lane.b32.xlu0 %v105, 127
  %v1327 = vpop.permute.xlu0 %1326
  %1328 = vrot.lane.b32.xlu0 %v106, 127
  %v1329 = vpop.permute.xlu0 %1328
  %1330 = vrot.lane.b32.xlu0 %v107, 127
  %v1331 = vpop.permute.xlu0 %1330
  %1332 = vrot.lane.b32.xlu0 %v108, 127
  %v1333 = vpop.permute.xlu0 %1332
  %v1335 = vlaneseq
  %v1336 = vshrl.u32 %v1335, 7
  %v1337 = vsub.s32 0, %v1336
  %v1338 = vrot.slane %v114, %v1337
  %v1340 = vmul.f32 %v1327, %v1338
  %v1341 = vmul.f32 %v1329, %v1338
  %v1342 = vmul.f32 %v1331, %v1338
  %v1343 = vmul.f32 %v1333, %v1338
  %1344 = vrot.lane.b32.xlu0 %v1304, 1
  %v1345 = vpop.permute.xlu0 %1344
  %1346 = vrot.lane.b32.xlu0 %v1305, 1
  %v1347 = vpop.permute.xlu0 %1346
  %1348 = vrot.lane.b32.xlu0 %v1306, 1
  %v1349 = vpop.permute.xlu0 %1348
  %1350 = vrot.lane.b32.xlu0 %v1307, 1
  %v1351 = vpop.permute.xlu0 %1350
  %v1352 = vmul.f32 %v1345, %v1320
  %v1353 = vmul.f32 %v1347, %v1320
  %v1354 = vmul.f32 %v1349, %v1320
  %v1355 = vmul.f32 %v1351, %v1320
  %1356 = vrot.lane.b32.xlu0 %v1304, 127
  %v1357 = vpop.permute.xlu0 %1356
  %1358 = vrot.lane.b32.xlu0 %v1305, 127
  %v1359 = vpop.permute.xlu0 %1358
  %1360 = vrot.lane.b32.xlu0 %v1306, 127
  %v1361 = vpop.permute.xlu0 %1360
  %1362 = vrot.lane.b32.xlu0 %v1307, 127
  %v1363 = vpop.permute.xlu0 %1362
  %v1364 = vmul.f32 %v1357, %v1338
  %v1365 = vmul.f32 %v1359, %v1338
  %v1366 = vmul.f32 %v1361, %v1338
  %v1367 = vmul.f32 %v1363, %v1338
  %v1368 = vpack.c.bf16 %v1353, %v1352
  %v1369 = vpack.c.bf16 %v1355, %v1354
  %v1370 = vpack.c.bf16 %v1305, %v1304
  %v1371 = vpack.c.bf16 %v1307, %v1306
  %v1372 = vpack.c.bf16 %v1365, %v1364
  %v1373 = vpack.c.bf16 %v1367, %v1366
  %v1374 = vpack.c.bf16 %v1323, %v1322
  %v1375 = vpack.c.bf16 %v1325, %v1324
  %v1376 = vpack.c.bf16 %v106, %v105
  %v1377 = vpack.c.bf16 %v108, %v107
  %v1378 = vpack.c.bf16 %v1341, %v1340
  %v1379 = vpack.c.bf16 %v1343, %v1342
  %v1396 = vunpack.c.l.b16 %v89
  %v1397 = vunpack.c.h.b16 %v89
  %v1398 = vunpack.c.l.b16 %v90
  %v1399 = vunpack.c.h.b16 %v90
  %v1400 = vunpack.c.l.b16 %v91
  %v1401 = vunpack.c.h.b16 %v91
  %v1402 = vunpack.c.l.b16 %v92
  %v1403 = vunpack.c.h.b16 %v92
  %v1404 = vunpack.c.l.b16 %v93
  %v1405 = vunpack.c.h.b16 %v93
  %v1406 = vunpack.c.l.b16 %v94
  %v1407 = vunpack.c.h.b16 %v94
  %v1408 = vunpack.c.l.b16 %v95
  %v1409 = vunpack.c.h.b16 %v95
  %v1410 = vunpack.c.l.b16 %v96
  %v1411 = vunpack.c.h.b16 %v96
  %v1412 = vunpack.c.l.b16 %v97
  %v1413 = vunpack.c.h.b16 %v97
  %v1414 = vunpack.c.l.b16 %v98
  %v1415 = vunpack.c.h.b16 %v98
  %v1416 = vunpack.c.l.b16 %v99
  %v1417 = vunpack.c.h.b16 %v99
  %v1418 = vunpack.c.l.b16 %v100
  %v1419 = vunpack.c.h.b16 %v100
  %v1420 = vunpack.c.l.b16 %v101
  %v1421 = vunpack.c.h.b16 %v101
  %v1422 = vunpack.c.l.b16 %v102
  %v1423 = vunpack.c.h.b16 %v102
  %v1424 = vunpack.c.l.b16 %v103
  %v1425 = vunpack.c.h.b16 %v103
  %v1426 = vunpack.c.l.b16 %v104
  %v1427 = vunpack.c.h.b16 %v104
  %v1428 = vpack.c.b16 %v1398, %v1396
  %v1429 = vpack.c.b16 %v1399, %v1397
  %v1430 = vpack.c.b16 %v1402, %v1400
  %v1431 = vpack.c.b16 %v1403, %v1401
  %v1432 = vpack.c.b16 %v1406, %v1404
  %v1433 = vpack.c.b16 %v1407, %v1405
  %v1434 = vpack.c.b16 %v1410, %v1408
  %v1435 = vpack.c.b16 %v1411, %v1409
  %v1436 = vpack.c.b16 %v1414, %v1412
  %v1437 = vpack.c.b16 %v1415, %v1413
  %v1438 = vpack.c.b16 %v1418, %v1416
  %v1439 = vpack.c.b16 %v1419, %v1417
  %v1440 = vpack.c.b16 %v1422, %v1420
  %v1441 = vpack.c.b16 %v1423, %v1421
  %v1442 = vpack.c.b16 %v1426, %v1424
  %v1443 = vpack.c.b16 %v1427, %v1425
  %vm1452 = vcmask 523264
  %v1454 = vsel %vm1452, %v1429, 0
  %v1457 = vsel %vm1452, %v1431, 0
  %v1460 = vsel %vm1452, %v1433, 0
  %v1463 = vsel %vm1452, %v1435, 0
  %v1466 = vsel %vm1452, %v1437, 0
  %v1469 = vsel %vm1452, %v1439, 0
  %v1472 = vsel %vm1452, %v1441, 0
  %v1475 = vsel %vm1452, %v1443, 0
  %1477 = vmatprep.subr.bf16.mxu0 0
  %1478 = vmatpush1.bf16.msra.mxu0 %v1368
  %1479 = vmatprep.subr.bf16.mxu0 0
  %1480 = vmatpush1.bf16.msra.mxu0 %v1369
  %1481 = vmatprep.subr.bf16.mxu0 0
  %1482 = vmatpush1.bf16.msra.mxu0 %v1370
  %1483 = vmatprep.subr.bf16.mxu0 0
  %1484 = vmatpush1.bf16.msra.mxu0 %v1371
  %1485 = vmatprep.subr.bf16.mxu0 0
  %1486 = vmatpush1.bf16.msra.mxu0 %v1372
  %1487 = vmatprep.subr.bf16.mxu0 0
  %1488 = vmatpush1.bf16.msra.mxu0 %v1373
  %1489 = vmatprep.subr.bf16.mxu0 0
  %1490 = vmatpush1.bf16.msra.mxu0 %v1374
  %1491 = vmatprep.subr.bf16.mxu0 0
  %1492 = vmatpush1.bf16.msra.mxu0 %v1375
  %1493 = vmatprep.subr.bf16.mxu0 0
  %1494 = vmatpush1.bf16.msra.mxu0 %v1376
  %1495 = vmatprep.subr.bf16.mxu0 0
  %1496 = vmatpush1.bf16.msra.mxu0 %v1377
  %1497 = vmatprep.subr.bf16.mxu0 0
  %1498 = vmatpush1.bf16.msra.mxu0 %v1378
  %1499 = vmatprep.subr.bf16.mxu0 0
  %1500 = vmatpush1.bf16.msra.mxu0 %v1379
  %1501 = vmatprep.subr.bf16.mxu0 0
  %1502 = vmatpush1.bf16.msra.mxu0 0
  %1503 = vmatprep.subr.bf16.mxu0 0
  %1504 = vmatpush1.bf16.msra.mxu0 0
  %1505 = vmatprep.subr.bf16.mxu0 0
  %1506 = vmatpush1.bf16.msra.mxu0 0
  %1507 = vmatprep.subr.bf16.mxu0 0
  %1508 = vmatpush1.bf16.msra.mxu0 0
  %1509 = vmatprep.mubr.bf16.mxu0 %v1454
  %1510 = vmatmul.mubr.bf16.gmra.mrb[0].mxu0 %v1428
  %v1511 = vpop.f32.mrb[0].mxu0
  %v1512 = vadd.f32 %v134, %v1511
  %v1513 = vpop.f32.mrb[0].mxu0
  %v1514 = vpop.f32.mrb[0].mxu0
  %v1515 = vadd.f32 %v139, %v1514
  %v1516 = vpop.f32.mrb[0].mxu0
  %1517 = vmatprep.mubr.bf16.mxu0 %v1457
  %1518 = vmatmul.mubr.bf16.gmra.mrb[0].mxu0 %v1430
  %v1519 = vpop.f32.mrb[0].mxu0
  %v1520 = vadd.f32 %v144, %v1519
  %v1521 = vpop.f32.mrb[0].mxu0
  %v1522 = vpop.f32.mrb[0].mxu0
  %v1523 = vadd.f32 %v149, %v1522
  %v1524 = vpop.f32.mrb[0].mxu0
  %1525 = vmatprep.mubr.bf16.mxu0 %v1460
  %1526 = vmatmul.mubr.bf16.gmra.mrb[0].mxu0 %v1432
  %v1527 = vpop.f32.mrb[0].mxu0
  %v1528 = vadd.f32 %v154, %v1527
  %v1529 = vpop.f32.mrb[0].mxu0
  %v1530 = vpop.f32.mrb[0].mxu0
  %v1531 = vadd.f32 %v159, %v1530
  %v1532 = vpop.f32.mrb[0].mxu0
  %1533 = vmatprep.mubr.bf16.mxu0 %v1463
  %1534 = vmatmul.mubr.bf16.gmra.mrb[0].mxu0 %v1434
  %v1535 = vpop.f32.mrb[0].mxu0
  %v1536 = vadd.f32 %v164, %v1535
  %v1537 = vpop.f32.mrb[0].mxu0
  %v1538 = vpop.f32.mrb[0].mxu0
  %v1539 = vadd.f32 %v169, %v1538
  %v1540 = vpop.f32.mrb[0].mxu0
  %1541 = vmatprep.mubr.bf16.mxu0 %v1466
  %1542 = vmatmul.mubr.bf16.gmra.mrb[0].mxu0 %v1436
  %v1543 = vpop.f32.mrb[0].mxu0
  %v1544 = vadd.f32 %v174, %v1543
  %v1545 = vpop.f32.mrb[0].mxu0
  %v1546 = vpop.f32.mrb[0].mxu0
  %v1547 = vadd.f32 %v179, %v1546
  %v1548 = vpop.f32.mrb[0].mxu0
  %1549 = vmatprep.mubr.bf16.mxu0 %v1469
  %1550 = vmatmul.mubr.bf16.gmra.mrb[0].mxu0 %v1438
  %v1551 = vpop.f32.mrb[0].mxu0
  %v1552 = vadd.f32 %v184, %v1551
  %v1553 = vpop.f32.mrb[0].mxu0
  %v1554 = vpop.f32.mrb[0].mxu0
  %v1555 = vadd.f32 %v189, %v1554
  %v1556 = vpop.f32.mrb[0].mxu0
  %1557 = vmatprep.mubr.bf16.mxu0 %v1472
  %1558 = vmatmul.mubr.bf16.gmra.mrb[0].mxu0 %v1440
  %v1559 = vpop.f32.mrb[0].mxu0
  %v1560 = vadd.f32 %v194, %v1559
  %v1561 = vpop.f32.mrb[0].mxu0
  %v1562 = vpop.f32.mrb[0].mxu0
  %v1563 = vadd.f32 %v199, %v1562
  %v1564 = vpop.f32.mrb[0].mxu0
  %1565 = vmatprep.mubr.bf16.mxu0 %v1475
  %1566 = vmatmul.mubr.bf16.gmra.mrb[0].mxu0 %v1442
  %v1567 = vpop.f32.mrb[0].mxu0
  %v1568 = vadd.f32 %v204, %v1567
  %v1569 = vpop.f32.mrb[0].mxu0
  %v1570 = vpop.f32.mrb[0].mxu0
  %v1571 = vadd.f32 %v209, %v1570
  %v1572 = vpop.f32.mrb[0].mxu0
  %1573 = vdwg.mxu0
  %v1574 = vmul.f32 %v1512, 0.5
  %v1575 = vmul.f32 %v1515, 0.5
  %v1576 = vmul.f32 %v1520, 0.5
  %v1577 = vmul.f32 %v1523, 0.5
  %v1578 = vmul.f32 %v1528, 0.5
  %v1579 = vmul.f32 %v1531, 0.5
  %v1580 = vmul.f32 %v1536, 0.5
  %v1581 = vmul.f32 %v1539, 0.5
  %v1582 = vmul.f32 %v1544, 0.5
  %v1583 = vmul.f32 %v1547, 0.5
  %v1584 = vmul.f32 %v1552, 0.5
  %v1585 = vmul.f32 %v1555, 0.5
  %v1586 = vtanh.pop %v1574
  %v1587 = vtanh.pop %v1575
  %v1588 = vtanh.pop %v1576
  %v1589 = vtanh.pop %v1577
  %v1590 = vtanh.pop %v1578
  %v1591 = vtanh.pop %v1579
  %v1592 = vtanh.pop %v1580
  %v1593 = vtanh.pop %v1581
  %v1594 = vtanh.pop %v1582
  %v1595 = vtanh.pop %v1583
  %v1596 = vtanh.pop %v1584
  %v1597 = vtanh.pop %v1585
  %v1598 = vadd.f32 %v1586, 1.0
  %v1599 = vadd.f32 %v1587, 1.0
  %v1600 = vadd.f32 %v1588, 1.0
  %v1601 = vadd.f32 %v1589, 1.0
  %v1602 = vadd.f32 %v1590, 1.0
  %v1603 = vadd.f32 %v1591, 1.0
  %v1604 = vadd.f32 %v1592, 1.0
  %v1605 = vadd.f32 %v1593, 1.0
  %v1606 = vadd.f32 %v1594, 1.0
  %v1607 = vadd.f32 %v1595, 1.0
  %v1608 = vadd.f32 %v1596, 1.0
  %v1609 = vadd.f32 %v1597, 1.0
  %v1610 = vmul.f32 %v1598, 0.5
  %v1611 = vmul.f32 %v1599, 0.5
  %v1612 = vmul.f32 %v1600, 0.5
  %v1613 = vmul.f32 %v1601, 0.5
  %v1614 = vmul.f32 %v1602, 0.5
  %v1615 = vmul.f32 %v1603, 0.5
  %v1616 = vmul.f32 %v1604, 0.5
  %v1617 = vmul.f32 %v1605, 0.5
  %v1618 = vmul.f32 %v1606, 0.5
  %v1619 = vmul.f32 %v1607, 0.5
  %v1620 = vmul.f32 %v1608, 0.5
  %v1621 = vmul.f32 %v1609, 0.5
  %v1622 = vtanh.pop %v1560
  %v1623 = vtanh.pop %v1563
  %v1624 = vtanh.pop %v1568
  %v1625 = vtanh.pop %v1571
  %v1626 = vmul.f32 %v1614, %v109
  %v1627 = vmul.f32 %v1615, %v110
  %v1628 = vmul.f32 %v1616, %v111
  %v1629 = vmul.f32 %v1617, %v112
  %v1630 = vmul.f32 %v1610, %v1622
  %v1631 = vmul.f32 %v1611, %v1623
  %v1632 = vmul.f32 %v1612, %v1624
  %v1633 = vmul.f32 %v1613, %v1625
  %v1634 = vadd.f32 %v1626, %v1630
  %v1635 = vadd.f32 %v1627, %v1631
  %v1636 = vadd.f32 %v1628, %v1632
  %v1637 = vadd.f32 %v1629, %v1633
  %v1638 = vtanh.pop %v1634
  %v1639 = vtanh.pop %v1635
  %v1640 = vtanh.pop %v1636
  %v1641 = vtanh.pop %v1637
  %v1642 = vmul.f32 %v1618, %v1638
  %v1643 = vmul.f32 %v1619, %v1639
  %v1644 = vmul.f32 %v1620, %v1640
  %v1645 = vmul.f32 %v1621, %v1641
  %1646 = vst [vmem:[%s12] sm:$0xff] %v1642
  %1647 = vst [vmem:[%s12 + $0x8] sm:$0xff] %v1643
  %1648 = vst [vmem:[%s12 + $0x10] sm:$0xff] %v1644
  %1649 = vst [vmem:[%s12 + $0x18] sm:$0xff] %v1645
  %v1650 = vmul.f32 %v1345, %v1012
  %v1651 = vmul.f32 %v1347, %v1012
  %v1652 = vmul.f32 %v1349, %v1012
  %v1653 = vmul.f32 %v1351, %v1012
  %v1654 = vmul.f32 %v1357, %v1030
  %v1655 = vmul.f32 %v1359, %v1030
  %v1656 = vmul.f32 %v1361, %v1030
  %v1657 = vmul.f32 %v1363, %v1030
  %v1658 = vld [vmem:[#allocation2 + $0x8] sm:$0xff]
  %v1659 = vld [vmem:[#allocation2 + $0x48] sm:$0xff]
  %v1660 = vld [vmem:[#allocation2 + $0x88] sm:$0xff]
  %v1661 = vld [vmem:[#allocation2 + $0xc8] sm:$0xff]
  %v1662 = vld [vmem:[#allocation2 + $0x108] sm:$0xff]
  %v1663 = vld [vmem:[#allocation2 + $0x148] sm:$0xff]
  %v1664 = vld [vmem:[#allocation2 + $0x188] sm:$0xff]
  %v1665 = vld [vmem:[#allocation2 + $0x1c8] sm:$0xff]
  %v1666 = vld [vmem:[#allocation2 + $0x208] sm:$0xff]
  %v1667 = vld [vmem:[#allocation2 + $0x248] sm:$0xff]
  %v1668 = vld [vmem:[#allocation2 + $0x288] sm:$0xff]
  %v1669 = vld [vmem:[#allocation2 + $0x2c8] sm:$0xff]
  %v1670 = vld [vmem:[#allocation2 + $0x308] sm:$0xff]
  %v1671 = vld [vmem:[#allocation2 + $0x348] sm:$0xff]
  %v1672 = vld [vmem:[#allocation2 + $0x388] sm:$0xff]
  %v1673 = vld [vmem:[#allocation2 + $0x3c8] sm:$0xff]
  %v1674 = vpack.c.bf16 %v1651, %v1650
  %v1675 = vpack.c.bf16 %v1653, %v1652
  %v1676 = vpack.c.bf16 %v1655, %v1654
  %v1677 = vpack.c.bf16 %v1657, %v1656
  %1678 = vmatprep.subr.bf16.mxu0 0
  %1679 = vmatpush1.bf16.msra.mxu0 %v1674
  %1680 = vmatprep.subr.bf16.mxu0 0
  %1681 = vmatpush1.bf16.msra.mxu0 %v1675
  %1682 = vmatprep.subr.bf16.mxu0 0
  %1683 = vmatpush1.bf16.msra.mxu0 %v1370
  %1684 = vmatprep.subr.bf16.mxu0 0
  %1685 = vmatpush1.bf16.msra.mxu0 %v1371
  %1686 = vmatprep.subr.bf16.mxu0 0
  %1687 = vmatpush1.bf16.msra.mxu0 %v1676
  %1688 = vmatprep.subr.bf16.mxu0 0
  %1689 = vmatpush1.bf16.msra.mxu0 %v1677
  %1690 = vmatprep.subr.bf16.mxu0 0
  %1691 = vmatpush1.bf16.msra.mxu0 0
  %1692 = vmatprep.subr.bf16.mxu0 0
  %1693 = vmatpush1.bf16.msra.mxu0 0
  %1694 = vmatprep.subr.bf16.mxu0 0
  %1695 = vmatpush1.bf16.msra.mxu0 0
  %1696 = vmatprep.subr.bf16.mxu0 0
  %1697 = vmatpush1.bf16.msra.mxu0 0
  %1698 = vmatprep.subr.bf16.mxu0 0
  %1699 = vmatpush1.bf16.msra.mxu0 0
  %1700 = vmatprep.subr.bf16.mxu0 0
  %1701 = vmatpush1.bf16.msra.mxu0 0
  %1702 = vmatprep.subr.bf16.mxu0 0
  %1703 = vmatpush1.bf16.msra.mxu0 0
  %1704 = vmatprep.subr.bf16.mxu0 0
  %1705 = vmatpush1.bf16.msra.mxu0 0
  %1706 = vmatprep.subr.bf16.mxu0 0
  %1707 = vmatpush1.bf16.msra.mxu0 0
  %1708 = vmatprep.subr.bf16.mxu0 0
  %1709 = vmatpush1.bf16.msra.mxu0 0
  %1710 = vmatprep.mubr.bf16.mxu0 0
  %1711 = vmatmul.mubr.bf16.gmra.mrb[0].mxu0 %v1100
  %v1712 = vpop.f32.mrb[0].mxu0
  %v1713 = vadd.f32 0.0, %v1712
  %v1714 = vpop.f32.mrb[0].mxu0
  %v1715 = vpop.f32.mrb[0].mxu0
  %v1716 = vadd.f32 0.0, %v1715
  %v1717 = vpop.f32.mrb[0].mxu0
  %1718 = vmatprep.mubr.bf16.mxu0 0
  %1719 = vmatmul.mubr.bf16.gmra.mrb[0].mxu0 %v1103
  %v1720 = vpop.f32.mrb[0].mxu0
  %v1721 = vadd.f32 0.0, %v1720
  %v1722 = vpop.f32.mrb[0].mxu0
  %v1723 = vpop.f32.mrb[0].mxu0
  %v1724 = vadd.f32 0.0, %v1723
  %v1725 = vpop.f32.mrb[0].mxu0
  %1726 = vmatprep.mubr.bf16.mxu0 0
  %1727 = vmatmul.mubr.bf16.gmra.mrb[0].mxu0 %v1106
  %v1728 = vpop.f32.mrb[0].mxu0
  %v1729 = vadd.f32 0.0, %v1728
  %v1730 = vpop.f32.mrb[0].mxu0
  %v1731 = vpop.f32.mrb[0].mxu0
  %v1732 = vadd.f32 0.0, %v1731
  %v1733 = vpop.f32.mrb[0].mxu0
  %1734 = vmatprep.mubr.bf16.mxu0 0
  %1735 = vmatmul.mubr.bf16.gmra.mrb[0].mxu0 %v1109
  %v1736 = vpop.f32.mrb[0].mxu0
  %v1737 = vadd.f32 0.0, %v1736
  %v1738 = vpop.f32.mrb[0].mxu0
  %v1739 = vpop.f32.mrb[0].mxu0
  %v1740 = vadd.f32 0.0, %v1739
  %v1741 = vpop.f32.mrb[0].mxu0
  %1742 = vmatprep.mubr.bf16.mxu0 0
  %1743 = vmatmul.mubr.bf16.gmra.mrb[0].mxu0 %v1112
  %v1744 = vpop.f32.mrb[0].mxu0
  %v1745 = vadd.f32 0.0, %v1744
  %v1746 = vpop.f32.mrb[0].mxu0
  %v1747 = vpop.f32.mrb[0].mxu0
  %v1748 = vadd.f32 0.0, %v1747
  %v1749 = vpop.f32.mrb[0].mxu0
  %1750 = vmatprep.mubr.bf16.mxu0 0
  %1751 = vmatmul.mubr.bf16.gmra.mrb[0].mxu0 %v1115
  %v1752 = vpop.f32.mrb[0].mxu0
  %v1753 = vadd.f32 0.0, %v1752
  %v1754 = vpop.f32.mrb[0].mxu0
  %v1755 = vpop.f32.mrb[0].mxu0
  %v1756 = vadd.f32 0.0, %v1755
  %v1757 = vpop.f32.mrb[0].mxu0
  %1758 = vmatprep.mubr.bf16.mxu0 0
  %1759 = vmatmul.mubr.bf16.gmra.mrb[0].mxu0 %v1118
  %v1760 = vpop.f32.mrb[0].mxu0
  %v1761 = vadd.f32 0.0, %v1760
  %v1762 = vpop.f32.mrb[0].mxu0
  %v1763 = vpop.f32.mrb[0].mxu0
  %v1764 = vadd.f32 0.0, %v1763
  %v1765 = vpop.f32.mrb[0].mxu0
  %1766 = vmatprep.mubr.bf16.mxu0 0
  %1767 = vmatmul.mubr.bf16.gmra.mrb[0].mxu0 %v1121
  %v1768 = vpop.f32.mrb[0].mxu0
  %v1769 = vadd.f32 0.0, %v1768
  %v1770 = vpop.f32.mrb[0].mxu0
  %v1771 = vpop.f32.mrb[0].mxu0
  %v1772 = vadd.f32 0.0, %v1771
  %v1773 = vpop.f32.mrb[0].mxu0
  %1774 = vdwg.mxu0
  %v1775 = vadd.f32 %v1658, %v1713
  %v1776 = vadd.f32 %v1659, %v1716
  %v1777 = vadd.f32 %v1660, %v1721
  %v1778 = vadd.f32 %v1661, %v1724
  %v1779 = vadd.f32 %v1662, %v1729
  %v1780 = vadd.f32 %v1663, %v1732
  %v1781 = vadd.f32 %v1664, %v1737
  %v1782 = vadd.f32 %v1665, %v1740
  %v1783 = vadd.f32 %v1666, %v1745
  %v1784 = vadd.f32 %v1667, %v1748
  %v1785 = vadd.f32 %v1668, %v1753
  %v1786 = vadd.f32 %v1669, %v1756
  %v1787 = vadd.f32 %v1670, %v1761
  %v1788 = vadd.f32 %v1671, %v1764
  %v1789 = vadd.f32 %v1672, %v1769
  %v1790 = vadd.f32 %v1673, %v1772
  %v1791 = vmul.f32 %v1775, 0.5
  %v1792 = vmul.f32 %v1776, 0.5
  %v1793 = vmul.f32 %v1777, 0.5
  %v1794 = vmul.f32 %v1778, 0.5
  %v1795 = vmul.f32 %v1779, 0.5
  %v1796 = vmul.f32 %v1780, 0.5
  %v1797 = vmul.f32 %v1781, 0.5
  %v1798 = vmul.f32 %v1782, 0.5
  %v1799 = vmul.f32 %v1783, 0.5
  %v1800 = vmul.f32 %v1784, 0.5
  %v1801 = vmul.f32 %v1785, 0.5
  %v1802 = vmul.f32 %v1786, 0.5
  %v1803 = vtanh.pop %v1791
  %v1804 = vtanh.pop %v1792
  %v1805 = vtanh.pop %v1793
  %v1806 = vtanh.pop %v1794
  %v1807 = vtanh.pop %v1795
  %v1808 = vtanh.pop %v1796
  %v1809 = vtanh.pop %v1797
  %v1810 = vtanh.pop %v1798
  %v1811 = vtanh.pop %v1799
  %v1812 = vtanh.pop %v1800
  %v1813 = vtanh.pop %v1801
  %v1814 = vtanh.pop %v1802
  %v1815 = vadd.f32 %v1803, 1.0
  %v1816 = vadd.f32 %v1804, 1.0
  %v1817 = vadd.f32 %v1805, 1.0
  %v1818 = vadd.f32 %v1806, 1.0
  %v1819 = vadd.f32 %v1807, 1.0
  %v1820 = vadd.f32 %v1808, 1.0
  %v1821 = vadd.f32 %v1809, 1.0
  %v1822 = vadd.f32 %v1810, 1.0
  %v1823 = vadd.f32 %v1811, 1.0
  %v1824 = vadd.f32 %v1812, 1.0
  %v1825 = vadd.f32 %v1813, 1.0
  %v1826 = vadd.f32 %v1814, 1.0
  %v1827 = vmul.f32 %v1815, 0.5
  %v1828 = vmul.f32 %v1816, 0.5
  %v1829 = vmul.f32 %v1817, 0.5
  %v1830 = vmul.f32 %v1818, 0.5
  %v1831 = vmul.f32 %v1819, 0.5
  %v1832 = vmul.f32 %v1820, 0.5
  %v1833 = vmul.f32 %v1821, 0.5
  %v1834 = vmul.f32 %v1822, 0.5
  %v1835 = vmul.f32 %v1823, 0.5
  %v1836 = vmul.f32 %v1824, 0.5
  %v1837 = vmul.f32 %v1825, 0.5
  %v1838 = vmul.f32 %v1826, 0.5
  %v1839 = vtanh.pop %v1787
  %v1840 = vtanh.pop %v1788
  %v1841 = vtanh.pop %v1789
  %v1842 = vtanh.pop %v1790
  %v1843 = vmul.f32 %v1831, %v1296
  %v1844 = vmul.f32 %v1832, %v1297
  %v1845 = vmul.f32 %v1833, %v1298
  %v1846 = vmul.f32 %v1834, %v1299
  %v1847 = vmul.f32 %v1827, %v1839
  %v1848 = vmul.f32 %v1828, %v1840
  %v1849 = vmul.f32 %v1829, %v1841
  %v1850 = vmul.f32 %v1830, %v1842
  %v1851 = vadd.f32 %v1843, %v1847
  %v1852 = vadd.f32 %v1844, %v1848
  %v1853 = vadd.f32 %v1845, %v1849
  %v1854 = vadd.f32 %v1846, %v1850
  %v1855 = vtanh.pop %v1851
  %v1856 = vtanh.pop %v1852
  %v1857 = vtanh.pop %v1853
  %v1858 = vtanh.pop %v1854
  %v1859 = vmul.f32 %v1835, %v1855
  %v1860 = vmul.f32 %v1836, %v1856
  %v1861 = vmul.f32 %v1837, %v1857
  %v1862 = vmul.f32 %v1838, %v1858
  %1863 = vrot.lane.b32.xlu0 %v1642, 1
  %v1864 = vpop.permute.xlu0 %1863
  %1865 = vrot.lane.b32.xlu0 %v1643, 1
  %v1866 = vpop.permute.xlu0 %1865
  %1867 = vrot.lane.b32.xlu0 %v1644, 1
  %v1868 = vpop.permute.xlu0 %1867
  %1869 = vrot.lane.b32.xlu0 %v1645, 1
  %v1870 = vpop.permute.xlu0 %1869
  %v1871 = vmul.f32 %v1864, %v1320
  %v1872 = vmul.f32 %v1866, %v1320
  %v1873 = vmul.f32 %v1868, %v1320
  %v1874 = vmul.f32 %v1870, %v1320
  %1875 = vrot.lane.b32.xlu0 %v1642, 127
  %v1876 = vpop.permute.xlu0 %1875
  %1877 = vrot.lane.b32.xlu0 %v1643, 127
  %v1878 = vpop.permute.xlu0 %1877
  %1879 = vrot.lane.b32.xlu0 %v1644, 127
  %v1880 = vpop.permute.xlu0 %1879
  %1881 = vrot.lane.b32.xlu0 %v1645, 127
  %v1882 = vpop.permute.xlu0 %1881
  %v1883 = vmul.f32 %v1876, %v1338
  %v1884 = vmul.f32 %v1878, %v1338
  %v1885 = vmul.f32 %v1880, %v1338
  %v1886 = vmul.f32 %v1882, %v1338
  %1887 = vrot.lane.b32.xlu0 %v1859, 1
  %v1888 = vpop.permute.xlu0 %1887
  %1889 = vrot.lane.b32.xlu0 %v1860, 1
  %v1890 = vpop.permute.xlu0 %1889
  %1891 = vrot.lane.b32.xlu0 %v1861, 1
  %v1892 = vpop.permute.xlu0 %1891
  %1893 = vrot.lane.b32.xlu0 %v1862, 1
  %v1894 = vpop.permute.xlu0 %1893
  %v1895 = vmul.f32 %v1888, %v1320
  %v1896 = vmul.f32 %v1890, %v1320
  %v1897 = vmul.f32 %v1892, %v1320
  %v1898 = vmul.f32 %v1894, %v1320
  %1899 = vrot.lane.b32.xlu0 %v1859, 127
  %v1900 = vpop.permute.xlu0 %1899
  %1901 = vrot.lane.b32.xlu0 %v1860, 127
  %v1902 = vpop.permute.xlu0 %1901
  %1903 = vrot.lane.b32.xlu0 %v1861, 127
  %v1904 = vpop.permute.xlu0 %1903
  %1905 = vrot.lane.b32.xlu0 %v1862, 127
  %v1906 = vpop.permute.xlu0 %1905
  %v1907 = vmul.f32 %v1900, %v1338
  %v1908 = vmul.f32 %v1902, %v1338
  %v1909 = vmul.f32 %v1904, %v1338
  %v1910 = vmul.f32 %v1906, %v1338
  %v1911 = vpack.c.bf16 %v1896, %v1895
  %v1912 = vpack.c.bf16 %v1898, %v1897
  %v1913 = vpack.c.bf16 %v1860, %v1859
  %v1914 = vpack.c.bf16 %v1862, %v1861
  %v1915 = vpack.c.bf16 %v1908, %v1907
  %v1916 = vpack.c.bf16 %v1910, %v1909
  %v1917 = vpack.c.bf16 %v1872, %v1871
  %v1918 = vpack.c.bf16 %v1874, %v1873
  %v1919 = vpack.c.bf16 %v1643, %v1642
  %v1920 = vpack.c.bf16 %v1645, %v1644
  %v1921 = vpack.c.bf16 %v1884, %v1883
  %v1922 = vpack.c.bf16 %v1886, %v1885
  %1923 = vmatprep.subr.bf16.mxu0 0
  %1924 = vmatpush1.bf16.msra.mxu0 %v1911
  %1925 = vmatprep.subr.bf16.mxu0 0
  %1926 = vmatpush1.bf16.msra.mxu0 %v1912
  %1927 = vmatprep.subr.bf16.mxu0 0
  %1928 = vmatpush1.bf16.msra.mxu0 %v1913
  %1929 = vmatprep.subr.bf16.mxu0 0
  %1930 = vmatpush1.bf16.msra.mxu0 %v1914
  %1931 = vmatprep.subr.bf16.mxu0 0
  %1932 = vmatpush1.bf16.msra.mxu0 %v1915
  %1933 = vmatprep.subr.bf16.mxu0 0
  %1934 = vmatpush1.bf16.msra.mxu0 %v1916
  %1935 = vmatprep.subr.bf16.mxu0 0
  %1936 = vmatpush1.bf16.msra.mxu0 %v1917
  %1937 = vmatprep.subr.bf16.mxu0 0
  %1938 = vmatpush1.bf16.msra.mxu0 %v1918
  %1939 = vmatprep.subr.bf16.mxu0 0
  %1940 = vmatpush1.bf16.msra.mxu0 %v1919
  %1941 = vmatprep.subr.bf16.mxu0 0
  %1942 = vmatpush1.bf16.msra.mxu0 %v1920
  %1943 = vmatprep.subr.bf16.mxu0 0
  %1944 = vmatpush1.bf16.msra.mxu0 %v1921
  %1945 = vmatprep.subr.bf16.mxu0 0
  %1946 = vmatpush1.bf16.msra.mxu0 %v1922
  %1947 = vmatprep.subr.bf16.mxu0 0
  %1948 = vmatpush1.bf16.msra.mxu0 0
  %1949 = vmatprep.subr.bf16.mxu0 0
  %1950 = vmatpush1.bf16.msra.mxu0 0
  %1951 = vmatprep.subr.bf16.mxu0 0
  %1952 = vmatpush1.bf16.msra.mxu0 0
  %1953 = vmatprep.subr.bf16.mxu0 0
  %1954 = vmatpush1.bf16.msra.mxu0 0
  %1955 = vmatprep.mubr.bf16.mxu0 %v1454
  %1956 = vmatmul.mubr.bf16.gmra.mrb[0].mxu0 %v1428
  %v1957 = vpop.f32.mrb[0].mxu0
  %v1958 = vadd.f32 %v134, %v1957
  %v1959 = vpop.f32.mrb[0].mxu0
  %v1960 = vpop.f32.mrb[0].mxu0
  %v1961 = vadd.f32 %v139, %v1960
  %v1962 = vpop.f32.mrb[0].mxu0
  %1963 = vmatprep.mubr.bf16.mxu0 %v1457
  %1964 = vmatmul.mubr.bf16.gmra.mrb[0].mxu0 %v1430
  %v1965 = vpop.f32.mrb[0].mxu0
  %v1966 = vadd.f32 %v144, %v1965
  %v1967 = vpop.f32.mrb[0].mxu0
  %v1968 = vpop.f32.mrb[0].mxu0
  %v1969 = vadd.f32 %v149, %v1968
  %v1970 = vpop.f32.mrb[0].mxu0
  %1971 = vmatprep.mubr.bf16.mxu0 %v1460
  %1972 = vmatmul.mubr.bf16.gmra.mrb[0].mxu0 %v1432
  %v1973 = vpop.f32.mrb[0].mxu0
  %v1974 = vadd.f32 %v154, %v1973
  %v1975 = vpop.f32.mrb[0].mxu0
  %v1976 = vpop.f32.mrb[0].mxu0
  %v1977 = vadd.f32 %v159, %v1976
  %v1978 = vpop.f32.mrb[0].mxu0
  %1979 = vmatprep.mubr.bf16.mxu0 %v1463
  %1980 = vmatmul.mubr.bf16.gmra.mrb[0].mxu0 %v1434
  %v1981 = vpop.f32.mrb[0].mxu0
  %v1982 = vadd.f32 %v164, %v1981
  %v1983 = vpop.f32.mrb[0].mxu0
  %v1984 = vpop.f32.mrb[0].mxu0
  %v1985 = vadd.f32 %v169, %v1984
  %v1986 = vpop.f32.mrb[0].mxu0
  %1987 = vmatprep.mubr.bf16.mxu0 %v1466
  %1988 = vmatmul.mubr.bf16.gmra.mrb[0].mxu0 %v1436
  %v1989 = vpop.f32.mrb[0].mxu0
  %v1990 = vadd.f32 %v174, %v1989
  %v1991 = vpop.f32.mrb[0].mxu0
  %v1992 = vpop.f32.mrb[0].mxu0
  %v1993 = vadd.f32 %v179, %v1992
  %v1994 = vpop.f32.mrb[0].mxu0
  %1995 = vmatprep.mubr.bf16.mxu0 %v1469
  %1996 = vmatmul.mubr.bf16.gmra.mrb[0].mxu0 %v1438
  %v1997 = vpop.f32.mrb[0].mxu0
  %v1998 = vadd.f32 %v184, %v1997
  %v1999 = vpop.f32.mrb[0].mxu0
  %v2000 = vpop.f32.mrb[0].mxu0
  %v2001 = vadd.f32 %v189, %v2000
  %v2002 = vpop.f32.mrb[0].mxu0
  %2003 = vmatprep.mubr.bf16.mxu0 %v1472
  %2004 = vmatmul.mubr.bf16.gmra.mrb[0].mxu0 %v1440
  %v2005 = vpop.f32.mrb[0].mxu0
  %v2006 = vadd.f32 %v194, %v2005
  %v2007 = vpop.f32.mrb[0].mxu0
  %v2008 = vpop.f32.mrb[0].mxu0
  %v2009 = vadd.f32 %v199, %v2008
  %v2010 = vpop.f32.mrb[0].mxu0
  %2011 = vmatprep.mubr.bf16.mxu0 %v1475
  %2012 = vmatmul.mubr.bf16.gmra.mrb[0].mxu0 %v1442
  %v2013 = vpop.f32.mrb[0].mxu0
  %v2014 = vadd.f32 %v204, %v2013
  %v2015 = vpop.f32.mrb[0].mxu0
  %v2016 = vpop.f32.mrb[0].mxu0
  %v2017 = vadd.f32 %v209, %v2016
  %v2018 = vpop.f32.mrb[0].mxu0
  %2019 = vdwg.mxu0
  %v2020 = vmul.f32 %v1958, 0.5
  %v2021 = vmul.f32 %v1961, 0.5
  %v2022 = vmul.f32 %v1966, 0.5
  %v2023 = vmul.f32 %v1969, 0.5
  %v2024 = vmul.f32 %v1974, 0.5
  %v2025 = vmul.f32 %v1977, 0.5
  %v2026 = vmul.f32 %v1982, 0.5
  %v2027 = vmul.f32 %v1985, 0.5
  %v2028 = vmul.f32 %v1990, 0.5
  %v2029 = vmul.f32 %v1993, 0.5
  %v2030 = vmul.f32 %v1998, 0.5
  %v2031 = vmul.f32 %v2001, 0.5
  %v2032 = vtanh.pop %v2020
  %v2033 = vtanh.pop %v2021
  %v2034 = vtanh.pop %v2022
  %v2035 = vtanh.pop %v2023
  %v2036 = vtanh.pop %v2024
  %v2037 = vtanh.pop %v2025
  %v2038 = vtanh.pop %v2026
  %v2039 = vtanh.pop %v2027
  %v2040 = vtanh.pop %v2028
  %v2041 = vtanh.pop %v2029
  %v2042 = vtanh.pop %v2030
  %v2043 = vtanh.pop %v2031
  %v2044 = vadd.f32 %v2032, 1.0
  %v2045 = vadd.f32 %v2033, 1.0
  %v2046 = vadd.f32 %v2034, 1.0
  %v2047 = vadd.f32 %v2035, 1.0
  %v2048 = vadd.f32 %v2036, 1.0
  %v2049 = vadd.f32 %v2037, 1.0
  %v2050 = vadd.f32 %v2038, 1.0
  %v2051 = vadd.f32 %v2039, 1.0
  %v2052 = vadd.f32 %v2040, 1.0
  %v2053 = vadd.f32 %v2041, 1.0
  %v2054 = vadd.f32 %v2042, 1.0
  %v2055 = vadd.f32 %v2043, 1.0
  %v2056 = vmul.f32 %v2044, 0.5
  %v2057 = vmul.f32 %v2045, 0.5
  %v2058 = vmul.f32 %v2046, 0.5
  %v2059 = vmul.f32 %v2047, 0.5
  %v2060 = vmul.f32 %v2048, 0.5
  %v2061 = vmul.f32 %v2049, 0.5
  %v2062 = vmul.f32 %v2050, 0.5
  %v2063 = vmul.f32 %v2051, 0.5
  %v2064 = vmul.f32 %v2052, 0.5
  %v2065 = vmul.f32 %v2053, 0.5
  %v2066 = vmul.f32 %v2054, 0.5
  %v2067 = vmul.f32 %v2055, 0.5
  %v2068 = vtanh.pop %v2006
  %v2069 = vtanh.pop %v2009
  %v2070 = vtanh.pop %v2014
  %v2071 = vtanh.pop %v2017
  %v2072 = vmul.f32 %v2060, %v1634
  %v2073 = vmul.f32 %v2061, %v1635
  %v2074 = vmul.f32 %v2062, %v1636
  %v2075 = vmul.f32 %v2063, %v1637
  %v2076 = vmul.f32 %v2056, %v2068
  %v2077 = vmul.f32 %v2057, %v2069
  %v2078 = vmul.f32 %v2058, %v2070
  %v2079 = vmul.f32 %v2059, %v2071
  %v2080 = vadd.f32 %v2072, %v2076
  %v2081 = vadd.f32 %v2073, %v2077
  %v2082 = vadd.f32 %v2074, %v2078
  %v2083 = vadd.f32 %v2075, %v2079
  %v2084 = vtanh.pop %v2080
  %v2085 = vtanh.pop %v2081
  %v2086 = vtanh.pop %v2082
  %v2087 = vtanh.pop %v2083
  %v2088 = vmul.f32 %v2064, %v2084
  %v2089 = vmul.f32 %v2065, %v2085
  %v2090 = vmul.f32 %v2066, %v2086
  %v2091 = vmul.f32 %v2067, %v2087
  %s2092 = scalar_lea.vmem %s12, 32
  %2093 = vst [vmem:[%s2092] sm:$0xff] %v2088
  %2094 = vst [vmem:[%s2092 + $0x8] sm:$0xff] %v2089
  %2095 = vst [vmem:[%s2092 + $0x10] sm:$0xff] %v2090
  %2096 = vst [vmem:[%s2092 + $0x18] sm:$0xff] %v2091
  %v2097 = vmul.f32 %v1888, %v1012
  %v2098 = vmul.f32 %v1890, %v1012
  %v2099 = vmul.f32 %v1892, %v1012
  %v2100 = vmul.f32 %v1894, %v1012
  %v2101 = vmul.f32 %v1900, %v1030
  %v2102 = vmul.f32 %v1902, %v1030
  %v2103 = vmul.f32 %v1904, %v1030
  %v2104 = vmul.f32 %v1906, %v1030
  %v2105 = vld [vmem:[#allocation2 + $0x10] sm:$0xff]
  %v2106 = vld [vmem:[#allocation2 + $0x50] sm:$0xff]
  %v2107 = vld [vmem:[#allocation2 + $0x90] sm:$0xff]
  %v2108 = vld [vmem:[#allocation2 + $0xd0] sm:$0xff]
  %v2109 = vld [vmem:[#allocation2 + $0x110] sm:$0xff]
  %v2110 = vld [vmem:[#allocation2 + $0x150] sm:$0xff]
  %v2111 = vld [vmem:[#allocation2 + $0x190] sm:$0xff]
  %v2112 = vld [vmem:[#allocation2 + $0x1d0] sm:$0xff]
  %v2113 = vld [vmem:[#allocation2 + $0x210] sm:$0xff]
  %v2114 = vld [vmem:[#allocation2 + $0x250] sm:$0xff]
  %v2115 = vld [vmem:[#allocation2 + $0x290] sm:$0xff]
  %v2116 = vld [vmem:[#allocation2 + $0x2d0] sm:$0xff]
  %v2117 = vld [vmem:[#allocation2 + $0x310] sm:$0xff]
  %v2118 = vld [vmem:[#allocation2 + $0x350] sm:$0xff]
  %v2119 = vld [vmem:[#allocation2 + $0x390] sm:$0xff]
  %v2120 = vld [vmem:[#allocation2 + $0x3d0] sm:$0xff]
  %v2121 = vpack.c.bf16 %v2098, %v2097
  %v2122 = vpack.c.bf16 %v2100, %v2099
  %v2123 = vpack.c.bf16 %v2102, %v2101
  %v2124 = vpack.c.bf16 %v2104, %v2103
  %2125 = vmatprep.subr.bf16.mxu0 0
  %2126 = vmatpush1.bf16.msra.mxu0 %v2121
  %2127 = vmatprep.subr.bf16.mxu0 0
  %2128 = vmatpush1.bf16.msra.mxu0 %v2122
  %2129 = vmatprep.subr.bf16.mxu0 0
  %2130 = vmatpush1.bf16.msra.mxu0 %v1913
  %2131 = vmatprep.subr.bf16.mxu0 0
  %2132 = vmatpush1.bf16.msra.mxu0 %v1914
  %2133 = vmatprep.subr.bf16.mxu0 0
  %2134 = vmatpush1.bf16.msra.mxu0 %v2123
  %2135 = vmatprep.subr.bf16.mxu0 0
  %2136 = vmatpush1.bf16.msra.mxu0 %v2124
  %2137 = vmatprep.subr.bf16.mxu0 0
  %2138 = vmatpush1.bf16.msra.mxu0 0
  %2139 = vmatprep.subr.bf16.mxu0 0
  %2140 = vmatpush1.bf16.msra.mxu0 0
  %2141 = vmatprep.subr.bf16.mxu0 0
  %2142 = vmatpush1.bf16.msra.mxu0 0
  %2143 = vmatprep.subr.bf16.mxu0 0
  %2144 = vmatpush1.bf16.msra.mxu0 0
  %2145 = vmatprep.subr.bf16.mxu0 0
  %2146 = vmatpush1.bf16.msra.mxu0 0
  %2147 = vmatprep.subr.bf16.mxu0 0
  %2148 = vmatpush1.bf16.msra.mxu0 0
  %2149 = vmatprep.subr.bf16.mxu0 0
  %2150 = vmatpush1.bf16.msra.mxu0 0
  %2151 = vmatprep.subr.bf16.mxu0 0
  %2152 = vmatpush1.bf16.msra.mxu0 0
  %2153 = vmatprep.subr.bf16.mxu0 0
  %2154 = vmatpush1.bf16.msra.mxu0 0
  %2155 = vmatprep.subr.bf16.mxu0 0
  %2156 = vmatpush1.bf16.msra.mxu0 0
  %2157 = vmatprep.mubr.bf16.mxu0 0
  %2158 = vmatmul.mubr.bf16.gmra.mrb[0].mxu0 %v1100
  %v2159 = vpop.f32.mrb[0].mxu0
  %v2160 = vadd.f32 0.0, %v2159
  %v2161 = vpop.f32.mrb[0].mxu0
  %v2162 = vpop.f32.mrb[0].mxu0
  %v2163 = vadd.f32 0.0, %v2162
  %v2164 = vpop.f32.mrb[0].mxu0
  %2165 = vmatprep.mubr.bf16.mxu0 0
  %2166 = vmatmul.mubr.bf16.gmra.mrb[0].mxu0 %v1103
  %v2167 = vpop.f32.mrb[0].mxu0
  %v2168 = vadd.f32 0.0, %v2167
  %v2169 = vpop.f32.mrb[0].mxu0
  %v2170 = vpop.f32.mrb[0].mxu0
  %v2171 = vadd.f32 0.0, %v2170
  %v2172 = vpop.f32.mrb[0].mxu0
  %2173 = vmatprep.mubr.bf16.mxu0 0
  %2174 = vmatmul.mubr.bf16.gmra.mrb[0].mxu0 %v1106
  %v2175 = vpop.f32.mrb[0].mxu0
  %v2176 = vadd.f32 0.0, %v2175
  %v2177 = vpop.f32.mrb[0].mxu0
  %v2178 = vpop.f32.mrb[0].mxu0
  %v2179 = vadd.f32 0.0, %v2178
  %v2180 = vpop.f32.mrb[0].mxu0
  %2181 = vmatprep.mubr.bf16.mxu0 0
  %2182 = vmatmul.mubr.bf16.gmra.mrb[0].mxu0 %v1109
  %v2183 = vpop.f32.mrb[0].mxu0
  %v2184 = vadd.f32 0.0, %v2183
  %v2185 = vpop.f32.mrb[0].mxu0
  %v2186 = vpop.f32.mrb[0].mxu0
  %v2187 = vadd.f32 0.0, %v2186
  %v2188 = vpop.f32.mrb[0].mxu0
  %2189 = vmatprep.mubr.bf16.mxu0 0
  %2190 = vmatmul.mubr.bf16.gmra.mrb[0].mxu0 %v1112
  %v2191 = vpop.f32.mrb[0].mxu0
  %v2192 = vadd.f32 0.0, %v2191
  %v2193 = vpop.f32.mrb[0].mxu0
  %v2194 = vpop.f32.mrb[0].mxu0
  %v2195 = vadd.f32 0.0, %v2194
  %v2196 = vpop.f32.mrb[0].mxu0
  %2197 = vmatprep.mubr.bf16.mxu0 0
  %2198 = vmatmul.mubr.bf16.gmra.mrb[0].mxu0 %v1115
  %v2199 = vpop.f32.mrb[0].mxu0
  %v2200 = vadd.f32 0.0, %v2199
  %v2201 = vpop.f32.mrb[0].mxu0
  %v2202 = vpop.f32.mrb[0].mxu0
  %v2203 = vadd.f32 0.0, %v2202
  %v2204 = vpop.f32.mrb[0].mxu0
  %2205 = vmatprep.mubr.bf16.mxu0 0
  %2206 = vmatmul.mubr.bf16.gmra.mrb[0].mxu0 %v1118
  %v2207 = vpop.f32.mrb[0].mxu0
  %v2208 = vadd.f32 0.0, %v2207
  %v2209 = vpop.f32.mrb[0].mxu0
  %v2210 = vpop.f32.mrb[0].mxu0
  %v2211 = vadd.f32 0.0, %v2210
  %v2212 = vpop.f32.mrb[0].mxu0
  %2213 = vmatprep.mubr.bf16.mxu0 0
  %2214 = vmatmul.mubr.bf16.gmra.mrb[0].mxu0 %v1121
  %v2215 = vpop.f32.mrb[0].mxu0
  %v2216 = vadd.f32 0.0, %v2215
  %v2217 = vpop.f32.mrb[0].mxu0
  %v2218 = vpop.f32.mrb[0].mxu0
  %v2219 = vadd.f32 0.0, %v2218
  %v2220 = vpop.f32.mrb[0].mxu0
  %2221 = vdwg.mxu0
  %v2222 = vadd.f32 %v2105, %v2160
  %v2223 = vadd.f32 %v2106, %v2163
  %v2224 = vadd.f32 %v2107, %v2168
  %v2225 = vadd.f32 %v2108, %v2171
  %v2226 = vadd.f32 %v2109, %v2176
  %v2227 = vadd.f32 %v2110, %v2179
  %v2228 = vadd.f32 %v2111, %v2184
  %v2229 = vadd.f32 %v2112, %v2187
  %v2230 = vadd.f32 %v2113, %v2192
  %v2231 = vadd.f32 %v2114, %v2195
  %v2232 = vadd.f32 %v2115, %v2200
  %v2233 = vadd.f32 %v2116, %v2203
  %v2234 = vadd.f32 %v2117, %v2208
  %v2235 = vadd.f32 %v2118, %v2211
  %v2236 = vadd.f32 %v2119, %v2216
  %v2237 = vadd.f32 %v2120, %v2219
  %v2238 = vmul.f32 %v2222, 0.5
  %v2239 = vmul.f32 %v2223, 0.5
  %v2240 = vmul.f32 %v2224, 0.5
  %v2241 = vmul.f32 %v2225, 0.5
  %v2242 = vmul.f32 %v2226, 0.5
  %v2243 = vmul.f32 %v2227, 0.5
  %v2244 = vmul.f32 %v2228, 0.5
  %v2245 = vmul.f32 %v2229, 0.5
  %v2246 = vmul.f32 %v2230, 0.5
  %v2247 = vmul.f32 %v2231, 0.5
  %v2248 = vmul.f32 %v2232, 0.5
  %v2249 = vmul.f32 %v2233, 0.5
  %v2250 = vtanh.pop %v2238
  %v2251 = vtanh.pop %v2239
  %v2252 = vtanh.pop %v2240
  %v2253 = vtanh.pop %v2241
  %v2254 = vtanh.pop %v2242
  %v2255 = vtanh.pop %v2243
  %v2256 = vtanh.pop %v2244
  %v2257 = vtanh.pop %v2245
  %v2258 = vtanh.pop %v2246
  %v2259 = vtanh.pop %v2247
  %v2260 = vtanh.pop %v2248
  %v2261 = vtanh.pop %v2249
  %v2262 = vadd.f32 %v2250, 1.0
  %v2263 = vadd.f32 %v2251, 1.0
  %v2264 = vadd.f32 %v2252, 1.0
  %v2265 = vadd.f32 %v2253, 1.0
  %v2266 = vadd.f32 %v2254, 1.0
  %v2267 = vadd.f32 %v2255, 1.0
  %v2268 = vadd.f32 %v2256, 1.0
  %v2269 = vadd.f32 %v2257, 1.0
  %v2270 = vadd.f32 %v2258, 1.0
  %v2271 = vadd.f32 %v2259, 1.0
  %v2272 = vadd.f32 %v2260, 1.0
  %v2273 = vadd.f32 %v2261, 1.0
  %v2274 = vmul.f32 %v2262, 0.5
  %v2275 = vmul.f32 %v2263, 0.5
  %v2276 = vmul.f32 %v2264, 0.5
  %v2277 = vmul.f32 %v2265, 0.5
  %v2278 = vmul.f32 %v2266, 0.5
  %v2279 = vmul.f32 %v2267, 0.5
  %v2280 = vmul.f32 %v2268, 0.5
  %v2281 = vmul.f32 %v2269, 0.5
  %v2282 = vmul.f32 %v2270, 0.5
  %v2283 = vmul.f32 %v2271, 0.5
  %v2284 = vmul.f32 %v2272, 0.5
  %v2285 = vmul.f32 %v2273, 0.5
  %v2286 = vtanh.pop %v2234
  %v2287 = vtanh.pop %v2235
  %v2288 = vtanh.pop %v2236
  %v2289 = vtanh.pop %v2237
  %v2290 = vmul.f32 %v2278, %v1851
  %v2291 = vmul.f32 %v2279, %v1852
  %v2292 = vmul.f32 %v2280, %v1853
  %v2293 = vmul.f32 %v2281, %v1854
  %v2294 = vmul.f32 %v2274, %v2286
  %v2295 = vmul.f32 %v2275, %v2287
  %v2296 = vmul.f32 %v2276, %v2288
  %v2297 = vmul.f32 %v2277, %v2289
  %v2298 = vadd.f32 %v2290, %v2294
  %v2299 = vadd.f32 %v2291, %v2295
  %v2300 = vadd.f32 %v2292, %v2296
  %v2301 = vadd.f32 %v2293, %v2297
  %v2302 = vtanh.pop %v2298
  %v2303 = vtanh.pop %v2299
  %v2304 = vtanh.pop %v2300
  %v2305 = vtanh.pop %v2301
  %v2306 = vmul.f32 %v2282, %v2302
  %v2307 = vmul.f32 %v2283, %v2303
  %v2308 = vmul.f32 %v2284, %v2304
  %v2309 = vmul.f32 %v2285, %v2305
  %2310 = vrot.lane.b32.xlu0 %v2088, 1
  %v2311 = vpop.permute.xlu0 %2310
  %2312 = vrot.lane.b32.xlu0 %v2089, 1
  %v2313 = vpop.permute.xlu0 %2312
  %2314 = vrot.lane.b32.xlu0 %v2090, 1
  %v2315 = vpop.permute.xlu0 %2314
  %2316 = vrot.lane.b32.xlu0 %v2091, 1
  %v2317 = vpop.permute.xlu0 %2316
  %v2318 = vmul.f32 %v2311, %v1320
  %v2319 = vmul.f32 %v2313, %v1320
  %v2320 = vmul.f32 %v2315, %v1320
  %v2321 = vmul.f32 %v2317, %v1320
  %2322 = vrot.lane.b32.xlu0 %v2088, 127
  %v2323 = vpop.permute.xlu0 %2322
  %2324 = vrot.lane.b32.xlu0 %v2089, 127
  %v2325 = vpop.permute.xlu0 %2324
  %2326 = vrot.lane.b32.xlu0 %v2090, 127
  %v2327 = vpop.permute.xlu0 %2326
  %2328 = vrot.lane.b32.xlu0 %v2091, 127
  %v2329 = vpop.permute.xlu0 %2328
  %v2330 = vmul.f32 %v2323, %v1338
  %v2331 = vmul.f32 %v2325, %v1338
  %v2332 = vmul.f32 %v2327, %v1338
  %v2333 = vmul.f32 %v2329, %v1338
  %2334 = vrot.lane.b32.xlu0 %v2306, 1
  %v2335 = vpop.permute.xlu0 %2334
  %2336 = vrot.lane.b32.xlu0 %v2307, 1
  %v2337 = vpop.permute.xlu0 %2336
  %2338 = vrot.lane.b32.xlu0 %v2308, 1
  %v2339 = vpop.permute.xlu0 %2338
  %2340 = vrot.lane.b32.xlu0 %v2309, 1
  %v2341 = vpop.permute.xlu0 %2340
  %v2342 = vmul.f32 %v2335, %v1320
  %v2343 = vmul.f32 %v2337, %v1320
  %v2344 = vmul.f32 %v2339, %v1320
  %v2345 = vmul.f32 %v2341, %v1320
  %2346 = vrot.lane.b32.xlu0 %v2306, 127
  %v2347 = vpop.permute.xlu0 %2346
  %2348 = vrot.lane.b32.xlu0 %v2307, 127
  %v2349 = vpop.permute.xlu0 %2348
  %2350 = vrot.lane.b32.xlu0 %v2308, 127
  %v2351 = vpop.permute.xlu0 %2350
  %2352 = vrot.lane.b32.xlu0 %v2309, 127
  %v2353 = vpop.permute.xlu0 %2352
  %v2354 = vmul.f32 %v2347, %v1338
  %v2355 = vmul.f32 %v2349, %v1338
  %v2356 = vmul.f32 %v2351, %v1338
  %v2357 = vmul.f32 %v2353, %v1338
  %v2358 = vpack.c.bf16 %v2343, %v2342
  %v2359 = vpack.c.bf16 %v2345, %v2344
  %v2360 = vpack.c.bf16 %v2307, %v2306
  %v2361 = vpack.c.bf16 %v2309, %v2308
  %v2362 = vpack.c.bf16 %v2355, %v2354
  %v2363 = vpack.c.bf16 %v2357, %v2356
  %v2364 = vpack.c.bf16 %v2319, %v2318
  %v2365 = vpack.c.bf16 %v2321, %v2320
  %v2366 = vpack.c.bf16 %v2089, %v2088
  %v2367 = vpack.c.bf16 %v2091, %v2090
  %v2368 = vpack.c.bf16 %v2331, %v2330
  %v2369 = vpack.c.bf16 %v2333, %v2332
  %2370 = vmatprep.subr.bf16.mxu0 0
  %2371 = vmatpush1.bf16.msra.mxu0 %v2358
  %2372 = vmatprep.subr.bf16.mxu0 0
  %2373 = vmatpush1.bf16.msra.mxu0 %v2359
  %2374 = vmatprep.subr.bf16.mxu0 0
  %2375 = vmatpush1.bf16.msra.mxu0 %v2360
  %2376 = vmatprep.subr.bf16.mxu0 0
  %2377 = vmatpush1.bf16.msra.mxu0 %v2361
  %2378 = vmatprep.subr.bf16.mxu0 0
  %2379 = vmatpush1.bf16.msra.mxu0 %v2362
  %2380 = vmatprep.subr.bf16.mxu0 0
  %2381 = vmatpush1.bf16.msra.mxu0 %v2363
  %2382 = vmatprep.subr.bf16.mxu0 0
  %2383 = vmatpush1.bf16.msra.mxu0 %v2364
  %2384 = vmatprep.subr.bf16.mxu0 0
  %2385 = vmatpush1.bf16.msra.mxu0 %v2365
  %2386 = vmatprep.subr.bf16.mxu0 0
  %2387 = vmatpush1.bf16.msra.mxu0 %v2366
  %2388 = vmatprep.subr.bf16.mxu0 0
  %2389 = vmatpush1.bf16.msra.mxu0 %v2367
  %2390 = vmatprep.subr.bf16.mxu0 0
  %2391 = vmatpush1.bf16.msra.mxu0 %v2368
  %2392 = vmatprep.subr.bf16.mxu0 0
  %2393 = vmatpush1.bf16.msra.mxu0 %v2369
  %2394 = vmatprep.subr.bf16.mxu0 0
  %2395 = vmatpush1.bf16.msra.mxu0 0
  %2396 = vmatprep.subr.bf16.mxu0 0
  %2397 = vmatpush1.bf16.msra.mxu0 0
  %2398 = vmatprep.subr.bf16.mxu0 0
  %2399 = vmatpush1.bf16.msra.mxu0 0
  %2400 = vmatprep.subr.bf16.mxu0 0
  %2401 = vmatpush1.bf16.msra.mxu0 0
  %2402 = vmatprep.mubr.bf16.mxu0 %v1454
  %2403 = vmatmul.mubr.bf16.gmra.mrb[0].mxu0 %v1428
  %v2404 = vpop.f32.mrb[0].mxu0
  %v2405 = vadd.f32 %v134, %v2404
  %v2406 = vpop.f32.mrb[0].mxu0
  %v2407 = vpop.f32.mrb[0].mxu0
  %v2408 = vadd.f32 %v139, %v2407
  %v2409 = vpop.f32.mrb[0].mxu0
  %2410 = vmatprep.mubr.bf16.mxu0 %v1457
  %2411 = vmatmul.mubr.bf16.gmra.mrb[0].mxu0 %v1430
  %v2412 = vpop.f32.mrb[0].mxu0
  %v2413 = vadd.f32 %v144, %v2412
  %v2414 = vpop.f32.mrb[0].mxu0
  %v2415 = vpop.f32.mrb[0].mxu0
  %v2416 = vadd.f32 %v149, %v2415
  %v2417 = vpop.f32.mrb[0].mxu0
  %2418 = vmatprep.mubr.bf16.mxu0 %v1460
  %2419 = vmatmul.mubr.bf16.gmra.mrb[0].mxu0 %v1432
  %v2420 = vpop.f32.mrb[0].mxu0
  %v2421 = vadd.f32 %v154, %v2420
  %v2422 = vpop.f32.mrb[0].mxu0
  %v2423 = vpop.f32.mrb[0].mxu0
  %v2424 = vadd.f32 %v159, %v2423
  %v2425 = vpop.f32.mrb[0].mxu0
  %2426 = vmatprep.mubr.bf16.mxu0 %v1463
  %2427 = vmatmul.mubr.bf16.gmra.mrb[0].mxu0 %v1434
  %v2428 = vpop.f32.mrb[0].mxu0
  %v2429 = vadd.f32 %v164, %v2428
  %v2430 = vpop.f32.mrb[0].mxu0
  %v2431 = vpop.f32.mrb[0].mxu0
  %v2432 = vadd.f32 %v169, %v2431
  %v2433 = vpop.f32.mrb[0].mxu0
  %2434 = vmatprep.mubr.bf16.mxu0 %v1466
  %2435 = vmatmul.mubr.bf16.gmra.mrb[0].mxu0 %v1436
  %v2436 = vpop.f32.mrb[0].mxu0
  %v2437 = vadd.f32 %v174, %v2436
  %v2438 = vpop.f32.mrb[0].mxu0
  %v2439 = vpop.f32.mrb[0].mxu0
  %v2440 = vadd.f32 %v179, %v2439
  %v2441 = vpop.f32.mrb[0].mxu0
  %2442 = vmatprep.mubr.bf16.mxu0 %v1469
  %2443 = vmatmul.mubr.bf16.gmra.mrb[0].mxu0 %v1438
  %v2444 = vpop.f32.mrb[0].mxu0
  %v2445 = vadd.f32 %v184, %v2444
  %v2446 = vpop.f32.mrb[0].mxu0
  %v2447 = vpop.f32.mrb[0].mxu0
  %v2448 = vadd.f32 %v189, %v2447
  %v2449 = vpop.f32.mrb[0].mxu0
  %2450 = vmatprep.mubr.bf16.mxu0 %v1472
  %2451 = vmatmul.mubr.bf16.gmra.mrb[0].mxu0 %v1440
  %v2452 = vpop.f32.mrb[0].mxu0
  %v2453 = vadd.f32 %v194, %v2452
  %v2454 = vpop.f32.mrb[0].mxu0
  %v2455 = vpop.f32.mrb[0].mxu0
  %v2456 = vadd.f32 %v199, %v2455
  %v2457 = vpop.f32.mrb[0].mxu0
  %2458 = vmatprep.mubr.bf16.mxu0 %v1475
  %2459 = vmatmul.mubr.bf16.gmra.mrb[0].mxu0 %v1442
  %v2460 = vpop.f32.mrb[0].mxu0
  %v2461 = vadd.f32 %v204, %v2460
  %v2462 = vpop.f32.mrb[0].mxu0
  %v2463 = vpop.f32.mrb[0].mxu0
  %v2464 = vadd.f32 %v209, %v2463
  %v2465 = vpop.f32.mrb[0].mxu0
  %2466 = vdwg.mxu0
  %v2467 = vmul.f32 %v2405, 0.5
  %v2468 = vmul.f32 %v2408, 0.5
  %v2469 = vmul.f32 %v2413, 0.5
  %v2470 = vmul.f32 %v2416, 0.5
  %v2471 = vmul.f32 %v2421, 0.5
  %v2472 = vmul.f32 %v2424, 0.5
  %v2473 = vmul.f32 %v2429, 0.5
  %v2474 = vmul.f32 %v2432, 0.5
  %v2475 = vmul.f32 %v2437, 0.5
  %v2476 = vmul.f32 %v2440, 0.5
  %v2477 = vmul.f32 %v2445, 0.5
  %v2478 = vmul.f32 %v2448, 0.5
  %v2479 = vtanh.pop %v2467
  %v2480 = vtanh.pop %v2468
  %v2481 = vtanh.pop %v2469
  %v2482 = vtanh.pop %v2470
  %v2483 = vtanh.pop %v2471
  %v2484 = vtanh.pop %v2472
  %v2485 = vtanh.pop %v2473
  %v2486 = vtanh.pop %v2474
  %v2487 = vtanh.pop %v2475
  %v2488 = vtanh.pop %v2476
  %v2489 = vtanh.pop %v2477
  %v2490 = vtanh.pop %v2478
  %v2491 = vadd.f32 %v2479, 1.0
  %v2492 = vadd.f32 %v2480, 1.0
  %v2493 = vadd.f32 %v2481, 1.0
  %v2494 = vadd.f32 %v2482, 1.0
  %v2495 = vadd.f32 %v2483, 1.0
  %v2496 = vadd.f32 %v2484, 1.0
  %v2497 = vadd.f32 %v2485, 1.0
  %v2498 = vadd.f32 %v2486, 1.0
  %v2499 = vadd.f32 %v2487, 1.0
  %v2500 = vadd.f32 %v2488, 1.0
  %v2501 = vadd.f32 %v2489, 1.0
  %v2502 = vadd.f32 %v2490, 1.0
  %v2503 = vmul.f32 %v2491, 0.5
  %v2504 = vmul.f32 %v2492, 0.5
  %v2505 = vmul.f32 %v2493, 0.5
  %v2506 = vmul.f32 %v2494, 0.5
  %v2507 = vmul.f32 %v2495, 0.5
  %v2508 = vmul.f32 %v2496, 0.5
  %v2509 = vmul.f32 %v2497, 0.5
  %v2510 = vmul.f32 %v2498, 0.5
  %v2511 = vmul.f32 %v2499, 0.5
  %v2512 = vmul.f32 %v2500, 0.5
  %v2513 = vmul.f32 %v2501, 0.5
  %v2514 = vmul.f32 %v2502, 0.5
  %v2515 = vtanh.pop %v2453
  %v2516 = vtanh.pop %v2456
  %v2517 = vtanh.pop %v2461
  %v2518 = vtanh.pop %v2464
  %v2519 = vmul.f32 %v2507, %v2080
  %v2520 = vmul.f32 %v2508, %v2081
  %v2521 = vmul.f32 %v2509, %v2082
  %v2522 = vmul.f32 %v2510, %v2083
  %v2523 = vmul.f32 %v2503, %v2515
  %v2524 = vmul.f32 %v2504, %v2516
  %v2525 = vmul.f32 %v2505, %v2517
  %v2526 = vmul.f32 %v2506, %v2518
  %v2527 = vadd.f32 %v2519, %v2523
  %v2528 = vadd.f32 %v2520, %v2524
  %v2529 = vadd.f32 %v2521, %v2525
  %v2530 = vadd.f32 %v2522, %v2526
  %v2531 = vtanh.pop %v2527
  %v2532 = vtanh.pop %v2528
  %v2533 = vtanh.pop %v2529
  %v2534 = vtanh.pop %v2530
  %v2535 = vmul.f32 %v2511, %v2531
  %v2536 = vmul.f32 %v2512, %v2532
  %v2537 = vmul.f32 %v2513, %v2533
  %v2538 = vmul.f32 %v2514, %v2534
  %s2539 = scalar_lea.vmem %s12, 64
  %2540 = vst [vmem:[%s2539] sm:$0xff] %v2535
  %2541 = vst [vmem:[%s2539 + $0x8] sm:$0xff] %v2536
  %2542 = vst [vmem:[%s2539 + $0x10] sm:$0xff] %v2537
  %2543 = vst [vmem:[%s2539 + $0x18] sm:$0xff] %v2538
  %v2544 = vmul.f32 %v2335, %v1012
  %v2545 = vmul.f32 %v2337, %v1012
  %v2546 = vmul.f32 %v2339, %v1012
  %v2547 = vmul.f32 %v2341, %v1012
  %v2548 = vmul.f32 %v2347, %v1030
  %v2549 = vmul.f32 %v2349, %v1030
  %v2550 = vmul.f32 %v2351, %v1030
  %v2551 = vmul.f32 %v2353, %v1030
  %v2552 = vld [vmem:[#allocation2 + $0x18] sm:$0xff]
  %v2553 = vld [vmem:[#allocation2 + $0x58] sm:$0xff]
  %v2554 = vld [vmem:[#allocation2 + $0x98] sm:$0xff]
  %v2555 = vld [vmem:[#allocation2 + $0xd8] sm:$0xff]
  %v2556 = vld [vmem:[#allocation2 + $0x118] sm:$0xff]
  %v2557 = vld [vmem:[#allocation2 + $0x158] sm:$0xff]
  %v2558 = vld [vmem:[#allocation2 + $0x198] sm:$0xff]
  %v2559 = vld [vmem:[#allocation2 + $0x1d8] sm:$0xff]
  %v2560 = vld [vmem:[#allocation2 + $0x218] sm:$0xff]
  %v2561 = vld [vmem:[#allocation2 + $0x258] sm:$0xff]
  %v2562 = vld [vmem:[#allocation2 + $0x298] sm:$0xff]
  %v2563 = vld [vmem:[#allocation2 + $0x2d8] sm:$0xff]
  %v2564 = vld [vmem:[#allocation2 + $0x318] sm:$0xff]
  %v2565 = vld [vmem:[#allocation2 + $0x358] sm:$0xff]
  %v2566 = vld [vmem:[#allocation2 + $0x398] sm:$0xff]
  %v2567 = vld [vmem:[#allocation2 + $0x3d8] sm:$0xff]
  %v2568 = vpack.c.bf16 %v2545, %v2544
  %v2569 = vpack.c.bf16 %v2547, %v2546
  %v2570 = vpack.c.bf16 %v2549, %v2548
  %v2571 = vpack.c.bf16 %v2551, %v2550
  %2572 = vmatprep.subr.bf16.mxu0 0
  %2573 = vmatpush1.bf16.msra.mxu0 %v2568
  %2574 = vmatprep.subr.bf16.mxu0 0
  %2575 = vmatpush1.bf16.msra.mxu0 %v2569
  %2576 = vmatprep.subr.bf16.mxu0 0
  %2577 = vmatpush1.bf16.msra.mxu0 %v2360
  %2578 = vmatprep.subr.bf16.mxu0 0
  %2579 = vmatpush1.bf16.msra.mxu0 %v2361
  %2580 = vmatprep.subr.bf16.mxu0 0
  %2581 = vmatpush1.bf16.msra.mxu0 %v2570
  %2582 = vmatprep.subr.bf16.mxu0 0
  %2583 = vmatpush1.bf16.msra.mxu0 %v2571
  %2584 = vmatprep.subr.bf16.mxu0 0
  %2585 = vmatpush1.bf16.msra.mxu0 0
  %2586 = vmatprep.subr.bf16.mxu0 0
  %2587 = vmatpush1.bf16.msra.mxu0 0
  %2588 = vmatprep.subr.bf16.mxu0 0
  %2589 = vmatpush1.bf16.msra.mxu0 0
  %2590 = vmatprep.subr.bf16.mxu0 0
  %2591 = vmatpush1.bf16.msra.mxu0 0
  %2592 = vmatprep.subr.bf16.mxu0 0
  %2593 = vmatpush1.bf16.msra.mxu0 0
  %2594 = vmatprep.subr.bf16.mxu0 0
  %2595 = vmatpush1.bf16.msra.mxu0 0
  %2596 = vmatprep.subr.bf16.mxu0 0
  %2597 = vmatpush1.bf16.msra.mxu0 0
  %2598 = vmatprep.subr.bf16.mxu0 0
  %2599 = vmatpush1.bf16.msra.mxu0 0
  %2600 = vmatprep.subr.bf16.mxu0 0
  %2601 = vmatpush1.bf16.msra.mxu0 0
  %2602 = vmatprep.subr.bf16.mxu0 0
  %2603 = vmatpush1.bf16.msra.mxu0 0
  %2604 = vmatprep.mubr.bf16.mxu0 0
  %2605 = vmatmul.mubr.bf16.gmra.mrb[0].mxu0 %v1100
  %v2606 = vpop.f32.mrb[0].mxu0
  %v2607 = vadd.f32 0.0, %v2606
  %v2608 = vpop.f32.mrb[0].mxu0
  %v2609 = vpop.f32.mrb[0].mxu0
  %v2610 = vadd.f32 0.0, %v2609
  %v2611 = vpop.f32.mrb[0].mxu0
  %2612 = vmatprep.mubr.bf16.mxu0 0
  %2613 = vmatmul.mubr.bf16.gmra.mrb[0].mxu0 %v1103
  %v2614 = vpop.f32.mrb[0].mxu0
  %v2615 = vadd.f32 0.0, %v2614
  %v2616 = vpop.f32.mrb[0].mxu0
  %v2617 = vpop.f32.mrb[0].mxu0
  %v2618 = vadd.f32 0.0, %v2617
  %v2619 = vpop.f32.mrb[0].mxu0
  %2620 = vmatprep.mubr.bf16.mxu0 0
  %2621 = vmatmul.mubr.bf16.gmra.mrb[0].mxu0 %v1106
  %v2622 = vpop.f32.mrb[0].mxu0
  %v2623 = vadd.f32 0.0, %v2622
  %v2624 = vpop.f32.mrb[0].mxu0
  %v2625 = vpop.f32.mrb[0].mxu0
  %v2626 = vadd.f32 0.0, %v2625
  %v2627 = vpop.f32.mrb[0].mxu0
  %2628 = vmatprep.mubr.bf16.mxu0 0
  %2629 = vmatmul.mubr.bf16.gmra.mrb[0].mxu0 %v1109
  %v2630 = vpop.f32.mrb[0].mxu0
  %v2631 = vadd.f32 0.0, %v2630
  %v2632 = vpop.f32.mrb[0].mxu0
  %v2633 = vpop.f32.mrb[0].mxu0
  %v2634 = vadd.f32 0.0, %v2633
  %v2635 = vpop.f32.mrb[0].mxu0
  %2636 = vmatprep.mubr.bf16.mxu0 0
  %2637 = vmatmul.mubr.bf16.gmra.mrb[0].mxu0 %v1112
  %v2638 = vpop.f32.mrb[0].mxu0
  %v2639 = vadd.f32 0.0, %v2638
  %v2640 = vpop.f32.mrb[0].mxu0
  %v2641 = vpop.f32.mrb[0].mxu0
  %v2642 = vadd.f32 0.0, %v2641
  %v2643 = vpop.f32.mrb[0].mxu0
  %2644 = vmatprep.mubr.bf16.mxu0 0
  %2645 = vmatmul.mubr.bf16.gmra.mrb[0].mxu0 %v1115
  %v2646 = vpop.f32.mrb[0].mxu0
  %v2647 = vadd.f32 0.0, %v2646
  %v2648 = vpop.f32.mrb[0].mxu0
  %v2649 = vpop.f32.mrb[0].mxu0
  %v2650 = vadd.f32 0.0, %v2649
  %v2651 = vpop.f32.mrb[0].mxu0
  %2652 = vmatprep.mubr.bf16.mxu0 0
  %2653 = vmatmul.mubr.bf16.gmra.mrb[0].mxu0 %v1118
  %v2654 = vpop.f32.mrb[0].mxu0
  %v2655 = vadd.f32 0.0, %v2654
  %v2656 = vpop.f32.mrb[0].mxu0
  %v2657 = vpop.f32.mrb[0].mxu0
  %v2658 = vadd.f32 0.0, %v2657
  %v2659 = vpop.f32.mrb[0].mxu0
  %2660 = vmatprep.mubr.bf16.mxu0 0
  %2661 = vmatmul.mubr.bf16.gmra.mrb[0].mxu0 %v1121
  %v2662 = vpop.f32.mrb[0].mxu0
  %v2663 = vadd.f32 0.0, %v2662
  %v2664 = vpop.f32.mrb[0].mxu0
  %v2665 = vpop.f32.mrb[0].mxu0
  %v2666 = vadd.f32 0.0, %v2665
  %v2667 = vpop.f32.mrb[0].mxu0
  %2668 = vdwg.mxu0
  %v2669 = vadd.f32 %v2552, %v2607
  %v2670 = vadd.f32 %v2553, %v2610
  %v2671 = vadd.f32 %v2554, %v2615
  %v2672 = vadd.f32 %v2555, %v2618
  %v2673 = vadd.f32 %v2556, %v2623
  %v2674 = vadd.f32 %v2557, %v2626
  %v2675 = vadd.f32 %v2558, %v2631
  %v2676 = vadd.f32 %v2559, %v2634
  %v2677 = vadd.f32 %v2560, %v2639
  %v2678 = vadd.f32 %v2561, %v2642
  %v2679 = vadd.f32 %v2562, %v2647
  %v2680 = vadd.f32 %v2563, %v2650
  %v2681 = vadd.f32 %v2564, %v2655
  %v2682 = vadd.f32 %v2565, %v2658
  %v2683 = vadd.f32 %v2566, %v2663
  %v2684 = vadd.f32 %v2567, %v2666
  %v2685 = vmul.f32 %v2669, 0.5
  %v2686 = vmul.f32 %v2670, 0.5
  %v2687 = vmul.f32 %v2671, 0.5
  %v2688 = vmul.f32 %v2672, 0.5
  %v2689 = vmul.f32 %v2673, 0.5
  %v2690 = vmul.f32 %v2674, 0.5
  %v2691 = vmul.f32 %v2675, 0.5
  %v2692 = vmul.f32 %v2676, 0.5
  %v2693 = vmul.f32 %v2677, 0.5
  %v2694 = vmul.f32 %v2678, 0.5
  %v2695 = vmul.f32 %v2679, 0.5
  %v2696 = vmul.f32 %v2680, 0.5
  %v2697 = vtanh.pop %v2685
  %v2698 = vtanh.pop %v2686
  %v2699 = vtanh.pop %v2687
  %v2700 = vtanh.pop %v2688
  %v2701 = vtanh.pop %v2689
  %v2702 = vtanh.pop %v2690
  %v2703 = vtanh.pop %v2691
  %v2704 = vtanh.pop %v2692
  %v2705 = vtanh.pop %v2693
  %v2706 = vtanh.pop %v2694
  %v2707 = vtanh.pop %v2695
  %v2708 = vtanh.pop %v2696
  %v2709 = vadd.f32 %v2697, 1.0
  %v2710 = vadd.f32 %v2698, 1.0
  %v2711 = vadd.f32 %v2699, 1.0
  %v2712 = vadd.f32 %v2700, 1.0
  %v2713 = vadd.f32 %v2701, 1.0
  %v2714 = vadd.f32 %v2702, 1.0
  %v2715 = vadd.f32 %v2703, 1.0
  %v2716 = vadd.f32 %v2704, 1.0
  %v2717 = vadd.f32 %v2705, 1.0
  %v2718 = vadd.f32 %v2706, 1.0
  %v2719 = vadd.f32 %v2707, 1.0
  %v2720 = vadd.f32 %v2708, 1.0
  %v2721 = vmul.f32 %v2709, 0.5
  %v2722 = vmul.f32 %v2710, 0.5
  %v2723 = vmul.f32 %v2711, 0.5
  %v2724 = vmul.f32 %v2712, 0.5
  %v2725 = vmul.f32 %v2713, 0.5
  %v2726 = vmul.f32 %v2714, 0.5
  %v2727 = vmul.f32 %v2715, 0.5
  %v2728 = vmul.f32 %v2716, 0.5
  %v2729 = vmul.f32 %v2717, 0.5
  %v2730 = vmul.f32 %v2718, 0.5
  %v2731 = vmul.f32 %v2719, 0.5
  %v2732 = vmul.f32 %v2720, 0.5
  %v2733 = vtanh.pop %v2681
  %v2734 = vtanh.pop %v2682
  %v2735 = vtanh.pop %v2683
  %v2736 = vtanh.pop %v2684
  %v2737 = vmul.f32 %v2725, %v2298
  %v2738 = vmul.f32 %v2726, %v2299
  %v2739 = vmul.f32 %v2727, %v2300
  %v2740 = vmul.f32 %v2728, %v2301
  %v2741 = vmul.f32 %v2721, %v2733
  %v2742 = vmul.f32 %v2722, %v2734
  %v2743 = vmul.f32 %v2723, %v2735
  %v2744 = vmul.f32 %v2724, %v2736
  %v2745 = vadd.f32 %v2737, %v2741
  %v2746 = vadd.f32 %v2738, %v2742
  %v2747 = vadd.f32 %v2739, %v2743
  %v2748 = vadd.f32 %v2740, %v2744
  %v2749 = vtanh.pop %v2745
  %v2750 = vtanh.pop %v2746
  %v2751 = vtanh.pop %v2747
  %v2752 = vtanh.pop %v2748
  %v2753 = vmul.f32 %v2729, %v2749
  %v2754 = vmul.f32 %v2730, %v2750
  %v2755 = vmul.f32 %v2731, %v2751
  %v2756 = vmul.f32 %v2732, %v2752
  %2757 = vrot.lane.b32.xlu0 %v2535, 1
  %v2758 = vpop.permute.xlu0 %2757
  %2759 = vrot.lane.b32.xlu0 %v2536, 1
  %v2760 = vpop.permute.xlu0 %2759
  %2761 = vrot.lane.b32.xlu0 %v2537, 1
  %v2762 = vpop.permute.xlu0 %2761
  %2763 = vrot.lane.b32.xlu0 %v2538, 1
  %v2764 = vpop.permute.xlu0 %2763
  %v2765 = vmul.f32 %v2758, %v1320
  %v2766 = vmul.f32 %v2760, %v1320
  %v2767 = vmul.f32 %v2762, %v1320
  %v2768 = vmul.f32 %v2764, %v1320
  %2769 = vrot.lane.b32.xlu0 %v2535, 127
  %v2770 = vpop.permute.xlu0 %2769
  %2771 = vrot.lane.b32.xlu0 %v2536, 127
  %v2772 = vpop.permute.xlu0 %2771
  %2773 = vrot.lane.b32.xlu0 %v2537, 127
  %v2774 = vpop.permute.xlu0 %2773
  %2775 = vrot.lane.b32.xlu0 %v2538, 127
  %v2776 = vpop.permute.xlu0 %2775
  %v2777 = vmul.f32 %v2770, %v1338
  %v2778 = vmul.f32 %v2772, %v1338
  %v2779 = vmul.f32 %v2774, %v1338
  %v2780 = vmul.f32 %v2776, %v1338
  %2781 = vrot.lane.b32.xlu0 %v2753, 1
  %v2782 = vpop.permute.xlu0 %2781
  %2783 = vrot.lane.b32.xlu0 %v2754, 1
  %v2784 = vpop.permute.xlu0 %2783
  %2785 = vrot.lane.b32.xlu0 %v2755, 1
  %v2786 = vpop.permute.xlu0 %2785
  %2787 = vrot.lane.b32.xlu0 %v2756, 1
  %v2788 = vpop.permute.xlu0 %2787
  %v2789 = vmul.f32 %v2782, %v1320
  %v2790 = vmul.f32 %v2784, %v1320
  %v2791 = vmul.f32 %v2786, %v1320
  %v2792 = vmul.f32 %v2788, %v1320
  %2793 = vrot.lane.b32.xlu0 %v2753, 127
  %v2794 = vpop.permute.xlu0 %2793
  %2795 = vrot.lane.b32.xlu0 %v2754, 127
  %v2796 = vpop.permute.xlu0 %2795
  %2797 = vrot.lane.b32.xlu0 %v2755, 127
  %v2798 = vpop.permute.xlu0 %2797
  %2799 = vrot.lane.b32.xlu0 %v2756, 127
  %v2800 = vpop.permute.xlu0 %2799
  %v2801 = vmul.f32 %v2794, %v1338
  %v2802 = vmul.f32 %v2796, %v1338
  %v2803 = vmul.f32 %v2798, %v1338
  %v2804 = vmul.f32 %v2800, %v1338
  %v2805 = vpack.c.bf16 %v2790, %v2789
  %v2806 = vpack.c.bf16 %v2792, %v2791
  %v2807 = vpack.c.bf16 %v2754, %v2753
  %v2808 = vpack.c.bf16 %v2756, %v2755
  %v2809 = vpack.c.bf16 %v2802, %v2801
  %v2810 = vpack.c.bf16 %v2804, %v2803
  %v2811 = vpack.c.bf16 %v2766, %v2765
  %v2812 = vpack.c.bf16 %v2768, %v2767
  %v2813 = vpack.c.bf16 %v2536, %v2535
  %v2814 = vpack.c.bf16 %v2538, %v2537
  %v2815 = vpack.c.bf16 %v2778, %v2777
  %v2816 = vpack.c.bf16 %v2780, %v2779
  %2817 = vmatprep.subr.bf16.mxu0 0
  %2818 = vmatpush1.bf16.msra.mxu0 %v2805
  %2819 = vmatprep.subr.bf16.mxu0 0
  %2820 = vmatpush1.bf16.msra.mxu0 %v2806
  %2821 = vmatprep.subr.bf16.mxu0 0
  %2822 = vmatpush1.bf16.msra.mxu0 %v2807
  %2823 = vmatprep.subr.bf16.mxu0 0
  %2824 = vmatpush1.bf16.msra.mxu0 %v2808
  %2825 = vmatprep.subr.bf16.mxu0 0
  %2826 = vmatpush1.bf16.msra.mxu0 %v2809
  %2827 = vmatprep.subr.bf16.mxu0 0
  %2828 = vmatpush1.bf16.msra.mxu0 %v2810
  %2829 = vmatprep.subr.bf16.mxu0 0
  %2830 = vmatpush1.bf16.msra.mxu0 %v2811
  %2831 = vmatprep.subr.bf16.mxu0 0
  %2832 = vmatpush1.bf16.msra.mxu0 %v2812
  %2833 = vmatprep.subr.bf16.mxu0 0
  %2834 = vmatpush1.bf16.msra.mxu0 %v2813
  %2835 = vmatprep.subr.bf16.mxu0 0
  %2836 = vmatpush1.bf16.msra.mxu0 %v2814
  %2837 = vmatprep.subr.bf16.mxu0 0
  %2838 = vmatpush1.bf16.msra.mxu0 %v2815
  %2839 = vmatprep.subr.bf16.mxu0 0
  %2840 = vmatpush1.bf16.msra.mxu0 %v2816
  %2841 = vmatprep.subr.bf16.mxu0 0
  %2842 = vmatpush1.bf16.msra.mxu0 0
  %2843 = vmatprep.subr.bf16.mxu0 0
  %2844 = vmatpush1.bf16.msra.mxu0 0
  %2845 = vmatprep.subr.bf16.mxu0 0
  %2846 = vmatpush1.bf16.msra.mxu0 0
  %2847 = vmatprep.subr.bf16.mxu0 0
  %2848 = vmatpush1.bf16.msra.mxu0 0
  %2849 = vmatprep.mubr.bf16.mxu0 %v1454
  %2850 = vmatmul.mubr.bf16.gmra.mrb[0].mxu0 %v1428
  %v2851 = vpop.f32.mrb[0].mxu0
  %v2852 = vadd.f32 %v134, %v2851
  %v2853 = vpop.f32.mrb[0].mxu0
  %v2854 = vpop.f32.mrb[0].mxu0
  %v2855 = vadd.f32 %v139, %v2854
  %v2856 = vpop.f32.mrb[0].mxu0
  %2857 = vmatprep.mubr.bf16.mxu0 %v1457
  %2858 = vmatmul.mubr.bf16.gmra.mrb[0].mxu0 %v1430
  %v2859 = vpop.f32.mrb[0].mxu0
  %v2860 = vadd.f32 %v144, %v2859
  %v2861 = vpop.f32.mrb[0].mxu0
  %v2862 = vpop.f32.mrb[0].mxu0
  %v2863 = vadd.f32 %v149, %v2862
  %v2864 = vpop.f32.mrb[0].mxu0
  %2865 = vmatprep.mubr.bf16.mxu0 %v1460
  %2866 = vmatmul.mubr.bf16.gmra.mrb[0].mxu0 %v1432
  %v2867 = vpop.f32.mrb[0].mxu0
  %v2868 = vadd.f32 %v154, %v2867
  %v2869 = vpop.f32.mrb[0].mxu0
  %v2870 = vpop.f32.mrb[0].mxu0
  %v2871 = vadd.f32 %v159, %v2870
  %v2872 = vpop.f32.mrb[0].mxu0
  %2873 = vmatprep.mubr.bf16.mxu0 %v1463
  %2874 = vmatmul.mubr.bf16.gmra.mrb[0].mxu0 %v1434
  %v2875 = vpop.f32.mrb[0].mxu0
  %v2876 = vadd.f32 %v164, %v2875
  %v2877 = vpop.f32.mrb[0].mxu0
  %v2878 = vpop.f32.mrb[0].mxu0
  %v2879 = vadd.f32 %v169, %v2878
  %v2880 = vpop.f32.mrb[0].mxu0
  %2881 = vmatprep.mubr.bf16.mxu0 %v1466
  %2882 = vmatmul.mubr.bf16.gmra.mrb[0].mxu0 %v1436
  %v2883 = vpop.f32.mrb[0].mxu0
  %v2884 = vadd.f32 %v174, %v2883
  %v2885 = vpop.f32.mrb[0].mxu0
  %v2886 = vpop.f32.mrb[0].mxu0
  %v2887 = vadd.f32 %v179, %v2886
  %v2888 = vpop.f32.mrb[0].mxu0
  %2889 = vmatprep.mubr.bf16.mxu0 %v1469
  %2890 = vmatmul.mubr.bf16.gmra.mrb[0].mxu0 %v1438
  %v2891 = vpop.f32.mrb[0].mxu0
  %v2892 = vadd.f32 %v184, %v2891
  %v2893 = vpop.f32.mrb[0].mxu0
  %v2894 = vpop.f32.mrb[0].mxu0
  %v2895 = vadd.f32 %v189, %v2894
  %v2896 = vpop.f32.mrb[0].mxu0
  %2897 = vmatprep.mubr.bf16.mxu0 %v1472
  %2898 = vmatmul.mubr.bf16.gmra.mrb[0].mxu0 %v1440
  %v2899 = vpop.f32.mrb[0].mxu0
  %v2900 = vadd.f32 %v194, %v2899
  %v2901 = vpop.f32.mrb[0].mxu0
  %v2902 = vpop.f32.mrb[0].mxu0
  %v2903 = vadd.f32 %v199, %v2902
  %v2904 = vpop.f32.mrb[0].mxu0
  %2905 = vmatprep.mubr.bf16.mxu0 %v1475
  %2906 = vmatmul.mubr.bf16.gmra.mrb[0].mxu0 %v1442
  %v2907 = vpop.f32.mrb[0].mxu0
  %v2908 = vadd.f32 %v204, %v2907
  %v2909 = vpop.f32.mrb[0].mxu0
  %v2910 = vpop.f32.mrb[0].mxu0
  %v2911 = vadd.f32 %v209, %v2910
  %v2912 = vpop.f32.mrb[0].mxu0
  %2913 = vdwg.mxu0
  %v2914 = vmul.f32 %v2852, 0.5
  %v2915 = vmul.f32 %v2855, 0.5
  %v2916 = vmul.f32 %v2860, 0.5
  %v2917 = vmul.f32 %v2863, 0.5
  %v2918 = vmul.f32 %v2868, 0.5
  %v2919 = vmul.f32 %v2871, 0.5
  %v2920 = vmul.f32 %v2876, 0.5
  %v2921 = vmul.f32 %v2879, 0.5
  %v2922 = vmul.f32 %v2884, 0.5
  %v2923 = vmul.f32 %v2887, 0.5
  %v2924 = vmul.f32 %v2892, 0.5
  %v2925 = vmul.f32 %v2895, 0.5
  %v2926 = vtanh.pop %v2914
  %v2927 = vtanh.pop %v2915
  %v2928 = vtanh.pop %v2916
  %v2929 = vtanh.pop %v2917
  %v2930 = vtanh.pop %v2918
  %v2931 = vtanh.pop %v2919
  %v2932 = vtanh.pop %v2920
  %v2933 = vtanh.pop %v2921
  %v2934 = vtanh.pop %v2922
  %v2935 = vtanh.pop %v2923
  %v2936 = vtanh.pop %v2924
  %v2937 = vtanh.pop %v2925
  %v2938 = vadd.f32 %v2926, 1.0
  %v2939 = vadd.f32 %v2927, 1.0
  %v2940 = vadd.f32 %v2928, 1.0
  %v2941 = vadd.f32 %v2929, 1.0
  %v2942 = vadd.f32 %v2930, 1.0
  %v2943 = vadd.f32 %v2931, 1.0
  %v2944 = vadd.f32 %v2932, 1.0
  %v2945 = vadd.f32 %v2933, 1.0
  %v2946 = vadd.f32 %v2934, 1.0
  %v2947 = vadd.f32 %v2935, 1.0
  %v2948 = vadd.f32 %v2936, 1.0
  %v2949 = vadd.f32 %v2937, 1.0
  %v2950 = vmul.f32 %v2938, 0.5
  %v2951 = vmul.f32 %v2939, 0.5
  %v2952 = vmul.f32 %v2940, 0.5
  %v2953 = vmul.f32 %v2941, 0.5
  %v2954 = vmul.f32 %v2942, 0.5
  %v2955 = vmul.f32 %v2943, 0.5
  %v2956 = vmul.f32 %v2944, 0.5
  %v2957 = vmul.f32 %v2945, 0.5
  %v2958 = vmul.f32 %v2946, 0.5
  %v2959 = vmul.f32 %v2947, 0.5
  %v2960 = vmul.f32 %v2948, 0.5
  %v2961 = vmul.f32 %v2949, 0.5
  %v2962 = vtanh.pop %v2900
  %v2963 = vtanh.pop %v2903
  %v2964 = vtanh.pop %v2908
  %v2965 = vtanh.pop %v2911
  %v2966 = vmul.f32 %v2954, %v2527
  %v2967 = vmul.f32 %v2955, %v2528
  %v2968 = vmul.f32 %v2956, %v2529
  %v2969 = vmul.f32 %v2957, %v2530
  %v2970 = vmul.f32 %v2950, %v2962
  %v2971 = vmul.f32 %v2951, %v2963
  %v2972 = vmul.f32 %v2952, %v2964
  %v2973 = vmul.f32 %v2953, %v2965
  %v2974 = vadd.f32 %v2966, %v2970
  %v2975 = vadd.f32 %v2967, %v2971
  %v2976 = vadd.f32 %v2968, %v2972
  %v2977 = vadd.f32 %v2969, %v2973
  %v2978 = vtanh.pop %v2974
  %v2979 = vtanh.pop %v2975
  %v2980 = vtanh.pop %v2976
  %v2981 = vtanh.pop %v2977
  %v2982 = vmul.f32 %v2958, %v2978
  %v2983 = vmul.f32 %v2959, %v2979
  %v2984 = vmul.f32 %v2960, %v2980
  %v2985 = vmul.f32 %v2961, %v2981
  %s2986 = scalar_lea.vmem %s12, 96
  %2987 = vst [vmem:[%s2986] sm:$0xff] %v2982
  %2988 = vst [vmem:[%s2986 + $0x8] sm:$0xff] %v2983
  %2989 = vst [vmem:[%s2986 + $0x10] sm:$0xff] %v2984
  %2990 = vst [vmem:[%s2986 + $0x18] sm:$0xff] %v2985
  %v2991 = vmul.f32 %v2782, %v1012
  %v2992 = vmul.f32 %v2784, %v1012
  %v2993 = vmul.f32 %v2786, %v1012
  %v2994 = vmul.f32 %v2788, %v1012
  %v2995 = vmul.f32 %v2794, %v1030
  %v2996 = vmul.f32 %v2796, %v1030
  %v2997 = vmul.f32 %v2798, %v1030
  %v2998 = vmul.f32 %v2800, %v1030
  %v2999 = vld [vmem:[#allocation2 + $0x20] sm:$0xff]
  %v3000 = vld [vmem:[#allocation2 + $0x60] sm:$0xff]
  %v3001 = vld [vmem:[#allocation2 + $0xa0] sm:$0xff]
  %v3002 = vld [vmem:[#allocation2 + $0xe0] sm:$0xff]
  %v3003 = vld [vmem:[#allocation2 + $0x120] sm:$0xff]
  %v3004 = vld [vmem:[#allocation2 + $0x160] sm:$0xff]
  %v3005 = vld [vmem:[#allocation2 + $0x1a0] sm:$0xff]
  %v3006 = vld [vmem:[#allocation2 + $0x1e0] sm:$0xff]
  %v3007 = vld [vmem:[#allocation2 + $0x220] sm:$0xff]
  %v3008 = vld [vmem:[#allocation2 + $0x260] sm:$0xff]
  %v3009 = vld [vmem:[#allocation2 + $0x2a0] sm:$0xff]
  %v3010 = vld [vmem:[#allocation2 + $0x2e0] sm:$0xff]
  %v3011 = vld [vmem:[#allocation2 + $0x320] sm:$0xff]
  %v3012 = vld [vmem:[#allocation2 + $0x360] sm:$0xff]
  %v3013 = vld [vmem:[#allocation2 + $0x3a0] sm:$0xff]
  %v3014 = vld [vmem:[#allocation2 + $0x3e0] sm:$0xff]
  %v3015 = vpack.c.bf16 %v2992, %v2991
  %v3016 = vpack.c.bf16 %v2994, %v2993
  %v3017 = vpack.c.bf16 %v2996, %v2995
  %v3018 = vpack.c.bf16 %v2998, %v2997
  %3019 = vmatprep.subr.bf16.mxu0 0
  %3020 = vmatpush1.bf16.msra.mxu0 %v3015
  %3021 = vmatprep.subr.bf16.mxu0 0
  %3022 = vmatpush1.bf16.msra.mxu0 %v3016
  %3023 = vmatprep.subr.bf16.mxu0 0
  %3024 = vmatpush1.bf16.msra.mxu0 %v2807
  %3025 = vmatprep.subr.bf16.mxu0 0
  %3026 = vmatpush1.bf16.msra.mxu0 %v2808
  %3027 = vmatprep.subr.bf16.mxu0 0
  %3028 = vmatpush1.bf16.msra.mxu0 %v3017
  %3029 = vmatprep.subr.bf16.mxu0 0
  %3030 = vmatpush1.bf16.msra.mxu0 %v3018
  %3031 = vmatprep.subr.bf16.mxu0 0
  %3032 = vmatpush1.bf16.msra.mxu0 0
  %3033 = vmatprep.subr.bf16.mxu0 0
  %3034 = vmatpush1.bf16.msra.mxu0 0
  %3035 = vmatprep.subr.bf16.mxu0 0
  %3036 = vmatpush1.bf16.msra.mxu0 0
  %3037 = vmatprep.subr.bf16.mxu0 0
  %3038 = vmatpush1.bf16.msra.mxu0 0
  %3039 = vmatprep.subr.bf16.mxu0 0
  %3040 = vmatpush1.bf16.msra.mxu0 0
  %3041 = vmatprep.subr.bf16.mxu0 0
  %3042 = vmatpush1.bf16.msra.mxu0 0
  %3043 = vmatprep.subr.bf16.mxu0 0
  %3044 = vmatpush1.bf16.msra.mxu0 0
  %3045 = vmatprep.subr.bf16.mxu0 0
  %3046 = vmatpush1.bf16.msra.mxu0 0
  %3047 = vmatprep.subr.bf16.mxu0 0
  %3048 = vmatpush1.bf16.msra.mxu0 0
  %3049 = vmatprep.subr.bf16.mxu0 0
  %3050 = vmatpush1.bf16.msra.mxu0 0
  %3051 = vmatprep.mubr.bf16.mxu0 0
  %3052 = vmatmul.mubr.bf16.gmra.mrb[0].mxu0 %v1100
  %v3053 = vpop.f32.mrb[0].mxu0
  %v3054 = vadd.f32 0.0, %v3053
  %v3055 = vpop.f32.mrb[0].mxu0
  %v3056 = vpop.f32.mrb[0].mxu0
  %v3057 = vadd.f32 0.0, %v3056
  %v3058 = vpop.f32.mrb[0].mxu0
  %3059 = vmatprep.mubr.bf16.mxu0 0
  %3060 = vmatmul.mubr.bf16.gmra.mrb[0].mxu0 %v1103
  %v3061 = vpop.f32.mrb[0].mxu0
  %v3062 = vadd.f32 0.0, %v3061
  %v3063 = vpop.f32.mrb[0].mxu0
  %v3064 = vpop.f32.mrb[0].mxu0
  %v3065 = vadd.f32 0.0, %v3064
  %v3066 = vpop.f32.mrb[0].mxu0
  %3067 = vmatprep.mubr.bf16.mxu0 0
  %3068 = vmatmul.mubr.bf16.gmra.mrb[0].mxu0 %v1106
  %v3069 = vpop.f32.mrb[0].mxu0
  %v3070 = vadd.f32 0.0, %v3069
  %v3071 = vpop.f32.mrb[0].mxu0
  %v3072 = vpop.f32.mrb[0].mxu0
  %v3073 = vadd.f32 0.0, %v3072
  %v3074 = vpop.f32.mrb[0].mxu0
  %3075 = vmatprep.mubr.bf16.mxu0 0
  %3076 = vmatmul.mubr.bf16.gmra.mrb[0].mxu0 %v1109
  %v3077 = vpop.f32.mrb[0].mxu0
  %v3078 = vadd.f32 0.0, %v3077
  %v3079 = vpop.f32.mrb[0].mxu0
  %v3080 = vpop.f32.mrb[0].mxu0
  %v3081 = vadd.f32 0.0, %v3080
  %v3082 = vpop.f32.mrb[0].mxu0
  %3083 = vmatprep.mubr.bf16.mxu0 0
  %3084 = vmatmul.mubr.bf16.gmra.mrb[0].mxu0 %v1112
  %v3085 = vpop.f32.mrb[0].mxu0
  %v3086 = vadd.f32 0.0, %v3085
  %v3087 = vpop.f32.mrb[0].mxu0
  %v3088 = vpop.f32.mrb[0].mxu0
  %v3089 = vadd.f32 0.0, %v3088
  %v3090 = vpop.f32.mrb[0].mxu0
  %3091 = vmatprep.mubr.bf16.mxu0 0
  %3092 = vmatmul.mubr.bf16.gmra.mrb[0].mxu0 %v1115
  %v3093 = vpop.f32.mrb[0].mxu0
  %v3094 = vadd.f32 0.0, %v3093
  %v3095 = vpop.f32.mrb[0].mxu0
  %v3096 = vpop.f32.mrb[0].mxu0
  %v3097 = vadd.f32 0.0, %v3096
  %v3098 = vpop.f32.mrb[0].mxu0
  %3099 = vmatprep.mubr.bf16.mxu0 0
  %3100 = vmatmul.mubr.bf16.gmra.mrb[0].mxu0 %v1118
  %v3101 = vpop.f32.mrb[0].mxu0
  %v3102 = vadd.f32 0.0, %v3101
  %v3103 = vpop.f32.mrb[0].mxu0
  %v3104 = vpop.f32.mrb[0].mxu0
  %v3105 = vadd.f32 0.0, %v3104
  %v3106 = vpop.f32.mrb[0].mxu0
  %3107 = vmatprep.mubr.bf16.mxu0 0
  %3108 = vmatmul.mubr.bf16.gmra.mrb[0].mxu0 %v1121
  %v3109 = vpop.f32.mrb[0].mxu0
  %v3110 = vadd.f32 0.0, %v3109
  %v3111 = vpop.f32.mrb[0].mxu0
  %v3112 = vpop.f32.mrb[0].mxu0
  %v3113 = vadd.f32 0.0, %v3112
  %v3114 = vpop.f32.mrb[0].mxu0
  %3115 = vdwg.mxu0
  %v3116 = vadd.f32 %v2999, %v3054
  %v3117 = vadd.f32 %v3000, %v3057
  %v3118 = vadd.f32 %v3001, %v3062
  %v3119 = vadd.f32 %v3002, %v3065
  %v3120 = vadd.f32 %v3003, %v3070
  %v3121 = vadd.f32 %v3004, %v3073
  %v3122 = vadd.f32 %v3005, %v3078
  %v3123 = vadd.f32 %v3006, %v3081
  %v3124 = vadd.f32 %v3007, %v3086
  %v3125 = vadd.f32 %v3008, %v3089
  %v3126 = vadd.f32 %v3009, %v3094
  %v3127 = vadd.f32 %v3010, %v3097
  %v3128 = vadd.f32 %v3011, %v3102
  %v3129 = vadd.f32 %v3012, %v3105
  %v3130 = vadd.f32 %v3013, %v3110
  %v3131 = vadd.f32 %v3014, %v3113
  %v3132 = vmul.f32 %v3116, 0.5
  %v3133 = vmul.f32 %v3117, 0.5
  %v3134 = vmul.f32 %v3118, 0.5
  %v3135 = vmul.f32 %v3119, 0.5
  %v3136 = vmul.f32 %v3120, 0.5
  %v3137 = vmul.f32 %v3121, 0.5
  %v3138 = vmul.f32 %v3122, 0.5
  %v3139 = vmul.f32 %v3123, 0.5
  %v3140 = vmul.f32 %v3124, 0.5
  %v3141 = vmul.f32 %v3125, 0.5
  %v3142 = vmul.f32 %v3126, 0.5
  %v3143 = vmul.f32 %v3127, 0.5
  %v3144 = vtanh.pop %v3132
  %v3145 = vtanh.pop %v3133
  %v3146 = vtanh.pop %v3134
  %v3147 = vtanh.pop %v3135
  %v3148 = vtanh.pop %v3136
  %v3149 = vtanh.pop %v3137
  %v3150 = vtanh.pop %v3138
  %v3151 = vtanh.pop %v3139
  %v3152 = vtanh.pop %v3140
  %v3153 = vtanh.pop %v3141
  %v3154 = vtanh.pop %v3142
  %v3155 = vtanh.pop %v3143
  %v3156 = vadd.f32 %v3144, 1.0
  %v3157 = vadd.f32 %v3145, 1.0
  %v3158 = vadd.f32 %v3146, 1.0
  %v3159 = vadd.f32 %v3147, 1.0
  %v3160 = vadd.f32 %v3148, 1.0
  %v3161 = vadd.f32 %v3149, 1.0
  %v3162 = vadd.f32 %v3150, 1.0
  %v3163 = vadd.f32 %v3151, 1.0
  %v3164 = vadd.f32 %v3152, 1.0
  %v3165 = vadd.f32 %v3153, 1.0
  %v3166 = vadd.f32 %v3154, 1.0
  %v3167 = vadd.f32 %v3155, 1.0
  %v3168 = vmul.f32 %v3156, 0.5
  %v3169 = vmul.f32 %v3157, 0.5
  %v3170 = vmul.f32 %v3158, 0.5
  %v3171 = vmul.f32 %v3159, 0.5
  %v3172 = vmul.f32 %v3160, 0.5
  %v3173 = vmul.f32 %v3161, 0.5
  %v3174 = vmul.f32 %v3162, 0.5
  %v3175 = vmul.f32 %v3163, 0.5
  %v3176 = vmul.f32 %v3164, 0.5
  %v3177 = vmul.f32 %v3165, 0.5
  %v3178 = vmul.f32 %v3166, 0.5
  %v3179 = vmul.f32 %v3167, 0.5
  %v3180 = vtanh.pop %v3128
  %v3181 = vtanh.pop %v3129
  %v3182 = vtanh.pop %v3130
  %v3183 = vtanh.pop %v3131
  %v3184 = vmul.f32 %v3172, %v2745
  %v3185 = vmul.f32 %v3173, %v2746
  %v3186 = vmul.f32 %v3174, %v2747
  %v3187 = vmul.f32 %v3175, %v2748
  %v3188 = vmul.f32 %v3168, %v3180
  %v3189 = vmul.f32 %v3169, %v3181
  %v3190 = vmul.f32 %v3170, %v3182
  %v3191 = vmul.f32 %v3171, %v3183
  %v3192 = vadd.f32 %v3184, %v3188
  %v3193 = vadd.f32 %v3185, %v3189
  %v3194 = vadd.f32 %v3186, %v3190
  %v3195 = vadd.f32 %v3187, %v3191
  %v3196 = vtanh.pop %v3192
  %v3197 = vtanh.pop %v3193
  %v3198 = vtanh.pop %v3194
  %v3199 = vtanh.pop %v3195
  %v3200 = vmul.f32 %v3176, %v3196
  %v3201 = vmul.f32 %v3177, %v3197
  %v3202 = vmul.f32 %v3178, %v3198
  %v3203 = vmul.f32 %v3179, %v3199
  %3204 = vrot.lane.b32.xlu0 %v2982, 1
  %v3205 = vpop.permute.xlu0 %3204
  %3206 = vrot.lane.b32.xlu0 %v2983, 1
  %v3207 = vpop.permute.xlu0 %3206
  %3208 = vrot.lane.b32.xlu0 %v2984, 1
  %v3209 = vpop.permute.xlu0 %3208
  %3210 = vrot.lane.b32.xlu0 %v2985, 1
  %v3211 = vpop.permute.xlu0 %3210
  %v3212 = vmul.f32 %v3205, %v1320
  %v3213 = vmul.f32 %v3207, %v1320
  %v3214 = vmul.f32 %v3209, %v1320
  %v3215 = vmul.f32 %v3211, %v1320
  %3216 = vrot.lane.b32.xlu0 %v2982, 127
  %v3217 = vpop.permute.xlu0 %3216
  %3218 = vrot.lane.b32.xlu0 %v2983, 127
  %v3219 = vpop.permute.xlu0 %3218
  %3220 = vrot.lane.b32.xlu0 %v2984, 127
  %v3221 = vpop.permute.xlu0 %3220
  %3222 = vrot.lane.b32.xlu0 %v2985, 127
  %v3223 = vpop.permute.xlu0 %3222
  %v3224 = vmul.f32 %v3217, %v1338
  %v3225 = vmul.f32 %v3219, %v1338
  %v3226 = vmul.f32 %v3221, %v1338
  %v3227 = vmul.f32 %v3223, %v1338
  %3228 = vrot.lane.b32.xlu0 %v3200, 1
  %v3229 = vpop.permute.xlu0 %3228
  %3230 = vrot.lane.b32.xlu0 %v3201, 1
  %v3231 = vpop.permute.xlu0 %3230
  %3232 = vrot.lane.b32.xlu0 %v3202, 1
  %v3233 = vpop.permute.xlu0 %3232
  %3234 = vrot.lane.b32.xlu0 %v3203, 1
  %v3235 = vpop.permute.xlu0 %3234
  %v3236 = vmul.f32 %v3229, %v1320
  %v3237 = vmul.f32 %v3231, %v1320
  %v3238 = vmul.f32 %v3233, %v1320
  %v3239 = vmul.f32 %v3235, %v1320
  %3240 = vrot.lane.b32.xlu0 %v3200, 127
  %v3241 = vpop.permute.xlu0 %3240
  %3242 = vrot.lane.b32.xlu0 %v3201, 127
  %v3243 = vpop.permute.xlu0 %3242
  %3244 = vrot.lane.b32.xlu0 %v3202, 127
  %v3245 = vpop.permute.xlu0 %3244
  %3246 = vrot.lane.b32.xlu0 %v3203, 127
  %v3247 = vpop.permute.xlu0 %3246
  %v3248 = vmul.f32 %v3241, %v1338
  %v3249 = vmul.f32 %v3243, %v1338
  %v3250 = vmul.f32 %v3245, %v1338
  %v3251 = vmul.f32 %v3247, %v1338
  %v3252 = vpack.c.bf16 %v3237, %v3236
  %v3253 = vpack.c.bf16 %v3239, %v3238
  %v3254 = vpack.c.bf16 %v3201, %v3200
  %v3255 = vpack.c.bf16 %v3203, %v3202
  %v3256 = vpack.c.bf16 %v3249, %v3248
  %v3257 = vpack.c.bf16 %v3251, %v3250
  %v3258 = vpack.c.bf16 %v3213, %v3212
  %v3259 = vpack.c.bf16 %v3215, %v3214
  %v3260 = vpack.c.bf16 %v2983, %v2982
  %v3261 = vpack.c.bf16 %v2985, %v2984
  %v3262 = vpack.c.bf16 %v3225, %v3224
  %v3263 = vpack.c.bf16 %v3227, %v3226
  %3264 = vmatprep.subr.bf16.mxu0 0
  %3265 = vmatpush1.bf16.msra.mxu0 %v3252
  %3266 = vmatprep.subr.bf16.mxu0 0
  %3267 = vmatpush1.bf16.msra.mxu0 %v3253
  %3268 = vmatprep.subr.bf16.mxu0 0
  %3269 = vmatpush1.bf16.msra.mxu0 %v3254
  %3270 = vmatprep.subr.bf16.mxu0 0
  %3271 = vmatpush1.bf16.msra.mxu0 %v3255
  %3272 = vmatprep.subr.bf16.mxu0 0
  %3273 = vmatpush1.bf16.msra.mxu0 %v3256
  %3274 = vmatprep.subr.bf16.mxu0 0
  %3275 = vmatpush1.bf16.msra.mxu0 %v3257
  %3276 = vmatprep.subr.bf16.mxu0 0
  %3277 = vmatpush1.bf16.msra.mxu0 %v3258
  %3278 = vmatprep.subr.bf16.mxu0 0
  %3279 = vmatpush1.bf16.msra.mxu0 %v3259
  %3280 = vmatprep.subr.bf16.mxu0 0
  %3281 = vmatpush1.bf16.msra.mxu0 %v3260
  %3282 = vmatprep.subr.bf16.mxu0 0
  %3283 = vmatpush1.bf16.msra.mxu0 %v3261
  %3284 = vmatprep.subr.bf16.mxu0 0
  %3285 = vmatpush1.bf16.msra.mxu0 %v3262
  %3286 = vmatprep.subr.bf16.mxu0 0
  %3287 = vmatpush1.bf16.msra.mxu0 %v3263
  %3288 = vmatprep.subr.bf16.mxu0 0
  %3289 = vmatpush1.bf16.msra.mxu0 0
  %3290 = vmatprep.subr.bf16.mxu0 0
  %3291 = vmatpush1.bf16.msra.mxu0 0
  %3292 = vmatprep.subr.bf16.mxu0 0
  %3293 = vmatpush1.bf16.msra.mxu0 0
  %3294 = vmatprep.subr.bf16.mxu0 0
  %3295 = vmatpush1.bf16.msra.mxu0 0
  %3296 = vmatprep.mubr.bf16.mxu0 %v1454
  %3297 = vmatmul.mubr.bf16.gmra.mrb[0].mxu0 %v1428
  %v3298 = vpop.f32.mrb[0].mxu0
  %v3299 = vadd.f32 %v134, %v3298
  %v3300 = vpop.f32.mrb[0].mxu0
  %v3301 = vpop.f32.mrb[0].mxu0
  %v3302 = vadd.f32 %v139, %v3301
  %v3303 = vpop.f32.mrb[0].mxu0
  %3304 = vmatprep.mubr.bf16.mxu0 %v1457
  %3305 = vmatmul.mubr.bf16.gmra.mrb[0].mxu0 %v1430
  %v3306 = vpop.f32.mrb[0].mxu0
  %v3307 = vadd.f32 %v144, %v3306
  %v3308 = vpop.f32.mrb[0].mxu0
  %v3309 = vpop.f32.mrb[0].mxu0
  %v3310 = vadd.f32 %v149, %v3309
  %v3311 = vpop.f32.mrb[0].mxu0
  %3312 = vmatprep.mubr.bf16.mxu0 %v1460
  %3313 = vmatmul.mubr.bf16.gmra.mrb[0].mxu0 %v1432
  %v3314 = vpop.f32.mrb[0].mxu0
  %v3315 = vadd.f32 %v154, %v3314
  %v3316 = vpop.f32.mrb[0].mxu0
  %v3317 = vpop.f32.mrb[0].mxu0
  %v3318 = vadd.f32 %v159, %v3317
  %v3319 = vpop.f32.mrb[0].mxu0
  %3320 = vmatprep.mubr.bf16.mxu0 %v1463
  %3321 = vmatmul.mubr.bf16.gmra.mrb[0].mxu0 %v1434
  %v3322 = vpop.f32.mrb[0].mxu0
  %v3323 = vadd.f32 %v164, %v3322
  %v3324 = vpop.f32.mrb[0].mxu0
  %v3325 = vpop.f32.mrb[0].mxu0
  %v3326 = vadd.f32 %v169, %v3325
  %v3327 = vpop.f32.mrb[0].mxu0
  %3328 = vmatprep.mubr.bf16.mxu0 %v1466
  %3329 = vmatmul.mubr.bf16.gmra.mrb[0].mxu0 %v1436
  %v3330 = vpop.f32.mrb[0].mxu0
  %v3331 = vadd.f32 %v174, %v3330
  %v3332 = vpop.f32.mrb[0].mxu0
  %v3333 = vpop.f32.mrb[0].mxu0
  %v3334 = vadd.f32 %v179, %v3333
  %v3335 = vpop.f32.mrb[0].mxu0
  %3336 = vmatprep.mubr.bf16.mxu0 %v1469
  %3337 = vmatmul.mubr.bf16.gmra.mrb[0].mxu0 %v1438
  %v3338 = vpop.f32.mrb[0].mxu0
  %v3339 = vadd.f32 %v184, %v3338
  %v3340 = vpop.f32.mrb[0].mxu0
  %v3341 = vpop.f32.mrb[0].mxu0
  %v3342 = vadd.f32 %v189, %v3341
  %v3343 = vpop.f32.mrb[0].mxu0
  %3344 = vmatprep.mubr.bf16.mxu0 %v1472
  %3345 = vmatmul.mubr.bf16.gmra.mrb[0].mxu0 %v1440
  %v3346 = vpop.f32.mrb[0].mxu0
  %v3347 = vadd.f32 %v194, %v3346
  %v3348 = vpop.f32.mrb[0].mxu0
  %v3349 = vpop.f32.mrb[0].mxu0
  %v3350 = vadd.f32 %v199, %v3349
  %v3351 = vpop.f32.mrb[0].mxu0
  %3352 = vmatprep.mubr.bf16.mxu0 %v1475
  %3353 = vmatmul.mubr.bf16.gmra.mrb[0].mxu0 %v1442
  %v3354 = vpop.f32.mrb[0].mxu0
  %v3355 = vadd.f32 %v204, %v3354
  %v3356 = vpop.f32.mrb[0].mxu0
  %v3357 = vpop.f32.mrb[0].mxu0
  %v3358 = vadd.f32 %v209, %v3357
  %v3359 = vpop.f32.mrb[0].mxu0
  %3360 = vdwg.mxu0
  %v3361 = vmul.f32 %v3299, 0.5
  %v3362 = vmul.f32 %v3302, 0.5
  %v3363 = vmul.f32 %v3307, 0.5
  %v3364 = vmul.f32 %v3310, 0.5
  %v3365 = vmul.f32 %v3315, 0.5
  %v3366 = vmul.f32 %v3318, 0.5
  %v3367 = vmul.f32 %v3323, 0.5
  %v3368 = vmul.f32 %v3326, 0.5
  %v3369 = vmul.f32 %v3331, 0.5
  %v3370 = vmul.f32 %v3334, 0.5
  %v3371 = vmul.f32 %v3339, 0.5
  %v3372 = vmul.f32 %v3342, 0.5
  %v3373 = vtanh.pop %v3361
  %v3374 = vtanh.pop %v3362
  %v3375 = vtanh.pop %v3363
  %v3376 = vtanh.pop %v3364
  %v3377 = vtanh.pop %v3365
  %v3378 = vtanh.pop %v3366
  %v3379 = vtanh.pop %v3367
  %v3380 = vtanh.pop %v3368
  %v3381 = vtanh.pop %v3369
  %v3382 = vtanh.pop %v3370
  %v3383 = vtanh.pop %v3371
  %v3384 = vtanh.pop %v3372
  %v3385 = vadd.f32 %v3373, 1.0
  %v3386 = vadd.f32 %v3374, 1.0
  %v3387 = vadd.f32 %v3375, 1.0
  %v3388 = vadd.f32 %v3376, 1.0
  %v3389 = vadd.f32 %v3377, 1.0
  %v3390 = vadd.f32 %v3378, 1.0
  %v3391 = vadd.f32 %v3379, 1.0
  %v3392 = vadd.f32 %v3380, 1.0
  %v3393 = vadd.f32 %v3381, 1.0
  %v3394 = vadd.f32 %v3382, 1.0
  %v3395 = vadd.f32 %v3383, 1.0
  %v3396 = vadd.f32 %v3384, 1.0
  %v3397 = vmul.f32 %v3385, 0.5
  %v3398 = vmul.f32 %v3386, 0.5
  %v3399 = vmul.f32 %v3387, 0.5
  %v3400 = vmul.f32 %v3388, 0.5
  %v3401 = vmul.f32 %v3389, 0.5
  %v3402 = vmul.f32 %v3390, 0.5
  %v3403 = vmul.f32 %v3391, 0.5
  %v3404 = vmul.f32 %v3392, 0.5
  %v3405 = vmul.f32 %v3393, 0.5
  %v3406 = vmul.f32 %v3394, 0.5
  %v3407 = vmul.f32 %v3395, 0.5
  %v3408 = vmul.f32 %v3396, 0.5
  %v3409 = vtanh.pop %v3347
  %v3410 = vtanh.pop %v3350
  %v3411 = vtanh.pop %v3355
  %v3412 = vtanh.pop %v3358
  %v3413 = vmul.f32 %v3401, %v2974
  %v3414 = vmul.f32 %v3402, %v2975
  %v3415 = vmul.f32 %v3403, %v2976
  %v3416 = vmul.f32 %v3404, %v2977
  %v3417 = vmul.f32 %v3397, %v3409
  %v3418 = vmul.f32 %v3398, %v3410
  %v3419 = vmul.f32 %v3399, %v3411
  %v3420 = vmul.f32 %v3400, %v3412
  %v3421 = vadd.f32 %v3413, %v3417
  %v3422 = vadd.f32 %v3414, %v3418
  %v3423 = vadd.f32 %v3415, %v3419
  %v3424 = vadd.f32 %v3416, %v3420
  %v3425 = vtanh.pop %v3421
  %v3426 = vtanh.pop %v3422
  %v3427 = vtanh.pop %v3423
  %v3428 = vtanh.pop %v3424
  %v3429 = vmul.f32 %v3405, %v3425
  %v3430 = vmul.f32 %v3406, %v3426
  %v3431 = vmul.f32 %v3407, %v3427
  %v3432 = vmul.f32 %v3408, %v3428
  %s3433 = scalar_lea.vmem %s12, 128
  %3434 = vst [vmem:[%s3433] sm:$0xff] %v3429
  %3435 = vst [vmem:[%s3433 + $0x8] sm:$0xff] %v3430
  %3436 = vst [vmem:[%s3433 + $0x10] sm:$0xff] %v3431
  %3437 = vst [vmem:[%s3433 + $0x18] sm:$0xff] %v3432
  %v3438 = vmul.f32 %v3229, %v1012
  %v3439 = vmul.f32 %v3231, %v1012
  %v3440 = vmul.f32 %v3233, %v1012
  %v3441 = vmul.f32 %v3235, %v1012
  %v3442 = vmul.f32 %v3241, %v1030
  %v3443 = vmul.f32 %v3243, %v1030
  %v3444 = vmul.f32 %v3245, %v1030
  %v3445 = vmul.f32 %v3247, %v1030
  %v3446 = vld [vmem:[#allocation2 + $0x28] sm:$0xff]
  %v3447 = vld [vmem:[#allocation2 + $0x68] sm:$0xff]
  %v3448 = vld [vmem:[#allocation2 + $0xa8] sm:$0xff]
  %v3449 = vld [vmem:[#allocation2 + $0xe8] sm:$0xff]
  %v3450 = vld [vmem:[#allocation2 + $0x128] sm:$0xff]
  %v3451 = vld [vmem:[#allocation2 + $0x168] sm:$0xff]
  %v3452 = vld [vmem:[#allocation2 + $0x1a8] sm:$0xff]
  %v3453 = vld [vmem:[#allocation2 + $0x1e8] sm:$0xff]
  %v3454 = vld [vmem:[#allocation2 + $0x228] sm:$0xff]
  %v3455 = vld [vmem:[#allocation2 + $0x268] sm:$0xff]
  %v3456 = vld [vmem:[#allocation2 + $0x2a8] sm:$0xff]
  %v3457 = vld [vmem:[#allocation2 + $0x2e8] sm:$0xff]
  %v3458 = vld [vmem:[#allocation2 + $0x328] sm:$0xff]
  %v3459 = vld [vmem:[#allocation2 + $0x368] sm:$0xff]
  %v3460 = vld [vmem:[#allocation2 + $0x3a8] sm:$0xff]
  %v3461 = vld [vmem:[#allocation2 + $0x3e8] sm:$0xff]
  %v3462 = vpack.c.bf16 %v3439, %v3438
  %v3463 = vpack.c.bf16 %v3441, %v3440
  %v3464 = vpack.c.bf16 %v3443, %v3442
  %v3465 = vpack.c.bf16 %v3445, %v3444
  %3466 = vmatprep.subr.bf16.mxu0 0
  %3467 = vmatpush1.bf16.msra.mxu0 %v3462
  %3468 = vmatprep.subr.bf16.mxu0 0
  %3469 = vmatpush1.bf16.msra.mxu0 %v3463
  %3470 = vmatprep.subr.bf16.mxu0 0
  %3471 = vmatpush1.bf16.msra.mxu0 %v3254
  %3472 = vmatprep.subr.bf16.mxu0 0
  %3473 = vmatpush1.bf16.msra.mxu0 %v3255
  %3474 = vmatprep.subr.bf16.mxu0 0
  %3475 = vmatpush1.bf16.msra.mxu0 %v3464
  %3476 = vmatprep.subr.bf16.mxu0 0
  %3477 = vmatpush1.bf16.msra.mxu0 %v3465
  %3478 = vmatprep.subr.bf16.mxu0 0
  %3479 = vmatpush1.bf16.msra.mxu0 0
  %3480 = vmatprep.subr.bf16.mxu0 0
  %3481 = vmatpush1.bf16.msra.mxu0 0
  %3482 = vmatprep.subr.bf16.mxu0 0
  %3483 = vmatpush1.bf16.msra.mxu0 0
  %3484 = vmatprep.subr.bf16.mxu0 0
  %3485 = vmatpush1.bf16.msra.mxu0 0
  %3486 = vmatprep.subr.bf16.mxu0 0
  %3487 = vmatpush1.bf16.msra.mxu0 0
  %3488 = vmatprep.subr.bf16.mxu0 0
  %3489 = vmatpush1.bf16.msra.mxu0 0
  %3490 = vmatprep.subr.bf16.mxu0 0
  %3491 = vmatpush1.bf16.msra.mxu0 0
  %3492 = vmatprep.subr.bf16.mxu0 0
  %3493 = vmatpush1.bf16.msra.mxu0 0
  %3494 = vmatprep.subr.bf16.mxu0 0
  %3495 = vmatpush1.bf16.msra.mxu0 0
  %3496 = vmatprep.subr.bf16.mxu0 0
  %3497 = vmatpush1.bf16.msra.mxu0 0
  %3498 = vmatprep.mubr.bf16.mxu0 0
  %3499 = vmatmul.mubr.bf16.gmra.mrb[0].mxu0 %v1100
  %v3500 = vpop.f32.mrb[0].mxu0
  %v3501 = vadd.f32 0.0, %v3500
  %v3502 = vpop.f32.mrb[0].mxu0
  %v3503 = vpop.f32.mrb[0].mxu0
  %v3504 = vadd.f32 0.0, %v3503
  %v3505 = vpop.f32.mrb[0].mxu0
  %3506 = vmatprep.mubr.bf16.mxu0 0
  %3507 = vmatmul.mubr.bf16.gmra.mrb[0].mxu0 %v1103
  %v3508 = vpop.f32.mrb[0].mxu0
  %v3509 = vadd.f32 0.0, %v3508
  %v3510 = vpop.f32.mrb[0].mxu0
  %v3511 = vpop.f32.mrb[0].mxu0
  %v3512 = vadd.f32 0.0, %v3511
  %v3513 = vpop.f32.mrb[0].mxu0
  %3514 = vmatprep.mubr.bf16.mxu0 0
  %3515 = vmatmul.mubr.bf16.gmra.mrb[0].mxu0 %v1106
  %v3516 = vpop.f32.mrb[0].mxu0
  %v3517 = vadd.f32 0.0, %v3516
  %v3518 = vpop.f32.mrb[0].mxu0
  %v3519 = vpop.f32.mrb[0].mxu0
  %v3520 = vadd.f32 0.0, %v3519
  %v3521 = vpop.f32.mrb[0].mxu0
  %3522 = vmatprep.mubr.bf16.mxu0 0
  %3523 = vmatmul.mubr.bf16.gmra.mrb[0].mxu0 %v1109
  %v3524 = vpop.f32.mrb[0].mxu0
  %v3525 = vadd.f32 0.0, %v3524
  %v3526 = vpop.f32.mrb[0].mxu0
  %v3527 = vpop.f32.mrb[0].mxu0
  %v3528 = vadd.f32 0.0, %v3527
  %v3529 = vpop.f32.mrb[0].mxu0
  %3530 = vmatprep.mubr.bf16.mxu0 0
  %3531 = vmatmul.mubr.bf16.gmra.mrb[0].mxu0 %v1112
  %v3532 = vpop.f32.mrb[0].mxu0
  %v3533 = vadd.f32 0.0, %v3532
  %v3534 = vpop.f32.mrb[0].mxu0
  %v3535 = vpop.f32.mrb[0].mxu0
  %v3536 = vadd.f32 0.0, %v3535
  %v3537 = vpop.f32.mrb[0].mxu0
  %3538 = vmatprep.mubr.bf16.mxu0 0
  %3539 = vmatmul.mubr.bf16.gmra.mrb[0].mxu0 %v1115
  %v3540 = vpop.f32.mrb[0].mxu0
  %v3541 = vadd.f32 0.0, %v3540
  %v3542 = vpop.f32.mrb[0].mxu0
  %v3543 = vpop.f32.mrb[0].mxu0
  %v3544 = vadd.f32 0.0, %v3543
  %v3545 = vpop.f32.mrb[0].mxu0
  %3546 = vmatprep.mubr.bf16.mxu0 0
  %3547 = vmatmul.mubr.bf16.gmra.mrb[0].mxu0 %v1118
  %v3548 = vpop.f32.mrb[0].mxu0
  %v3549 = vadd.f32 0.0, %v3548
  %v3550 = vpop.f32.mrb[0].mxu0
  %v3551 = vpop.f32.mrb[0].mxu0
  %v3552 = vadd.f32 0.0, %v3551
  %v3553 = vpop.f32.mrb[0].mxu0
  %3554 = vmatprep.mubr.bf16.mxu0 0
  %3555 = vmatmul.mubr.bf16.gmra.mrb[0].mxu0 %v1121
  %v3556 = vpop.f32.mrb[0].mxu0
  %v3557 = vadd.f32 0.0, %v3556
  %v3558 = vpop.f32.mrb[0].mxu0
  %v3559 = vpop.f32.mrb[0].mxu0
  %v3560 = vadd.f32 0.0, %v3559
  %v3561 = vpop.f32.mrb[0].mxu0
  %3562 = vdwg.mxu0
  %v3563 = vadd.f32 %v3446, %v3501
  %v3564 = vadd.f32 %v3447, %v3504
  %v3565 = vadd.f32 %v3448, %v3509
  %v3566 = vadd.f32 %v3449, %v3512
  %v3567 = vadd.f32 %v3450, %v3517
  %v3568 = vadd.f32 %v3451, %v3520
  %v3569 = vadd.f32 %v3452, %v3525
  %v3570 = vadd.f32 %v3453, %v3528
  %v3571 = vadd.f32 %v3454, %v3533
  %v3572 = vadd.f32 %v3455, %v3536
  %v3573 = vadd.f32 %v3456, %v3541
  %v3574 = vadd.f32 %v3457, %v3544
  %v3575 = vadd.f32 %v3458, %v3549
  %v3576 = vadd.f32 %v3459, %v3552
  %v3577 = vadd.f32 %v3460, %v3557
  %v3578 = vadd.f32 %v3461, %v3560
  %v3579 = vmul.f32 %v3563, 0.5
  %v3580 = vmul.f32 %v3564, 0.5
  %v3581 = vmul.f32 %v3565, 0.5
  %v3582 = vmul.f32 %v3566, 0.5
  %v3583 = vmul.f32 %v3567, 0.5
  %v3584 = vmul.f32 %v3568, 0.5
  %v3585 = vmul.f32 %v3569, 0.5
  %v3586 = vmul.f32 %v3570, 0.5
  %v3587 = vmul.f32 %v3571, 0.5
  %v3588 = vmul.f32 %v3572, 0.5
  %v3589 = vmul.f32 %v3573, 0.5
  %v3590 = vmul.f32 %v3574, 0.5
  %v3591 = vtanh.pop %v3579
  %v3592 = vtanh.pop %v3580
  %v3593 = vtanh.pop %v3581
  %v3594 = vtanh.pop %v3582
  %v3595 = vtanh.pop %v3583
  %v3596 = vtanh.pop %v3584
  %v3597 = vtanh.pop %v3585
  %v3598 = vtanh.pop %v3586
  %v3599 = vtanh.pop %v3587
  %v3600 = vtanh.pop %v3588
  %v3601 = vtanh.pop %v3589
  %v3602 = vtanh.pop %v3590
  %v3603 = vadd.f32 %v3591, 1.0
  %v3604 = vadd.f32 %v3592, 1.0
  %v3605 = vadd.f32 %v3593, 1.0
  %v3606 = vadd.f32 %v3594, 1.0
  %v3607 = vadd.f32 %v3595, 1.0
  %v3608 = vadd.f32 %v3596, 1.0
  %v3609 = vadd.f32 %v3597, 1.0
  %v3610 = vadd.f32 %v3598, 1.0
  %v3611 = vadd.f32 %v3599, 1.0
  %v3612 = vadd.f32 %v3600, 1.0
  %v3613 = vadd.f32 %v3601, 1.0
  %v3614 = vadd.f32 %v3602, 1.0
  %v3615 = vmul.f32 %v3603, 0.5
  %v3616 = vmul.f32 %v3604, 0.5
  %v3617 = vmul.f32 %v3605, 0.5
  %v3618 = vmul.f32 %v3606, 0.5
  %v3619 = vmul.f32 %v3607, 0.5
  %v3620 = vmul.f32 %v3608, 0.5
  %v3621 = vmul.f32 %v3609, 0.5
  %v3622 = vmul.f32 %v3610, 0.5
  %v3623 = vmul.f32 %v3611, 0.5
  %v3624 = vmul.f32 %v3612, 0.5
  %v3625 = vmul.f32 %v3613, 0.5
  %v3626 = vmul.f32 %v3614, 0.5
  %v3627 = vtanh.pop %v3575
  %v3628 = vtanh.pop %v3576
  %v3629 = vtanh.pop %v3577
  %v3630 = vtanh.pop %v3578
  %v3631 = vmul.f32 %v3619, %v3192
  %v3632 = vmul.f32 %v3620, %v3193
  %v3633 = vmul.f32 %v3621, %v3194
  %v3634 = vmul.f32 %v3622, %v3195
  %v3635 = vmul.f32 %v3615, %v3627
  %v3636 = vmul.f32 %v3616, %v3628
  %v3637 = vmul.f32 %v3617, %v3629
  %v3638 = vmul.f32 %v3618, %v3630
  %v3639 = vadd.f32 %v3631, %v3635
  %v3640 = vadd.f32 %v3632, %v3636
  %v3641 = vadd.f32 %v3633, %v3637
  %v3642 = vadd.f32 %v3634, %v3638
  %v3643 = vtanh.pop %v3639
  %v3644 = vtanh.pop %v3640
  %v3645 = vtanh.pop %v3641
  %v3646 = vtanh.pop %v3642
  %v3647 = vmul.f32 %v3623, %v3643
  %v3648 = vmul.f32 %v3624, %v3644
  %v3649 = vmul.f32 %v3625, %v3645
  %v3650 = vmul.f32 %v3626, %v3646
  %3651 = vrot.lane.b32.xlu0 %v3429, 1
  %v3652 = vpop.permute.xlu0 %3651
  %3653 = vrot.lane.b32.xlu0 %v3430, 1
  %v3654 = vpop.permute.xlu0 %3653
  %3655 = vrot.lane.b32.xlu0 %v3431, 1
  %v3656 = vpop.permute.xlu0 %3655
  %3657 = vrot.lane.b32.xlu0 %v3432, 1
  %v3658 = vpop.permute.xlu0 %3657
  %v3659 = vmul.f32 %v3652, %v1320
  %v3660 = vmul.f32 %v3654, %v1320
  %v3661 = vmul.f32 %v3656, %v1320
  %v3662 = vmul.f32 %v3658, %v1320
  %3663 = vrot.lane.b32.xlu0 %v3429, 127
  %v3664 = vpop.permute.xlu0 %3663
  %3665 = vrot.lane.b32.xlu0 %v3430, 127
  %v3666 = vpop.permute.xlu0 %3665
  %3667 = vrot.lane.b32.xlu0 %v3431, 127
  %v3668 = vpop.permute.xlu0 %3667
  %3669 = vrot.lane.b32.xlu0 %v3432, 127
  %v3670 = vpop.permute.xlu0 %3669
  %v3671 = vmul.f32 %v3664, %v1338
  %v3672 = vmul.f32 %v3666, %v1338
  %v3673 = vmul.f32 %v3668, %v1338
  %v3674 = vmul.f32 %v3670, %v1338
  %3675 = vrot.lane.b32.xlu0 %v3647, 1
  %v3676 = vpop.permute.xlu0 %3675
  %3677 = vrot.lane.b32.xlu0 %v3648, 1
  %v3678 = vpop.permute.xlu0 %3677
  %3679 = vrot.lane.b32.xlu0 %v3649, 1
  %v3680 = vpop.permute.xlu0 %3679
  %3681 = vrot.lane.b32.xlu0 %v3650, 1
  %v3682 = vpop.permute.xlu0 %3681
  %v3683 = vmul.f32 %v3676, %v1320
  %v3684 = vmul.f32 %v3678, %v1320
  %v3685 = vmul.f32 %v3680, %v1320
  %v3686 = vmul.f32 %v3682, %v1320
  %3687 = vrot.lane.b32.xlu0 %v3647, 127
  %v3688 = vpop.permute.xlu0 %3687
  %3689 = vrot.lane.b32.xlu0 %v3648, 127
  %v3690 = vpop.permute.xlu0 %3689
  %3691 = vrot.lane.b32.xlu0 %v3649, 127
  %v3692 = vpop.permute.xlu0 %3691
  %3693 = vrot.lane.b32.xlu0 %v3650, 127
  %v3694 = vpop.permute.xlu0 %3693
  %v3695 = vmul.f32 %v3688, %v1338
  %v3696 = vmul.f32 %v3690, %v1338
  %v3697 = vmul.f32 %v3692, %v1338
  %v3698 = vmul.f32 %v3694, %v1338
  %v3699 = vpack.c.bf16 %v3684, %v3683
  %v3700 = vpack.c.bf16 %v3686, %v3685
  %v3701 = vpack.c.bf16 %v3648, %v3647
  %v3702 = vpack.c.bf16 %v3650, %v3649
  %v3703 = vpack.c.bf16 %v3696, %v3695
  %v3704 = vpack.c.bf16 %v3698, %v3697
  %v3705 = vpack.c.bf16 %v3660, %v3659
  %v3706 = vpack.c.bf16 %v3662, %v3661
  %v3707 = vpack.c.bf16 %v3430, %v3429
  %v3708 = vpack.c.bf16 %v3432, %v3431
  %v3709 = vpack.c.bf16 %v3672, %v3671
  %v3710 = vpack.c.bf16 %v3674, %v3673
  %3711 = vmatprep.subr.bf16.mxu0 0
  %3712 = vmatpush1.bf16.msra.mxu0 %v3699
  %3713 = vmatprep.subr.bf16.mxu0 0
  %3714 = vmatpush1.bf16.msra.mxu0 %v3700
  %3715 = vmatprep.subr.bf16.mxu0 0
  %3716 = vmatpush1.bf16.msra.mxu0 %v3701
  %3717 = vmatprep.subr.bf16.mxu0 0
  %3718 = vmatpush1.bf16.msra.mxu0 %v3702
  %3719 = vmatprep.subr.bf16.mxu0 0
  %3720 = vmatpush1.bf16.msra.mxu0 %v3703
  %3721 = vmatprep.subr.bf16.mxu0 0
  %3722 = vmatpush1.bf16.msra.mxu0 %v3704
  %3723 = vmatprep.subr.bf16.mxu0 0
  %3724 = vmatpush1.bf16.msra.mxu0 %v3705
  %3725 = vmatprep.subr.bf16.mxu0 0
  %3726 = vmatpush1.bf16.msra.mxu0 %v3706
  %3727 = vmatprep.subr.bf16.mxu0 0
  %3728 = vmatpush1.bf16.msra.mxu0 %v3707
  %3729 = vmatprep.subr.bf16.mxu0 0
  %3730 = vmatpush1.bf16.msra.mxu0 %v3708
  %3731 = vmatprep.subr.bf16.mxu0 0
  %3732 = vmatpush1.bf16.msra.mxu0 %v3709
  %3733 = vmatprep.subr.bf16.mxu0 0
  %3734 = vmatpush1.bf16.msra.mxu0 %v3710
  %3735 = vmatprep.subr.bf16.mxu0 0
  %3736 = vmatpush1.bf16.msra.mxu0 0
  %3737 = vmatprep.subr.bf16.mxu0 0
  %3738 = vmatpush1.bf16.msra.mxu0 0
  %3739 = vmatprep.subr.bf16.mxu0 0
  %3740 = vmatpush1.bf16.msra.mxu0 0
  %3741 = vmatprep.subr.bf16.mxu0 0
  %3742 = vmatpush1.bf16.msra.mxu0 0
  %3743 = vmatprep.mubr.bf16.mxu0 %v1454
  %3744 = vmatmul.mubr.bf16.gmra.mrb[0].mxu0 %v1428
  %v3745 = vpop.f32.mrb[0].mxu0
  %v3746 = vadd.f32 %v134, %v3745
  %v3747 = vpop.f32.mrb[0].mxu0
  %v3748 = vpop.f32.mrb[0].mxu0
  %v3749 = vadd.f32 %v139, %v3748
  %v3750 = vpop.f32.mrb[0].mxu0
  %3751 = vmatprep.mubr.bf16.mxu0 %v1457
  %3752 = vmatmul.mubr.bf16.gmra.mrb[0].mxu0 %v1430
  %v3753 = vpop.f32.mrb[0].mxu0
  %v3754 = vadd.f32 %v144, %v3753
  %v3755 = vpop.f32.mrb[0].mxu0
  %v3756 = vpop.f32.mrb[0].mxu0
  %v3757 = vadd.f32 %v149, %v3756
  %v3758 = vpop.f32.mrb[0].mxu0
  %3759 = vmatprep.mubr.bf16.mxu0 %v1460
  %3760 = vmatmul.mubr.bf16.gmra.mrb[0].mxu0 %v1432
  %v3761 = vpop.f32.mrb[0].mxu0
  %v3762 = vadd.f32 %v154, %v3761
  %v3763 = vpop.f32.mrb[0].mxu0
  %v3764 = vpop.f32.mrb[0].mxu0
  %v3765 = vadd.f32 %v159, %v3764
  %v3766 = vpop.f32.mrb[0].mxu0
  %3767 = vmatprep.mubr.bf16.mxu0 %v1463
  %3768 = vmatmul.mubr.bf16.gmra.mrb[0].mxu0 %v1434
  %v3769 = vpop.f32.mrb[0].mxu0
  %v3770 = vadd.f32 %v164, %v3769
  %v3771 = vpop.f32.mrb[0].mxu0
  %v3772 = vpop.f32.mrb[0].mxu0
  %v3773 = vadd.f32 %v169, %v3772
  %v3774 = vpop.f32.mrb[0].mxu0
  %3775 = vmatprep.mubr.bf16.mxu0 %v1466
  %3776 = vmatmul.mubr.bf16.gmra.mrb[0].mxu0 %v1436
  %v3777 = vpop.f32.mrb[0].mxu0
  %v3778 = vadd.f32 %v174, %v3777
  %v3779 = vpop.f32.mrb[0].mxu0
  %v3780 = vpop.f32.mrb[0].mxu0
  %v3781 = vadd.f32 %v179, %v3780
  %v3782 = vpop.f32.mrb[0].mxu0
  %3783 = vmatprep.mubr.bf16.mxu0 %v1469
  %3784 = vmatmul.mubr.bf16.gmra.mrb[0].mxu0 %v1438
  %v3785 = vpop.f32.mrb[0].mxu0
  %v3786 = vadd.f32 %v184, %v3785
  %v3787 = vpop.f32.mrb[0].mxu0
  %v3788 = vpop.f32.mrb[0].mxu0
  %v3789 = vadd.f32 %v189, %v3788
  %v3790 = vpop.f32.mrb[0].mxu0
  %3791 = vmatprep.mubr.bf16.mxu0 %v1472
  %3792 = vmatmul.mubr.bf16.gmra.mrb[0].mxu0 %v1440
  %v3793 = vpop.f32.mrb[0].mxu0
  %v3794 = vadd.f32 %v194, %v3793
  %v3795 = vpop.f32.mrb[0].mxu0
  %v3796 = vpop.f32.mrb[0].mxu0
  %v3797 = vadd.f32 %v199, %v3796
  %v3798 = vpop.f32.mrb[0].mxu0
  %3799 = vmatprep.mubr.bf16.mxu0 %v1475
  %3800 = vmatmul.mubr.bf16.gmra.mrb[0].mxu0 %v1442
  %v3801 = vpop.f32.mrb[0].mxu0
  %v3802 = vadd.f32 %v204, %v3801
  %v3803 = vpop.f32.mrb[0].mxu0
  %v3804 = vpop.f32.mrb[0].mxu0
  %v3805 = vadd.f32 %v209, %v3804
  %v3806 = vpop.f32.mrb[0].mxu0
  %3807 = vdwg.mxu0
  %v3808 = vmul.f32 %v3746, 0.5
  %v3809 = vmul.f32 %v3749, 0.5
  %v3810 = vmul.f32 %v3754, 0.5
  %v3811 = vmul.f32 %v3757, 0.5
  %v3812 = vmul.f32 %v3762, 0.5
  %v3813 = vmul.f32 %v3765, 0.5
  %v3814 = vmul.f32 %v3770, 0.5
  %v3815 = vmul.f32 %v3773, 0.5
  %v3816 = vmul.f32 %v3778, 0.5
  %v3817 = vmul.f32 %v3781, 0.5
  %v3818 = vmul.f32 %v3786, 0.5
  %v3819 = vmul.f32 %v3789, 0.5
  %v3820 = vtanh.pop %v3808
  %v3821 = vtanh.pop %v3809
  %v3822 = vtanh.pop %v3810
  %v3823 = vtanh.pop %v3811
  %v3824 = vtanh.pop %v3812
  %v3825 = vtanh.pop %v3813
  %v3826 = vtanh.pop %v3814
  %v3827 = vtanh.pop %v3815
  %v3828 = vtanh.pop %v3816
  %v3829 = vtanh.pop %v3817
  %v3830 = vtanh.pop %v3818
  %v3831 = vtanh.pop %v3819
  %v3832 = vadd.f32 %v3820, 1.0
  %v3833 = vadd.f32 %v3821, 1.0
  %v3834 = vadd.f32 %v3822, 1.0
  %v3835 = vadd.f32 %v3823, 1.0
  %v3836 = vadd.f32 %v3824, 1.0
  %v3837 = vadd.f32 %v3825, 1.0
  %v3838 = vadd.f32 %v3826, 1.0
  %v3839 = vadd.f32 %v3827, 1.0
  %v3840 = vadd.f32 %v3828, 1.0
  %v3841 = vadd.f32 %v3829, 1.0
  %v3842 = vadd.f32 %v3830, 1.0
  %v3843 = vadd.f32 %v3831, 1.0
  %v3844 = vmul.f32 %v3832, 0.5
  %v3845 = vmul.f32 %v3833, 0.5
  %v3846 = vmul.f32 %v3834, 0.5
  %v3847 = vmul.f32 %v3835, 0.5
  %v3848 = vmul.f32 %v3836, 0.5
  %v3849 = vmul.f32 %v3837, 0.5
  %v3850 = vmul.f32 %v3838, 0.5
  %v3851 = vmul.f32 %v3839, 0.5
  %v3852 = vmul.f32 %v3840, 0.5
  %v3853 = vmul.f32 %v3841, 0.5
  %v3854 = vmul.f32 %v3842, 0.5
  %v3855 = vmul.f32 %v3843, 0.5
  %v3856 = vtanh.pop %v3794
  %v3857 = vtanh.pop %v3797
  %v3858 = vtanh.pop %v3802
  %v3859 = vtanh.pop %v3805
  %v3860 = vmul.f32 %v3848, %v3421
  %v3861 = vmul.f32 %v3849, %v3422
  %v3862 = vmul.f32 %v3850, %v3423
  %v3863 = vmul.f32 %v3851, %v3424
  %v3864 = vmul.f32 %v3844, %v3856
  %v3865 = vmul.f32 %v3845, %v3857
  %v3866 = vmul.f32 %v3846, %v3858
  %v3867 = vmul.f32 %v3847, %v3859
  %v3868 = vadd.f32 %v3860, %v3864
  %v3869 = vadd.f32 %v3861, %v3865
  %v3870 = vadd.f32 %v3862, %v3866
  %v3871 = vadd.f32 %v3863, %v3867
  %v3872 = vtanh.pop %v3868
  %v3873 = vtanh.pop %v3869
  %v3874 = vtanh.pop %v3870
  %v3875 = vtanh.pop %v3871
  %v3876 = vmul.f32 %v3852, %v3872
  %v3877 = vmul.f32 %v3853, %v3873
  %v3878 = vmul.f32 %v3854, %v3874
  %v3879 = vmul.f32 %v3855, %v3875
  %s3880 = scalar_lea.vmem %s12, 160
  %3881 = vst [vmem:[%s3880] sm:$0xff] %v3876
  %3882 = vst [vmem:[%s3880 + $0x8] sm:$0xff] %v3877
  %3883 = vst [vmem:[%s3880 + $0x10] sm:$0xff] %v3878
  %3884 = vst [vmem:[%s3880 + $0x18] sm:$0xff] %v3879
  %v3885 = vmul.f32 %v3676, %v1012
  %v3886 = vmul.f32 %v3678, %v1012
  %v3887 = vmul.f32 %v3680, %v1012
  %v3888 = vmul.f32 %v3682, %v1012
  %v3889 = vmul.f32 %v3688, %v1030
  %v3890 = vmul.f32 %v3690, %v1030
  %v3891 = vmul.f32 %v3692, %v1030
  %v3892 = vmul.f32 %v3694, %v1030
  %v3893 = vld [vmem:[#allocation2 + $0x30] sm:$0xff]
  %v3894 = vld [vmem:[#allocation2 + $0x70] sm:$0xff]
  %v3895 = vld [vmem:[#allocation2 + $0xb0] sm:$0xff]
  %v3896 = vld [vmem:[#allocation2 + $0xf0] sm:$0xff]
  %v3897 = vld [vmem:[#allocation2 + $0x130] sm:$0xff]
  %v3898 = vld [vmem:[#allocation2 + $0x170] sm:$0xff]
  %v3899 = vld [vmem:[#allocation2 + $0x1b0] sm:$0xff]
  %v3900 = vld [vmem:[#allocation2 + $0x1f0] sm:$0xff]
  %v3901 = vld [vmem:[#allocation2 + $0x230] sm:$0xff]
  %v3902 = vld [vmem:[#allocation2 + $0x270] sm:$0xff]
  %v3903 = vld [vmem:[#allocation2 + $0x2b0] sm:$0xff]
  %v3904 = vld [vmem:[#allocation2 + $0x2f0] sm:$0xff]
  %v3905 = vld [vmem:[#allocation2 + $0x330] sm:$0xff]
  %v3906 = vld [vmem:[#allocation2 + $0x370] sm:$0xff]
  %v3907 = vld [vmem:[#allocation2 + $0x3b0] sm:$0xff]
  %v3908 = vld [vmem:[#allocation2 + $0x3f0] sm:$0xff]
  %v3909 = vpack.c.bf16 %v3886, %v3885
  %v3910 = vpack.c.bf16 %v3888, %v3887
  %v3911 = vpack.c.bf16 %v3890, %v3889
  %v3912 = vpack.c.bf16 %v3892, %v3891
  %3913 = vmatprep.subr.bf16.mxu0 0
  %3914 = vmatpush1.bf16.msra.mxu0 %v3909
  %3915 = vmatprep.subr.bf16.mxu0 0
  %3916 = vmatpush1.bf16.msra.mxu0 %v3910
  %3917 = vmatprep.subr.bf16.mxu0 0
  %3918 = vmatpush1.bf16.msra.mxu0 %v3701
  %3919 = vmatprep.subr.bf16.mxu0 0
  %3920 = vmatpush1.bf16.msra.mxu0 %v3702
  %3921 = vmatprep.subr.bf16.mxu0 0
  %3922 = vmatpush1.bf16.msra.mxu0 %v3911
  %3923 = vmatprep.subr.bf16.mxu0 0
  %3924 = vmatpush1.bf16.msra.mxu0 %v3912
  %3925 = vmatprep.subr.bf16.mxu0 0
  %3926 = vmatpush1.bf16.msra.mxu0 0
  %3927 = vmatprep.subr.bf16.mxu0 0
  %3928 = vmatpush1.bf16.msra.mxu0 0
  %3929 = vmatprep.subr.bf16.mxu0 0
  %3930 = vmatpush1.bf16.msra.mxu0 0
  %3931 = vmatprep.subr.bf16.mxu0 0
  %3932 = vmatpush1.bf16.msra.mxu0 0
  %3933 = vmatprep.subr.bf16.mxu0 0
  %3934 = vmatpush1.bf16.msra.mxu0 0
  %3935 = vmatprep.subr.bf16.mxu0 0
  %3936 = vmatpush1.bf16.msra.mxu0 0
  %3937 = vmatprep.subr.bf16.mxu0 0
  %3938 = vmatpush1.bf16.msra.mxu0 0
  %3939 = vmatprep.subr.bf16.mxu0 0
  %3940 = vmatpush1.bf16.msra.mxu0 0
  %3941 = vmatprep.subr.bf16.mxu0 0
  %3942 = vmatpush1.bf16.msra.mxu0 0
  %3943 = vmatprep.subr.bf16.mxu0 0
  %3944 = vmatpush1.bf16.msra.mxu0 0
  %3945 = vmatprep.mubr.bf16.mxu0 0
  %3946 = vmatmul.mubr.bf16.gmra.mrb[0].mxu0 %v1100
  %v3947 = vpop.f32.mrb[0].mxu0
  %v3948 = vadd.f32 0.0, %v3947
  %v3949 = vpop.f32.mrb[0].mxu0
  %v3950 = vpop.f32.mrb[0].mxu0
  %v3951 = vadd.f32 0.0, %v3950
  %v3952 = vpop.f32.mrb[0].mxu0
  %3953 = vmatprep.mubr.bf16.mxu0 0
  %3954 = vmatmul.mubr.bf16.gmra.mrb[0].mxu0 %v1103
  %v3955 = vpop.f32.mrb[0].mxu0
  %v3956 = vadd.f32 0.0, %v3955
  %v3957 = vpop.f32.mrb[0].mxu0
  %v3958 = vpop.f32.mrb[0].mxu0
  %v3959 = vadd.f32 0.0, %v3958
  %v3960 = vpop.f32.mrb[0].mxu0
  %3961 = vmatprep.mubr.bf16.mxu0 0
  %3962 = vmatmul.mubr.bf16.gmra.mrb[0].mxu0 %v1106
  %v3963 = vpop.f32.mrb[0].mxu0
  %v3964 = vadd.f32 0.0, %v3963
  %v3965 = vpop.f32.mrb[0].mxu0
  %v3966 = vpop.f32.mrb[0].mxu0
  %v3967 = vadd.f32 0.0, %v3966
  %v3968 = vpop.f32.mrb[0].mxu0
  %3969 = vmatprep.mubr.bf16.mxu0 0
  %3970 = vmatmul.mubr.bf16.gmra.mrb[0].mxu0 %v1109
  %v3971 = vpop.f32.mrb[0].mxu0
  %v3972 = vadd.f32 0.0, %v3971
  %v3973 = vpop.f32.mrb[0].mxu0
  %v3974 = vpop.f32.mrb[0].mxu0
  %v3975 = vadd.f32 0.0, %v3974
  %v3976 = vpop.f32.mrb[0].mxu0
  %3977 = vmatprep.mubr.bf16.mxu0 0
  %3978 = vmatmul.mubr.bf16.gmra.mrb[0].mxu0 %v1112
  %v3979 = vpop.f32.mrb[0].mxu0
  %v3980 = vadd.f32 0.0, %v3979
  %v3981 = vpop.f32.mrb[0].mxu0
  %v3982 = vpop.f32.mrb[0].mxu0
  %v3983 = vadd.f32 0.0, %v3982
  %v3984 = vpop.f32.mrb[0].mxu0
  %3985 = vmatprep.mubr.bf16.mxu0 0
  %3986 = vmatmul.mubr.bf16.gmra.mrb[0].mxu0 %v1115
  %v3987 = vpop.f32.mrb[0].mxu0
  %v3988 = vadd.f32 0.0, %v3987
  %v3989 = vpop.f32.mrb[0].mxu0
  %v3990 = vpop.f32.mrb[0].mxu0
  %v3991 = vadd.f32 0.0, %v3990
  %v3992 = vpop.f32.mrb[0].mxu0
  %3993 = vmatprep.mubr.bf16.mxu0 0
  %3994 = vmatmul.mubr.bf16.gmra.mrb[0].mxu0 %v1118
  %v3995 = vpop.f32.mrb[0].mxu0
  %v3996 = vadd.f32 0.0, %v3995
  %v3997 = vpop.f32.mrb[0].mxu0
  %v3998 = vpop.f32.mrb[0].mxu0
  %v3999 = vadd.f32 0.0, %v3998
  %v4000 = vpop.f32.mrb[0].mxu0
  %4001 = vmatprep.mubr.bf16.mxu0 0
  %4002 = vmatmul.mubr.bf16.gmra.mrb[0].mxu0 %v1121
  %v4003 = vpop.f32.mrb[0].mxu0
  %v4004 = vadd.f32 0.0, %v4003
  %v4005 = vpop.f32.mrb[0].mxu0
  %v4006 = vpop.f32.mrb[0].mxu0
  %v4007 = vadd.f32 0.0, %v4006
  %v4008 = vpop.f32.mrb[0].mxu0
  %4009 = vdwg.mxu0
  %v4010 = vadd.f32 %v3893, %v3948
  %v4011 = vadd.f32 %v3894, %v3951
  %v4012 = vadd.f32 %v3895, %v3956
  %v4013 = vadd.f32 %v3896, %v3959
  %v4014 = vadd.f32 %v3897, %v3964
  %v4015 = vadd.f32 %v3898, %v3967
  %v4016 = vadd.f32 %v3899, %v3972
  %v4017 = vadd.f32 %v3900, %v3975
  %v4018 = vadd.f32 %v3901, %v3980
  %v4019 = vadd.f32 %v3902, %v3983
  %v4020 = vadd.f32 %v3903, %v3988
  %v4021 = vadd.f32 %v3904, %v3991
  %v4022 = vadd.f32 %v3905, %v3996
  %v4023 = vadd.f32 %v3906, %v3999
  %v4024 = vadd.f32 %v3907, %v4004
  %v4025 = vadd.f32 %v3908, %v4007
  %v4026 = vmul.f32 %v4010, 0.5
  %v4027 = vmul.f32 %v4011, 0.5
  %v4028 = vmul.f32 %v4012, 0.5
  %v4029 = vmul.f32 %v4013, 0.5
  %v4030 = vmul.f32 %v4014, 0.5
  %v4031 = vmul.f32 %v4015, 0.5
  %v4032 = vmul.f32 %v4016, 0.5
  %v4033 = vmul.f32 %v4017, 0.5
  %v4034 = vmul.f32 %v4018, 0.5
  %v4035 = vmul.f32 %v4019, 0.5
  %v4036 = vmul.f32 %v4020, 0.5
  %v4037 = vmul.f32 %v4021, 0.5
  %v4038 = vtanh.pop %v4026
  %v4039 = vtanh.pop %v4027
  %v4040 = vtanh.pop %v4028
  %v4041 = vtanh.pop %v4029
  %v4042 = vtanh.pop %v4030
  %v4043 = vtanh.pop %v4031
  %v4044 = vtanh.pop %v4032
  %v4045 = vtanh.pop %v4033
  %v4046 = vtanh.pop %v4034
  %v4047 = vtanh.pop %v4035
  %v4048 = vtanh.pop %v4036
  %v4049 = vtanh.pop %v4037
  %v4050 = vadd.f32 %v4038, 1.0
  %v4051 = vadd.f32 %v4039, 1.0
  %v4052 = vadd.f32 %v4040, 1.0
  %v4053 = vadd.f32 %v4041, 1.0
  %v4054 = vadd.f32 %v4042, 1.0
  %v4055 = vadd.f32 %v4043, 1.0
  %v4056 = vadd.f32 %v4044, 1.0
  %v4057 = vadd.f32 %v4045, 1.0
  %v4058 = vadd.f32 %v4046, 1.0
  %v4059 = vadd.f32 %v4047, 1.0
  %v4060 = vadd.f32 %v4048, 1.0
  %v4061 = vadd.f32 %v4049, 1.0
  %v4062 = vmul.f32 %v4050, 0.5
  %v4063 = vmul.f32 %v4051, 0.5
  %v4064 = vmul.f32 %v4052, 0.5
  %v4065 = vmul.f32 %v4053, 0.5
  %v4066 = vmul.f32 %v4054, 0.5
  %v4067 = vmul.f32 %v4055, 0.5
  %v4068 = vmul.f32 %v4056, 0.5
  %v4069 = vmul.f32 %v4057, 0.5
  %v4070 = vmul.f32 %v4058, 0.5
  %v4071 = vmul.f32 %v4059, 0.5
  %v4072 = vmul.f32 %v4060, 0.5
  %v4073 = vmul.f32 %v4061, 0.5
  %v4074 = vtanh.pop %v4022
  %v4075 = vtanh.pop %v4023
  %v4076 = vtanh.pop %v4024
  %v4077 = vtanh.pop %v4025
  %v4078 = vmul.f32 %v4066, %v3639
  %v4079 = vmul.f32 %v4067, %v3640
  %v4080 = vmul.f32 %v4068, %v3641
  %v4081 = vmul.f32 %v4069, %v3642
  %v4082 = vmul.f32 %v4062, %v4074
  %v4083 = vmul.f32 %v4063, %v4075
  %v4084 = vmul.f32 %v4064, %v4076
  %v4085 = vmul.f32 %v4065, %v4077
  %v4086 = vadd.f32 %v4078, %v4082
  %v4087 = vadd.f32 %v4079, %v4083
  %v4088 = vadd.f32 %v4080, %v4084
  %v4089 = vadd.f32 %v4081, %v4085
  %v4090 = vtanh.pop %v4086
  %v4091 = vtanh.pop %v4087
  %v4092 = vtanh.pop %v4088
  %v4093 = vtanh.pop %v4089
  %v4094 = vmul.f32 %v4070, %v4090
  %v4095 = vmul.f32 %v4071, %v4091
  %v4096 = vmul.f32 %v4072, %v4092
  %v4097 = vmul.f32 %v4073, %v4093
  %4098 = vrot.lane.b32.xlu0 %v3876, 1
  %v4099 = vpop.permute.xlu0 %4098
  %4100 = vrot.lane.b32.xlu0 %v3877, 1
  %v4101 = vpop.permute.xlu0 %4100
  %4102 = vrot.lane.b32.xlu0 %v3878, 1
  %v4103 = vpop.permute.xlu0 %4102
  %4104 = vrot.lane.b32.xlu0 %v3879, 1
  %v4105 = vpop.permute.xlu0 %4104
  %v4106 = vmul.f32 %v4099, %v1320
  %v4107 = vmul.f32 %v4101, %v1320
  %v4108 = vmul.f32 %v4103, %v1320
  %v4109 = vmul.f32 %v4105, %v1320
  %4110 = vrot.lane.b32.xlu0 %v3876, 127
  %v4111 = vpop.permute.xlu0 %4110
  %4112 = vrot.lane.b32.xlu0 %v3877, 127
  %v4113 = vpop.permute.xlu0 %4112
  %4114 = vrot.lane.b32.xlu0 %v3878, 127
  %v4115 = vpop.permute.xlu0 %4114
  %4116 = vrot.lane.b32.xlu0 %v3879, 127
  %v4117 = vpop.permute.xlu0 %4116
  %v4118 = vmul.f32 %v4111, %v1338
  %v4119 = vmul.f32 %v4113, %v1338
  %v4120 = vmul.f32 %v4115, %v1338
  %v4121 = vmul.f32 %v4117, %v1338
  %4122 = vrot.lane.b32.xlu0 %v4094, 1
  %v4123 = vpop.permute.xlu0 %4122
  %4124 = vrot.lane.b32.xlu0 %v4095, 1
  %v4125 = vpop.permute.xlu0 %4124
  %4126 = vrot.lane.b32.xlu0 %v4096, 1
  %v4127 = vpop.permute.xlu0 %4126
  %4128 = vrot.lane.b32.xlu0 %v4097, 1
  %v4129 = vpop.permute.xlu0 %4128
  %v4130 = vmul.f32 %v4123, %v1320
  %v4131 = vmul.f32 %v4125, %v1320
  %v4132 = vmul.f32 %v4127, %v1320
  %v4133 = vmul.f32 %v4129, %v1320
  %4134 = vrot.lane.b32.xlu0 %v4094, 127
  %v4135 = vpop.permute.xlu0 %4134
  %4136 = vrot.lane.b32.xlu0 %v4095, 127
  %v4137 = vpop.permute.xlu0 %4136
  %4138 = vrot.lane.b32.xlu0 %v4096, 127
  %v4139 = vpop.permute.xlu0 %4138
  %4140 = vrot.lane.b32.xlu0 %v4097, 127
  %v4141 = vpop.permute.xlu0 %4140
  %v4142 = vmul.f32 %v4135, %v1338
  %v4143 = vmul.f32 %v4137, %v1338
  %v4144 = vmul.f32 %v4139, %v1338
  %v4145 = vmul.f32 %v4141, %v1338
  %v4146 = vpack.c.bf16 %v4131, %v4130
  %v4147 = vpack.c.bf16 %v4133, %v4132
  %v4148 = vpack.c.bf16 %v4095, %v4094
  %v4149 = vpack.c.bf16 %v4097, %v4096
  %v4150 = vpack.c.bf16 %v4143, %v4142
  %v4151 = vpack.c.bf16 %v4145, %v4144
  %v4152 = vpack.c.bf16 %v4107, %v4106
  %v4153 = vpack.c.bf16 %v4109, %v4108
  %v4154 = vpack.c.bf16 %v3877, %v3876
  %v4155 = vpack.c.bf16 %v3879, %v3878
  %v4156 = vpack.c.bf16 %v4119, %v4118
  %v4157 = vpack.c.bf16 %v4121, %v4120
  %4158 = vmatprep.subr.bf16.mxu0 0
  %4159 = vmatpush1.bf16.msra.mxu0 %v4146
  %4160 = vmatprep.subr.bf16.mxu0 0
  %4161 = vmatpush1.bf16.msra.mxu0 %v4147
  %4162 = vmatprep.subr.bf16.mxu0 0
  %4163 = vmatpush1.bf16.msra.mxu0 %v4148
  %4164 = vmatprep.subr.bf16.mxu0 0
  %4165 = vmatpush1.bf16.msra.mxu0 %v4149
  %4166 = vmatprep.subr.bf16.mxu0 0
  %4167 = vmatpush1.bf16.msra.mxu0 %v4150
  %4168 = vmatprep.subr.bf16.mxu0 0
  %4169 = vmatpush1.bf16.msra.mxu0 %v4151
  %4170 = vmatprep.subr.bf16.mxu0 0
  %4171 = vmatpush1.bf16.msra.mxu0 %v4152
  %4172 = vmatprep.subr.bf16.mxu0 0
  %4173 = vmatpush1.bf16.msra.mxu0 %v4153
  %4174 = vmatprep.subr.bf16.mxu0 0
  %4175 = vmatpush1.bf16.msra.mxu0 %v4154
  %4176 = vmatprep.subr.bf16.mxu0 0
  %4177 = vmatpush1.bf16.msra.mxu0 %v4155
  %4178 = vmatprep.subr.bf16.mxu0 0
  %4179 = vmatpush1.bf16.msra.mxu0 %v4156
  %4180 = vmatprep.subr.bf16.mxu0 0
  %4181 = vmatpush1.bf16.msra.mxu0 %v4157
  %4182 = vmatprep.subr.bf16.mxu0 0
  %4183 = vmatpush1.bf16.msra.mxu0 0
  %4184 = vmatprep.subr.bf16.mxu0 0
  %4185 = vmatpush1.bf16.msra.mxu0 0
  %4186 = vmatprep.subr.bf16.mxu0 0
  %4187 = vmatpush1.bf16.msra.mxu0 0
  %4188 = vmatprep.subr.bf16.mxu0 0
  %4189 = vmatpush1.bf16.msra.mxu0 0
  %4190 = vmatprep.mubr.bf16.mxu0 %v1454
  %4191 = vmatmul.mubr.bf16.gmra.mrb[0].mxu0 %v1428
  %v4192 = vpop.f32.mrb[0].mxu0
  %v4193 = vadd.f32 %v134, %v4192
  %v4194 = vpop.f32.mrb[0].mxu0
  %v4195 = vpop.f32.mrb[0].mxu0
  %v4196 = vadd.f32 %v139, %v4195
  %v4197 = vpop.f32.mrb[0].mxu0
  %4198 = vmatprep.mubr.bf16.mxu0 %v1457
  %4199 = vmatmul.mubr.bf16.gmra.mrb[0].mxu0 %v1430
  %v4200 = vpop.f32.mrb[0].mxu0
  %v4201 = vadd.f32 %v144, %v4200
  %v4202 = vpop.f32.mrb[0].mxu0
  %v4203 = vpop.f32.mrb[0].mxu0
  %v4204 = vadd.f32 %v149, %v4203
  %v4205 = vpop.f32.mrb[0].mxu0
  %4206 = vmatprep.mubr.bf16.mxu0 %v1460
  %4207 = vmatmul.mubr.bf16.gmra.mrb[0].mxu0 %v1432
  %v4208 = vpop.f32.mrb[0].mxu0
  %v4209 = vadd.f32 %v154, %v4208
  %v4210 = vpop.f32.mrb[0].mxu0
  %v4211 = vpop.f32.mrb[0].mxu0
  %v4212 = vadd.f32 %v159, %v4211
  %v4213 = vpop.f32.mrb[0].mxu0
  %4214 = vmatprep.mubr.bf16.mxu0 %v1463
  %4215 = vmatmul.mubr.bf16.gmra.mrb[0].mxu0 %v1434
  %v4216 = vpop.f32.mrb[0].mxu0
  %v4217 = vadd.f32 %v164, %v4216
  %v4218 = vpop.f32.mrb[0].mxu0
  %v4219 = vpop.f32.mrb[0].mxu0
  %v4220 = vadd.f32 %v169, %v4219
  %v4221 = vpop.f32.mrb[0].mxu0
  %4222 = vmatprep.mubr.bf16.mxu0 %v1466
  %4223 = vmatmul.mubr.bf16.gmra.mrb[0].mxu0 %v1436
  %v4224 = vpop.f32.mrb[0].mxu0
  %v4225 = vadd.f32 %v174, %v4224
  %v4226 = vpop.f32.mrb[0].mxu0
  %v4227 = vpop.f32.mrb[0].mxu0
  %v4228 = vadd.f32 %v179, %v4227
  %v4229 = vpop.f32.mrb[0].mxu0
  %4230 = vmatprep.mubr.bf16.mxu0 %v1469
  %4231 = vmatmul.mubr.bf16.gmra.mrb[0].mxu0 %v1438
  %v4232 = vpop.f32.mrb[0].mxu0
  %v4233 = vadd.f32 %v184, %v4232
  %v4234 = vpop.f32.mrb[0].mxu0
  %v4235 = vpop.f32.mrb[0].mxu0
  %v4236 = vadd.f32 %v189, %v4235
  %v4237 = vpop.f32.mrb[0].mxu0
  %4238 = vmatprep.mubr.bf16.mxu0 %v1472
  %4239 = vmatmul.mubr.bf16.gmra.mrb[0].mxu0 %v1440
  %v4240 = vpop.f32.mrb[0].mxu0
  %v4241 = vadd.f32 %v194, %v4240
  %v4242 = vpop.f32.mrb[0].mxu0
  %v4243 = vpop.f32.mrb[0].mxu0
  %v4244 = vadd.f32 %v199, %v4243
  %v4245 = vpop.f32.mrb[0].mxu0
  %4246 = vmatprep.mubr.bf16.mxu0 %v1475
  %4247 = vmatmul.mubr.bf16.gmra.mrb[0].mxu0 %v1442
  %v4248 = vpop.f32.mrb[0].mxu0
  %v4249 = vadd.f32 %v204, %v4248
  %v4250 = vpop.f32.mrb[0].mxu0
  %v4251 = vpop.f32.mrb[0].mxu0
  %v4252 = vadd.f32 %v209, %v4251
  %v4253 = vpop.f32.mrb[0].mxu0
  %4254 = vdwg.mxu0
  %v4255 = vmul.f32 %v4193, 0.5
  %v4256 = vmul.f32 %v4196, 0.5
  %v4257 = vmul.f32 %v4201, 0.5
  %v4258 = vmul.f32 %v4204, 0.5
  %v4259 = vmul.f32 %v4209, 0.5
  %v4260 = vmul.f32 %v4212, 0.5
  %v4261 = vmul.f32 %v4217, 0.5
  %v4262 = vmul.f32 %v4220, 0.5
  %v4263 = vmul.f32 %v4225, 0.5
  %v4264 = vmul.f32 %v4228, 0.5
  %v4265 = vmul.f32 %v4233, 0.5
  %v4266 = vmul.f32 %v4236, 0.5
  %v4267 = vtanh.pop %v4255
  %v4268 = vtanh.pop %v4256
  %v4269 = vtanh.pop %v4257
  %v4270 = vtanh.pop %v4258
  %v4271 = vtanh.pop %v4259
  %v4272 = vtanh.pop %v4260
  %v4273 = vtanh.pop %v4261
  %v4274 = vtanh.pop %v4262
  %v4275 = vtanh.pop %v4263
  %v4276 = vtanh.pop %v4264
  %v4277 = vtanh.pop %v4265
  %v4278 = vtanh.pop %v4266
  %v4279 = vadd.f32 %v4267, 1.0
  %v4280 = vadd.f32 %v4268, 1.0
  %v4281 = vadd.f32 %v4269, 1.0
  %v4282 = vadd.f32 %v4270, 1.0
  %v4283 = vadd.f32 %v4271, 1.0
  %v4284 = vadd.f32 %v4272, 1.0
  %v4285 = vadd.f32 %v4273, 1.0
  %v4286 = vadd.f32 %v4274, 1.0
  %v4287 = vadd.f32 %v4275, 1.0
  %v4288 = vadd.f32 %v4276, 1.0
  %v4289 = vadd.f32 %v4277, 1.0
  %v4290 = vadd.f32 %v4278, 1.0
  %v4291 = vmul.f32 %v4279, 0.5
  %v4292 = vmul.f32 %v4280, 0.5
  %v4293 = vmul.f32 %v4281, 0.5
  %v4294 = vmul.f32 %v4282, 0.5
  %v4295 = vmul.f32 %v4283, 0.5
  %v4296 = vmul.f32 %v4284, 0.5
  %v4297 = vmul.f32 %v4285, 0.5
  %v4298 = vmul.f32 %v4286, 0.5
  %v4299 = vmul.f32 %v4287, 0.5
  %v4300 = vmul.f32 %v4288, 0.5
  %v4301 = vmul.f32 %v4289, 0.5
  %v4302 = vmul.f32 %v4290, 0.5
  %v4303 = vtanh.pop %v4241
  %v4304 = vtanh.pop %v4244
  %v4305 = vtanh.pop %v4249
  %v4306 = vtanh.pop %v4252
  %v4307 = vmul.f32 %v4295, %v3868
  %v4308 = vmul.f32 %v4296, %v3869
  %v4309 = vmul.f32 %v4297, %v3870
  %v4310 = vmul.f32 %v4298, %v3871
  %v4311 = vmul.f32 %v4291, %v4303
  %v4312 = vmul.f32 %v4292, %v4304
  %v4313 = vmul.f32 %v4293, %v4305
  %v4314 = vmul.f32 %v4294, %v4306
  %v4315 = vadd.f32 %v4307, %v4311
  %v4316 = vadd.f32 %v4308, %v4312
  %v4317 = vadd.f32 %v4309, %v4313
  %v4318 = vadd.f32 %v4310, %v4314
  %v4319 = vtanh.pop %v4315
  %v4320 = vtanh.pop %v4316
  %v4321 = vtanh.pop %v4317
  %v4322 = vtanh.pop %v4318
  %v4323 = vmul.f32 %v4299, %v4319
  %v4324 = vmul.f32 %v4300, %v4320
  %v4325 = vmul.f32 %v4301, %v4321
  %v4326 = vmul.f32 %v4302, %v4322
  %s4327 = scalar_lea.vmem %s12, 192
  %4328 = vst [vmem:[%s4327] sm:$0xff] %v4323
  %4329 = vst [vmem:[%s4327 + $0x8] sm:$0xff] %v4324
  %4330 = vst [vmem:[%s4327 + $0x10] sm:$0xff] %v4325
  %4331 = vst [vmem:[%s4327 + $0x18] sm:$0xff] %v4326
  %v4332 = vmul.f32 %v4123, %v1012
  %v4333 = vmul.f32 %v4125, %v1012
  %v4334 = vmul.f32 %v4127, %v1012
  %v4335 = vmul.f32 %v4129, %v1012
  %v4336 = vmul.f32 %v4135, %v1030
  %v4337 = vmul.f32 %v4137, %v1030
  %v4338 = vmul.f32 %v4139, %v1030
  %v4339 = vmul.f32 %v4141, %v1030
  %v4340 = vld [vmem:[#allocation2 + $0x38] sm:$0xff]
  %v4341 = vld [vmem:[#allocation2 + $0x78] sm:$0xff]
  %v4342 = vld [vmem:[#allocation2 + $0xb8] sm:$0xff]
  %v4343 = vld [vmem:[#allocation2 + $0xf8] sm:$0xff]
  %v4344 = vld [vmem:[#allocation2 + $0x138] sm:$0xff]
  %v4345 = vld [vmem:[#allocation2 + $0x178] sm:$0xff]
  %v4346 = vld [vmem:[#allocation2 + $0x1b8] sm:$0xff]
  %v4347 = vld [vmem:[#allocation2 + $0x1f8] sm:$0xff]
  %v4348 = vld [vmem:[#allocation2 + $0x238] sm:$0xff]
  %v4349 = vld [vmem:[#allocation2 + $0x278] sm:$0xff]
  %v4350 = vld [vmem:[#allocation2 + $0x2b8] sm:$0xff]
  %v4351 = vld [vmem:[#allocation2 + $0x2f8] sm:$0xff]
  %v4352 = vld [vmem:[#allocation2 + $0x338] sm:$0xff]
  %v4353 = vld [vmem:[#allocation2 + $0x378] sm:$0xff]
  %v4354 = vld [vmem:[#allocation2 + $0x3b8] sm:$0xff]
  %v4355 = vld [vmem:[#allocation2 + $0x3f8] sm:$0xff]
  %v4356 = vpack.c.bf16 %v4333, %v4332
  %v4357 = vpack.c.bf16 %v4335, %v4334
  %v4358 = vpack.c.bf16 %v4337, %v4336
  %v4359 = vpack.c.bf16 %v4339, %v4338
  %4360 = vmatprep.subr.bf16.mxu0 0
  %4361 = vmatpush1.bf16.msra.mxu0 %v4356
  %4362 = vmatprep.subr.bf16.mxu0 0
  %4363 = vmatpush1.bf16.msra.mxu0 %v4357
  %4364 = vmatprep.subr.bf16.mxu0 0
  %4365 = vmatpush1.bf16.msra.mxu0 %v4148
  %4366 = vmatprep.subr.bf16.mxu0 0
  %4367 = vmatpush1.bf16.msra.mxu0 %v4149
  %4368 = vmatprep.subr.bf16.mxu0 0
  %4369 = vmatpush1.bf16.msra.mxu0 %v4358
  %4370 = vmatprep.subr.bf16.mxu0 0
  %4371 = vmatpush1.bf16.msra.mxu0 %v4359
  %4372 = vmatprep.subr.bf16.mxu0 0
  %4373 = vmatpush1.bf16.msra.mxu0 0
  %4374 = vmatprep.subr.bf16.mxu0 0
  %4375 = vmatpush1.bf16.msra.mxu0 0
  %4376 = vmatprep.subr.bf16.mxu0 0
  %4377 = vmatpush1.bf16.msra.mxu0 0
  %4378 = vmatprep.subr.bf16.mxu0 0
  %4379 = vmatpush1.bf16.msra.mxu0 0
  %4380 = vmatprep.subr.bf16.mxu0 0
  %4381 = vmatpush1.bf16.msra.mxu0 0
  %4382 = vmatprep.subr.bf16.mxu0 0
  %4383 = vmatpush1.bf16.msra.mxu0 0
  %4384 = vmatprep.subr.bf16.mxu0 0
  %4385 = vmatpush1.bf16.msra.mxu0 0
  %4386 = vmatprep.subr.bf16.mxu0 0
  %4387 = vmatpush1.bf16.msra.mxu0 0
  %4388 = vmatprep.subr.bf16.mxu0 0
  %4389 = vmatpush1.bf16.msra.mxu0 0
  %4390 = vmatprep.subr.bf16.mxu0 0
  %4391 = vmatpush1.bf16.msra.mxu0 0
  %4392 = vmatprep.mubr.bf16.mxu0 0
  %4393 = vmatmul.mubr.bf16.gmra.mrb[0].mxu0 %v1100
  %v4394 = vpop.f32.mrb[0].mxu0
  %v4395 = vadd.f32 0.0, %v4394
  %v4396 = vpop.f32.mrb[0].mxu0
  %v4397 = vpop.f32.mrb[0].mxu0
  %v4398 = vadd.f32 0.0, %v4397
  %v4399 = vpop.f32.mrb[0].mxu0
  %4400 = vmatprep.mubr.bf16.mxu0 0
  %4401 = vmatmul.mubr.bf16.gmra.mrb[0].mxu0 %v1103
  %v4402 = vpop.f32.mrb[0].mxu0
  %v4403 = vadd.f32 0.0, %v4402
  %v4404 = vpop.f32.mrb[0].mxu0
  %v4405 = vpop.f32.mrb[0].mxu0
  %v4406 = vadd.f32 0.0, %v4405
  %v4407 = vpop.f32.mrb[0].mxu0
  %4408 = vmatprep.mubr.bf16.mxu0 0
  %4409 = vmatmul.mubr.bf16.gmra.mrb[0].mxu0 %v1106
  %v4410 = vpop.f32.mrb[0].mxu0
  %v4411 = vadd.f32 0.0, %v4410
  %v4412 = vpop.f32.mrb[0].mxu0
  %v4413 = vpop.f32.mrb[0].mxu0
  %v4414 = vadd.f32 0.0, %v4413
  %v4415 = vpop.f32.mrb[0].mxu0
  %4416 = vmatprep.mubr.bf16.mxu0 0
  %4417 = vmatmul.mubr.bf16.gmra.mrb[0].mxu0 %v1109
  %v4418 = vpop.f32.mrb[0].mxu0
  %v4419 = vadd.f32 0.0, %v4418
  %v4420 = vpop.f32.mrb[0].mxu0
  %v4421 = vpop.f32.mrb[0].mxu0
  %v4422 = vadd.f32 0.0, %v4421
  %v4423 = vpop.f32.mrb[0].mxu0
  %4424 = vmatprep.mubr.bf16.mxu0 0
  %4425 = vmatmul.mubr.bf16.gmra.mrb[0].mxu0 %v1112
  %v4426 = vpop.f32.mrb[0].mxu0
  %v4427 = vadd.f32 0.0, %v4426
  %v4428 = vpop.f32.mrb[0].mxu0
  %v4429 = vpop.f32.mrb[0].mxu0
  %v4430 = vadd.f32 0.0, %v4429
  %v4431 = vpop.f32.mrb[0].mxu0
  %4432 = vmatprep.mubr.bf16.mxu0 0
  %4433 = vmatmul.mubr.bf16.gmra.mrb[0].mxu0 %v1115
  %v4434 = vpop.f32.mrb[0].mxu0
  %v4435 = vadd.f32 0.0, %v4434
  %v4436 = vpop.f32.mrb[0].mxu0
  %v4437 = vpop.f32.mrb[0].mxu0
  %v4438 = vadd.f32 0.0, %v4437
  %v4439 = vpop.f32.mrb[0].mxu0
  %4440 = vmatprep.mubr.bf16.mxu0 0
  %4441 = vmatmul.mubr.bf16.gmra.mrb[0].mxu0 %v1118
  %v4442 = vpop.f32.mrb[0].mxu0
  %v4443 = vadd.f32 0.0, %v4442
  %v4444 = vpop.f32.mrb[0].mxu0
  %v4445 = vpop.f32.mrb[0].mxu0
  %v4446 = vadd.f32 0.0, %v4445
  %v4447 = vpop.f32.mrb[0].mxu0
  %4448 = vmatprep.mubr.bf16.mxu0 0
  %4449 = vmatmul.mubr.bf16.gmra.mrb[0].mxu0 %v1121
  %v4450 = vpop.f32.mrb[0].mxu0
  %v4451 = vadd.f32 0.0, %v4450
  %v4452 = vpop.f32.mrb[0].mxu0
  %v4453 = vpop.f32.mrb[0].mxu0
  %v4454 = vadd.f32 0.0, %v4453
  %v4455 = vpop.f32.mrb[0].mxu0
  %4456 = vdwg.mxu0
  %v4457 = vadd.f32 %v4340, %v4395
  %v4458 = vadd.f32 %v4341, %v4398
  %v4459 = vadd.f32 %v4342, %v4403
  %v4460 = vadd.f32 %v4343, %v4406
  %v4461 = vadd.f32 %v4344, %v4411
  %v4462 = vadd.f32 %v4345, %v4414
  %v4463 = vadd.f32 %v4346, %v4419
  %v4464 = vadd.f32 %v4347, %v4422
  %v4465 = vadd.f32 %v4348, %v4427
  %v4466 = vadd.f32 %v4349, %v4430
  %v4467 = vadd.f32 %v4350, %v4435
  %v4468 = vadd.f32 %v4351, %v4438
  %v4469 = vadd.f32 %v4352, %v4443
  %v4470 = vadd.f32 %v4353, %v4446
  %v4471 = vadd.f32 %v4354, %v4451
  %v4472 = vadd.f32 %v4355, %v4454
  %v4473 = vmul.f32 %v4457, 0.5
  %v4474 = vmul.f32 %v4458, 0.5
  %v4475 = vmul.f32 %v4459, 0.5
  %v4476 = vmul.f32 %v4460, 0.5
  %v4477 = vmul.f32 %v4461, 0.5
  %v4478 = vmul.f32 %v4462, 0.5
  %v4479 = vmul.f32 %v4463, 0.5
  %v4480 = vmul.f32 %v4464, 0.5
  %v4481 = vmul.f32 %v4465, 0.5
  %v4482 = vmul.f32 %v4466, 0.5
  %v4483 = vmul.f32 %v4467, 0.5
  %v4484 = vmul.f32 %v4468, 0.5
  %v4485 = vtanh.pop %v4473
  %v4486 = vtanh.pop %v4474
  %v4487 = vtanh.pop %v4475
  %v4488 = vtanh.pop %v4476
  %v4489 = vtanh.pop %v4477
  %v4490 = vtanh.pop %v4478
  %v4491 = vtanh.pop %v4479
  %v4492 = vtanh.pop %v4480
  %v4493 = vtanh.pop %v4481
  %v4494 = vtanh.pop %v4482
  %v4495 = vtanh.pop %v4483
  %v4496 = vtanh.pop %v4484
  %v4497 = vadd.f32 %v4485, 1.0
  %v4498 = vadd.f32 %v4486, 1.0
  %v4499 = vadd.f32 %v4487, 1.0
  %v4500 = vadd.f32 %v4488, 1.0
  %v4501 = vadd.f32 %v4489, 1.0
  %v4502 = vadd.f32 %v4490, 1.0
  %v4503 = vadd.f32 %v4491, 1.0
  %v4504 = vadd.f32 %v4492, 1.0
  %v4505 = vadd.f32 %v4493, 1.0
  %v4506 = vadd.f32 %v4494, 1.0
  %v4507 = vadd.f32 %v4495, 1.0
  %v4508 = vadd.f32 %v4496, 1.0
  %v4509 = vmul.f32 %v4497, 0.5
  %v4510 = vmul.f32 %v4498, 0.5
  %v4511 = vmul.f32 %v4499, 0.5
  %v4512 = vmul.f32 %v4500, 0.5
  %v4513 = vmul.f32 %v4501, 0.5
  %v4514 = vmul.f32 %v4502, 0.5
  %v4515 = vmul.f32 %v4503, 0.5
  %v4516 = vmul.f32 %v4504, 0.5
  %v4517 = vmul.f32 %v4505, 0.5
  %v4518 = vmul.f32 %v4506, 0.5
  %v4519 = vmul.f32 %v4507, 0.5
  %v4520 = vmul.f32 %v4508, 0.5
  %v4521 = vtanh.pop %v4469
  %v4522 = vtanh.pop %v4470
  %v4523 = vtanh.pop %v4471
  %v4524 = vtanh.pop %v4472
  %v4525 = vmul.f32 %v4513, %v4086
  %v4526 = vmul.f32 %v4514, %v4087
  %v4527 = vmul.f32 %v4515, %v4088
  %v4528 = vmul.f32 %v4516, %v4089
  %v4529 = vmul.f32 %v4509, %v4521
  %v4530 = vmul.f32 %v4510, %v4522
  %v4531 = vmul.f32 %v4511, %v4523
  %v4532 = vmul.f32 %v4512, %v4524
  %v4533 = vadd.f32 %v4525, %v4529
  %v4534 = vadd.f32 %v4526, %v4530
  %v4535 = vadd.f32 %v4527, %v4531
  %v4536 = vadd.f32 %v4528, %v4532
  %v4537 = vtanh.pop %v4533
  %v4538 = vtanh.pop %v4534
  %v4539 = vtanh.pop %v4535
  %v4540 = vtanh.pop %v4536
  %v4541 = vmul.f32 %v4517, %v4537
  %v4542 = vmul.f32 %v4518, %v4538
  %v4543 = vmul.f32 %v4519, %v4539
  %v4544 = vmul.f32 %v4520, %v4540
  %4545 = vrot.lane.b32.xlu0 %v4323, 1
  %v4546 = vpop.permute.xlu0 %4545
  %4547 = vrot.lane.b32.xlu0 %v4324, 1
  %v4548 = vpop.permute.xlu0 %4547
  %4549 = vrot.lane.b32.xlu0 %v4325, 1
  %v4550 = vpop.permute.xlu0 %4549
  %4551 = vrot.lane.b32.xlu0 %v4326, 1
  %v4552 = vpop.permute.xlu0 %4551
  %v4553 = vmul.f32 %v4546, %v1320
  %v4554 = vmul.f32 %v4548, %v1320
  %v4555 = vmul.f32 %v4550, %v1320
  %v4556 = vmul.f32 %v4552, %v1320
  %4557 = vrot.lane.b32.xlu0 %v4323, 127
  %v4558 = vpop.permute.xlu0 %4557
  %4559 = vrot.lane.b32.xlu0 %v4324, 127
  %v4560 = vpop.permute.xlu0 %4559
  %4561 = vrot.lane.b32.xlu0 %v4325, 127
  %v4562 = vpop.permute.xlu0 %4561
  %4563 = vrot.lane.b32.xlu0 %v4326, 127
  %v4564 = vpop.permute.xlu0 %4563
  %v4565 = vmul.f32 %v4558, %v1338
  %v4566 = vmul.f32 %v4560, %v1338
  %v4567 = vmul.f32 %v4562, %v1338
  %v4568 = vmul.f32 %v4564, %v1338
  %4569 = vrot.lane.b32.xlu0 %v4541, 1
  %v4570 = vpop.permute.xlu0 %4569
  %4571 = vrot.lane.b32.xlu0 %v4542, 1
  %v4572 = vpop.permute.xlu0 %4571
  %4573 = vrot.lane.b32.xlu0 %v4543, 1
  %v4574 = vpop.permute.xlu0 %4573
  %4575 = vrot.lane.b32.xlu0 %v4544, 1
  %v4576 = vpop.permute.xlu0 %4575
  %v4577 = vmul.f32 %v4570, %v1320
  %v4578 = vmul.f32 %v4572, %v1320
  %v4579 = vmul.f32 %v4574, %v1320
  %v4580 = vmul.f32 %v4576, %v1320
  %4581 = vrot.lane.b32.xlu0 %v4541, 127
  %v4582 = vpop.permute.xlu0 %4581
  %4583 = vrot.lane.b32.xlu0 %v4542, 127
  %v4584 = vpop.permute.xlu0 %4583
  %4585 = vrot.lane.b32.xlu0 %v4543, 127
  %v4586 = vpop.permute.xlu0 %4585
  %4587 = vrot.lane.b32.xlu0 %v4544, 127
  %v4588 = vpop.permute.xlu0 %4587
  %v4589 = vmul.f32 %v4582, %v1338
  %v4590 = vmul.f32 %v4584, %v1338
  %v4591 = vmul.f32 %v4586, %v1338
  %v4592 = vmul.f32 %v4588, %v1338
  %v4593 = vpack.c.bf16 %v4578, %v4577
  %v4594 = vpack.c.bf16 %v4580, %v4579
  %v4595 = vpack.c.bf16 %v4542, %v4541
  %v4596 = vpack.c.bf16 %v4544, %v4543
  %v4597 = vpack.c.bf16 %v4590, %v4589
  %v4598 = vpack.c.bf16 %v4592, %v4591
  %v4599 = vpack.c.bf16 %v4554, %v4553
  %v4600 = vpack.c.bf16 %v4556, %v4555
  %v4601 = vpack.c.bf16 %v4324, %v4323
  %v4602 = vpack.c.bf16 %v4326, %v4325
  %v4603 = vpack.c.bf16 %v4566, %v4565
  %v4604 = vpack.c.bf16 %v4568, %v4567
  %4605 = vmatprep.subr.bf16.mxu0 0
  %4606 = vmatpush1.bf16.msra.mxu0 %v4593
  %4607 = vmatprep.subr.bf16.mxu0 0
  %4608 = vmatpush1.bf16.msra.mxu0 %v4594
  %4609 = vmatprep.subr.bf16.mxu0 0
  %4610 = vmatpush1.bf16.msra.mxu0 %v4595
  %4611 = vmatprep.subr.bf16.mxu0 0
  %4612 = vmatpush1.bf16.msra.mxu0 %v4596
  %4613 = vmatprep.subr.bf16.mxu0 0
  %4614 = vmatpush1.bf16.msra.mxu0 %v4597
  %4615 = vmatprep.subr.bf16.mxu0 0
  %4616 = vmatpush1.bf16.msra.mxu0 %v4598
  %4617 = vmatprep.subr.bf16.mxu0 0
  %4618 = vmatpush1.bf16.msra.mxu0 %v4599
  %4619 = vmatprep.subr.bf16.mxu0 0
  %4620 = vmatpush1.bf16.msra.mxu0 %v4600
  %4621 = vmatprep.subr.bf16.mxu0 0
  %4622 = vmatpush1.bf16.msra.mxu0 %v4601
  %4623 = vmatprep.subr.bf16.mxu0 0
  %4624 = vmatpush1.bf16.msra.mxu0 %v4602
  %4625 = vmatprep.subr.bf16.mxu0 0
  %4626 = vmatpush1.bf16.msra.mxu0 %v4603
  %4627 = vmatprep.subr.bf16.mxu0 0
  %4628 = vmatpush1.bf16.msra.mxu0 %v4604
  %4629 = vmatprep.subr.bf16.mxu0 0
  %4630 = vmatpush1.bf16.msra.mxu0 0
  %4631 = vmatprep.subr.bf16.mxu0 0
  %4632 = vmatpush1.bf16.msra.mxu0 0
  %4633 = vmatprep.subr.bf16.mxu0 0
  %4634 = vmatpush1.bf16.msra.mxu0 0
  %4635 = vmatprep.subr.bf16.mxu0 0
  %4636 = vmatpush1.bf16.msra.mxu0 0
  %4637 = vmatprep.mubr.bf16.mxu0 %v1454
  %4638 = vmatmul.mubr.bf16.gmra.mrb[0].mxu0 %v1428
  %v4639 = vpop.f32.mrb[0].mxu0
  %v4640 = vadd.f32 %v134, %v4639
  %v4641 = vpop.f32.mrb[0].mxu0
  %v4642 = vpop.f32.mrb[0].mxu0
  %v4643 = vadd.f32 %v139, %v4642
  %v4644 = vpop.f32.mrb[0].mxu0
  %4645 = vmatprep.mubr.bf16.mxu0 %v1457
  %4646 = vmatmul.mubr.bf16.gmra.mrb[0].mxu0 %v1430
  %v4647 = vpop.f32.mrb[0].mxu0
  %v4648 = vadd.f32 %v144, %v4647
  %v4649 = vpop.f32.mrb[0].mxu0
  %v4650 = vpop.f32.mrb[0].mxu0
  %v4651 = vadd.f32 %v149, %v4650
  %v4652 = vpop.f32.mrb[0].mxu0
  %4653 = vmatprep.mubr.bf16.mxu0 %v1460
  %4654 = vmatmul.mubr.bf16.gmra.mrb[0].mxu0 %v1432
  %v4655 = vpop.f32.mrb[0].mxu0
  %v4656 = vadd.f32 %v154, %v4655
  %v4657 = vpop.f32.mrb[0].mxu0
  %v4658 = vpop.f32.mrb[0].mxu0
  %v4659 = vadd.f32 %v159, %v4658
  %v4660 = vpop.f32.mrb[0].mxu0
  %4661 = vmatprep.mubr.bf16.mxu0 %v1463
  %4662 = vmatmul.mubr.bf16.gmra.mrb[0].mxu0 %v1434
  %v4663 = vpop.f32.mrb[0].mxu0
  %v4664 = vadd.f32 %v164, %v4663
  %v4665 = vpop.f32.mrb[0].mxu0
  %v4666 = vpop.f32.mrb[0].mxu0
  %v4667 = vadd.f32 %v169, %v4666
  %v4668 = vpop.f32.mrb[0].mxu0
  %4669 = vmatprep.mubr.bf16.mxu0 %v1466
  %4670 = vmatmul.mubr.bf16.gmra.mrb[0].mxu0 %v1436
  %v4671 = vpop.f32.mrb[0].mxu0
  %v4672 = vadd.f32 %v174, %v4671
  %v4673 = vpop.f32.mrb[0].mxu0
  %v4674 = vpop.f32.mrb[0].mxu0
  %v4675 = vadd.f32 %v179, %v4674
  %v4676 = vpop.f32.mrb[0].mxu0
  %4677 = vmatprep.mubr.bf16.mxu0 %v1469
  %4678 = vmatmul.mubr.bf16.gmra.mrb[0].mxu0 %v1438
  %v4679 = vpop.f32.mrb[0].mxu0
  %v4680 = vadd.f32 %v184, %v4679
  %v4681 = vpop.f32.mrb[0].mxu0
  %v4682 = vpop.f32.mrb[0].mxu0
  %v4683 = vadd.f32 %v189, %v4682
  %v4684 = vpop.f32.mrb[0].mxu0
  %4685 = vmatprep.mubr.bf16.mxu0 %v1472
  %4686 = vmatmul.mubr.bf16.gmra.mrb[0].mxu0 %v1440
  %v4687 = vpop.f32.mrb[0].mxu0
  %v4688 = vadd.f32 %v194, %v4687
  %v4689 = vpop.f32.mrb[0].mxu0
  %v4690 = vpop.f32.mrb[0].mxu0
  %v4691 = vadd.f32 %v199, %v4690
  %v4692 = vpop.f32.mrb[0].mxu0
  %4693 = vmatprep.mubr.bf16.mxu0 %v1475
  %4694 = vmatmul.mubr.bf16.gmra.mrb[0].mxu0 %v1442
  %v4695 = vpop.f32.mrb[0].mxu0
  %v4696 = vadd.f32 %v204, %v4695
  %v4697 = vpop.f32.mrb[0].mxu0
  %v4698 = vpop.f32.mrb[0].mxu0
  %v4699 = vadd.f32 %v209, %v4698
  %v4700 = vpop.f32.mrb[0].mxu0
  %4701 = vdwg.mxu0
  %v4702 = vmul.f32 %v4640, 0.5
  %v4703 = vmul.f32 %v4643, 0.5
  %v4704 = vmul.f32 %v4648, 0.5
  %v4705 = vmul.f32 %v4651, 0.5
  %v4706 = vmul.f32 %v4656, 0.5
  %v4707 = vmul.f32 %v4659, 0.5
  %v4708 = vmul.f32 %v4664, 0.5
  %v4709 = vmul.f32 %v4667, 0.5
  %v4710 = vmul.f32 %v4672, 0.5
  %v4711 = vmul.f32 %v4675, 0.5
  %v4712 = vmul.f32 %v4680, 0.5
  %v4713 = vmul.f32 %v4683, 0.5
  %v4714 = vtanh.pop %v4702
  %v4715 = vtanh.pop %v4703
  %v4716 = vtanh.pop %v4704
  %v4717 = vtanh.pop %v4705
  %v4718 = vtanh.pop %v4706
  %v4719 = vtanh.pop %v4707
  %v4720 = vtanh.pop %v4708
  %v4721 = vtanh.pop %v4709
  %v4722 = vtanh.pop %v4710
  %v4723 = vtanh.pop %v4711
  %v4724 = vtanh.pop %v4712
  %v4725 = vtanh.pop %v4713
  %v4726 = vadd.f32 %v4714, 1.0
  %v4727 = vadd.f32 %v4715, 1.0
  %v4728 = vadd.f32 %v4716, 1.0
  %v4729 = vadd.f32 %v4717, 1.0
  %v4730 = vadd.f32 %v4718, 1.0
  %v4731 = vadd.f32 %v4719, 1.0
  %v4732 = vadd.f32 %v4720, 1.0
  %v4733 = vadd.f32 %v4721, 1.0
  %v4734 = vadd.f32 %v4722, 1.0
  %v4735 = vadd.f32 %v4723, 1.0
  %v4736 = vadd.f32 %v4724, 1.0
  %v4737 = vadd.f32 %v4725, 1.0
  %v4738 = vmul.f32 %v4726, 0.5
  %v4739 = vmul.f32 %v4727, 0.5
  %v4740 = vmul.f32 %v4728, 0.5
  %v4741 = vmul.f32 %v4729, 0.5
  %v4742 = vmul.f32 %v4730, 0.5
  %v4743 = vmul.f32 %v4731, 0.5
  %v4744 = vmul.f32 %v4732, 0.5
  %v4745 = vmul.f32 %v4733, 0.5
  %v4746 = vmul.f32 %v4734, 0.5
  %v4747 = vmul.f32 %v4735, 0.5
  %v4748 = vmul.f32 %v4736, 0.5
  %v4749 = vmul.f32 %v4737, 0.5
  %v4750 = vtanh.pop %v4688
  %v4751 = vtanh.pop %v4691
  %v4752 = vtanh.pop %v4696
  %v4753 = vtanh.pop %v4699
  %v4754 = vmul.f32 %v4742, %v4315
  %v4755 = vmul.f32 %v4743, %v4316
  %v4756 = vmul.f32 %v4744, %v4317
  %v4757 = vmul.f32 %v4745, %v4318
  %v4758 = vmul.f32 %v4738, %v4750
  %v4759 = vmul.f32 %v4739, %v4751
  %v4760 = vmul.f32 %v4740, %v4752
  %v4761 = vmul.f32 %v4741, %v4753
  %v4762 = vadd.f32 %v4754, %v4758
  %v4763 = vadd.f32 %v4755, %v4759
  %v4764 = vadd.f32 %v4756, %v4760
  %v4765 = vadd.f32 %v4757, %v4761
  %v4766 = vtanh.pop %v4762
  %v4767 = vtanh.pop %v4763
  %v4768 = vtanh.pop %v4764
  %v4769 = vtanh.pop %v4765
  %v4770 = vmul.f32 %v4746, %v4766
  %v4771 = vmul.f32 %v4747, %v4767
  %v4772 = vmul.f32 %v4748, %v4768
  %v4773 = vmul.f32 %v4749, %v4769
  %s4774 = scalar_lea.vmem %s12, 224
  %4775 = vst [vmem:[%s4774] sm:$0xff] %v4770
  %4776 = vst [vmem:[%s4774 + $0x8] sm:$0xff] %v4771
  %4777 = vst [vmem:[%s4774 + $0x10] sm:$0xff] %v4772
  %4778 = vst [vmem:[%s4774 + $0x18] sm:$0xff] %v4773
  %4779 = vst [vmem:[%s13] sm:$0xff] %v4541
  %4780 = vst [vmem:[%s13 + $0x8] sm:$0xff] %v4542
  %4781 = vst [vmem:[%s13 + $0x10] sm:$0xff] %v4543
  %4782 = vst [vmem:[%s13 + $0x18] sm:$0xff] %v4544
  %4783 = vst [vmem:[%s14] sm:$0xff] %v4533
  %4784 = vst [vmem:[%s14 + $0x8] sm:$0xff] %v4534
  %4785 = vst [vmem:[%s14 + $0x10] sm:$0xff] %v4535
  %4786 = vst [vmem:[%s14 + $0x18] sm:$0xff] %v4536
  %4787 = vst [vmem:[%s15] sm:$0xff] %v4770
  %4788 = vst [vmem:[%s15 + $0x8] sm:$0xff] %v4771
  %4789 = vst [vmem:[%s15 + $0x10] sm:$0xff] %v4772
  %4790 = vst [vmem:[%s15 + $0x18] sm:$0xff] %v4773
  %4791 = vst [vmem:[%s16] sm:$0xff] %v4762
  %4792 = vst [vmem:[%s16 + $0x8] sm:$0xff] %v4763
  %4793 = vst [vmem:[%s16 + $0x10] sm:$0xff] %v4764
  %4794 = vst [vmem:[%s16 + $0x18] sm:$0xff] %v4765
  // Predicated region
  $region50: #{multi_conv_lstm_forward.1} parent=0 // pred_check
    _
  $region51: #{multi_conv_lstm_forward.1} parent=0 // pred_check_branch
    %4796 = sbr.rel (0) target = $region53
  $region52: #{multi_conv_lstm_forward.1} parent=0 // pred_region
    _
  $region53: #{multi_conv_lstm_forward.1} parent=0 // pred_fallthru
    _
  // Predicated region
  $region54: #{multi_conv_lstm_forward.1} parent=0 // pred_check
    _
  $region55: #{multi_conv_lstm_forward.1} parent=0 // pred_check_branch
    %4798 = sbr.rel (0) target = $region57
  $region56: #{multi_conv_lstm_forward.1} parent=0 // pred_region
    _
  $region57: #{multi_conv_lstm_forward.1} parent=0 // pred_fallthru
    _
  // Predicated region
  $region58: #{multi_conv_lstm_forward.1} parent=0 // pred_check
    _
  $region59: #{multi_conv_lstm_forward.1} parent=0 // pred_check_branch
    %4800 = sbr.rel (0) target = $region61
  $region60: #{multi_conv_lstm_forward.1} parent=0 // pred_region
    _
  $region61: #{multi_conv_lstm_forward.1} parent=0 // pred_fallthru
    _
  // Predicated region
  $region62: #{multi_conv_lstm_forward.1} parent=0 // pred_check
    _
  $region63: #{multi_conv_lstm_forward.1} parent=0 // pred_check_branch
    %4802 = sbr.rel (0) target = $region65
  $region64: #{multi_conv_lstm_forward.1} parent=0 // pred_region
    _
  $region65: #{multi_conv_lstm_forward.1} parent=0 // pred_fallthru
    _
  // Predicated region
  $region66: #{multi_conv_lstm_forward.1} parent=0 // pred_check
    _
  $region67: #{multi_conv_lstm_forward.1} parent=0 // pred_check_branch
    %4804 = sbr.rel (0) target = $region69
  $region68: #{multi_conv_lstm_forward.1} parent=0 // pred_region
    _
  $region69: #{multi_conv_lstm_forward.1} parent=0 // pred_fallthru
    _
  // Predicated region
  $region70: #{multi_conv_lstm_forward.1} parent=0 // pred_check
    _
  $region71: #{multi_conv_lstm_forward.1} parent=0 // pred_check_branch
    %4806 = sbr.rel (0) target = $region73
  $region72: #{multi_conv_lstm_forward.1} parent=0 // pred_region
    _
  $region73: #{multi_conv_lstm_forward.1} parent=0 // pred_fallthru
    _
  // Predicated region
  $region74: #{multi_conv_lstm_forward.1} parent=0 // pred_check
    _
  $region75: #{multi_conv_lstm_forward.1} parent=0 // pred_check_branch
    %4808 = sbr.rel (0) target = $region77
  $region76: #{multi_conv_lstm_forward.1} parent=0 // pred_region
    _
  $region77: #{multi_conv_lstm_forward.1} parent=0 // pred_fallthru
    _
  // Predicated region
  $region78: #{multi_conv_lstm_forward.1} parent=0 // pred_check
    _
  $region79: #{multi_conv_lstm_forward.1} parent=0 // pred_check_branch
    %4810 = sbr.rel (0) target = $region81
  $region80: #{multi_conv_lstm_forward.1} parent=0 // pred_region
    _
  $region81: #{multi_conv_lstm_forward.1} parent=0 // pred_fallthru
    _
  // Predicated region
  $region82: #{multi_conv_lstm_forward.1} parent=0 // pred_check
    _
  $region83: #{multi_conv_lstm_forward.1} parent=0 // pred_check_branch
    %4812 = sbr.rel (0) target = $region85
  $region84: #{multi_conv_lstm_forward.1} parent=0 // pred_region
    _
  $region85: #{multi_conv_lstm_forward.1} parent=0 // pred_fallthru
    _
  // Predicated region
  $region86: #{multi_conv_lstm_forward.1} parent=0 // pred_check
    _
  $region87: #{multi_conv_lstm_forward.1} parent=0 // pred_check_branch
    %4814 = sbr.rel (0) target = $region89
  $region88: #{multi_conv_lstm_forward.1} parent=0 // pred_region
    _
  $region89: #{multi_conv_lstm_forward.1} parent=0 // pred_fallthru
    _

</llo_original>
